<compile_context>
chip_gen: v7x
topology: tpu7x:2x2x1
jax: 0.10.0
libtpu: 0.0.40
codegen_flags: <defaults>
</compile_context>

<pallas_src>
import functools
import math

import jax
import jax.numpy as jnp
from jax import lax
from jax.experimental import pallas as pl
from jax.experimental.pallas import tpu as pltpu


# ------------------------------------------------------------------ helpers

_GELU_C = 0.7978845608028654  # sqrt(2/pi)


def _gelu(x):
    # tanh-approximate GELU (EUP tanh instead of a VALU-heavy erf polynomial).
    # TODO(synk): torch.nn.functional.gelu defaults to the exact erf form; the
    # tanh approximation differs by <~1e-3 absolute.
    return 0.5 * x * (1.0 + jnp.tanh(_GELU_C * (x + 0.044715 * x * x * x)))


def _layernorm(x, g, b, eps):
    mu = jnp.mean(x, axis=-1, keepdims=True)
    xc = x - mu
    var = jnp.mean(xc * xc, axis=-1, keepdims=True)
    return xc * lax.rsqrt(var + eps) * g + b


def _mm(a, b, mm_dtype):
    # Single choke point for MXU matmuls: set mm_dtype=jnp.bfloat16 on v6e/v7x
    # (and store weights as bf16 in HBM) for native-MXU throughput; f32
    # accumulation is kept via preferred_element_type.
    return jnp.dot(a.astype(mm_dtype), b.astype(mm_dtype),
                   preferred_element_type=jnp.float32)


def _mha_full(qp, kv, wo, bo, nhead, mm_dtype):
    """Multi-head attention with already-projected Q and fused K/V.

    qp: (TQ, C) f32; kv: (N, 2C) with K = kv[:, :C], V = kv[:, C:].
    K/V are fully VMEM-resident, so this is a plain softmax (no flash
    chunk-rescaling work).  Per-head contexts are packed into one (TQ, C)
    slab so the output projection is a single full-depth (TQ,C)@(C,C) matmul.
    """
    tq, c = qp.shape
    hd = c // nhead
    scale = 1.0 / math.sqrt(hd)
    kp = kv[:, :c]
    vp = kv[:, c:]
    ctxs = []
    for h in range(nhead):                              # static, small head count
        qh = (qp[:, h * hd:(h + 1) * hd] * scale).astype(mm_dtype)
        kh = kp[:, h * hd:(h + 1) * hd].astype(mm_dtype)
        vh = vp[:, h * hd:(h + 1) * hd].astype(mm_dtype)
        s = lax.dot_general(qh, kh, (((1,), (1,)), ((), ())),
                            preferred_element_type=jnp.float32)     # (TQ, N)
        m = jnp.max(s, axis=-1, keepdims=True)
        p = jnp.exp(s - m)
        l = jnp.sum(p, axis=-1, keepdims=True)
        ctx = jnp.dot(p.astype(mm_dtype), vh,
                      preferred_element_type=jnp.float32)           # (TQ, hd)
        ctxs.append(ctx * pl.reciprocal(l, approx=True))            # EUP recip
    ctx_all = jnp.concatenate(ctxs, axis=-1)                        # (TQ, C)
    return _mm(ctx_all, wo, mm_dtype) + bo                          # ONE out-proj


# ------------------------------------------------------------------ kernel

def _decoder_layer_kernel(
        tgt_ref, mem_ref, pos_ref,
        sa_wq_ref, sa_bq_ref, sa_wkv_ref, sa_bkv_ref, sa_wo_ref, sa_bo_ref,
        n1_g_ref, n1_b_ref,
        off_w_ref, off_b_ref,
        ca_wq_ref, ca_bq_ref, ca_wkv_ref, ca_bkv_ref, ca_wo_ref, ca_bo_ref,
        n2_g_ref, n2_b_ref,
        ffn_w1_ref, ffn_b1_ref, ffn_w2_ref, ffn_b2_ref,
        n3_g_ref, n3_b_ref,
        fin_g_ref, fin_b_ref,
        tgt_out_ref, pos_out_ref,
        sa_kv_scr, ca_kv_scr,
        *, nhead, tq, eps, mm_dtype, apply_final_ln):
    """One full TransformerDecoderLayer (deformable/'input' config) on a
    (TQ, C) query tile of one batch element; everything stays in VMEM."""
    qi = pl.program_id(1)

    # ---- hoisted full-sequence K/V projections: once per batch element ------
    # Computed at qi == 0 into persistent VMEM scratch; every later query tile
    # of the same batch element reuses them (qi axis is "arbitrary" so the
    # tiles of a batch run sequentially on one core).
    @pl.when(qi == 0)
    def _():
        tgt_full = tgt_ref[0].astype(jnp.float32)          # (N, C)
        mem_full = mem_ref[0].astype(jnp.float32)          # (N, C)
        sa_kv_scr[...] = (_mm(tgt_full, sa_wkv_ref[...], mm_dtype)
                          + sa_bkv_ref[...]).astype(sa_kv_scr.dtype)
        ca_kv_scr[...] = (_mm(mem_full, ca_wkv_ref[...], mm_dtype)
                          + ca_bkv_ref[...]).astype(ca_kv_scr.dtype)

    # Query tile sliced straight from the VMEM-resident sequence (no second
    # DMA stream for tgt).
    start = pl.multiple_of(qi * tq, tq)
    tgt_q = tgt_ref.at[0][pl.ds(start, tq), :].astype(jnp.float32)   # (TQ, C)

    # ---- self-attention: q = k = v-source = tgt (query_pos is all-zeros) ----
    qp = _mm(tgt_q, sa_wq_ref[...], mm_dtype) + sa_bq_ref[...]
    sa_out = _mha_full(qp, sa_kv_scr[...], sa_wo_ref[...], sa_bo_ref[...],
                       nhead, mm_dtype)
    x = _layernorm(tgt_q + sa_out, n1_g_ref[...], n1_b_ref[...], eps)  # (TQ, C)

    # ---- deformable offset: tgt_position += linear_offset(post-norm1 tgt) ---
    off = _mm(x, off_w_ref[...], mm_dtype) + off_b_ref[...]
    pos_out_ref[0] = (pos_ref[0].astype(jnp.float32) + off).astype(pos_out_ref.dtype)

    # ---- cross-attention with memory (pos embed is None) --------------------
    qp2 = _mm(x, ca_wq_ref[...], mm_dtype) + ca_bq_ref[...]
    ca_out = _mha_full(qp2, ca_kv_scr[...], ca_wo_ref[...], ca_bo_ref[...],
                       nhead, mm_dtype)
    x = _layernorm(x + ca_out, n2_g_ref[...], n2_b_ref[...], eps)

    # ---- feed-forward (tanh GELU) --------------------------------------------
    h = _gelu(_mm(x, ffn_w1_ref[...], mm_dtype) + ffn_b1_ref[...])
    y = _mm(h, ffn_w2_ref[...], mm_dtype) + ffn_b2_ref[...]
    x = _layernorm(x + y, n3_g_ref[...], n3_b_ref[...], eps)

    # ---- final decoder LayerNorm fused into the last layer ------------------
    if apply_final_ln:
        x = _layernorm(x, fin_g_ref[...], fin_b_ref[...], eps)
    tgt_out_ref[0] = x.astype(tgt_out_ref.dtype)


# ------------------------------------------------------------------ wrappers

def _pick_tile(n, pref=128):
    """Largest multiple-of-8 query tile <= pref that divides n.

    Falls back to the full sequence (tiling disabled) when no such divisor
    exists -- beware VMEM for large, awkward N in that case."""
    if n <= pref:
        return n
    for t in range(pref - pref % 8, 7, -8):
        if n % t == 0:
            return t
    return n


def decoder_layer(tgt, memory, pos, lp, final_g, final_b, *, nhead, tq,
                  eps=1e-5, mm_dtype=jnp.float32, apply_final_ln=False):
    B, N, C = tgt.shape
    P = pos.shape[-1]
    F = lp['ffn_w1'].shape[1]
    ntiles = N // tq

    full_seq = pl.BlockSpec((1, N, C), lambda b, qi: (b, 0, 0))
    tile_q = pl.BlockSpec((1, tq, C), lambda b, qi: (b, qi, 0))
    tile_p = pl.BlockSpec((1, tq, P), lambda b, qi: (b, qi, 0))

    def wspec(shape):
        return pl.BlockSpec(shape, lambda b, qi: (0,) * len(shape))

    weights = (
        lp['sa_wq'], lp['sa_bq'], lp['sa_wkv'], lp['sa_bkv'],
        lp['sa_wo'], lp['sa_bo'],
        lp['norm1_g'], lp['norm1_b'],
        lp['off_w'], lp['off_b'],
        lp['ca_wq'], lp['ca_bq'], lp['ca_wkv'], lp['ca_bkv'],
        lp['ca_wo'], lp['ca_bo'],
        lp['norm2_g'], lp['norm2_b'],
        lp['ffn_w1'], lp['ffn_b1'], lp['ffn_w2'], lp['ffn_b2'],
        lp['norm3_g'], lp['norm3_b'],
        final_g, final_b,
    )
    in_specs = [full_seq, full_seq, tile_p] + [wspec(w.shape) for w in weights]

    # Advisory cost estimate so XLA schedules the per-layer custom calls sanely.
    wbytes = sum(int(w.size) for w in weights) * 4
    flops = 2 * B * N * (
        C * 4 * C            # self-attn: Q + fused KV + out projections
        + C * 4 * C          # cross-attn: Q + fused KV + out projections
        + 4 * N * C          # scores + contexts for both attentions
        + 2 * C * F          # FFN
        + C * P)             # deformable offset
    transcendentals = B * N * (2 * N * nhead + F)   # exp (2 attns) + tanh GELU
    bytes_accessed = 4 * B * N * (3 * C + 2 * P) + wbytes
    cost = pl.CostEstimate(flops=flops, transcendentals=transcendentals,
                           bytes_accessed=bytes_accessed)

    # Explicit VMEM budget: v5e's 16 MiB default scoped limit is too small for
    # realistic N/C; keep headroom but stay under v7x's 64 MiB physical unless
    # the working set genuinely needs more.
    # TODO(synk): for v7x at large N, add pipeline_mode=pl.Buffered(1) on the
    # constant-index weight / full-sequence specs (or stream K/V from HBM).
    mm_bytes = jnp.dtype(mm_dtype).itemsize
    est = (2 * wbytes                                  # double-buffered weights
           + 2 * 2 * N * C * 4                         # tgt + memory, dbl-buffered
           + 2 * N * 2 * C * mm_bytes                  # projected K/V scratch
           + 2 * 2 * (2 * tq * C + 2 * tq * P) * 4)    # per-tile in/out buffers
    vmem_limit = int(min(max(2 * est, 32 * 1024 * 1024), 128 * 1024 * 1024))

    kernel = functools.partial(
        _decoder_layer_kernel, nhead=nhead, tq=tq, eps=eps,
        mm_dtype=mm_dtype, apply_final_ln=apply_final_ln)

    return pl.pallas_call(
        kernel,
        out_shape=(jax.ShapeDtypeStruct((B, N, C), tgt.dtype),
                   jax.ShapeDtypeStruct((B, N, P), pos.dtype)),
        grid=(B, ntiles),
        in_specs=in_specs,
        out_specs=(tile_q, tile_p),
        scratch_shapes=[pltpu.VMEM((N, 2 * C), mm_dtype),    # self-attn K/V
                        pltpu.VMEM((N, 2 * C), mm_dtype)],   # cross-attn K/V
        compiler_params=pltpu.CompilerParams(
            # qi must stay sequential ("arbitrary"): the hoisted K/V scratch
            # written at qi==0 is reused by later tiles of the same batch.
            # B stays "parallel" so megacore can shard batch elements.
            dimension_semantics=("parallel", "arbitrary"),
            vmem_limit_bytes=vmem_limit),
        cost_estimate=cost,
    )(tgt, memory, pos, *weights)


# ------------------------------------------------------------------ model

def transformer3d_forward(src, src_position, params, nhead, *,
                          block_q=256, mm_dtype=jnp.float32):
    """Matches Transformer3D.forward(src, mask=None, query_embed=None,
    pos_embed=None, src_position=src_position) with the deformable config."""
    B, N, C = src.shape
    P = params['layers'][0]['off_w'].shape[1]
    osz = src_position.shape[-1]

    memory = src                 # seed_feat is None -> memory = src
    tgt = src                    # deformable: tgt = src, query_embed = zeros
    # tgt_position padded to a lane-dense width; padding lanes stay exactly 0.
    pos = jnp.zeros((B, N, P), src_position.dtype).at[..., :osz].set(src_position)

    tq = _pick_tile(N, block_q)
    n_layers = len(params['layers'])
    for li, lp in enumerate(params['layers']):
        tgt, pos = decoder_layer(
            tgt, memory, pos, lp, params['norm_g'], params['norm_b'],
            nhead=nhead, tq=tq, mm_dtype=mm_dtype,
            apply_final_ln=(li == n_layers - 1))   # final LN fused in last layer

    hs = tgt[None]                       # (1, B, N, C)  == hs.transpose(1, 2)
    finpos = pos[..., :osz][None]        # (1, B, N, 3)  == finpos.transpose(1, 2)
    return hs, memory, finpos            # memory == memory.permute(1, 0, 2)


def init_params(key, d_model, dim_ff, num_layers, offset_size=3, pos_pad=128):
    def dense(k, fan_in, fan_out, scale=0.02):
        return (scale * jax.random.normal(k, (fan_in, fan_out))).astype(jnp.float32)

    def zeros(*shape):
        return jnp.zeros(shape, jnp.float32)

    def ones(*shape):
        return jnp.ones(shape, jnp.float32)

    layers = []
    for lk in jax.random.split(key, num_layers):
        ks = jax.random.split(lk, 11)
        sa_wkv = jnp.concatenate(
            [dense(ks[1], d_model, d_model),
             dense(ks[2], d_model, d_model)], axis=1)            # (C, 2C) fused K/V
        ca_wkv = jnp.concatenate(
            [dense(ks[4], d_model, d_model),
             dense(ks[5], d_model, d_model)], axis=1)            # (C, 2C) fused K/V
        # NOTE: the PyTorch __init__ zero-inits linear_offset; small random
        # values fill the first `offset_size` columns so the position path is
        # exercised.  Padding columns stay exactly zero so padded lanes never
        # change.
        off_w = zeros(d_model, pos_pad).at[:, :offset_size].set(
            dense(ks[6], d_model, offset_size))
        layers.append(dict(
            sa_wq=dense(ks[0], d_model, d_model), sa_bq=zeros(1, d_model),
            sa_wkv=sa_wkv, sa_bkv=zeros(1, 2 * d_model),
            sa_wo=dense(ks[3], d_model, d_model), sa_bo=zeros(1, d_model),
            norm1_g=ones(1, d_model), norm1_b=zeros(1, d_model),
            off_w=off_w, off_b=zeros(1, pos_pad),
            ca_wq=dense(ks[7], d_model, d_model), ca_bq=zeros(1, d_model),
            ca_wkv=ca_wkv, ca_bkv=zeros(1, 2 * d_model),
            ca_wo=dense(ks[8], d_model, d_model), ca_bo=zeros(1, d_model),
            norm2_g=ones(1, d_model), norm2_b=zeros(1, d_model),
            ffn_w1=dense(ks[9], d_model, dim_ff), ffn_b1=zeros(1, dim_ff),
            ffn_w2=dense(ks[10], dim_ff, d_model), ffn_b2=zeros(1, d_model),
            norm3_g=ones(1, d_model), norm3_b=zeros(1, d_model),
        ))
    return dict(layers=layers,
                norm_g=ones(1, d_model), norm_b=zeros(1, d_model))


# ------------------------------------------------------------------ reference

def reference_forward(src, src_position, params, nhead):
    """Pure-jnp reference with the same math (tanh GELU, exact softmax)."""
    def mha(q_in, kv_in, wq, bq, wk, bk, wv, bv, wo, bo):
        B, Nq, C = q_in.shape
        Nk = kv_in.shape[1]
        hd = C // nhead
        qp = q_in @ wq + bq
        kp = kv_in @ wk + bk
        vp = kv_in @ wv + bv
        qh = qp.reshape(B, Nq, nhead, hd).transpose(0, 2, 1, 3)
        kh = kp.reshape(B, Nk, nhead, hd).transpose(0, 2, 1, 3)
        vh = vp.reshape(B, Nk, nhead, hd).transpose(0, 2, 1, 3)
        s = jnp.einsum('bhqd,bhkd->bhqk', qh, kh) / math.sqrt(hd)
        p = jax.nn.softmax(s, axis=-1)
        ctx = jnp.einsum('bhqk,bhkd->bhqd', p, vh)
        ctx = ctx.transpose(0, 2, 1, 3).reshape(B, Nq, C)
        return ctx @ wo + bo

    B, N, C = src.shape
    osz = src_position.shape[-1]
    P = params['layers'][0]['off_w'].shape[1]
    memory, tgt = src, src
    pos = jnp.zeros((B, N, P), src_position.dtype).at[..., :osz].set(src_position)
    for lp in params['layers']:
        wkv, bkv = lp['sa_wkv'], lp['sa_bkv']
        t2 = mha(tgt, tgt, lp['sa_wq'], lp['sa_bq'],
                 wkv[:, :C], bkv[:, :C], wkv[:, C:], bkv[:, C:],
                 lp['sa_wo'], lp['sa_bo'])
        tgt = _layernorm(tgt + t2, lp['norm1_g'], lp['norm1_b'], 1e-5)
        pos = pos + tgt @ lp['off_w'] + lp['off_b']
        wkv, bkv = lp['ca_wkv'], lp['ca_bkv']
        t2 = mha(tgt, memory, lp['ca_wq'], lp['ca_bq'],
                 wkv[:, :C], bkv[:, :C], wkv[:, C:], bkv[:, C:],
                 lp['ca_wo'], lp['ca_bo'])
        tgt = _layernorm(tgt + t2, lp['norm2_g'], lp['norm2_b'], 1e-5)
        t2 = _gelu(tgt @ lp['ffn_w1'] + lp['ffn_b1']) @ lp['ffn_w2'] + lp['ffn_b2']
        tgt = _layernorm(tgt + t2, lp['norm3_g'], lp['norm3_b'], 1e-5)
    out = _layernorm(tgt, params['norm_g'], params['norm_b'], 1e-5)
    return out[None], memory, pos[..., :osz][None]


# ------------------------------------------------------------------ main

if __name__ == "__main__":
    B, N, C, NHEAD, FF, LAYERS = 2, 16, 32, 4, 64, 2

    key = jax.random.PRNGKey(0)
    k_src, k_pos, k_par = jax.random.split(key, 3)
    src = jax.random.normal(k_src, (B, N, C), jnp.float32)
    src_position = jax.random.normal(k_pos, (B, N, 3), jnp.float32)
    params = init_params(k_par, d_model=C, dim_ff=FF, num_layers=LAYERS)

    # block_q=8 -> 2 query tiles per batch element, exercising the hoisted
    # per-batch K/V scratch path and the pl.ds query-tile slicing.
    fwd = jax.jit(functools.partial(transformer3d_forward, nhead=NHEAD,
                                    block_q=8))
    hs, memory, finpos = fwd(src, src_position, params)
    jax.block_until_ready((hs, memory, finpos))

    assert hs.shape == (1, B, N, C)
    assert memory.shape == (B, N, C)
    assert finpos.shape == (1, B, N, 3)
    assert bool(jnp.all(jnp.isfinite(hs)))
    assert bool(jnp.all(jnp.isfinite(finpos)))

    # numeric check against a pure-jnp reference (approx reciprocal in the
    # kernel softmax is the only intentional numeric difference)
    hs_r, mem_r, pos_r = reference_forward(src, src_position, params, NHEAD)
    assert float(jnp.max(jnp.abs(memory - mem_r))) == 0.0
    assert float(jnp.max(jnp.abs(hs - hs_r))) < 3e-2
    assert float(jnp.max(jnp.abs(finpos - pos_r))) < 3e-2

    print("KERNEL_OK")
</pallas_src>

<mosaic_0001>
module attributes {stable_mosaic.version = 11 : i64} {
  func.func @_decoder_layer_kernel(%arg0: i32, %arg1: i32, %arg2: memref<1x16x32xf32, #tpu.memory_space<vmem>>, %arg3: memref<1x16x32xf32, #tpu.memory_space<vmem>>, %arg4: memref<1x8x128xf32, #tpu.memory_space<vmem>>, %arg5: memref<32x32xf32, #tpu.memory_space<vmem>>, %arg6: memref<1x32xf32, #tpu.memory_space<vmem>>, %arg7: memref<32x64xf32, #tpu.memory_space<vmem>>, %arg8: memref<1x64xf32, #tpu.memory_space<vmem>>, %arg9: memref<32x32xf32, #tpu.memory_space<vmem>>, %arg10: memref<1x32xf32, #tpu.memory_space<vmem>>, %arg11: memref<1x32xf32, #tpu.memory_space<vmem>>, %arg12: memref<1x32xf32, #tpu.memory_space<vmem>>, %arg13: memref<32x128xf32, #tpu.memory_space<vmem>>, %arg14: memref<1x128xf32, #tpu.memory_space<vmem>>, %arg15: memref<32x32xf32, #tpu.memory_space<vmem>>, %arg16: memref<1x32xf32, #tpu.memory_space<vmem>>, %arg17: memref<32x64xf32, #tpu.memory_space<vmem>>, %arg18: memref<1x64xf32, #tpu.memory_space<vmem>>, %arg19: memref<32x32xf32, #tpu.memory_space<vmem>>, %arg20: memref<1x32xf32, #tpu.memory_space<vmem>>, %arg21: memref<1x32xf32, #tpu.memory_space<vmem>>, %arg22: memref<1x32xf32, #tpu.memory_space<vmem>>, %arg23: memref<32x64xf32, #tpu.memory_space<vmem>>, %arg24: memref<1x64xf32, #tpu.memory_space<vmem>>, %arg25: memref<64x32xf32, #tpu.memory_space<vmem>>, %arg26: memref<1x32xf32, #tpu.memory_space<vmem>>, %arg27: memref<1x32xf32, #tpu.memory_space<vmem>>, %arg28: memref<1x32xf32, #tpu.memory_space<vmem>>, %arg29: memref<1x32xf32, #tpu.memory_space<vmem>>, %arg30: memref<1x32xf32, #tpu.memory_space<vmem>>, %arg31: memref<1x8x32xf32, #tpu.memory_space<vmem>>, %arg32: memref<1x8x128xf32, #tpu.memory_space<vmem>>, %arg33: memref<16x64xf32, #tpu.memory_space<vmem>>, %arg34: memref<16x64xf32, #tpu.memory_space<vmem>>) attributes {dimension_semantics = [#tpu.dimension_semantics<parallel>, #tpu.dimension_semantics<arbitrary>], iteration_bounds = array<i64: 2, 2>, scalar_prefetch = 0 : i64, scratch_operands = 2 : i64, tpu.core_type = #tpu.core_type<tc>, window_params = [{transform_indices = @transform_0, window_bounds = array<i64: 1, 16, 32>}, {transform_indices = @transform_1, window_bounds = array<i64: 1, 16, 32>}, {transform_indices = @transform_2, window_bounds = array<i64: 1, 8, 128>}, {pipeline_mode = #tpu.pipeline_mode<synchronous>, transform_indices = @transform_3, window_bounds = array<i64: 32, 32>}, {pipeline_mode = #tpu.pipeline_mode<synchronous>, transform_indices = @transform_4, window_bounds = array<i64: 1, 32>}, {pipeline_mode = #tpu.pipeline_mode<synchronous>, transform_indices = @transform_5, window_bounds = array<i64: 32, 64>}, {pipeline_mode = #tpu.pipeline_mode<synchronous>, transform_indices = @transform_6, window_bounds = array<i64: 1, 64>}, {pipeline_mode = #tpu.pipeline_mode<synchronous>, transform_indices = @transform_7, window_bounds = array<i64: 32, 32>}, {pipeline_mode = #tpu.pipeline_mode<synchronous>, transform_indices = @transform_8, window_bounds = array<i64: 1, 32>}, {pipeline_mode = #tpu.pipeline_mode<synchronous>, transform_indices = @transform_9, window_bounds = array<i64: 1, 32>}, {pipeline_mode = #tpu.pipeline_mode<synchronous>, transform_indices = @transform_10, window_bounds = array<i64: 1, 32>}, {pipeline_mode = #tpu.pipeline_mode<synchronous>, transform_indices = @transform_11, window_bounds = array<i64: 32, 128>}, {pipeline_mode = #tpu.pipeline_mode<synchronous>, transform_indices = @transform_12, window_bounds = array<i64: 1, 128>}, {pipeline_mode = #tpu.pipeline_mode<synchronous>, transform_indices = @transform_13, window_bounds = array<i64: 32, 32>}, {pipeline_mode = #tpu.pipeline_mode<synchronous>, transform_indices = @transform_14, window_bounds = array<i64: 1, 32>}, {pipeline_mode = #tpu.pipeline_mode<synchronous>, transform_indices = @transform_15, window_bounds = array<i64: 32, 64>}, {pipeline_mode = #tpu.pipeline_mode<synchronous>, transform_indices = @transform_16, window_bounds = array<i64: 1, 64>}, {pipeline_mode = #tpu.pipeline_mode<synchronous>, transform_indices = @transform_17, window_bounds = array<i64: 32, 32>}, {pipeline_mode = #tpu.pipeline_mode<synchronous>, transform_indices = @transform_18, window_bounds = array<i64: 1, 32>}, {pipeline_mode = #tpu.pipeline_mode<synchronous>, transform_indices = @transform_19, window_bounds = array<i64: 1, 32>}, {pipeline_mode = #tpu.pipeline_mode<synchronous>, transform_indices = @transform_20, window_bounds = array<i64: 1, 32>}, {pipeline_mode = #tpu.pipeline_mode<synchronous>, transform_indices = @transform_21, window_bounds = array<i64: 32, 64>}, {pipeline_mode = #tpu.pipeline_mode<synchronous>, transform_indices = @transform_22, window_bounds = array<i64: 1, 64>}, {pipeline_mode = #tpu.pipeline_mode<synchronous>, transform_indices = @transform_23, window_bounds = array<i64: 64, 32>}, {pipeline_mode = #tpu.pipeline_mode<synchronous>, transform_indices = @transform_24, window_bounds = array<i64: 1, 32>}, {pipeline_mode = #tpu.pipeline_mode<synchronous>, transform_indices = @transform_25, window_bounds = array<i64: 1, 32>}, {pipeline_mode = #tpu.pipeline_mode<synchronous>, transform_indices = @transform_26, window_bounds = array<i64: 1, 32>}, {pipeline_mode = #tpu.pipeline_mode<synchronous>, transform_indices = @transform_27, window_bounds = array<i64: 1, 32>}, {pipeline_mode = #tpu.pipeline_mode<synchronous>, transform_indices = @transform_28, window_bounds = array<i64: 1, 32>}, {transform_indices = @transform_29, window_bounds = array<i64: 1, 8, 32>}, {transform_indices = @transform_30, window_bounds = array<i64: 1, 8, 128>}]} {
    %c0_i32 = arith.constant 0 : i32
    %0 = arith.cmpi eq, %arg1, %c0_i32 : i32
    %1 = arith.extui %0 : i1 to i32
    %c0_i32_0 = arith.constant 0 : i32
    %2 = arith.cmpi ne, %1, %c0_i32_0 : i32
    scf.if %2 {
      %c0_122 = arith.constant 0 : index
      %c0_123 = arith.constant 0 : index
      %c0_124 = arith.constant 0 : index
      %279 = vector.load %arg2[%c0_122, %c0_123, %c0_124] : memref<1x16x32xf32, #tpu.memory_space<vmem>>, vector<1x16x32xf32>
      %280 = vector.shape_cast %279 : vector<1x16x32xf32> to vector<16x32xf32>
      %c0_125 = arith.constant 0 : index
      %c0_126 = arith.constant 0 : index
      %c0_127 = arith.constant 0 : index
      %281 = vector.load %arg3[%c0_125, %c0_126, %c0_127] : memref<1x16x32xf32, #tpu.memory_space<vmem>>, vector<1x16x32xf32>
      %282 = vector.shape_cast %281 : vector<1x16x32xf32> to vector<16x32xf32>
      %c0_128 = arith.constant 0 : index
      %c0_129 = arith.constant 0 : index
      %283 = vector.load %arg7[%c0_128, %c0_129] : memref<32x64xf32, #tpu.memory_space<vmem>>, vector<32x64xf32>
      %cst_130 = arith.constant dense<0.000000e+00> : vector<16x64xf32>
      %284 = tpu.matmul %280, %283, %cst_130 {dimension_numbers = #tpu.dot_dimension_numbers<[1], [0], [0], [1], [0, 0, 1, 1], [], []>} : vector<16x32xf32>, vector<32x64xf32>, vector<16x64xf32> -> vector<16x64xf32>
      %c0_131 = arith.constant 0 : index
      %c0_132 = arith.constant 0 : index
      %285 = vector.load %arg8[%c0_131, %c0_132] : memref<1x64xf32, #tpu.memory_space<vmem>>, vector<1x64xf32>
      %286 = vector.broadcast %285 : vector<1x64xf32> to vector<16x64xf32>
      %287 = arith.addf %284, %286 : vector<16x64xf32>
      %c0_133 = arith.constant 0 : index
      %c0_134 = arith.constant 0 : index
      %288 = vector.load %arg33[%c0_133, %c0_134] : memref<16x64xf32, #tpu.memory_space<vmem>>, vector<16x64xf32>
      tpu.vector_store %arg33[%c0_133, %c0_134], %287 {strides = array<i32>} : memref<16x64xf32, #tpu.memory_space<vmem>>, vector<16x64xf32>,
      %c0_135 = arith.constant 0 : index
      %c0_136 = arith.constant 0 : index
      %289 = vector.load %arg17[%c0_135, %c0_136] : memref<32x64xf32, #tpu.memory_space<vmem>>, vector<32x64xf32>
      %cst_137 = arith.constant dense<0.000000e+00> : vector<16x64xf32>
      %290 = tpu.matmul %282, %289, %cst_137 {dimension_numbers = #tpu.dot_dimension_numbers<[1], [0], [0], [1], [0, 0, 1, 1], [], []>} : vector<16x32xf32>, vector<32x64xf32>, vector<16x64xf32> -> vector<16x64xf32>
      %c0_138 = arith.constant 0 : index
      %c0_139 = arith.constant 0 : index
      %291 = vector.load %arg18[%c0_138, %c0_139] : memref<1x64xf32, #tpu.memory_space<vmem>>, vector<1x64xf32>
      %292 = vector.broadcast %291 : vector<1x64xf32> to vector<16x64xf32>
      %293 = arith.addf %290, %292 : vector<16x64xf32>
      %c0_140 = arith.constant 0 : index
      %c0_141 = arith.constant 0 : index
      %294 = vector.load %arg34[%c0_140, %c0_141] : memref<16x64xf32, #tpu.memory_space<vmem>>, vector<16x64xf32>
      tpu.vector_store %arg34[%c0_140, %c0_141], %293 {strides = array<i32>} : memref<16x64xf32, #tpu.memory_space<vmem>>, vector<16x64xf32>,
    } else {
    }
    %c8_i32 = arith.constant 8 : i32
    %3 = arith.muli %arg1, %c8_i32 : i32
    %4 = tpu.assume_multiple %3, 8 : i32
    %c0_i32_1 = arith.constant 0 : i32
    %c0_i32_2 = arith.constant 0 : i32
    %c0_i32_3 = arith.constant 0 : i32
    %5 = tpu.memref_slice %arg2[%c0_i32_1, %c0_i32_2, %c0_i32_3] : memref<1x16x32xf32, #tpu.memory_space<vmem>> -> memref<1x16x32xf32, #tpu.memory_space<vmem>>
    %6 = tpu.memref_squeeze %5 : memref<1x16x32xf32, #tpu.memory_space<vmem>> -> memref<16x32xf32, #tpu.memory_space<vmem>>
    %7 = arith.index_cast %4 : i32 to index
    %c0 = arith.constant 0 : index
    %8 = vector.load %6[%7, %c0] : memref<16x32xf32, #tpu.memory_space<vmem>>, vector<8x32xf32>
    %c0_4 = arith.constant 0 : index
    %c0_5 = arith.constant 0 : index
    %9 = vector.load %arg5[%c0_4, %c0_5] : memref<32x32xf32, #tpu.memory_space<vmem>>, vector<32x32xf32>
    %cst = arith.constant dense<0.000000e+00> : vector<8x32xf32>
    %10 = tpu.matmul %8, %9, %cst {dimension_numbers = #tpu.dot_dimension_numbers<[1], [0], [0], [1], [0, 0, 1, 1], [], []>} : vector<8x32xf32>, vector<32x32xf32>, vector<8x32xf32> -> vector<8x32xf32>
    %c0_6 = arith.constant 0 : index
    %c0_7 = arith.constant 0 : index
    %11 = vector.load %arg6[%c0_6, %c0_7] : memref<1x32xf32, #tpu.memory_space<vmem>>, vector<1x32xf32>
    %12 = vector.broadcast %11 : vector<1x32xf32> to vector<8x32xf32>
    %13 = arith.addf %10, %12 : vector<8x32xf32>
    %c0_8 = arith.constant 0 : index
    %c0_9 = arith.constant 0 : index
    %14 = vector.load %arg33[%c0_8, %c0_9] : memref<16x64xf32, #tpu.memory_space<vmem>>, vector<16x64xf32>
    %c0_10 = arith.constant 0 : index
    %c0_11 = arith.constant 0 : index
    %15 = vector.load %arg9[%c0_10, %c0_11] : memref<32x32xf32, #tpu.memory_space<vmem>>, vector<32x32xf32>
    %c0_12 = arith.constant 0 : index
    %c0_13 = arith.constant 0 : index
    %16 = vector.load %arg10[%c0_12, %c0_13] : memref<1x32xf32, #tpu.memory_space<vmem>>, vector<1x32xf32>
    %17 = vector.extract_strided_slice %14 {offsets = [0, 0], sizes = [16, 32], strides = [1, 1]} : vector<16x64xf32> to vector<16x32xf32>
    %18 = vector.extract_strided_slice %14 {offsets = [0, 32], sizes = [16, 32], strides = [1, 1]} : vector<16x64xf32> to vector<16x32xf32>
    %19 = vector.extract_strided_slice %13 {offsets = [0, 0], sizes = [8, 8], strides = [1, 1]} : vector<8x32xf32> to vector<8x8xf32>
    %cst_14 = arith.constant 0.353553385 : f32
    %20 = vector.broadcast %cst_14 : f32 to vector<8x8xf32>
    %21 = arith.mulf %19, %20 : vector<8x8xf32>
    %22 = vector.extract_strided_slice %17 {offsets = [0, 0], sizes = [16, 8], strides = [1, 1]} : vector<16x32xf32> to vector<16x8xf32>
    %23 = vector.extract_strided_slice %18 {offsets = [0, 0], sizes = [16, 8], strides = [1, 1]} : vector<16x32xf32> to vector<16x8xf32>
    %cst_15 = arith.constant dense<0.000000e+00> : vector<8x16xf32>
    %24 = tpu.matmul %21, %22, %cst_15 {dimension_numbers = #tpu.dot_dimension_numbers<[1], [1], [0], [0], [0, 0, 1, 0], [], []>} : vector<8x8xf32>, vector<16x8xf32>, vector<8x16xf32> -> vector<8x16xf32>
    %cst_16 = arith.constant dense<0xFF800000> : vector<8xf32>
    %25 = vector.multi_reduction <maximumf>, %24, %cst_16 [1] : vector<8x16xf32> to vector<8xf32>
    %26 = vector.shape_cast %25 : vector<8xf32> to vector<8x1xf32>
    %27 = vector.broadcast %26 : vector<8x1xf32> to vector<8x16xf32>
    %28 = arith.subf %24, %27 : vector<8x16xf32>
    %29 = math.exp %28 : vector<8x16xf32>
    %cst_17 = arith.constant dense<0.000000e+00> : vector<8xf32>
    %30 = vector.multi_reduction <add>, %29, %cst_17 [1] : vector<8x16xf32> to vector<8xf32>
    %31 = vector.shape_cast %30 : vector<8xf32> to vector<8x1xf32>
    %cst_18 = arith.constant dense<0.000000e+00> : vector<8x8xf32>
    %32 = tpu.matmul %29, %23, %cst_18 {dimension_numbers = #tpu.dot_dimension_numbers<[1], [0], [0], [1], [0, 0, 1, 1], [], []>} : vector<8x16xf32>, vector<16x8xf32>, vector<8x8xf32> -> vector<8x8xf32>
    %33 = tpu.reciprocal %31 {approx = true} : vector<8x1xf32> -> vector<8x1xf32>
    %34 = vector.broadcast %33 : vector<8x1xf32> to vector<8x8xf32>
    %35 = arith.mulf %32, %34 : vector<8x8xf32>
    %36 = vector.extract_strided_slice %13 {offsets = [0, 8], sizes = [8, 8], strides = [1, 1]} : vector<8x32xf32> to vector<8x8xf32>
    %cst_19 = arith.constant 0.353553385 : f32
    %37 = vector.broadcast %cst_19 : f32 to vector<8x8xf32>
    %38 = arith.mulf %36, %37 : vector<8x8xf32>
    %39 = vector.extract_strided_slice %17 {offsets = [0, 8], sizes = [16, 8], strides = [1, 1]} : vector<16x32xf32> to vector<16x8xf32>
    %40 = vector.extract_strided_slice %18 {offsets = [0, 8], sizes = [16, 8], strides = [1, 1]} : vector<16x32xf32> to vector<16x8xf32>
    %cst_20 = arith.constant dense<0.000000e+00> : vector<8x16xf32>
    %41 = tpu.matmul %38, %39, %cst_20 {dimension_numbers = #tpu.dot_dimension_numbers<[1], [1], [0], [0], [0, 0, 1, 0], [], []>} : vector<8x8xf32>, vector<16x8xf32>, vector<8x16xf32> -> vector<8x16xf32>
    %cst_21 = arith.constant dense<0xFF800000> : vector<8xf32>
    %42 = vector.multi_reduction <maximumf>, %41, %cst_21 [1] : vector<8x16xf32> to vector<8xf32>
    %43 = vector.shape_cast %42 : vector<8xf32> to vector<8x1xf32>
    %44 = vector.broadcast %43 : vector<8x1xf32> to vector<8x16xf32>
    %45 = arith.subf %41, %44 : vector<8x16xf32>
    %46 = math.exp %45 : vector<8x16xf32>
    %cst_22 = arith.constant dense<0.000000e+00> : vector<8xf32>
    %47 = vector.multi_reduction <add>, %46, %cst_22 [1] : vector<8x16xf32> to vector<8xf32>
    %48 = vector.shape_cast %47 : vector<8xf32> to vector<8x1xf32>
    %cst_23 = arith.constant dense<0.000000e+00> : vector<8x8xf32>
    %49 = tpu.matmul %46, %40, %cst_23 {dimension_numbers = #tpu.dot_dimension_numbers<[1], [0], [0], [1], [0, 0, 1, 1], [], []>} : vector<8x16xf32>, vector<16x8xf32>, vector<8x8xf32> -> vector<8x8xf32>
    %50 = tpu.reciprocal %48 {approx = true} : vector<8x1xf32> -> vector<8x1xf32>
    %51 = vector.broadcast %50 : vector<8x1xf32> to vector<8x8xf32>
    %52 = arith.mulf %49, %51 : vector<8x8xf32>
    %53 = vector.extract_strided_slice %13 {offsets = [0, 16], sizes = [8, 8], strides = [1, 1]} : vector<8x32xf32> to vector<8x8xf32>
    %cst_24 = arith.constant 0.353553385 : f32
    %54 = vector.broadcast %cst_24 : f32 to vector<8x8xf32>
    %55 = arith.mulf %53, %54 : vector<8x8xf32>
    %56 = vector.extract_strided_slice %17 {offsets = [0, 16], sizes = [16, 8], strides = [1, 1]} : vector<16x32xf32> to vector<16x8xf32>
    %57 = vector.extract_strided_slice %18 {offsets = [0, 16], sizes = [16, 8], strides = [1, 1]} : vector<16x32xf32> to vector<16x8xf32>
    %cst_25 = arith.constant dense<0.000000e+00> : vector<8x16xf32>
    %58 = tpu.matmul %55, %56, %cst_25 {dimension_numbers = #tpu.dot_dimension_numbers<[1], [1], [0], [0], [0, 0, 1, 0], [], []>} : vector<8x8xf32>, vector<16x8xf32>, vector<8x16xf32> -> vector<8x16xf32>
    %cst_26 = arith.constant dense<0xFF800000> : vector<8xf32>
    %59 = vector.multi_reduction <maximumf>, %58, %cst_26 [1] : vector<8x16xf32> to vector<8xf32>
    %60 = vector.shape_cast %59 : vector<8xf32> to vector<8x1xf32>
    %61 = vector.broadcast %60 : vector<8x1xf32> to vector<8x16xf32>
    %62 = arith.subf %58, %61 : vector<8x16xf32>
    %63 = math.exp %62 : vector<8x16xf32>
    %cst_27 = arith.constant dense<0.000000e+00> : vector<8xf32>
    %64 = vector.multi_reduction <add>, %63, %cst_27 [1] : vector<8x16xf32> to vector<8xf32>
    %65 = vector.shape_cast %64 : vector<8xf32> to vector<8x1xf32>
    %cst_28 = arith.constant dense<0.000000e+00> : vector<8x8xf32>
    %66 = tpu.matmul %63, %57, %cst_28 {dimension_numbers = #tpu.dot_dimension_numbers<[1], [0], [0], [1], [0, 0, 1, 1], [], []>} : vector<8x16xf32>, vector<16x8xf32>, vector<8x8xf32> -> vector<8x8xf32>
    %67 = tpu.reciprocal %65 {approx = true} : vector<8x1xf32> -> vector<8x1xf32>
    %68 = vector.broadcast %67 : vector<8x1xf32> to vector<8x8xf32>
    %69 = arith.mulf %66, %68 : vector<8x8xf32>
    %70 = vector.extract_strided_slice %13 {offsets = [0, 24], sizes = [8, 8], strides = [1, 1]} : vector<8x32xf32> to vector<8x8xf32>
    %cst_29 = arith.constant 0.353553385 : f32
    %71 = vector.broadcast %cst_29 : f32 to vector<8x8xf32>
    %72 = arith.mulf %70, %71 : vector<8x8xf32>
    %73 = vector.extract_strided_slice %17 {offsets = [0, 24], sizes = [16, 8], strides = [1, 1]} : vector<16x32xf32> to vector<16x8xf32>
    %74 = vector.extract_strided_slice %18 {offsets = [0, 24], sizes = [16, 8], strides = [1, 1]} : vector<16x32xf32> to vector<16x8xf32>
    %cst_30 = arith.constant dense<0.000000e+00> : vector<8x16xf32>
    %75 = tpu.matmul %72, %73, %cst_30 {dimension_numbers = #tpu.dot_dimension_numbers<[1], [1], [0], [0], [0, 0, 1, 0], [], []>} : vector<8x8xf32>, vector<16x8xf32>, vector<8x16xf32> -> vector<8x16xf32>
    %cst_31 = arith.constant dense<0xFF800000> : vector<8xf32>
    %76 = vector.multi_reduction <maximumf>, %75, %cst_31 [1] : vector<8x16xf32> to vector<8xf32>
    %77 = vector.shape_cast %76 : vector<8xf32> to vector<8x1xf32>
    %78 = vector.broadcast %77 : vector<8x1xf32> to vector<8x16xf32>
    %79 = arith.subf %75, %78 : vector<8x16xf32>
    %80 = math.exp %79 : vector<8x16xf32>
    %cst_32 = arith.constant dense<0.000000e+00> : vector<8xf32>
    %81 = vector.multi_reduction <add>, %80, %cst_32 [1] : vector<8x16xf32> to vector<8xf32>
    %82 = vector.shape_cast %81 : vector<8xf32> to vector<8x1xf32>
    %cst_33 = arith.constant dense<0.000000e+00> : vector<8x8xf32>
    %83 = tpu.matmul %80, %74, %cst_33 {dimension_numbers = #tpu.dot_dimension_numbers<[1], [0], [0], [1], [0, 0, 1, 1], [], []>} : vector<8x16xf32>, vector<16x8xf32>, vector<8x8xf32> -> vector<8x8xf32>
    %84 = tpu.reciprocal %82 {approx = true} : vector<8x1xf32> -> vector<8x1xf32>
    %85 = vector.broadcast %84 : vector<8x1xf32> to vector<8x8xf32>
    %86 = arith.mulf %83, %85 : vector<8x8xf32>
    %87 = tpu.concatenate %35, %52, %69, %86 in 1 : vector<8x8xf32>, vector<8x8xf32>, vector<8x8xf32>, vector<8x8xf32> -> vector<8x32xf32>
    %cst_34 = arith.constant dense<0.000000e+00> : vector<8x32xf32>
    %88 = tpu.matmul %87, %15, %cst_34 {dimension_numbers = #tpu.dot_dimension_numbers<[1], [0], [0], [1], [0, 0, 1, 1], [], []>} : vector<8x32xf32>, vector<32x32xf32>, vector<8x32xf32> -> vector<8x32xf32>
    %89 = vector.broadcast %16 : vector<1x32xf32> to vector<8x32xf32>
    %90 = arith.addf %88, %89 : vector<8x32xf32>
    %91 = arith.addf %8, %90 : vector<8x32xf32>
    %c0_35 = arith.constant 0 : index
    %c0_36 = arith.constant 0 : index
    %92 = vector.load %arg11[%c0_35, %c0_36] : memref<1x32xf32, #tpu.memory_space<vmem>>, vector<1x32xf32>
    %c0_37 = arith.constant 0 : index
    %c0_38 = arith.constant 0 : index
    %93 = vector.load %arg12[%c0_37, %c0_38] : memref<1x32xf32, #tpu.memory_space<vmem>>, vector<1x32xf32>
    %cst_39 = arith.constant dense<0.000000e+00> : vector<8xf32>
    %94 = vector.multi_reduction <add>, %91, %cst_39 [1] : vector<8x32xf32> to vector<8xf32>
    %95 = vector.shape_cast %94 : vector<8xf32> to vector<8x1xf32>
    %cst_40 = arith.constant 3.200000e+01 : f32
    %96 = vector.broadcast %cst_40 : f32 to vector<8x1xf32>
    %97 = arith.divf %95, %96 : vector<8x1xf32>
    %98 = vector.broadcast %97 : vector<8x1xf32> to vector<8x32xf32>
    %99 = arith.subf %91, %98 : vector<8x32xf32>
    %100 = arith.mulf %99, %99 : vector<8x32xf32>
    %cst_41 = arith.constant dense<0.000000e+00> : vector<8xf32>
    %101 = vector.multi_reduction <add>, %100, %cst_41 [1] : vector<8x32xf32> to vector<8xf32>
    %102 = vector.shape_cast %101 : vector<8xf32> to vector<8x1xf32>
    %cst_42 = arith.constant 3.200000e+01 : f32
    %103 = vector.broadcast %cst_42 : f32 to vector<8x1xf32>
    %104 = arith.divf %102, %103 : vector<8x1xf32>
    %cst_43 = arith.constant 9.99999974E-6 : f32
    %105 = vector.broadcast %cst_43 : f32 to vector<8x1xf32>
    %106 = arith.addf %104, %105 : vector<8x1xf32>
    %107 = math.rsqrt %106 : vector<8x1xf32>
    %108 = vector.broadcast %107 : vector<8x1xf32> to vector<8x32xf32>
    %109 = arith.mulf %99, %108 : vector<8x32xf32>
    %110 = vector.broadcast %92 : vector<1x32xf32> to vector<8x32xf32>
    %111 = arith.mulf %109, %110 : vector<8x32xf32>
    %112 = vector.broadcast %93 : vector<1x32xf32> to vector<8x32xf32>
    %113 = arith.addf %111, %112 : vector<8x32xf32>
    %c0_44 = arith.constant 0 : index
    %c0_45 = arith.constant 0 : index
    %114 = vector.load %arg13[%c0_44, %c0_45] : memref<32x128xf32, #tpu.memory_space<vmem>>, vector<32x128xf32>
    %cst_46 = arith.constant dense<0.000000e+00> : vector<8x128xf32>
    %115 = tpu.matmul %113, %114, %cst_46 {dimension_numbers = #tpu.dot_dimension_numbers<[1], [0], [0], [1], [0, 0, 1, 1], [], []>} : vector<8x32xf32>, vector<32x128xf32>, vector<8x128xf32> -> vector<8x128xf32>
    %c0_47 = arith.constant 0 : index
    %c0_48 = arith.constant 0 : index
    %116 = vector.load %arg14[%c0_47, %c0_48] : memref<1x128xf32, #tpu.memory_space<vmem>>, vector<1x128xf32>
    %117 = vector.broadcast %116 : vector<1x128xf32> to vector<8x128xf32>
    %118 = arith.addf %115, %117 : vector<8x128xf32>
    %c0_49 = arith.constant 0 : index
    %c0_50 = arith.constant 0 : index
    %c0_51 = arith.constant 0 : index
    %119 = vector.load %arg4[%c0_49, %c0_50, %c0_51] : memref<1x8x128xf32, #tpu.memory_space<vmem>>, vector<1x8x128xf32>
    %120 = vector.shape_cast %119 : vector<1x8x128xf32> to vector<8x128xf32>
    %121 = arith.addf %120, %118 : vector<8x128xf32>
    %c0_52 = arith.constant 0 : index
    %c0_53 = arith.constant 0 : index
    %c0_54 = arith.constant 0 : index
    %122 = vector.load %arg32[%c0_52, %c0_53, %c0_54] : memref<1x8x128xf32, #tpu.memory_space<vmem>>, vector<1x8x128xf32>
    %123 = vector.shape_cast %122 : vector<1x8x128xf32> to vector<8x128xf32>
    %124 = vector.shape_cast %121 : vector<8x128xf32> to vector<1x8x128xf32>
    tpu.vector_store %arg32[%c0_52, %c0_53, %c0_54], %124 {strides = array<i32>} : memref<1x8x128xf32, #tpu.memory_space<vmem>>, vector<1x8x128xf32>,
    %c0_55 = arith.constant 0 : index
    %c0_56 = arith.constant 0 : index
    %125 = vector.load %arg15[%c0_55, %c0_56] : memref<32x32xf32, #tpu.memory_space<vmem>>, vector<32x32xf32>
    %cst_57 = arith.constant dense<0.000000e+00> : vector<8x32xf32>
    %126 = tpu.matmul %113, %125, %cst_57 {dimension_numbers = #tpu.dot_dimension_numbers<[1], [0], [0], [1], [0, 0, 1, 1], [], []>} : vector<8x32xf32>, vector<32x32xf32>, vector<8x32xf32> -> vector<8x32xf32>
    %c0_58 = arith.constant 0 : index
    %c0_59 = arith.constant 0 : index
    %127 = vector.load %arg16[%c0_58, %c0_59] : memref<1x32xf32, #tpu.memory_space<vmem>>, vector<1x32xf32>
    %128 = vector.broadcast %127 : vector<1x32xf32> to vector<8x32xf32>
    %129 = arith.addf %126, %128 : vector<8x32xf32>
    %c0_60 = arith.constant 0 : index
    %c0_61 = arith.constant 0 : index
    %130 = vector.load %arg34[%c0_60, %c0_61] : memref<16x64xf32, #tpu.memory_space<vmem>>, vector<16x64xf32>
    %c0_62 = arith.constant 0 : index
    %c0_63 = arith.constant 0 : index
    %131 = vector.load %arg19[%c0_62, %c0_63] : memref<32x32xf32, #tpu.memory_space<vmem>>, vector<32x32xf32>
    %c0_64 = arith.constant 0 : index
    %c0_65 = arith.constant 0 : index
    %132 = vector.load %arg20[%c0_64, %c0_65] : memref<1x32xf32, #tpu.memory_space<vmem>>, vector<1x32xf32>
    %133 = vector.extract_strided_slice %130 {offsets = [0, 0], sizes = [16, 32], strides = [1, 1]} : vector<16x64xf32> to vector<16x32xf32>
    %134 = vector.extract_strided_slice %130 {offsets = [0, 32], sizes = [16, 32], strides = [1, 1]} : vector<16x64xf32> to vector<16x32xf32>
    %135 = vector.extract_strided_slice %129 {offsets = [0, 0], sizes = [8, 8], strides = [1, 1]} : vector<8x32xf32> to vector<8x8xf32>
    %cst_66 = arith.constant 0.353553385 : f32
    %136 = vector.broadcast %cst_66 : f32 to vector<8x8xf32>
    %137 = arith.mulf %135, %136 : vector<8x8xf32>
    %138 = vector.extract_strided_slice %133 {offsets = [0, 0], sizes = [16, 8], strides = [1, 1]} : vector<16x32xf32> to vector<16x8xf32>
    %139 = vector.extract_strided_slice %134 {offsets = [0, 0], sizes = [16, 8], strides = [1, 1]} : vector<16x32xf32> to vector<16x8xf32>
    %cst_67 = arith.constant dense<0.000000e+00> : vector<8x16xf32>
    %140 = tpu.matmul %137, %138, %cst_67 {dimension_numbers = #tpu.dot_dimension_numbers<[1], [1], [0], [0], [0, 0, 1, 0], [], []>} : vector<8x8xf32>, vector<16x8xf32>, vector<8x16xf32> -> vector<8x16xf32>
    %cst_68 = arith.constant dense<0xFF800000> : vector<8xf32>
    %141 = vector.multi_reduction <maximumf>, %140, %cst_68 [1] : vector<8x16xf32> to vector<8xf32>
    %142 = vector.shape_cast %141 : vector<8xf32> to vector<8x1xf32>
    %143 = vector.broadcast %142 : vector<8x1xf32> to vector<8x16xf32>
    %144 = arith.subf %140, %143 : vector<8x16xf32>
    %145 = math.exp %144 : vector<8x16xf32>
    %cst_69 = arith.constant dense<0.000000e+00> : vector<8xf32>
    %146 = vector.multi_reduction <add>, %145, %cst_69 [1] : vector<8x16xf32> to vector<8xf32>
    %147 = vector.shape_cast %146 : vector<8xf32> to vector<8x1xf32>
    %cst_70 = arith.constant dense<0.000000e+00> : vector<8x8xf32>
    %148 = tpu.matmul %145, %139, %cst_70 {dimension_numbers = #tpu.dot_dimension_numbers<[1], [0], [0], [1], [0, 0, 1, 1], [], []>} : vector<8x16xf32>, vector<16x8xf32>, vector<8x8xf32> -> vector<8x8xf32>
    %149 = tpu.reciprocal %147 {approx = true} : vector<8x1xf32> -> vector<8x1xf32>
    %150 = vector.broadcast %149 : vector<8x1xf32> to vector<8x8xf32>
    %151 = arith.mulf %148, %150 : vector<8x8xf32>
    %152 = vector.extract_strided_slice %129 {offsets = [0, 8], sizes = [8, 8], strides = [1, 1]} : vector<8x32xf32> to vector<8x8xf32>
    %cst_71 = arith.constant 0.353553385 : f32
    %153 = vector.broadcast %cst_71 : f32 to vector<8x8xf32>
    %154 = arith.mulf %152, %153 : vector<8x8xf32>
    %155 = vector.extract_strided_slice %133 {offsets = [0, 8], sizes = [16, 8], strides = [1, 1]} : vector<16x32xf32> to vector<16x8xf32>
    %156 = vector.extract_strided_slice %134 {offsets = [0, 8], sizes = [16, 8], strides = [1, 1]} : vector<16x32xf32> to vector<16x8xf32>
    %cst_72 = arith.constant dense<0.000000e+00> : vector<8x16xf32>
    %157 = tpu.matmul %154, %155, %cst_72 {dimension_numbers = #tpu.dot_dimension_numbers<[1], [1], [0], [0], [0, 0, 1, 0], [], []>} : vector<8x8xf32>, vector<16x8xf32>, vector<8x16xf32> -> vector<8x16xf32>
    %cst_73 = arith.constant dense<0xFF800000> : vector<8xf32>
    %158 = vector.multi_reduction <maximumf>, %157, %cst_73 [1] : vector<8x16xf32> to vector<8xf32>
    %159 = vector.shape_cast %158 : vector<8xf32> to vector<8x1xf32>
    %160 = vector.broadcast %159 : vector<8x1xf32> to vector<8x16xf32>
    %161 = arith.subf %157, %160 : vector<8x16xf32>
    %162 = math.exp %161 : vector<8x16xf32>
    %cst_74 = arith.constant dense<0.000000e+00> : vector<8xf32>
    %163 = vector.multi_reduction <add>, %162, %cst_74 [1] : vector<8x16xf32> to vector<8xf32>
    %164 = vector.shape_cast %163 : vector<8xf32> to vector<8x1xf32>
    %cst_75 = arith.constant dense<0.000000e+00> : vector<8x8xf32>
    %165 = tpu.matmul %162, %156, %cst_75 {dimension_numbers = #tpu.dot_dimension_numbers<[1], [0], [0], [1], [0, 0, 1, 1], [], []>} : vector<8x16xf32>, vector<16x8xf32>, vector<8x8xf32> -> vector<8x8xf32>
    %166 = tpu.reciprocal %164 {approx = true} : vector<8x1xf32> -> vector<8x1xf32>
    %167 = vector.broadcast %166 : vector<8x1xf32> to vector<8x8xf32>
    %168 = arith.mulf %165, %167 : vector<8x8xf32>
    %169 = vector.extract_strided_slice %129 {offsets = [0, 16], sizes = [8, 8], strides = [1, 1]} : vector<8x32xf32> to vector<8x8xf32>
    %cst_76 = arith.constant 0.353553385 : f32
    %170 = vector.broadcast %cst_76 : f32 to vector<8x8xf32>
    %171 = arith.mulf %169, %170 : vector<8x8xf32>
    %172 = vector.extract_strided_slice %133 {offsets = [0, 16], sizes = [16, 8], strides = [1, 1]} : vector<16x32xf32> to vector<16x8xf32>
    %173 = vector.extract_strided_slice %134 {offsets = [0, 16], sizes = [16, 8], strides = [1, 1]} : vector<16x32xf32> to vector<16x8xf32>
    %cst_77 = arith.constant dense<0.000000e+00> : vector<8x16xf32>
    %174 = tpu.matmul %171, %172, %cst_77 {dimension_numbers = #tpu.dot_dimension_numbers<[1], [1], [0], [0], [0, 0, 1, 0], [], []>} : vector<8x8xf32>, vector<16x8xf32>, vector<8x16xf32> -> vector<8x16xf32>
    %cst_78 = arith.constant dense<0xFF800000> : vector<8xf32>
    %175 = vector.multi_reduction <maximumf>, %174, %cst_78 [1] : vector<8x16xf32> to vector<8xf32>
    %176 = vector.shape_cast %175 : vector<8xf32> to vector<8x1xf32>
    %177 = vector.broadcast %176 : vector<8x1xf32> to vector<8x16xf32>
    %178 = arith.subf %174, %177 : vector<8x16xf32>
    %179 = math.exp %178 : vector<8x16xf32>
    %cst_79 = arith.constant dense<0.000000e+00> : vector<8xf32>
    %180 = vector.multi_reduction <add>, %179, %cst_79 [1] : vector<8x16xf32> to vector<8xf32>
    %181 = vector.shape_cast %180 : vector<8xf32> to vector<8x1xf32>
    %cst_80 = arith.constant dense<0.000000e+00> : vector<8x8xf32>
    %182 = tpu.matmul %179, %173, %cst_80 {dimension_numbers = #tpu.dot_dimension_numbers<[1], [0], [0], [1], [0, 0, 1, 1], [], []>} : vector<8x16xf32>, vector<16x8xf32>, vector<8x8xf32> -> vector<8x8xf32>
    %183 = tpu.reciprocal %181 {approx = true} : vector<8x1xf32> -> vector<8x1xf32>
    %184 = vector.broadcast %183 : vector<8x1xf32> to vector<8x8xf32>
    %185 = arith.mulf %182, %184 : vector<8x8xf32>
    %186 = vector.extract_strided_slice %129 {offsets = [0, 24], sizes = [8, 8], strides = [1, 1]} : vector<8x32xf32> to vector<8x8xf32>
    %cst_81 = arith.constant 0.353553385 : f32
    %187 = vector.broadcast %cst_81 : f32 to vector<8x8xf32>
    %188 = arith.mulf %186, %187 : vector<8x8xf32>
    %189 = vector.extract_strided_slice %133 {offsets = [0, 24], sizes = [16, 8], strides = [1, 1]} : vector<16x32xf32> to vector<16x8xf32>
    %190 = vector.extract_strided_slice %134 {offsets = [0, 24], sizes = [16, 8], strides = [1, 1]} : vector<16x32xf32> to vector<16x8xf32>
    %cst_82 = arith.constant dense<0.000000e+00> : vector<8x16xf32>
    %191 = tpu.matmul %188, %189, %cst_82 {dimension_numbers = #tpu.dot_dimension_numbers<[1], [1], [0], [0], [0, 0, 1, 0], [], []>} : vector<8x8xf32>, vector<16x8xf32>, vector<8x16xf32> -> vector<8x16xf32>
    %cst_83 = arith.constant dense<0xFF800000> : vector<8xf32>
    %192 = vector.multi_reduction <maximumf>, %191, %cst_83 [1] : vector<8x16xf32> to vector<8xf32>
    %193 = vector.shape_cast %192 : vector<8xf32> to vector<8x1xf32>
    %194 = vector.broadcast %193 : vector<8x1xf32> to vector<8x16xf32>
    %195 = arith.subf %191, %194 : vector<8x16xf32>
    %196 = math.exp %195 : vector<8x16xf32>
    %cst_84 = arith.constant dense<0.000000e+00> : vector<8xf32>
    %197 = vector.multi_reduction <add>, %196, %cst_84 [1] : vector<8x16xf32> to vector<8xf32>
    %198 = vector.shape_cast %197 : vector<8xf32> to vector<8x1xf32>
    %cst_85 = arith.constant dense<0.000000e+00> : vector<8x8xf32>
    %199 = tpu.matmul %196, %190, %cst_85 {dimension_numbers = #tpu.dot_dimension_numbers<[1], [0], [0], [1], [0, 0, 1, 1], [], []>} : vector<8x16xf32>, vector<16x8xf32>, vector<8x8xf32> -> vector<8x8xf32>
    %200 = tpu.reciprocal %198 {approx = true} : vector<8x1xf32> -> vector<8x1xf32>
    %201 = vector.broadcast %200 : vector<8x1xf32> to vector<8x8xf32>
    %202 = arith.mulf %199, %201 : vector<8x8xf32>
    %203 = tpu.concatenate %151, %168, %185, %202 in 1 : vector<8x8xf32>, vector<8x8xf32>, vector<8x8xf32>, vector<8x8xf32> -> vector<8x32xf32>
    %cst_86 = arith.constant dense<0.000000e+00> : vector<8x32xf32>
    %204 = tpu.matmul %203, %131, %cst_86 {dimension_numbers = #tpu.dot_dimension_numbers<[1], [0], [0], [1], [0, 0, 1, 1], [], []>} : vector<8x32xf32>, vector<32x32xf32>, vector<8x32xf32> -> vector<8x32xf32>
    %205 = vector.broadcast %132 : vector<1x32xf32> to vector<8x32xf32>
    %206 = arith.addf %204, %205 : vector<8x32xf32>
    %207 = arith.addf %113, %206 : vector<8x32xf32>
    %c0_87 = arith.constant 0 : index
    %c0_88 = arith.constant 0 : index
    %208 = vector.load %arg21[%c0_87, %c0_88] : memref<1x32xf32, #tpu.memory_space<vmem>>, vector<1x32xf32>
    %c0_89 = arith.constant 0 : index
    %c0_90 = arith.constant 0 : index
    %209 = vector.load %arg22[%c0_89, %c0_90] : memref<1x32xf32, #tpu.memory_space<vmem>>, vector<1x32xf32>
    %cst_91 = arith.constant dense<0.000000e+00> : vector<8xf32>
    %210 = vector.multi_reduction <add>, %207, %cst_91 [1] : vector<8x32xf32> to vector<8xf32>
    %211 = vector.shape_cast %210 : vector<8xf32> to vector<8x1xf32>
    %cst_92 = arith.constant 3.200000e+01 : f32
    %212 = vector.broadcast %cst_92 : f32 to vector<8x1xf32>
    %213 = arith.divf %211, %212 : vector<8x1xf32>
    %214 = vector.broadcast %213 : vector<8x1xf32> to vector<8x32xf32>
    %215 = arith.subf %207, %214 : vector<8x32xf32>
    %216 = arith.mulf %215, %215 : vector<8x32xf32>
    %cst_93 = arith.constant dense<0.000000e+00> : vector<8xf32>
    %217 = vector.multi_reduction <add>, %216, %cst_93 [1] : vector<8x32xf32> to vector<8xf32>
    %218 = vector.shape_cast %217 : vector<8xf32> to vector<8x1xf32>
    %cst_94 = arith.constant 3.200000e+01 : f32
    %219 = vector.broadcast %cst_94 : f32 to vector<8x1xf32>
    %220 = arith.divf %218, %219 : vector<8x1xf32>
    %cst_95 = arith.constant 9.99999974E-6 : f32
    %221 = vector.broadcast %cst_95 : f32 to vector<8x1xf32>
    %222 = arith.addf %220, %221 : vector<8x1xf32>
    %223 = math.rsqrt %222 : vector<8x1xf32>
    %224 = vector.broadcast %223 : vector<8x1xf32> to vector<8x32xf32>
    %225 = arith.mulf %215, %224 : vector<8x32xf32>
    %226 = vector.broadcast %208 : vector<1x32xf32> to vector<8x32xf32>
    %227 = arith.mulf %225, %226 : vector<8x32xf32>
    %228 = vector.broadcast %209 : vector<1x32xf32> to vector<8x32xf32>
    %229 = arith.addf %227, %228 : vector<8x32xf32>
    %c0_96 = arith.constant 0 : index
    %c0_97 = arith.constant 0 : index
    %230 = vector.load %arg23[%c0_96, %c0_97] : memref<32x64xf32, #tpu.memory_space<vmem>>, vector<32x64xf32>
    %cst_98 = arith.constant dense<0.000000e+00> : vector<8x64xf32>
    %231 = tpu.matmul %229, %230, %cst_98 {dimension_numbers = #tpu.dot_dimension_numbers<[1], [0], [0], [1], [0, 0, 1, 1], [], []>} : vector<8x32xf32>, vector<32x64xf32>, vector<8x64xf32> -> vector<8x64xf32>
    %c0_99 = arith.constant 0 : index
    %c0_100 = arith.constant 0 : index
    %232 = vector.load %arg24[%c0_99, %c0_100] : memref<1x64xf32, #tpu.memory_space<vmem>>, vector<1x64xf32>
    %233 = vector.broadcast %232 : vector<1x64xf32> to vector<8x64xf32>
    %234 = arith.addf %231, %233 : vector<8x64xf32>
    %cst_101 = arith.constant 5.000000e-01 : f32
    %235 = vector.broadcast %cst_101 : f32 to vector<8x64xf32>
    %236 = arith.mulf %235, %234 : vector<8x64xf32>
    %cst_102 = arith.constant 4.471500e-02 : f32
    %237 = vector.broadcast %cst_102 : f32 to vector<8x64xf32>
    %238 = arith.mulf %237, %234 : vector<8x64xf32>
    %239 = arith.mulf %238, %234 : vector<8x64xf32>
    %240 = arith.mulf %239, %234 : vector<8x64xf32>
    %241 = arith.addf %234, %240 : vector<8x64xf32>
    %cst_103 = arith.constant 0.797884583 : f32
    %242 = vector.broadcast %cst_103 : f32 to vector<8x64xf32>
    %243 = arith.mulf %242, %241 : vector<8x64xf32>
    %244 = math.tanh %243 : vector<8x64xf32>
    %cst_104 = arith.constant 1.000000e+00 : f32
    %245 = vector.broadcast %cst_104 : f32 to vector<8x64xf32>
    %246 = arith.addf %245, %244 : vector<8x64xf32>
    %247 = arith.mulf %236, %246 : vector<8x64xf32>
    %c0_105 = arith.constant 0 : index
    %c0_106 = arith.constant 0 : index
    %248 = vector.load %arg25[%c0_105, %c0_106] : memref<64x32xf32, #tpu.memory_space<vmem>>, vector<64x32xf32>
    %cst_107 = arith.constant dense<0.000000e+00> : vector<8x32xf32>
    %249 = tpu.matmul %247, %248, %cst_107 {dimension_numbers = #tpu.dot_dimension_numbers<[1], [0], [0], [1], [0, 0, 1, 1], [], []>} : vector<8x64xf32>, vector<64x32xf32>, vector<8x32xf32> -> vector<8x32xf32>
    %c0_108 = arith.constant 0 : index
    %c0_109 = arith.constant 0 : index
    %250 = vector.load %arg26[%c0_108, %c0_109] : memref<1x32xf32, #tpu.memory_space<vmem>>, vector<1x32xf32>
    %251 = vector.broadcast %250 : vector<1x32xf32> to vector<8x32xf32>
    %252 = arith.addf %249, %251 : vector<8x32xf32>
    %253 = arith.addf %229, %252 : vector<8x32xf32>
    %c0_110 = arith.constant 0 : index
    %c0_111 = arith.constant 0 : index
    %254 = vector.load %arg27[%c0_110, %c0_111] : memref<1x32xf32, #tpu.memory_space<vmem>>, vector<1x32xf32>
    %c0_112 = arith.constant 0 : index
    %c0_113 = arith.constant 0 : index
    %255 = vector.load %arg28[%c0_112, %c0_113] : memref<1x32xf32, #tpu.memory_space<vmem>>, vector<1x32xf32>
    %cst_114 = arith.constant dense<0.000000e+00> : vector<8xf32>
    %256 = vector.multi_reduction <add>, %253, %cst_114 [1] : vector<8x32xf32> to vector<8xf32>
    %257 = vector.shape_cast %256 : vector<8xf32> to vector<8x1xf32>
    %cst_115 = arith.constant 3.200000e+01 : f32
    %258 = vector.broadcast %cst_115 : f32 to vector<8x1xf32>
    %259 = arith.divf %257, %258 : vector<8x1xf32>
    %260 = vector.broadcast %259 : vector<8x1xf32> to vector<8x32xf32>
    %261 = arith.subf %253, %260 : vector<8x32xf32>
    %262 = arith.mulf %261, %261 : vector<8x32xf32>
    %cst_116 = arith.constant dense<0.000000e+00> : vector<8xf32>
    %263 = vector.multi_reduction <add>, %262, %cst_116 [1] : vector<8x32xf32> to vector<8xf32>
    %264 = vector.shape_cast %263 : vector<8xf32> to vector<8x1xf32>
    %cst_117 = arith.constant 3.200000e+01 : f32
    %265 = vector.broadcast %cst_117 : f32 to vector<8x1xf32>
    %266 = arith.divf %264, %265 : vector<8x1xf32>
    %cst_118 = arith.constant 9.99999974E-6 : f32
    %267 = vector.broadcast %cst_118 : f32 to vector<8x1xf32>
    %268 = arith.addf %266, %267 : vector<8x1xf32>
    %269 = math.rsqrt %268 : vector<8x1xf32>
    %270 = vector.broadcast %269 : vector<8x1xf32> to vector<8x32xf32>
    %271 = arith.mulf %261, %270 : vector<8x32xf32>
    %272 = vector.broadcast %254 : vector<1x32xf32> to vector<8x32xf32>
    %273 = arith.mulf %271, %272 : vector<8x32xf32>
    %274 = vector.broadcast %255 : vector<1x32xf32> to vector<8x32xf32>
    %275 = arith.addf %273, %274 : vector<8x32xf32>
    %c0_119 = arith.constant 0 : index
    %c0_120 = arith.constant 0 : index
    %c0_121 = arith.constant 0 : index
    %276 = vector.load %arg31[%c0_119, %c0_120, %c0_121] : memref<1x8x32xf32, #tpu.memory_space<vmem>>, vector<1x8x32xf32>
    %277 = vector.shape_cast %276 : vector<1x8x32xf32> to vector<8x32xf32>
    %278 = vector.shape_cast %275 : vector<8x32xf32> to vector<1x8x32xf32>
    tpu.vector_store %arg31[%c0_119, %c0_120, %c0_121], %278 {strides = array<i32>} : memref<1x8x32xf32, #tpu.memory_space<vmem>>, vector<1x8x32xf32>,
    return
  }
  func.func @transform_0(%arg0: i32, %arg1: i32) -> (i32, i32, i32) {
    %c0_i32 = arith.constant 0 : i32
    %c0_i32_0 = arith.constant 0 : i32
    %c0_i32_1 = arith.constant 0 : i32
    return %arg0, %c0_i32, %c0_i32_0 : i32, i32, i32
  }
  func.func @transform_1(%arg0: i32, %arg1: i32) -> (i32, i32, i32) {
    %c0_i32 = arith.constant 0 : i32
    %c0_i32_0 = arith.constant 0 : i32
    %c0_i32_1 = arith.constant 0 : i32
    return %arg0, %c0_i32, %c0_i32_0 : i32, i32, i32
  }
  func.func @transform_2(%arg0: i32, %arg1: i32) -> (i32, i32, i32) {
    %c0_i32 = arith.constant 0 : i32
    %c0_i32_0 = arith.constant 0 : i32
    return %arg0, %arg1, %c0_i32 : i32, i32, i32
  }
  func.func @transform_3(%arg0: i32, %arg1: i32) -> (i32, i32) {
    %c0_i32 = arith.constant 0 : i32
    %c0_i32_0 = arith.constant 0 : i32
    %c0_i32_1 = arith.constant 0 : i32
    return %c0_i32, %c0_i32_0 : i32, i32
  }
  func.func @transform_4(%arg0: i32, %arg1: i32) -> (i32, i32) {
    %c0_i32 = arith.constant 0 : i32
    %c0_i32_0 = arith.constant 0 : i32
    %c0_i32_1 = arith.constant 0 : i32
    return %c0_i32, %c0_i32_0 : i32, i32
  }
  func.func @transform_5(%arg0: i32, %arg1: i32) -> (i32, i32) {
    %c0_i32 = arith.constant 0 : i32
    %c0_i32_0 = arith.constant 0 : i32
    %c0_i32_1 = arith.constant 0 : i32
    return %c0_i32, %c0_i32_0 : i32, i32
  }
  func.func @transform_6(%arg0: i32, %arg1: i32) -> (i32, i32) {
    %c0_i32 = arith.constant 0 : i32
    %c0_i32_0 = arith.constant 0 : i32
    %c0_i32_1 = arith.constant 0 : i32
    return %c0_i32, %c0_i32_0 : i32, i32
  }
  func.func @transform_7(%arg0: i32, %arg1: i32) -> (i32, i32) {
    %c0_i32 = arith.constant 0 : i32
    %c0_i32_0 = arith.constant 0 : i32
    %c0_i32_1 = arith.constant 0 : i32
    return %c0_i32, %c0_i32_0 : i32, i32
  }
  func.func @transform_8(%arg0: i32, %arg1: i32) -> (i32, i32) {
    %c0_i32 = arith.constant 0 : i32
    %c0_i32_0 = arith.constant 0 : i32
    %c0_i32_1 = arith.constant 0 : i32
    return %c0_i32, %c0_i32_0 : i32, i32
  }
  func.func @transform_9(%arg0: i32, %arg1: i32) -> (i32, i32) {
    %c0_i32 = arith.constant 0 : i32
    %c0_i32_0 = arith.constant 0 : i32
    %c0_i32_1 = arith.constant 0 : i32
    return %c0_i32, %c0_i32_0 : i32, i32
  }
  func.func @transform_10(%arg0: i32, %arg1: i32) -> (i32, i32) {
    %c0_i32 = arith.constant 0 : i32
    %c0_i32_0 = arith.constant 0 : i32
    %c0_i32_1 = arith.constant 0 : i32
    return %c0_i32, %c0_i32_0 : i32, i32
  }
  func.func @transform_11(%arg0: i32, %arg1: i32) -> (i32, i32) {
    %c0_i32 = arith.constant 0 : i32
    %c0_i32_0 = arith.constant 0 : i32
    %c0_i32_1 = arith.constant 0 : i32
    return %c0_i32, %c0_i32_0 : i32, i32
  }
  func.func @transform_12(%arg0: i32, %arg1: i32) -> (i32, i32) {
    %c0_i32 = arith.constant 0 : i32
    %c0_i32_0 = arith.constant 0 : i32
    %c0_i32_1 = arith.constant 0 : i32
    return %c0_i32, %c0_i32_0 : i32, i32
  }
  func.func @transform_13(%arg0: i32, %arg1: i32) -> (i32, i32) {
    %c0_i32 = arith.constant 0 : i32
    %c0_i32_0 = arith.constant 0 : i32
    %c0_i32_1 = arith.constant 0 : i32
    return %c0_i32, %c0_i32_0 : i32, i32
  }
  func.func @transform_14(%arg0: i32, %arg1: i32) -> (i32, i32) {
    %c0_i32 = arith.constant 0 : i32
    %c0_i32_0 = arith.constant 0 : i32
    %c0_i32_1 = arith.constant 0 : i32
    return %c0_i32, %c0_i32_0 : i32, i32
  }
  func.func @transform_15(%arg0: i32, %arg1: i32) -> (i32, i32) {
    %c0_i32 = arith.constant 0 : i32
    %c0_i32_0 = arith.constant 0 : i32
    %c0_i32_1 = arith.constant 0 : i32
    return %c0_i32, %c0_i32_0 : i32, i32
  }
  func.func @transform_16(%arg0: i32, %arg1: i32) -> (i32, i32) {
    %c0_i32 = arith.constant 0 : i32
    %c0_i32_0 = arith.constant 0 : i32
    %c0_i32_1 = arith.constant 0 : i32
    return %c0_i32, %c0_i32_0 : i32, i32
  }
  func.func @transform_17(%arg0: i32, %arg1: i32) -> (i32, i32) {
    %c0_i32 = arith.constant 0 : i32
    %c0_i32_0 = arith.constant 0 : i32
    %c0_i32_1 = arith.constant 0 : i32
    return %c0_i32, %c0_i32_0 : i32, i32
  }
  func.func @transform_18(%arg0: i32, %arg1: i32) -> (i32, i32) {
    %c0_i32 = arith.constant 0 : i32
    %c0_i32_0 = arith.constant 0 : i32
    %c0_i32_1 = arith.constant 0 : i32
    return %c0_i32, %c0_i32_0 : i32, i32
  }
  func.func @transform_19(%arg0: i32, %arg1: i32) -> (i32, i32) {
    %c0_i32 = arith.constant 0 : i32
    %c0_i32_0 = arith.constant 0 : i32
    %c0_i32_1 = arith.constant 0 : i32
    return %c0_i32, %c0_i32_0 : i32, i32
  }
  func.func @transform_20(%arg0: i32, %arg1: i32) -> (i32, i32) {
    %c0_i32 = arith.constant 0 : i32
    %c0_i32_0 = arith.constant 0 : i32
    %c0_i32_1 = arith.constant 0 : i32
    return %c0_i32, %c0_i32_0 : i32, i32
  }
  func.func @transform_21(%arg0: i32, %arg1: i32) -> (i32, i32) {
    %c0_i32 = arith.constant 0 : i32
    %c0_i32_0 = arith.constant 0 : i32
    %c0_i32_1 = arith.constant 0 : i32
    return %c0_i32, %c0_i32_0 : i32, i32
  }
  func.func @transform_22(%arg0: i32, %arg1: i32) -> (i32, i32) {
    %c0_i32 = arith.constant 0 : i32
    %c0_i32_0 = arith.constant 0 : i32
    %c0_i32_1 = arith.constant 0 : i32
    return %c0_i32, %c0_i32_0 : i32, i32
  }
  func.func @transform_23(%arg0: i32, %arg1: i32) -> (i32, i32) {
    %c0_i32 = arith.constant 0 : i32
    %c0_i32_0 = arith.constant 0 : i32
    %c0_i32_1 = arith.constant 0 : i32
    return %c0_i32, %c0_i32_0 : i32, i32
  }
  func.func @transform_24(%arg0: i32, %arg1: i32) -> (i32, i32) {
    %c0_i32 = arith.constant 0 : i32
    %c0_i32_0 = arith.constant 0 : i32
    %c0_i32_1 = arith.constant 0 : i32
    return %c0_i32, %c0_i32_0 : i32, i32
  }
  func.func @transform_25(%arg0: i32, %arg1: i32) -> (i32, i32) {
    %c0_i32 = arith.constant 0 : i32
    %c0_i32_0 = arith.constant 0 : i32
    %c0_i32_1 = arith.constant 0 : i32
    return %c0_i32, %c0_i32_0 : i32, i32
  }
  func.func @transform_26(%arg0: i32, %arg1: i32) -> (i32, i32) {
    %c0_i32 = arith.constant 0 : i32
    %c0_i32_0 = arith.constant 0 : i32
    %c0_i32_1 = arith.constant 0 : i32
    return %c0_i32, %c0_i32_0 : i32, i32
  }
  func.func @transform_27(%arg0: i32, %arg1: i32) -> (i32, i32) {
    %c0_i32 = arith.constant 0 : i32
    %c0_i32_0 = arith.constant 0 : i32
    %c0_i32_1 = arith.constant 0 : i32
    return %c0_i32, %c0_i32_0 : i32, i32
  }
  func.func @transform_28(%arg0: i32, %arg1: i32) -> (i32, i32) {
    %c0_i32 = arith.constant 0 : i32
    %c0_i32_0 = arith.constant 0 : i32
    %c0_i32_1 = arith.constant 0 : i32
    return %c0_i32, %c0_i32_0 : i32, i32
  }
  func.func @transform_29(%arg0: i32, %arg1: i32) -> (i32, i32, i32) {
    %c0_i32 = arith.constant 0 : i32
    %c0_i32_0 = arith.constant 0 : i32
    return %arg0, %arg1, %c0_i32 : i32, i32, i32
  }
  func.func @transform_30(%arg0: i32, %arg1: i32) -> (i32, i32, i32) {
    %c0_i32 = arith.constant 0 : i32
    %c0_i32_0 = arith.constant 0 : i32
    return %arg0, %arg1, %c0_i32 : i32, i32, i32
  }
}

module attributes {stable_mosaic.version = 11 : i64} {
  func.func @_decoder_layer_kernel(%arg0: i32, %arg1: i32, %arg2: memref<1x16x32xf32, #tpu.memory_space<vmem>>, %arg3: memref<1x16x32xf32, #tpu.memory_space<vmem>>, %arg4: memref<1x8x128xf32, #tpu.memory_space<vmem>>, %arg5: memref<32x32xf32, #tpu.memory_space<vmem>>, %arg6: memref<1x32xf32, #tpu.memory_space<vmem>>, %arg7: memref<32x64xf32, #tpu.memory_space<vmem>>, %arg8: memref<1x64xf32, #tpu.memory_space<vmem>>, %arg9: memref<32x32xf32, #tpu.memory_space<vmem>>, %arg10: memref<1x32xf32, #tpu.memory_space<vmem>>, %arg11: memref<1x32xf32, #tpu.memory_space<vmem>>, %arg12: memref<1x32xf32, #tpu.memory_space<vmem>>, %arg13: memref<32x128xf32, #tpu.memory_space<vmem>>, %arg14: memref<1x128xf32, #tpu.memory_space<vmem>>, %arg15: memref<32x32xf32, #tpu.memory_space<vmem>>, %arg16: memref<1x32xf32, #tpu.memory_space<vmem>>, %arg17: memref<32x64xf32, #tpu.memory_space<vmem>>, %arg18: memref<1x64xf32, #tpu.memory_space<vmem>>, %arg19: memref<32x32xf32, #tpu.memory_space<vmem>>, %arg20: memref<1x32xf32, #tpu.memory_space<vmem>>, %arg21: memref<1x32xf32, #tpu.memory_space<vmem>>, %arg22: memref<1x32xf32, #tpu.memory_space<vmem>>, %arg23: memref<32x64xf32, #tpu.memory_space<vmem>>, %arg24: memref<1x64xf32, #tpu.memory_space<vmem>>, %arg25: memref<64x32xf32, #tpu.memory_space<vmem>>, %arg26: memref<1x32xf32, #tpu.memory_space<vmem>>, %arg27: memref<1x32xf32, #tpu.memory_space<vmem>>, %arg28: memref<1x32xf32, #tpu.memory_space<vmem>>, %arg29: memref<1x32xf32, #tpu.memory_space<vmem>>, %arg30: memref<1x32xf32, #tpu.memory_space<vmem>>, %arg31: memref<1x8x32xf32, #tpu.memory_space<vmem>>, %arg32: memref<1x8x128xf32, #tpu.memory_space<vmem>>, %arg33: memref<16x64xf32, #tpu.memory_space<vmem>>, %arg34: memref<16x64xf32, #tpu.memory_space<vmem>>) attributes {dimension_semantics = [#tpu.dimension_semantics<parallel>, #tpu.dimension_semantics<arbitrary>], iteration_bounds = array<i64: 2, 2>, scalar_prefetch = 0 : i64, scratch_operands = 2 : i64, tpu.core_type = #tpu.core_type<tc>, window_params = [{transform_indices = @transform_0, window_bounds = array<i64: 1, 16, 32>}, {transform_indices = @transform_1, window_bounds = array<i64: 1, 16, 32>}, {transform_indices = @transform_2, window_bounds = array<i64: 1, 8, 128>}, {pipeline_mode = #tpu.pipeline_mode<synchronous>, transform_indices = @transform_3, window_bounds = array<i64: 32, 32>}, {pipeline_mode = #tpu.pipeline_mode<synchronous>, transform_indices = @transform_4, window_bounds = array<i64: 1, 32>}, {pipeline_mode = #tpu.pipeline_mode<synchronous>, transform_indices = @transform_5, window_bounds = array<i64: 32, 64>}, {pipeline_mode = #tpu.pipeline_mode<synchronous>, transform_indices = @transform_6, window_bounds = array<i64: 1, 64>}, {pipeline_mode = #tpu.pipeline_mode<synchronous>, transform_indices = @transform_7, window_bounds = array<i64: 32, 32>}, {pipeline_mode = #tpu.pipeline_mode<synchronous>, transform_indices = @transform_8, window_bounds = array<i64: 1, 32>}, {pipeline_mode = #tpu.pipeline_mode<synchronous>, transform_indices = @transform_9, window_bounds = array<i64: 1, 32>}, {pipeline_mode = #tpu.pipeline_mode<synchronous>, transform_indices = @transform_10, window_bounds = array<i64: 1, 32>}, {pipeline_mode = #tpu.pipeline_mode<synchronous>, transform_indices = @transform_11, window_bounds = array<i64: 32, 128>}, {pipeline_mode = #tpu.pipeline_mode<synchronous>, transform_indices = @transform_12, window_bounds = array<i64: 1, 128>}, {pipeline_mode = #tpu.pipeline_mode<synchronous>, transform_indices = @transform_13, window_bounds = array<i64: 32, 32>}, {pipeline_mode = #tpu.pipeline_mode<synchronous>, transform_indices = @transform_14, window_bounds = array<i64: 1, 32>}, {pipeline_mode = #tpu.pipeline_mode<synchronous>, transform_indices = @transform_15, window_bounds = array<i64: 32, 64>}, {pipeline_mode = #tpu.pipeline_mode<synchronous>, transform_indices = @transform_16, window_bounds = array<i64: 1, 64>}, {pipeline_mode = #tpu.pipeline_mode<synchronous>, transform_indices = @transform_17, window_bounds = array<i64: 32, 32>}, {pipeline_mode = #tpu.pipeline_mode<synchronous>, transform_indices = @transform_18, window_bounds = array<i64: 1, 32>}, {pipeline_mode = #tpu.pipeline_mode<synchronous>, transform_indices = @transform_19, window_bounds = array<i64: 1, 32>}, {pipeline_mode = #tpu.pipeline_mode<synchronous>, transform_indices = @transform_20, window_bounds = array<i64: 1, 32>}, {pipeline_mode = #tpu.pipeline_mode<synchronous>, transform_indices = @transform_21, window_bounds = array<i64: 32, 64>}, {pipeline_mode = #tpu.pipeline_mode<synchronous>, transform_indices = @transform_22, window_bounds = array<i64: 1, 64>}, {pipeline_mode = #tpu.pipeline_mode<synchronous>, transform_indices = @transform_23, window_bounds = array<i64: 64, 32>}, {pipeline_mode = #tpu.pipeline_mode<synchronous>, transform_indices = @transform_24, window_bounds = array<i64: 1, 32>}, {pipeline_mode = #tpu.pipeline_mode<synchronous>, transform_indices = @transform_25, window_bounds = array<i64: 1, 32>}, {pipeline_mode = #tpu.pipeline_mode<synchronous>, transform_indices = @transform_26, window_bounds = array<i64: 1, 32>}, {pipeline_mode = #tpu.pipeline_mode<synchronous>, transform_indices = @transform_27, window_bounds = array<i64: 1, 32>}, {pipeline_mode = #tpu.pipeline_mode<synchronous>, transform_indices = @transform_28, window_bounds = array<i64: 1, 32>}, {transform_indices = @transform_29, window_bounds = array<i64: 1, 8, 32>}, {transform_indices = @transform_30, window_bounds = array<i64: 1, 8, 128>}]} {
    %c0_i32 = arith.constant 0 : i32
    %0 = arith.cmpi eq, %arg1, %c0_i32 : i32
    %1 = arith.extui %0 : i1 to i32
    %c0_i32_0 = arith.constant 0 : i32
    %2 = arith.cmpi ne, %1, %c0_i32_0 : i32
    scf.if %2 {
      %c0_131 = arith.constant 0 : index
      %c0_132 = arith.constant 0 : index
      %c0_133 = arith.constant 0 : index
      %301 = vector.load %arg2[%c0_131, %c0_132, %c0_133] : memref<1x16x32xf32, #tpu.memory_space<vmem>>, vector<1x16x32xf32>
      %302 = vector.shape_cast %301 : vector<1x16x32xf32> to vector<16x32xf32>
      %c0_134 = arith.constant 0 : index
      %c0_135 = arith.constant 0 : index
      %c0_136 = arith.constant 0 : index
      %303 = vector.load %arg3[%c0_134, %c0_135, %c0_136] : memref<1x16x32xf32, #tpu.memory_space<vmem>>, vector<1x16x32xf32>
      %304 = vector.shape_cast %303 : vector<1x16x32xf32> to vector<16x32xf32>
      %c0_137 = arith.constant 0 : index
      %c0_138 = arith.constant 0 : index
      %305 = vector.load %arg7[%c0_137, %c0_138] : memref<32x64xf32, #tpu.memory_space<vmem>>, vector<32x64xf32>
      %cst_139 = arith.constant dense<0.000000e+00> : vector<16x64xf32>
      %306 = tpu.matmul %302, %305, %cst_139 {dimension_numbers = #tpu.dot_dimension_numbers<[1], [0], [0], [1], [0, 0, 1, 1], [], []>} : vector<16x32xf32>, vector<32x64xf32>, vector<16x64xf32> -> vector<16x64xf32>
      %c0_140 = arith.constant 0 : index
      %c0_141 = arith.constant 0 : index
      %307 = vector.load %arg8[%c0_140, %c0_141] : memref<1x64xf32, #tpu.memory_space<vmem>>, vector<1x64xf32>
      %308 = vector.broadcast %307 : vector<1x64xf32> to vector<16x64xf32>
      %309 = arith.addf %306, %308 : vector<16x64xf32>
      %c0_142 = arith.constant 0 : index
      %c0_143 = arith.constant 0 : index
      %310 = vector.load %arg33[%c0_142, %c0_143] : memref<16x64xf32, #tpu.memory_space<vmem>>, vector<16x64xf32>
      tpu.vector_store %arg33[%c0_142, %c0_143], %309 {strides = array<i32>} : memref<16x64xf32, #tpu.memory_space<vmem>>, vector<16x64xf32>,
      %c0_144 = arith.constant 0 : index
      %c0_145 = arith.constant 0 : index
      %311 = vector.load %arg17[%c0_144, %c0_145] : memref<32x64xf32, #tpu.memory_space<vmem>>, vector<32x64xf32>
      %cst_146 = arith.constant dense<0.000000e+00> : vector<16x64xf32>
      %312 = tpu.matmul %304, %311, %cst_146 {dimension_numbers = #tpu.dot_dimension_numbers<[1], [0], [0], [1], [0, 0, 1, 1], [], []>} : vector<16x32xf32>, vector<32x64xf32>, vector<16x64xf32> -> vector<16x64xf32>
      %c0_147 = arith.constant 0 : index
      %c0_148 = arith.constant 0 : index
      %313 = vector.load %arg18[%c0_147, %c0_148] : memref<1x64xf32, #tpu.memory_space<vmem>>, vector<1x64xf32>
      %314 = vector.broadcast %313 : vector<1x64xf32> to vector<16x64xf32>
      %315 = arith.addf %312, %314 : vector<16x64xf32>
      %c0_149 = arith.constant 0 : index
      %c0_150 = arith.constant 0 : index
      %316 = vector.load %arg34[%c0_149, %c0_150] : memref<16x64xf32, #tpu.memory_space<vmem>>, vector<16x64xf32>
      tpu.vector_store %arg34[%c0_149, %c0_150], %315 {strides = array<i32>} : memref<16x64xf32, #tpu.memory_space<vmem>>, vector<16x64xf32>,
    } else {
    }
    %c8_i32 = arith.constant 8 : i32
    %3 = arith.muli %arg1, %c8_i32 : i32
    %4 = tpu.assume_multiple %3, 8 : i32
    %c0_i32_1 = arith.constant 0 : i32
    %c0_i32_2 = arith.constant 0 : i32
    %c0_i32_3 = arith.constant 0 : i32
    %5 = tpu.memref_slice %arg2[%c0_i32_1, %c0_i32_2, %c0_i32_3] : memref<1x16x32xf32, #tpu.memory_space<vmem>> -> memref<1x16x32xf32, #tpu.memory_space<vmem>>
    %6 = tpu.memref_squeeze %5 : memref<1x16x32xf32, #tpu.memory_space<vmem>> -> memref<16x32xf32, #tpu.memory_space<vmem>>
    %7 = arith.index_cast %4 : i32 to index
    %c0 = arith.constant 0 : index
    %8 = vector.load %6[%7, %c0] : memref<16x32xf32, #tpu.memory_space<vmem>>, vector<8x32xf32>
    %c0_4 = arith.constant 0 : index
    %c0_5 = arith.constant 0 : index
    %9 = vector.load %arg5[%c0_4, %c0_5] : memref<32x32xf32, #tpu.memory_space<vmem>>, vector<32x32xf32>
    %cst = arith.constant dense<0.000000e+00> : vector<8x32xf32>
    %10 = tpu.matmul %8, %9, %cst {dimension_numbers = #tpu.dot_dimension_numbers<[1], [0], [0], [1], [0, 0, 1, 1], [], []>} : vector<8x32xf32>, vector<32x32xf32>, vector<8x32xf32> -> vector<8x32xf32>
    %c0_6 = arith.constant 0 : index
    %c0_7 = arith.constant 0 : index
    %11 = vector.load %arg6[%c0_6, %c0_7] : memref<1x32xf32, #tpu.memory_space<vmem>>, vector<1x32xf32>
    %12 = vector.broadcast %11 : vector<1x32xf32> to vector<8x32xf32>
    %13 = arith.addf %10, %12 : vector<8x32xf32>
    %c0_8 = arith.constant 0 : index
    %c0_9 = arith.constant 0 : index
    %14 = vector.load %arg33[%c0_8, %c0_9] : memref<16x64xf32, #tpu.memory_space<vmem>>, vector<16x64xf32>
    %c0_10 = arith.constant 0 : index
    %c0_11 = arith.constant 0 : index
    %15 = vector.load %arg9[%c0_10, %c0_11] : memref<32x32xf32, #tpu.memory_space<vmem>>, vector<32x32xf32>
    %c0_12 = arith.constant 0 : index
    %c0_13 = arith.constant 0 : index
    %16 = vector.load %arg10[%c0_12, %c0_13] : memref<1x32xf32, #tpu.memory_space<vmem>>, vector<1x32xf32>
    %17 = vector.extract_strided_slice %14 {offsets = [0, 0], sizes = [16, 32], strides = [1, 1]} : vector<16x64xf32> to vector<16x32xf32>
    %18 = vector.extract_strided_slice %14 {offsets = [0, 32], sizes = [16, 32], strides = [1, 1]} : vector<16x64xf32> to vector<16x32xf32>
    %19 = vector.extract_strided_slice %13 {offsets = [0, 0], sizes = [8, 8], strides = [1, 1]} : vector<8x32xf32> to vector<8x8xf32>
    %cst_14 = arith.constant 0.353553385 : f32
    %20 = vector.broadcast %cst_14 : f32 to vector<8x8xf32>
    %21 = arith.mulf %19, %20 : vector<8x8xf32>
    %22 = vector.extract_strided_slice %17 {offsets = [0, 0], sizes = [16, 8], strides = [1, 1]} : vector<16x32xf32> to vector<16x8xf32>
    %23 = vector.extract_strided_slice %18 {offsets = [0, 0], sizes = [16, 8], strides = [1, 1]} : vector<16x32xf32> to vector<16x8xf32>
    %cst_15 = arith.constant dense<0.000000e+00> : vector<8x16xf32>
    %24 = tpu.matmul %21, %22, %cst_15 {dimension_numbers = #tpu.dot_dimension_numbers<[1], [1], [0], [0], [0, 0, 1, 0], [], []>} : vector<8x8xf32>, vector<16x8xf32>, vector<8x16xf32> -> vector<8x16xf32>
    %cst_16 = arith.constant dense<0xFF800000> : vector<8xf32>
    %25 = vector.multi_reduction <maximumf>, %24, %cst_16 [1] : vector<8x16xf32> to vector<8xf32>
    %26 = vector.shape_cast %25 : vector<8xf32> to vector<8x1xf32>
    %27 = vector.broadcast %26 : vector<8x1xf32> to vector<8x16xf32>
    %28 = arith.subf %24, %27 : vector<8x16xf32>
    %29 = math.exp %28 : vector<8x16xf32>
    %cst_17 = arith.constant dense<0.000000e+00> : vector<8xf32>
    %30 = vector.multi_reduction <add>, %29, %cst_17 [1] : vector<8x16xf32> to vector<8xf32>
    %31 = vector.shape_cast %30 : vector<8xf32> to vector<8x1xf32>
    %cst_18 = arith.constant dense<0.000000e+00> : vector<8x8xf32>
    %32 = tpu.matmul %29, %23, %cst_18 {dimension_numbers = #tpu.dot_dimension_numbers<[1], [0], [0], [1], [0, 0, 1, 1], [], []>} : vector<8x16xf32>, vector<16x8xf32>, vector<8x8xf32> -> vector<8x8xf32>
    %33 = tpu.reciprocal %31 {approx = true} : vector<8x1xf32> -> vector<8x1xf32>
    %34 = vector.broadcast %33 : vector<8x1xf32> to vector<8x8xf32>
    %35 = arith.mulf %32, %34 : vector<8x8xf32>
    %36 = vector.extract_strided_slice %13 {offsets = [0, 8], sizes = [8, 8], strides = [1, 1]} : vector<8x32xf32> to vector<8x8xf32>
    %cst_19 = arith.constant 0.353553385 : f32
    %37 = vector.broadcast %cst_19 : f32 to vector<8x8xf32>
    %38 = arith.mulf %36, %37 : vector<8x8xf32>
    %39 = vector.extract_strided_slice %17 {offsets = [0, 8], sizes = [16, 8], strides = [1, 1]} : vector<16x32xf32> to vector<16x8xf32>
    %40 = vector.extract_strided_slice %18 {offsets = [0, 8], sizes = [16, 8], strides = [1, 1]} : vector<16x32xf32> to vector<16x8xf32>
    %cst_20 = arith.constant dense<0.000000e+00> : vector<8x16xf32>
    %41 = tpu.matmul %38, %39, %cst_20 {dimension_numbers = #tpu.dot_dimension_numbers<[1], [1], [0], [0], [0, 0, 1, 0], [], []>} : vector<8x8xf32>, vector<16x8xf32>, vector<8x16xf32> -> vector<8x16xf32>
    %cst_21 = arith.constant dense<0xFF800000> : vector<8xf32>
    %42 = vector.multi_reduction <maximumf>, %41, %cst_21 [1] : vector<8x16xf32> to vector<8xf32>
    %43 = vector.shape_cast %42 : vector<8xf32> to vector<8x1xf32>
    %44 = vector.broadcast %43 : vector<8x1xf32> to vector<8x16xf32>
    %45 = arith.subf %41, %44 : vector<8x16xf32>
    %46 = math.exp %45 : vector<8x16xf32>
    %cst_22 = arith.constant dense<0.000000e+00> : vector<8xf32>
    %47 = vector.multi_reduction <add>, %46, %cst_22 [1] : vector<8x16xf32> to vector<8xf32>
    %48 = vector.shape_cast %47 : vector<8xf32> to vector<8x1xf32>
    %cst_23 = arith.constant dense<0.000000e+00> : vector<8x8xf32>
    %49 = tpu.matmul %46, %40, %cst_23 {dimension_numbers = #tpu.dot_dimension_numbers<[1], [0], [0], [1], [0, 0, 1, 1], [], []>} : vector<8x16xf32>, vector<16x8xf32>, vector<8x8xf32> -> vector<8x8xf32>
    %50 = tpu.reciprocal %48 {approx = true} : vector<8x1xf32> -> vector<8x1xf32>
    %51 = vector.broadcast %50 : vector<8x1xf32> to vector<8x8xf32>
    %52 = arith.mulf %49, %51 : vector<8x8xf32>
    %53 = vector.extract_strided_slice %13 {offsets = [0, 16], sizes = [8, 8], strides = [1, 1]} : vector<8x32xf32> to vector<8x8xf32>
    %cst_24 = arith.constant 0.353553385 : f32
    %54 = vector.broadcast %cst_24 : f32 to vector<8x8xf32>
    %55 = arith.mulf %53, %54 : vector<8x8xf32>
    %56 = vector.extract_strided_slice %17 {offsets = [0, 16], sizes = [16, 8], strides = [1, 1]} : vector<16x32xf32> to vector<16x8xf32>
    %57 = vector.extract_strided_slice %18 {offsets = [0, 16], sizes = [16, 8], strides = [1, 1]} : vector<16x32xf32> to vector<16x8xf32>
    %cst_25 = arith.constant dense<0.000000e+00> : vector<8x16xf32>
    %58 = tpu.matmul %55, %56, %cst_25 {dimension_numbers = #tpu.dot_dimension_numbers<[1], [1], [0], [0], [0, 0, 1, 0], [], []>} : vector<8x8xf32>, vector<16x8xf32>, vector<8x16xf32> -> vector<8x16xf32>
    %cst_26 = arith.constant dense<0xFF800000> : vector<8xf32>
    %59 = vector.multi_reduction <maximumf>, %58, %cst_26 [1] : vector<8x16xf32> to vector<8xf32>
    %60 = vector.shape_cast %59 : vector<8xf32> to vector<8x1xf32>
    %61 = vector.broadcast %60 : vector<8x1xf32> to vector<8x16xf32>
    %62 = arith.subf %58, %61 : vector<8x16xf32>
    %63 = math.exp %62 : vector<8x16xf32>
    %cst_27 = arith.constant dense<0.000000e+00> : vector<8xf32>
    %64 = vector.multi_reduction <add>, %63, %cst_27 [1] : vector<8x16xf32> to vector<8xf32>
    %65 = vector.shape_cast %64 : vector<8xf32> to vector<8x1xf32>
    %cst_28 = arith.constant dense<0.000000e+00> : vector<8x8xf32>
    %66 = tpu.matmul %63, %57, %cst_28 {dimension_numbers = #tpu.dot_dimension_numbers<[1], [0], [0], [1], [0, 0, 1, 1], [], []>} : vector<8x16xf32>, vector<16x8xf32>, vector<8x8xf32> -> vector<8x8xf32>
    %67 = tpu.reciprocal %65 {approx = true} : vector<8x1xf32> -> vector<8x1xf32>
    %68 = vector.broadcast %67 : vector<8x1xf32> to vector<8x8xf32>
    %69 = arith.mulf %66, %68 : vector<8x8xf32>
    %70 = vector.extract_strided_slice %13 {offsets = [0, 24], sizes = [8, 8], strides = [1, 1]} : vector<8x32xf32> to vector<8x8xf32>
    %cst_29 = arith.constant 0.353553385 : f32
    %71 = vector.broadcast %cst_29 : f32 to vector<8x8xf32>
    %72 = arith.mulf %70, %71 : vector<8x8xf32>
    %73 = vector.extract_strided_slice %17 {offsets = [0, 24], sizes = [16, 8], strides = [1, 1]} : vector<16x32xf32> to vector<16x8xf32>
    %74 = vector.extract_strided_slice %18 {offsets = [0, 24], sizes = [16, 8], strides = [1, 1]} : vector<16x32xf32> to vector<16x8xf32>
    %cst_30 = arith.constant dense<0.000000e+00> : vector<8x16xf32>
    %75 = tpu.matmul %72, %73, %cst_30 {dimension_numbers = #tpu.dot_dimension_numbers<[1], [1], [0], [0], [0, 0, 1, 0], [], []>} : vector<8x8xf32>, vector<16x8xf32>, vector<8x16xf32> -> vector<8x16xf32>
    %cst_31 = arith.constant dense<0xFF800000> : vector<8xf32>
    %76 = vector.multi_reduction <maximumf>, %75, %cst_31 [1] : vector<8x16xf32> to vector<8xf32>
    %77 = vector.shape_cast %76 : vector<8xf32> to vector<8x1xf32>
    %78 = vector.broadcast %77 : vector<8x1xf32> to vector<8x16xf32>
    %79 = arith.subf %75, %78 : vector<8x16xf32>
    %80 = math.exp %79 : vector<8x16xf32>
    %cst_32 = arith.constant dense<0.000000e+00> : vector<8xf32>
    %81 = vector.multi_reduction <add>, %80, %cst_32 [1] : vector<8x16xf32> to vector<8xf32>
    %82 = vector.shape_cast %81 : vector<8xf32> to vector<8x1xf32>
    %cst_33 = arith.constant dense<0.000000e+00> : vector<8x8xf32>
    %83 = tpu.matmul %80, %74, %cst_33 {dimension_numbers = #tpu.dot_dimension_numbers<[1], [0], [0], [1], [0, 0, 1, 1], [], []>} : vector<8x16xf32>, vector<16x8xf32>, vector<8x8xf32> -> vector<8x8xf32>
    %84 = tpu.reciprocal %82 {approx = true} : vector<8x1xf32> -> vector<8x1xf32>
    %85 = vector.broadcast %84 : vector<8x1xf32> to vector<8x8xf32>
    %86 = arith.mulf %83, %85 : vector<8x8xf32>
    %87 = tpu.concatenate %35, %52, %69, %86 in 1 : vector<8x8xf32>, vector<8x8xf32>, vector<8x8xf32>, vector<8x8xf32> -> vector<8x32xf32>
    %cst_34 = arith.constant dense<0.000000e+00> : vector<8x32xf32>
    %88 = tpu.matmul %87, %15, %cst_34 {dimension_numbers = #tpu.dot_dimension_numbers<[1], [0], [0], [1], [0, 0, 1, 1], [], []>} : vector<8x32xf32>, vector<32x32xf32>, vector<8x32xf32> -> vector<8x32xf32>
    %89 = vector.broadcast %16 : vector<1x32xf32> to vector<8x32xf32>
    %90 = arith.addf %88, %89 : vector<8x32xf32>
    %91 = arith.addf %8, %90 : vector<8x32xf32>
    %c0_35 = arith.constant 0 : index
    %c0_36 = arith.constant 0 : index
    %92 = vector.load %arg11[%c0_35, %c0_36] : memref<1x32xf32, #tpu.memory_space<vmem>>, vector<1x32xf32>
    %c0_37 = arith.constant 0 : index
    %c0_38 = arith.constant 0 : index
    %93 = vector.load %arg12[%c0_37, %c0_38] : memref<1x32xf32, #tpu.memory_space<vmem>>, vector<1x32xf32>
    %cst_39 = arith.constant dense<0.000000e+00> : vector<8xf32>
    %94 = vector.multi_reduction <add>, %91, %cst_39 [1] : vector<8x32xf32> to vector<8xf32>
    %95 = vector.shape_cast %94 : vector<8xf32> to vector<8x1xf32>
    %cst_40 = arith.constant 3.200000e+01 : f32
    %96 = vector.broadcast %cst_40 : f32 to vector<8x1xf32>
    %97 = arith.divf %95, %96 : vector<8x1xf32>
    %98 = vector.broadcast %97 : vector<8x1xf32> to vector<8x32xf32>
    %99 = arith.subf %91, %98 : vector<8x32xf32>
    %100 = arith.mulf %99, %99 : vector<8x32xf32>
    %cst_41 = arith.constant dense<0.000000e+00> : vector<8xf32>
    %101 = vector.multi_reduction <add>, %100, %cst_41 [1] : vector<8x32xf32> to vector<8xf32>
    %102 = vector.shape_cast %101 : vector<8xf32> to vector<8x1xf32>
    %cst_42 = arith.constant 3.200000e+01 : f32
    %103 = vector.broadcast %cst_42 : f32 to vector<8x1xf32>
    %104 = arith.divf %102, %103 : vector<8x1xf32>
    %cst_43 = arith.constant 9.99999974E-6 : f32
    %105 = vector.broadcast %cst_43 : f32 to vector<8x1xf32>
    %106 = arith.addf %104, %105 : vector<8x1xf32>
    %107 = math.rsqrt %106 : vector<8x1xf32>
    %108 = vector.broadcast %107 : vector<8x1xf32> to vector<8x32xf32>
    %109 = arith.mulf %99, %108 : vector<8x32xf32>
    %110 = vector.broadcast %92 : vector<1x32xf32> to vector<8x32xf32>
    %111 = arith.mulf %109, %110 : vector<8x32xf32>
    %112 = vector.broadcast %93 : vector<1x32xf32> to vector<8x32xf32>
    %113 = arith.addf %111, %112 : vector<8x32xf32>
    %c0_44 = arith.constant 0 : index
    %c0_45 = arith.constant 0 : index
    %114 = vector.load %arg13[%c0_44, %c0_45] : memref<32x128xf32, #tpu.memory_space<vmem>>, vector<32x128xf32>
    %cst_46 = arith.constant dense<0.000000e+00> : vector<8x128xf32>
    %115 = tpu.matmul %113, %114, %cst_46 {dimension_numbers = #tpu.dot_dimension_numbers<[1], [0], [0], [1], [0, 0, 1, 1], [], []>} : vector<8x32xf32>, vector<32x128xf32>, vector<8x128xf32> -> vector<8x128xf32>
    %c0_47 = arith.constant 0 : index
    %c0_48 = arith.constant 0 : index
    %116 = vector.load %arg14[%c0_47, %c0_48] : memref<1x128xf32, #tpu.memory_space<vmem>>, vector<1x128xf32>
    %117 = vector.broadcast %116 : vector<1x128xf32> to vector<8x128xf32>
    %118 = arith.addf %115, %117 : vector<8x128xf32>
    %c0_49 = arith.constant 0 : index
    %c0_50 = arith.constant 0 : index
    %c0_51 = arith.constant 0 : index
    %119 = vector.load %arg4[%c0_49, %c0_50, %c0_51] : memref<1x8x128xf32, #tpu.memory_space<vmem>>, vector<1x8x128xf32>
    %120 = vector.shape_cast %119 : vector<1x8x128xf32> to vector<8x128xf32>
    %121 = arith.addf %120, %118 : vector<8x128xf32>
    %c0_52 = arith.constant 0 : index
    %c0_53 = arith.constant 0 : index
    %c0_54 = arith.constant 0 : index
    %122 = vector.load %arg32[%c0_52, %c0_53, %c0_54] : memref<1x8x128xf32, #tpu.memory_space<vmem>>, vector<1x8x128xf32>
    %123 = vector.shape_cast %122 : vector<1x8x128xf32> to vector<8x128xf32>
    %124 = vector.shape_cast %121 : vector<8x128xf32> to vector<1x8x128xf32>
    tpu.vector_store %arg32[%c0_52, %c0_53, %c0_54], %124 {strides = array<i32>} : memref<1x8x128xf32, #tpu.memory_space<vmem>>, vector<1x8x128xf32>,
    %c0_55 = arith.constant 0 : index
    %c0_56 = arith.constant 0 : index
    %125 = vector.load %arg15[%c0_55, %c0_56] : memref<32x32xf32, #tpu.memory_space<vmem>>, vector<32x32xf32>
    %cst_57 = arith.constant dense<0.000000e+00> : vector<8x32xf32>
    %126 = tpu.matmul %113, %125, %cst_57 {dimension_numbers = #tpu.dot_dimension_numbers<[1], [0], [0], [1], [0, 0, 1, 1], [], []>} : vector<8x32xf32>, vector<32x32xf32>, vector<8x32xf32> -> vector<8x32xf32>
    %c0_58 = arith.constant 0 : index
    %c0_59 = arith.constant 0 : index
    %127 = vector.load %arg16[%c0_58, %c0_59] : memref<1x32xf32, #tpu.memory_space<vmem>>, vector<1x32xf32>
    %128 = vector.broadcast %127 : vector<1x32xf32> to vector<8x32xf32>
    %129 = arith.addf %126, %128 : vector<8x32xf32>
    %c0_60 = arith.constant 0 : index
    %c0_61 = arith.constant 0 : index
    %130 = vector.load %arg34[%c0_60, %c0_61] : memref<16x64xf32, #tpu.memory_space<vmem>>, vector<16x64xf32>
    %c0_62 = arith.constant 0 : index
    %c0_63 = arith.constant 0 : index
    %131 = vector.load %arg19[%c0_62, %c0_63] : memref<32x32xf32, #tpu.memory_space<vmem>>, vector<32x32xf32>
    %c0_64 = arith.constant 0 : index
    %c0_65 = arith.constant 0 : index
    %132 = vector.load %arg20[%c0_64, %c0_65] : memref<1x32xf32, #tpu.memory_space<vmem>>, vector<1x32xf32>
    %133 = vector.extract_strided_slice %130 {offsets = [0, 0], sizes = [16, 32], strides = [1, 1]} : vector<16x64xf32> to vector<16x32xf32>
    %134 = vector.extract_strided_slice %130 {offsets = [0, 32], sizes = [16, 32], strides = [1, 1]} : vector<16x64xf32> to vector<16x32xf32>
    %135 = vector.extract_strided_slice %129 {offsets = [0, 0], sizes = [8, 8], strides = [1, 1]} : vector<8x32xf32> to vector<8x8xf32>
    %cst_66 = arith.constant 0.353553385 : f32
    %136 = vector.broadcast %cst_66 : f32 to vector<8x8xf32>
    %137 = arith.mulf %135, %136 : vector<8x8xf32>
    %138 = vector.extract_strided_slice %133 {offsets = [0, 0], sizes = [16, 8], strides = [1, 1]} : vector<16x32xf32> to vector<16x8xf32>
    %139 = vector.extract_strided_slice %134 {offsets = [0, 0], sizes = [16, 8], strides = [1, 1]} : vector<16x32xf32> to vector<16x8xf32>
    %cst_67 = arith.constant dense<0.000000e+00> : vector<8x16xf32>
    %140 = tpu.matmul %137, %138, %cst_67 {dimension_numbers = #tpu.dot_dimension_numbers<[1], [1], [0], [0], [0, 0, 1, 0], [], []>} : vector<8x8xf32>, vector<16x8xf32>, vector<8x16xf32> -> vector<8x16xf32>
    %cst_68 = arith.constant dense<0xFF800000> : vector<8xf32>
    %141 = vector.multi_reduction <maximumf>, %140, %cst_68 [1] : vector<8x16xf32> to vector<8xf32>
    %142 = vector.shape_cast %141 : vector<8xf32> to vector<8x1xf32>
    %143 = vector.broadcast %142 : vector<8x1xf32> to vector<8x16xf32>
    %144 = arith.subf %140, %143 : vector<8x16xf32>
    %145 = math.exp %144 : vector<8x16xf32>
    %cst_69 = arith.constant dense<0.000000e+00> : vector<8xf32>
    %146 = vector.multi_reduction <add>, %145, %cst_69 [1] : vector<8x16xf32> to vector<8xf32>
    %147 = vector.shape_cast %146 : vector<8xf32> to vector<8x1xf32>
    %cst_70 = arith.constant dense<0.000000e+00> : vector<8x8xf32>
    %148 = tpu.matmul %145, %139, %cst_70 {dimension_numbers = #tpu.dot_dimension_numbers<[1], [0], [0], [1], [0, 0, 1, 1], [], []>} : vector<8x16xf32>, vector<16x8xf32>, vector<8x8xf32> -> vector<8x8xf32>
    %149 = tpu.reciprocal %147 {approx = true} : vector<8x1xf32> -> vector<8x1xf32>
    %150 = vector.broadcast %149 : vector<8x1xf32> to vector<8x8xf32>
    %151 = arith.mulf %148, %150 : vector<8x8xf32>
    %152 = vector.extract_strided_slice %129 {offsets = [0, 8], sizes = [8, 8], strides = [1, 1]} : vector<8x32xf32> to vector<8x8xf32>
    %cst_71 = arith.constant 0.353553385 : f32
    %153 = vector.broadcast %cst_71 : f32 to vector<8x8xf32>
    %154 = arith.mulf %152, %153 : vector<8x8xf32>
    %155 = vector.extract_strided_slice %133 {offsets = [0, 8], sizes = [16, 8], strides = [1, 1]} : vector<16x32xf32> to vector<16x8xf32>
    %156 = vector.extract_strided_slice %134 {offsets = [0, 8], sizes = [16, 8], strides = [1, 1]} : vector<16x32xf32> to vector<16x8xf32>
    %cst_72 = arith.constant dense<0.000000e+00> : vector<8x16xf32>
    %157 = tpu.matmul %154, %155, %cst_72 {dimension_numbers = #tpu.dot_dimension_numbers<[1], [1], [0], [0], [0, 0, 1, 0], [], []>} : vector<8x8xf32>, vector<16x8xf32>, vector<8x16xf32> -> vector<8x16xf32>
    %cst_73 = arith.constant dense<0xFF800000> : vector<8xf32>
    %158 = vector.multi_reduction <maximumf>, %157, %cst_73 [1] : vector<8x16xf32> to vector<8xf32>
    %159 = vector.shape_cast %158 : vector<8xf32> to vector<8x1xf32>
    %160 = vector.broadcast %159 : vector<8x1xf32> to vector<8x16xf32>
    %161 = arith.subf %157, %160 : vector<8x16xf32>
    %162 = math.exp %161 : vector<8x16xf32>
    %cst_74 = arith.constant dense<0.000000e+00> : vector<8xf32>
    %163 = vector.multi_reduction <add>, %162, %cst_74 [1] : vector<8x16xf32> to vector<8xf32>
    %164 = vector.shape_cast %163 : vector<8xf32> to vector<8x1xf32>
    %cst_75 = arith.constant dense<0.000000e+00> : vector<8x8xf32>
    %165 = tpu.matmul %162, %156, %cst_75 {dimension_numbers = #tpu.dot_dimension_numbers<[1], [0], [0], [1], [0, 0, 1, 1], [], []>} : vector<8x16xf32>, vector<16x8xf32>, vector<8x8xf32> -> vector<8x8xf32>
    %166 = tpu.reciprocal %164 {approx = true} : vector<8x1xf32> -> vector<8x1xf32>
    %167 = vector.broadcast %166 : vector<8x1xf32> to vector<8x8xf32>
    %168 = arith.mulf %165, %167 : vector<8x8xf32>
    %169 = vector.extract_strided_slice %129 {offsets = [0, 16], sizes = [8, 8], strides = [1, 1]} : vector<8x32xf32> to vector<8x8xf32>
    %cst_76 = arith.constant 0.353553385 : f32
    %170 = vector.broadcast %cst_76 : f32 to vector<8x8xf32>
    %171 = arith.mulf %169, %170 : vector<8x8xf32>
    %172 = vector.extract_strided_slice %133 {offsets = [0, 16], sizes = [16, 8], strides = [1, 1]} : vector<16x32xf32> to vector<16x8xf32>
    %173 = vector.extract_strided_slice %134 {offsets = [0, 16], sizes = [16, 8], strides = [1, 1]} : vector<16x32xf32> to vector<16x8xf32>
    %cst_77 = arith.constant dense<0.000000e+00> : vector<8x16xf32>
    %174 = tpu.matmul %171, %172, %cst_77 {dimension_numbers = #tpu.dot_dimension_numbers<[1], [1], [0], [0], [0, 0, 1, 0], [], []>} : vector<8x8xf32>, vector<16x8xf32>, vector<8x16xf32> -> vector<8x16xf32>
    %cst_78 = arith.constant dense<0xFF800000> : vector<8xf32>
    %175 = vector.multi_reduction <maximumf>, %174, %cst_78 [1] : vector<8x16xf32> to vector<8xf32>
    %176 = vector.shape_cast %175 : vector<8xf32> to vector<8x1xf32>
    %177 = vector.broadcast %176 : vector<8x1xf32> to vector<8x16xf32>
    %178 = arith.subf %174, %177 : vector<8x16xf32>
    %179 = math.exp %178 : vector<8x16xf32>
    %cst_79 = arith.constant dense<0.000000e+00> : vector<8xf32>
    %180 = vector.multi_reduction <add>, %179, %cst_79 [1] : vector<8x16xf32> to vector<8xf32>
    %181 = vector.shape_cast %180 : vector<8xf32> to vector<8x1xf32>
    %cst_80 = arith.constant dense<0.000000e+00> : vector<8x8xf32>
    %182 = tpu.matmul %179, %173, %cst_80 {dimension_numbers = #tpu.dot_dimension_numbers<[1], [0], [0], [1], [0, 0, 1, 1], [], []>} : vector<8x16xf32>, vector<16x8xf32>, vector<8x8xf32> -> vector<8x8xf32>
    %183 = tpu.reciprocal %181 {approx = true} : vector<8x1xf32> -> vector<8x1xf32>
    %184 = vector.broadcast %183 : vector<8x1xf32> to vector<8x8xf32>
    %185 = arith.mulf %182, %184 : vector<8x8xf32>
    %186 = vector.extract_strided_slice %129 {offsets = [0, 24], sizes = [8, 8], strides = [1, 1]} : vector<8x32xf32> to vector<8x8xf32>
    %cst_81 = arith.constant 0.353553385 : f32
    %187 = vector.broadcast %cst_81 : f32 to vector<8x8xf32>
    %188 = arith.mulf %186, %187 : vector<8x8xf32>
    %189 = vector.extract_strided_slice %133 {offsets = [0, 24], sizes = [16, 8], strides = [1, 1]} : vector<16x32xf32> to vector<16x8xf32>
    %190 = vector.extract_strided_slice %134 {offsets = [0, 24], sizes = [16, 8], strides = [1, 1]} : vector<16x32xf32> to vector<16x8xf32>
    %cst_82 = arith.constant dense<0.000000e+00> : vector<8x16xf32>
    %191 = tpu.matmul %188, %189, %cst_82 {dimension_numbers = #tpu.dot_dimension_numbers<[1], [1], [0], [0], [0, 0, 1, 0], [], []>} : vector<8x8xf32>, vector<16x8xf32>, vector<8x16xf32> -> vector<8x16xf32>
    %cst_83 = arith.constant dense<0xFF800000> : vector<8xf32>
    %192 = vector.multi_reduction <maximumf>, %191, %cst_83 [1] : vector<8x16xf32> to vector<8xf32>
    %193 = vector.shape_cast %192 : vector<8xf32> to vector<8x1xf32>
    %194 = vector.broadcast %193 : vector<8x1xf32> to vector<8x16xf32>
    %195 = arith.subf %191, %194 : vector<8x16xf32>
    %196 = math.exp %195 : vector<8x16xf32>
    %cst_84 = arith.constant dense<0.000000e+00> : vector<8xf32>
    %197 = vector.multi_reduction <add>, %196, %cst_84 [1] : vector<8x16xf32> to vector<8xf32>
    %198 = vector.shape_cast %197 : vector<8xf32> to vector<8x1xf32>
    %cst_85 = arith.constant dense<0.000000e+00> : vector<8x8xf32>
    %199 = tpu.matmul %196, %190, %cst_85 {dimension_numbers = #tpu.dot_dimension_numbers<[1], [0], [0], [1], [0, 0, 1, 1], [], []>} : vector<8x16xf32>, vector<16x8xf32>, vector<8x8xf32> -> vector<8x8xf32>
    %200 = tpu.reciprocal %198 {approx = true} : vector<8x1xf32> -> vector<8x1xf32>
    %201 = vector.broadcast %200 : vector<8x1xf32> to vector<8x8xf32>
    %202 = arith.mulf %199, %201 : vector<8x8xf32>
    %203 = tpu.concatenate %151, %168, %185, %202 in 1 : vector<8x8xf32>, vector<8x8xf32>, vector<8x8xf32>, vector<8x8xf32> -> vector<8x32xf32>
    %cst_86 = arith.constant dense<0.000000e+00> : vector<8x32xf32>
    %204 = tpu.matmul %203, %131, %cst_86 {dimension_numbers = #tpu.dot_dimension_numbers<[1], [0], [0], [1], [0, 0, 1, 1], [], []>} : vector<8x32xf32>, vector<32x32xf32>, vector<8x32xf32> -> vector<8x32xf32>
    %205 = vector.broadcast %132 : vector<1x32xf32> to vector<8x32xf32>
    %206 = arith.addf %204, %205 : vector<8x32xf32>
    %207 = arith.addf %113, %206 : vector<8x32xf32>
    %c0_87 = arith.constant 0 : index
    %c0_88 = arith.constant 0 : index
    %208 = vector.load %arg21[%c0_87, %c0_88] : memref<1x32xf32, #tpu.memory_space<vmem>>, vector<1x32xf32>
    %c0_89 = arith.constant 0 : index
    %c0_90 = arith.constant 0 : index
    %209 = vector.load %arg22[%c0_89, %c0_90] : memref<1x32xf32, #tpu.memory_space<vmem>>, vector<1x32xf32>
    %cst_91 = arith.constant dense<0.000000e+00> : vector<8xf32>
    %210 = vector.multi_reduction <add>, %207, %cst_91 [1] : vector<8x32xf32> to vector<8xf32>
    %211 = vector.shape_cast %210 : vector<8xf32> to vector<8x1xf32>
    %cst_92 = arith.constant 3.200000e+01 : f32
    %212 = vector.broadcast %cst_92 : f32 to vector<8x1xf32>
    %213 = arith.divf %211, %212 : vector<8x1xf32>
    %214 = vector.broadcast %213 : vector<8x1xf32> to vector<8x32xf32>
    %215 = arith.subf %207, %214 : vector<8x32xf32>
    %216 = arith.mulf %215, %215 : vector<8x32xf32>
    %cst_93 = arith.constant dense<0.000000e+00> : vector<8xf32>
    %217 = vector.multi_reduction <add>, %216, %cst_93 [1] : vector<8x32xf32> to vector<8xf32>
    %218 = vector.shape_cast %217 : vector<8xf32> to vector<8x1xf32>
    %cst_94 = arith.constant 3.200000e+01 : f32
    %219 = vector.broadcast %cst_94 : f32 to vector<8x1xf32>
    %220 = arith.divf %218, %219 : vector<8x1xf32>
    %cst_95 = arith.constant 9.99999974E-6 : f32
    %221 = vector.broadcast %cst_95 : f32 to vector<8x1xf32>
    %222 = arith.addf %220, %221 : vector<8x1xf32>
    %223 = math.rsqrt %222 : vector<8x1xf32>
    %224 = vector.broadcast %223 : vector<8x1xf32> to vector<8x32xf32>
    %225 = arith.mulf %215, %224 : vector<8x32xf32>
    %226 = vector.broadcast %208 : vector<1x32xf32> to vector<8x32xf32>
    %227 = arith.mulf %225, %226 : vector<8x32xf32>
    %228 = vector.broadcast %209 : vector<1x32xf32> to vector<8x32xf32>
    %229 = arith.addf %227, %228 : vector<8x32xf32>
    %c0_96 = arith.constant 0 : index
    %c0_97 = arith.constant 0 : index
    %230 = vector.load %arg23[%c0_96, %c0_97] : memref<32x64xf32, #tpu.memory_space<vmem>>, vector<32x64xf32>
    %cst_98 = arith.constant dense<0.000000e+00> : vector<8x64xf32>
    %231 = tpu.matmul %229, %230, %cst_98 {dimension_numbers = #tpu.dot_dimension_numbers<[1], [0], [0], [1], [0, 0, 1, 1], [], []>} : vector<8x32xf32>, vector<32x64xf32>, vector<8x64xf32> -> vector<8x64xf32>
    %c0_99 = arith.constant 0 : index
    %c0_100 = arith.constant 0 : index
    %232 = vector.load %arg24[%c0_99, %c0_100] : memref<1x64xf32, #tpu.memory_space<vmem>>, vector<1x64xf32>
    %233 = vector.broadcast %232 : vector<1x64xf32> to vector<8x64xf32>
    %234 = arith.addf %231, %233 : vector<8x64xf32>
    %cst_101 = arith.constant 5.000000e-01 : f32
    %235 = vector.broadcast %cst_101 : f32 to vector<8x64xf32>
    %236 = arith.mulf %235, %234 : vector<8x64xf32>
    %cst_102 = arith.constant 4.471500e-02 : f32
    %237 = vector.broadcast %cst_102 : f32 to vector<8x64xf32>
    %238 = arith.mulf %237, %234 : vector<8x64xf32>
    %239 = arith.mulf %238, %234 : vector<8x64xf32>
    %240 = arith.mulf %239, %234 : vector<8x64xf32>
    %241 = arith.addf %234, %240 : vector<8x64xf32>
    %cst_103 = arith.constant 0.797884583 : f32
    %242 = vector.broadcast %cst_103 : f32 to vector<8x64xf32>
    %243 = arith.mulf %242, %241 : vector<8x64xf32>
    %244 = math.tanh %243 : vector<8x64xf32>
    %cst_104 = arith.constant 1.000000e+00 : f32
    %245 = vector.broadcast %cst_104 : f32 to vector<8x64xf32>
    %246 = arith.addf %245, %244 : vector<8x64xf32>
    %247 = arith.mulf %236, %246 : vector<8x64xf32>
    %c0_105 = arith.constant 0 : index
    %c0_106 = arith.constant 0 : index
    %248 = vector.load %arg25[%c0_105, %c0_106] : memref<64x32xf32, #tpu.memory_space<vmem>>, vector<64x32xf32>
    %cst_107 = arith.constant dense<0.000000e+00> : vector<8x32xf32>
    %249 = tpu.matmul %247, %248, %cst_107 {dimension_numbers = #tpu.dot_dimension_numbers<[1], [0], [0], [1], [0, 0, 1, 1], [], []>} : vector<8x64xf32>, vector<64x32xf32>, vector<8x32xf32> -> vector<8x32xf32>
    %c0_108 = arith.constant 0 : index
    %c0_109 = arith.constant 0 : index
    %250 = vector.load %arg26[%c0_108, %c0_109] : memref<1x32xf32, #tpu.memory_space<vmem>>, vector<1x32xf32>
    %251 = vector.broadcast %250 : vector<1x32xf32> to vector<8x32xf32>
    %252 = arith.addf %249, %251 : vector<8x32xf32>
    %253 = arith.addf %229, %252 : vector<8x32xf32>
    %c0_110 = arith.constant 0 : index
    %c0_111 = arith.constant 0 : index
    %254 = vector.load %arg27[%c0_110, %c0_111] : memref<1x32xf32, #tpu.memory_space<vmem>>, vector<1x32xf32>
    %c0_112 = arith.constant 0 : index
    %c0_113 = arith.constant 0 : index
    %255 = vector.load %arg28[%c0_112, %c0_113] : memref<1x32xf32, #tpu.memory_space<vmem>>, vector<1x32xf32>
    %cst_114 = arith.constant dense<0.000000e+00> : vector<8xf32>
    %256 = vector.multi_reduction <add>, %253, %cst_114 [1] : vector<8x32xf32> to vector<8xf32>
    %257 = vector.shape_cast %256 : vector<8xf32> to vector<8x1xf32>
    %cst_115 = arith.constant 3.200000e+01 : f32
    %258 = vector.broadcast %cst_115 : f32 to vector<8x1xf32>
    %259 = arith.divf %257, %258 : vector<8x1xf32>
    %260 = vector.broadcast %259 : vector<8x1xf32> to vector<8x32xf32>
    %261 = arith.subf %253, %260 : vector<8x32xf32>
    %262 = arith.mulf %261, %261 : vector<8x32xf32>
    %cst_116 = arith.constant dense<0.000000e+00> : vector<8xf32>
    %263 = vector.multi_reduction <add>, %262, %cst_116 [1] : vector<8x32xf32> to vector<8xf32>
    %264 = vector.shape_cast %263 : vector<8xf32> to vector<8x1xf32>
    %cst_117 = arith.constant 3.200000e+01 : f32
    %265 = vector.broadcast %cst_117 : f32 to vector<8x1xf32>
    %266 = arith.divf %264, %265 : vector<8x1xf32>
    %cst_118 = arith.constant 9.99999974E-6 : f32
    %267 = vector.broadcast %cst_118 : f32 to vector<8x1xf32>
    %268 = arith.addf %266, %267 : vector<8x1xf32>
    %269 = math.rsqrt %268 : vector<8x1xf32>
    %270 = vector.broadcast %269 : vector<8x1xf32> to vector<8x32xf32>
    %271 = arith.mulf %261, %270 : vector<8x32xf32>
    %272 = vector.broadcast %254 : vector<1x32xf32> to vector<8x32xf32>
    %273 = arith.mulf %271, %272 : vector<8x32xf32>
    %274 = vector.broadcast %255 : vector<1x32xf32> to vector<8x32xf32>
    %275 = arith.addf %273, %274 : vector<8x32xf32>
    %c0_119 = arith.constant 0 : index
    %c0_120 = arith.constant 0 : index
    %276 = vector.load %arg29[%c0_119, %c0_120] : memref<1x32xf32, #tpu.memory_space<vmem>>, vector<1x32xf32>
    %c0_121 = arith.constant 0 : index
    %c0_122 = arith.constant 0 : index
    %277 = vector.load %arg30[%c0_121, %c0_122] : memref<1x32xf32, #tpu.memory_space<vmem>>, vector<1x32xf32>
    %cst_123 = arith.constant dense<0.000000e+00> : vector<8xf32>
    %278 = vector.multi_reduction <add>, %275, %cst_123 [1] : vector<8x32xf32> to vector<8xf32>
    %279 = vector.shape_cast %278 : vector<8xf32> to vector<8x1xf32>
    %cst_124 = arith.constant 3.200000e+01 : f32
    %280 = vector.broadcast %cst_124 : f32 to vector<8x1xf32>
    %281 = arith.divf %279, %280 : vector<8x1xf32>
    %282 = vector.broadcast %281 : vector<8x1xf32> to vector<8x32xf32>
    %283 = arith.subf %275, %282 : vector<8x32xf32>
    %284 = arith.mulf %283, %283 : vector<8x32xf32>
    %cst_125 = arith.constant dense<0.000000e+00> : vector<8xf32>
    %285 = vector.multi_reduction <add>, %284, %cst_125 [1] : vector<8x32xf32> to vector<8xf32>
    %286 = vector.shape_cast %285 : vector<8xf32> to vector<8x1xf32>
    %cst_126 = arith.constant 3.200000e+01 : f32
    %287 = vector.broadcast %cst_126 : f32 to vector<8x1xf32>
    %288 = arith.divf %286, %287 : vector<8x1xf32>
    %cst_127 = arith.constant 9.99999974E-6 : f32
    %289 = vector.broadcast %cst_127 : f32 to vector<8x1xf32>
    %290 = arith.addf %288, %289 : vector<8x1xf32>
    %291 = math.rsqrt %290 : vector<8x1xf32>
    %292 = vector.broadcast %291 : vector<8x1xf32> to vector<8x32xf32>
    %293 = arith.mulf %283, %292 : vector<8x32xf32>
    %294 = vector.broadcast %276 : vector<1x32xf32> to vector<8x32xf32>
    %295 = arith.mulf %293, %294 : vector<8x32xf32>
    %296 = vector.broadcast %277 : vector<1x32xf32> to vector<8x32xf32>
    %297 = arith.addf %295, %296 : vector<8x32xf32>
    %c0_128 = arith.constant 0 : index
    %c0_129 = arith.constant 0 : index
    %c0_130 = arith.constant 0 : index
    %298 = vector.load %arg31[%c0_128, %c0_129, %c0_130] : memref<1x8x32xf32, #tpu.memory_space<vmem>>, vector<1x8x32xf32>
    %299 = vector.shape_cast %298 : vector<1x8x32xf32> to vector<8x32xf32>
    %300 = vector.shape_cast %297 : vector<8x32xf32> to vector<1x8x32xf32>
    tpu.vector_store %arg31[%c0_128, %c0_129, %c0_130], %300 {strides = array<i32>} : memref<1x8x32xf32, #tpu.memory_space<vmem>>, vector<1x8x32xf32>,
    return
  }
  func.func @transform_0(%arg0: i32, %arg1: i32) -> (i32, i32, i32) {
    %c0_i32 = arith.constant 0 : i32
    %c0_i32_0 = arith.constant 0 : i32
    %c0_i32_1 = arith.constant 0 : i32
    return %arg0, %c0_i32, %c0_i32_0 : i32, i32, i32
  }
  func.func @transform_1(%arg0: i32, %arg1: i32) -> (i32, i32, i32) {
    %c0_i32 = arith.constant 0 : i32
    %c0_i32_0 = arith.constant 0 : i32
    %c0_i32_1 = arith.constant 0 : i32
    return %arg0, %c0_i32, %c0_i32_0 : i32, i32, i32
  }
  func.func @transform_2(%arg0: i32, %arg1: i32) -> (i32, i32, i32) {
    %c0_i32 = arith.constant 0 : i32
    %c0_i32_0 = arith.constant 0 : i32
    return %arg0, %arg1, %c0_i32 : i32, i32, i32
  }
  func.func @transform_3(%arg0: i32, %arg1: i32) -> (i32, i32) {
    %c0_i32 = arith.constant 0 : i32
    %c0_i32_0 = arith.constant 0 : i32
    %c0_i32_1 = arith.constant 0 : i32
    return %c0_i32, %c0_i32_0 : i32, i32
  }
  func.func @transform_4(%arg0: i32, %arg1: i32) -> (i32, i32) {
    %c0_i32 = arith.constant 0 : i32
    %c0_i32_0 = arith.constant 0 : i32
    %c0_i32_1 = arith.constant 0 : i32
    return %c0_i32, %c0_i32_0 : i32, i32
  }
  func.func @transform_5(%arg0: i32, %arg1: i32) -> (i32, i32) {
    %c0_i32 = arith.constant 0 : i32
    %c0_i32_0 = arith.constant 0 : i32
    %c0_i32_1 = arith.constant 0 : i32
    return %c0_i32, %c0_i32_0 : i32, i32
  }
  func.func @transform_6(%arg0: i32, %arg1: i32) -> (i32, i32) {
    %c0_i32 = arith.constant 0 : i32
    %c0_i32_0 = arith.constant 0 : i32
    %c0_i32_1 = arith.constant 0 : i32
    return %c0_i32, %c0_i32_0 : i32, i32
  }
  func.func @transform_7(%arg0: i32, %arg1: i32) -> (i32, i32) {
    %c0_i32 = arith.constant 0 : i32
    %c0_i32_0 = arith.constant 0 : i32
    %c0_i32_1 = arith.constant 0 : i32
    return %c0_i32, %c0_i32_0 : i32, i32
  }
  func.func @transform_8(%arg0: i32, %arg1: i32) -> (i32, i32) {
    %c0_i32 = arith.constant 0 : i32
    %c0_i32_0 = arith.constant 0 : i32
    %c0_i32_1 = arith.constant 0 : i32
    return %c0_i32, %c0_i32_0 : i32, i32
  }
  func.func @transform_9(%arg0: i32, %arg1: i32) -> (i32, i32) {
    %c0_i32 = arith.constant 0 : i32
    %c0_i32_0 = arith.constant 0 : i32
    %c0_i32_1 = arith.constant 0 : i32
    return %c0_i32, %c0_i32_0 : i32, i32
  }
  func.func @transform_10(%arg0: i32, %arg1: i32) -> (i32, i32) {
    %c0_i32 = arith.constant 0 : i32
    %c0_i32_0 = arith.constant 0 : i32
    %c0_i32_1 = arith.constant 0 : i32
    return %c0_i32, %c0_i32_0 : i32, i32
  }
  func.func @transform_11(%arg0: i32, %arg1: i32) -> (i32, i32) {
    %c0_i32 = arith.constant 0 : i32
    %c0_i32_0 = arith.constant 0 : i32
    %c0_i32_1 = arith.constant 0 : i32
    return %c0_i32, %c0_i32_0 : i32, i32
  }
  func.func @transform_12(%arg0: i32, %arg1: i32) -> (i32, i32) {
    %c0_i32 = arith.constant 0 : i32
    %c0_i32_0 = arith.constant 0 : i32
    %c0_i32_1 = arith.constant 0 : i32
    return %c0_i32, %c0_i32_0 : i32, i32
  }
  func.func @transform_13(%arg0: i32, %arg1: i32) -> (i32, i32) {
    %c0_i32 = arith.constant 0 : i32
    %c0_i32_0 = arith.constant 0 : i32
    %c0_i32_1 = arith.constant 0 : i32
    return %c0_i32, %c0_i32_0 : i32, i32
  }
  func.func @transform_14(%arg0: i32, %arg1: i32) -> (i32, i32) {
    %c0_i32 = arith.constant 0 : i32
    %c0_i32_0 = arith.constant 0 : i32
    %c0_i32_1 = arith.constant 0 : i32
    return %c0_i32, %c0_i32_0 : i32, i32
  }
  func.func @transform_15(%arg0: i32, %arg1: i32) -> (i32, i32) {
    %c0_i32 = arith.constant 0 : i32
    %c0_i32_0 = arith.constant 0 : i32
    %c0_i32_1 = arith.constant 0 : i32
    return %c0_i32, %c0_i32_0 : i32, i32
  }
  func.func @transform_16(%arg0: i32, %arg1: i32) -> (i32, i32) {
    %c0_i32 = arith.constant 0 : i32
    %c0_i32_0 = arith.constant 0 : i32
    %c0_i32_1 = arith.constant 0 : i32
    return %c0_i32, %c0_i32_0 : i32, i32
  }
  func.func @transform_17(%arg0: i32, %arg1: i32) -> (i32, i32) {
    %c0_i32 = arith.constant 0 : i32
    %c0_i32_0 = arith.constant 0 : i32
    %c0_i32_1 = arith.constant 0 : i32
    return %c0_i32, %c0_i32_0 : i32, i32
  }
  func.func @transform_18(%arg0: i32, %arg1: i32) -> (i32, i32) {
    %c0_i32 = arith.constant 0 : i32
    %c0_i32_0 = arith.constant 0 : i32
    %c0_i32_1 = arith.constant 0 : i32
    return %c0_i32, %c0_i32_0 : i32, i32
  }
  func.func @transform_19(%arg0: i32, %arg1: i32) -> (i32, i32) {
    %c0_i32 = arith.constant 0 : i32
    %c0_i32_0 = arith.constant 0 : i32
    %c0_i32_1 = arith.constant 0 : i32
    return %c0_i32, %c0_i32_0 : i32, i32
  }
  func.func @transform_20(%arg0: i32, %arg1: i32) -> (i32, i32) {
    %c0_i32 = arith.constant 0 : i32
    %c0_i32_0 = arith.constant 0 : i32
    %c0_i32_1 = arith.constant 0 : i32
    return %c0_i32, %c0_i32_0 : i32, i32
  }
  func.func @transform_21(%arg0: i32, %arg1: i32) -> (i32, i32) {
    %c0_i32 = arith.constant 0 : i32
    %c0_i32_0 = arith.constant 0 : i32
    %c0_i32_1 = arith.constant 0 : i32
    return %c0_i32, %c0_i32_0 : i32, i32
  }
  func.func @transform_22(%arg0: i32, %arg1: i32) -> (i32, i32) {
    %c0_i32 = arith.constant 0 : i32
    %c0_i32_0 = arith.constant 0 : i32
    %c0_i32_1 = arith.constant 0 : i32
    return %c0_i32, %c0_i32_0 : i32, i32
  }
  func.func @transform_23(%arg0: i32, %arg1: i32) -> (i32, i32) {
    %c0_i32 = arith.constant 0 : i32
    %c0_i32_0 = arith.constant 0 : i32
    %c0_i32_1 = arith.constant 0 : i32
    return %c0_i32, %c0_i32_0 : i32, i32
  }
  func.func @transform_24(%arg0: i32, %arg1: i32) -> (i32, i32) {
    %c0_i32 = arith.constant 0 : i32
    %c0_i32_0 = arith.constant 0 : i32
    %c0_i32_1 = arith.constant 0 : i32
    return %c0_i32, %c0_i32_0 : i32, i32
  }
  func.func @transform_25(%arg0: i32, %arg1: i32) -> (i32, i32) {
    %c0_i32 = arith.constant 0 : i32
    %c0_i32_0 = arith.constant 0 : i32
    %c0_i32_1 = arith.constant 0 : i32
    return %c0_i32, %c0_i32_0 : i32, i32
  }
  func.func @transform_26(%arg0: i32, %arg1: i32) -> (i32, i32) {
    %c0_i32 = arith.constant 0 : i32
    %c0_i32_0 = arith.constant 0 : i32
    %c0_i32_1 = arith.constant 0 : i32
    return %c0_i32, %c0_i32_0 : i32, i32
  }
  func.func @transform_27(%arg0: i32, %arg1: i32) -> (i32, i32) {
    %c0_i32 = arith.constant 0 : i32
    %c0_i32_0 = arith.constant 0 : i32
    %c0_i32_1 = arith.constant 0 : i32
    return %c0_i32, %c0_i32_0 : i32, i32
  }
  func.func @transform_28(%arg0: i32, %arg1: i32) -> (i32, i32) {
    %c0_i32 = arith.constant 0 : i32
    %c0_i32_0 = arith.constant 0 : i32
    %c0_i32_1 = arith.constant 0 : i32
    return %c0_i32, %c0_i32_0 : i32, i32
  }
  func.func @transform_29(%arg0: i32, %arg1: i32) -> (i32, i32, i32) {
    %c0_i32 = arith.constant 0 : i32
    %c0_i32_0 = arith.constant 0 : i32
    return %arg0, %arg1, %c0_i32 : i32, i32, i32
  }
  func.func @transform_30(%arg0: i32, %arg1: i32) -> (i32, i32, i32) {
    %c0_i32 = arith.constant 0 : i32
    %c0_i32_0 = arith.constant 0 : i32
    return %arg0, %arg1, %c0_i32 : i32, i32, i32
  }
}

</mosaic_0001>

<llo_original>
// kernel: transformer3d_forward.2
$region0: #{transformer3d_forward.2}
  #allocation0 [shape = 'u32[]', space=smem, size = 0x4, offset = 0x4, fixed_abs, tag = 'smem constant byte address 0x4 - core index']
  #allocation1 [shape = 'u32[144,128]{1,0:T(1,128)}', space=vmem, size = 0x12000, scoped, tag = 'internal scratch']
  #allocation2 [shape = 'f32[16,64]{1,0:T(8,128)}', space=vmem, size = 0x2000, scoped, tag = 'scratch operand']
  #allocation3 [shape = 'f32[16,64]{1,0:T(8,128)}', space=vmem, size = 0x2000, scoped, tag = 'scratch operand']
  %s0 = inlined_call_operand.smem [shape: u32[31], index: -1, kind: input, shape index: {}]
  %s1 = sld [smem:[%s0]]
  %s2 = scalar_lea.smem %s0, 1
  %s3 = sld [smem:[%s2]]
  %s4 = scalar_lea.smem %s0, 2
  %s5 = sld [smem:[%s4]]
  %s6 = scalar_lea.smem %s0, 3
  %s7 = sld [smem:[%s6]]
  %s8 = scalar_lea.smem %s0, 4
  %s9 = sld [smem:[%s8]]
  %s10 = scalar_lea.smem %s0, 5
  %s11 = sld [smem:[%s10]]
  %s12 = scalar_lea.smem %s0, 6
  %s13 = sld [smem:[%s12]]
  %s14 = scalar_lea.smem %s0, 7
  %s15 = sld [smem:[%s14]]
  %s16 = scalar_lea.smem %s0, 8
  %s17 = sld [smem:[%s16]]
  %s18 = scalar_lea.smem %s0, 9
  %s19 = sld [smem:[%s18]]
  %s20 = scalar_lea.smem %s0, 10
  %s21 = sld [smem:[%s20]]
  %s22 = scalar_lea.smem %s0, 11
  %s23 = sld [smem:[%s22]]
  %s24 = scalar_lea.smem %s0, 12
  %s25 = sld [smem:[%s24]]
  %s26 = scalar_lea.smem %s0, 13
  %s27 = sld [smem:[%s26]]
  %s28 = scalar_lea.smem %s0, 14
  %s29 = sld [smem:[%s28]]
  %s30 = scalar_lea.smem %s0, 15
  %s31 = sld [smem:[%s30]]
  %s32 = scalar_lea.smem %s0, 16
  %s33 = sld [smem:[%s32]]
  %s34 = scalar_lea.smem %s0, 17
  %s35 = sld [smem:[%s34]]
  %s36 = scalar_lea.smem %s0, 18
  %s37 = sld [smem:[%s36]]
  %s38 = scalar_lea.smem %s0, 19
  %s39 = sld [smem:[%s38]]
  %s40 = scalar_lea.smem %s0, 20
  %s41 = sld [smem:[%s40]]
  %s42 = scalar_lea.smem %s0, 21
  %s43 = sld [smem:[%s42]]
  %s44 = scalar_lea.smem %s0, 22
  %s45 = sld [smem:[%s44]]
  %s46 = scalar_lea.smem %s0, 23
  %s47 = sld [smem:[%s46]]
  %s48 = scalar_lea.smem %s0, 24
  %s49 = sld [smem:[%s48]]
  %s50 = scalar_lea.smem %s0, 25
  %s51 = sld [smem:[%s50]]
  %s52 = scalar_lea.smem %s0, 26
  %s53 = sld [smem:[%s52]]
  %s54 = scalar_lea.smem %s0, 27
  %s55 = sld [smem:[%s54]]
  %s56 = scalar_lea.smem %s0, 28
  %s57 = sld [smem:[%s56]]
  %s58 = scalar_lea.smem %s0, 29
  %s59 = sld [smem:[%s58]]
  %s60 = scalar_lea.smem %s0, 30
  %s61 = sld [smem:[%s60]]
  %62 = xla_tuple %s59, %s61
  %s63 = sld [smem:[#allocation0]]
  $region193: #{transformer3d_forward.2} parent=0
    _
  %s65 = ssub.s32 1, %s63
  %s66 = scalar_select 0, %s65, %s63
  $region1: #{transformer3d_forward.2} parent=0
    #allocation4 [shape = 'u8[512]{0}', space=vmem, size = 0x400, scoped, tag = 'input window, operand 4, single buffered']
    #allocation5 [shape = 's32[2]{0}', space=sflag, size = 0x8, scoped, tag = 'scoped memory for transformer3d_forward.2']
    #allocation6 [shape = 'u8[512]{0}', space=vmem, size = 0x400, scoped, tag = 'input window, operand 6, single buffered']
    #allocation7 [shape = 's32[1]{0}', space=sflag, size = 0x4, scoped, tag = 'scoped memory for transformer3d_forward.2']
    #allocation8 [shape = 'u8[512]{0}', space=vmem, size = 0x400, scoped, tag = 'input window, operand 8, single buffered']
    #allocation9 [shape = 'u8[512]{0}', space=vmem, size = 0x400, scoped, tag = 'input window, operand 12, single buffered']
    #allocation10 [shape = 's32[1]{0}', space=sflag, size = 0x4, scoped, tag = 'scoped memory for transformer3d_forward.2']
    #allocation11 [shape = 'u8[512]{0}', space=vmem, size = 0x400, scoped, tag = 'input window, operand 25, single buffered']
    #allocation12 [shape = 'u8[512]{0}', space=vmem, size = 0x400, scoped, tag = 'input window, operand 26, single buffered']
    #allocation13 [shape = 's32[1]{0}', space=sflag, size = 0x4, scoped, tag = 'scoped memory for transformer3d_forward.2']
    #allocation14 [shape = 'u8[512]{0}', space=vmem, size = 0x400, scoped, tag = 'input window, operand 27, single buffered']
    #allocation15 [shape = 'u8[512]{0}', space=vmem, size = 0x400, scoped, tag = 'input window, operand 28, single buffered']
    #allocation16 [shape = 's32[1]{0}', space=sflag, size = 0x4, scoped, tag = 'scoped memory for transformer3d_forward.2']
    %67 = vsyncpa [#allocation5], 0
    %68 = vsyncpa [#allocation7], 0
    %69 = vsyncpa [#allocation10], 0
    %70 = vsyncpa [#allocation13], 0
    %71 = vsyncpa [#allocation16], 0
    loop: start=0, step=1, limit=6
    $region2: #{transformer3d_forward.2} parent=1 // loop_pre_header
      _
    $region3: #{transformer3d_forward.2} parent=1 // loop_header
      %s73 = sphi 0, %s77
      %p74 = scmp.ge.s32.totalorder %s73, 6
      %s80 = sphi 0, %s92
      %s81 = sphi 0, %s88
      %s82 = sphi 0, %s80
      %s83 = sphi 0, %s81
      %s84 = sphi 0, %s82
      %s85 = sphi 0, %s83
      %s95 = sphi 0, %s97
      %s98 = sphi 0, %s95
      %s99 = sphi 0, %s98
      %s115 = sphi 0, %s99
      %s121 = sphi 0, %s123
      %s124 = sphi 0, %s121
      %s125 = sphi 0, %s124
      %s141 = sphi 0, %s125
      %s149 = sphi 0, %s151
      %s152 = sphi 0, %s149
      %s153 = sphi 0, %s152
      %s169 = sphi 0, %s153
      %s173 = sphi 0, %s173
      %s175 = sphi 0, %s173
      %s176 = sphi 0, %s175
      %s190 = sphi 0, %s176
      %s194 = sphi 0, %s194
      %s196 = sphi 0, %s194
      %s197 = sphi 0, %s196
      %s211 = sphi 0, %s197
      %s215 = sphi 0, %s215
      %s217 = sphi 0, %s215
      %s218 = sphi 0, %s217
      %s232 = sphi 0, %s218
      %s236 = sphi 0, %s236
      %s238 = sphi 0, %s236
      %s239 = sphi 0, %s238
      %s253 = sphi 0, %s239
      %s257 = sphi 0, %s257
      %s259 = sphi 0, %s257
      %s260 = sphi 0, %s259
      %s274 = sphi 0, %s260
      %s278 = sphi 0, %s278
      %s280 = sphi 0, %s278
      %s281 = sphi 0, %s280
      %s295 = sphi 0, %s281
      %s299 = sphi 0, %s299
      %s301 = sphi 0, %s299
      %s302 = sphi 0, %s301
      %s316 = sphi 0, %s302
      %s320 = sphi 0, %s320
      %s322 = sphi 0, %s320
      %s323 = sphi 0, %s322
      %s337 = sphi 0, %s323
      %s341 = sphi 0, %s341
      %s343 = sphi 0, %s341
      %s344 = sphi 0, %s343
      %s358 = sphi 0, %s344
      %s362 = sphi 0, %s362
      %s364 = sphi 0, %s362
      %s365 = sphi 0, %s364
      %s379 = sphi 0, %s365
      %s383 = sphi 0, %s383
      %s385 = sphi 0, %s383
      %s386 = sphi 0, %s385
      %s400 = sphi 0, %s386
      %s404 = sphi 0, %s404
      %s406 = sphi 0, %s404
      %s407 = sphi 0, %s406
      %s421 = sphi 0, %s407
      %s425 = sphi 0, %s425
      %s427 = sphi 0, %s425
      %s428 = sphi 0, %s427
      %s442 = sphi 0, %s428
      %s446 = sphi 0, %s446
      %s448 = sphi 0, %s446
      %s449 = sphi 0, %s448
      %s463 = sphi 0, %s449
      %s467 = sphi 0, %s467
      %s469 = sphi 0, %s467
      %s470 = sphi 0, %s469
      %s484 = sphi 0, %s470
      %s488 = sphi 0, %s488
      %s490 = sphi 0, %s488
      %s491 = sphi 0, %s490
      %s505 = sphi 0, %s491
      %s509 = sphi 0, %s509
      %s511 = sphi 0, %s509
      %s512 = sphi 0, %s511
      %s526 = sphi 0, %s512
      %s530 = sphi 0, %s530
      %s532 = sphi 0, %s530
      %s533 = sphi 0, %s532
      %s547 = sphi 0, %s533
      %s551 = sphi 0, %s551
      %s553 = sphi 0, %s551
      %s554 = sphi 0, %s553
      %s568 = sphi 0, %s554
      %s572 = sphi 0, %s572
      %s574 = sphi 0, %s572
      %s575 = sphi 0, %s574
      %s589 = sphi 0, %s575
      %s593 = sphi 0, %s593
      %s595 = sphi 0, %s593
      %s596 = sphi 0, %s595
      %s610 = sphi 0, %s596
      %s614 = sphi 0, %s614
      %s616 = sphi 0, %s614
      %s617 = sphi 0, %s616
      %s631 = sphi 0, %s617
      %s635 = sphi 0, %s635
      %s637 = sphi 0, %s635
      %s638 = sphi 0, %s637
      %s652 = sphi 0, %s638
      %s656 = sphi 0, %s656
      %s658 = sphi 0, %s656
      %s659 = sphi 0, %s658
      %s673 = sphi 0, %s659
      %s677 = sphi 0, %s677
      %s679 = sphi 0, %s677
      %s680 = sphi 0, %s679
      %s694 = sphi 0, %s680
      %s698 = sphi 0, %s698
      %s700 = sphi 0, %s698
      %s701 = sphi 0, %s700
      %s715 = sphi 0, %s701
      %s723 = sphi 0, %s725
      %s726 = sphi 0, %s723
      %s727 = sphi 0, %s726
      %s743 = sphi 0, %s727
      %s751 = sphi 0, %s753
      %s754 = sphi 0, %s751
      %s755 = sphi 0, %s754
      %s771 = sphi 0, %s755
    $region4: #{transformer3d_forward.2} parent=1 // loop_header_branch
      %76 = sbr.rel (%p74) target = $region8
    $region5: #{transformer3d_forward.2} parent=1 // loop_body
      %s78 = ssub.s32 %s73, 1
      %s79 = ssub.s32 %s73, 2
      %s86 = sadd.s32 1, %s81
      %p87 = scmp.ge.s32.totalorder %s86, 2
      %s88 = scalar_select %p87, 0, %s86
      %s89 = sadd.s32 1, %s80
      %s90 = scalar_select %p87, %s89, %s80
      %p91 = scmp.ge.s32.totalorder %s90, 2
      %s92 = scalar_select %p91, 0, %s90
      %s93 = ssub.s32 %s80, %s92
      %p94 = scmp.eq.s32.totalorder %s93, 0
      %s96 = sadd.s32 %s95, 1
      %s97 = scalar_select %p94, %s95, %s96
      %p100 = pneg %p94
      %p101 = scmp.eq.s32.totalorder %s73, 3
      %p102 = por %p100, %p101
      %p103 = scmp.ne.s32.totalorder %s95, %s98
      %p104 = scmp.eq.s32.totalorder %s73, 0
      %p105 = por %p103, %p104
      %p106 = scmp.ne.s32.totalorder %s95, %s98
      %p107 = scmp.eq.s32.totalorder %s78, 3
      %p108 = por %p106, %p107
      %p109 = scmp.ne.s32.totalorder %s98, %s99
      %p110 = scmp.eq.s32.totalorder %s78, 0
      %p111 = por %p109, %p110
      %p112 = scmp.ne.s32.totalorder %s98, %s99
      %p113 = scmp.eq.s32.totalorder %s79, 3
      %p114 = por %p112, %p113
      %p116 = scmp.ne.s32.totalorder %s99, %s115
      %p117 = scmp.eq.s32.totalorder %s79, 0
      %p118 = por %p116, %p117
      %s119 = ssub.s32 %s80, %s92
      %p120 = scmp.eq.s32.totalorder %s119, 0
      %s122 = sadd.s32 %s121, 1
      %s123 = scalar_select %p120, %s121, %s122
      %p126 = pneg %p120
      %p127 = scmp.eq.s32.totalorder %s73, 3
      %p128 = por %p126, %p127
      %p129 = scmp.ne.s32.totalorder %s121, %s124
      %p130 = scmp.eq.s32.totalorder %s73, 0
      %p131 = por %p129, %p130
      %p132 = scmp.ne.s32.totalorder %s121, %s124
      %p133 = scmp.eq.s32.totalorder %s78, 3
      %p134 = por %p132, %p133
      %p135 = scmp.ne.s32.totalorder %s124, %s125
      %p136 = scmp.eq.s32.totalorder %s78, 0
      %p137 = por %p135, %p136
      %p138 = scmp.ne.s32.totalorder %s124, %s125
      %p139 = scmp.eq.s32.totalorder %s79, 3
      %p140 = por %p138, %p139
      %p142 = scmp.ne.s32.totalorder %s125, %s141
      %p143 = scmp.eq.s32.totalorder %s79, 0
      %p144 = por %p142, %p143
      %s145 = ssub.s32 %s80, %s92
      %s146 = ssub.s32 %s81, %s88
      %s147 = sor.u32 %s145, %s146
      %p148 = scmp.eq.s32.totalorder %s147, 0
      %s150 = sadd.s32 %s149, 1
      %s151 = scalar_select %p148, %s149, %s150
      %p154 = pneg %p148
      %p155 = scmp.eq.s32.totalorder %s73, 3
      %p156 = por %p154, %p155
      %p157 = scmp.ne.s32.totalorder %s149, %s152
      %p158 = scmp.eq.s32.totalorder %s73, 0
      %p159 = por %p157, %p158
      %p160 = scmp.ne.s32.totalorder %s149, %s152
      %p161 = scmp.eq.s32.totalorder %s78, 3
      %p162 = por %p160, %p161
      %p163 = scmp.ne.s32.totalorder %s152, %s153
      %p164 = scmp.eq.s32.totalorder %s78, 0
      %p165 = por %p163, %p164
      %p166 = scmp.ne.s32.totalorder %s152, %s153
      %p167 = scmp.eq.s32.totalorder %s79, 3
      %p168 = por %p166, %p167
      %p170 = scmp.ne.s32.totalorder %s153, %s169
      %p171 = scmp.eq.s32.totalorder %s79, 0
      %p172 = por %p170, %p171
      %s174 = sadd.s32 %s173, 1
      %p177 = scmp.eq.s32.totalorder %s73, 3
      %p178 = scmp.ne.s32.totalorder %s173, %s175
      %p179 = scmp.eq.s32.totalorder %s73, 0
      %p180 = por %p178, %p179
      %p181 = scmp.ne.s32.totalorder %s173, %s175
      %p182 = scmp.eq.s32.totalorder %s78, 3
      %p183 = por %p181, %p182
      %p184 = scmp.ne.s32.totalorder %s175, %s176
      %p185 = scmp.eq.s32.totalorder %s78, 0
      %p186 = por %p184, %p185
      %p187 = scmp.ne.s32.totalorder %s175, %s176
      %p188 = scmp.eq.s32.totalorder %s79, 3
      %p189 = por %p187, %p188
      %p191 = scmp.ne.s32.totalorder %s176, %s190
      %p192 = scmp.eq.s32.totalorder %s79, 0
      %p193 = por %p191, %p192
      %s195 = sadd.s32 %s194, 1
      %p198 = scmp.eq.s32.totalorder %s73, 3
      %p199 = scmp.ne.s32.totalorder %s194, %s196
      %p200 = scmp.eq.s32.totalorder %s73, 0
      %p201 = por %p199, %p200
      %p202 = scmp.ne.s32.totalorder %s194, %s196
      %p203 = scmp.eq.s32.totalorder %s78, 3
      %p204 = por %p202, %p203
      %p205 = scmp.ne.s32.totalorder %s196, %s197
      %p206 = scmp.eq.s32.totalorder %s78, 0
      %p207 = por %p205, %p206
      %p208 = scmp.ne.s32.totalorder %s196, %s197
      %p209 = scmp.eq.s32.totalorder %s79, 3
      %p210 = por %p208, %p209
      %p212 = scmp.ne.s32.totalorder %s197, %s211
      %p213 = scmp.eq.s32.totalorder %s79, 0
      %p214 = por %p212, %p213
      %s216 = sadd.s32 %s215, 1
      %p219 = scmp.eq.s32.totalorder %s73, 3
      %p220 = scmp.ne.s32.totalorder %s215, %s217
      %p221 = scmp.eq.s32.totalorder %s73, 0
      %p222 = por %p220, %p221
      %p223 = scmp.ne.s32.totalorder %s215, %s217
      %p224 = scmp.eq.s32.totalorder %s78, 3
      %p225 = por %p223, %p224
      %p226 = scmp.ne.s32.totalorder %s217, %s218
      %p227 = scmp.eq.s32.totalorder %s78, 0
      %p228 = por %p226, %p227
      %p229 = scmp.ne.s32.totalorder %s217, %s218
      %p230 = scmp.eq.s32.totalorder %s79, 3
      %p231 = por %p229, %p230
      %p233 = scmp.ne.s32.totalorder %s218, %s232
      %p234 = scmp.eq.s32.totalorder %s79, 0
      %p235 = por %p233, %p234
      %s237 = sadd.s32 %s236, 1
      %p240 = scmp.eq.s32.totalorder %s73, 3
      %p241 = scmp.ne.s32.totalorder %s236, %s238
      %p242 = scmp.eq.s32.totalorder %s73, 0
      %p243 = por %p241, %p242
      %p244 = scmp.ne.s32.totalorder %s236, %s238
      %p245 = scmp.eq.s32.totalorder %s78, 3
      %p246 = por %p244, %p245
      %p247 = scmp.ne.s32.totalorder %s238, %s239
      %p248 = scmp.eq.s32.totalorder %s78, 0
      %p249 = por %p247, %p248
      %p250 = scmp.ne.s32.totalorder %s238, %s239
      %p251 = scmp.eq.s32.totalorder %s79, 3
      %p252 = por %p250, %p251
      %p254 = scmp.ne.s32.totalorder %s239, %s253
      %p255 = scmp.eq.s32.totalorder %s79, 0
      %p256 = por %p254, %p255
      %s258 = sadd.s32 %s257, 1
      %p261 = scmp.eq.s32.totalorder %s73, 3
      %p262 = scmp.ne.s32.totalorder %s257, %s259
      %p263 = scmp.eq.s32.totalorder %s73, 0
      %p264 = por %p262, %p263
      %p265 = scmp.ne.s32.totalorder %s257, %s259
      %p266 = scmp.eq.s32.totalorder %s78, 3
      %p267 = por %p265, %p266
      %p268 = scmp.ne.s32.totalorder %s259, %s260
      %p269 = scmp.eq.s32.totalorder %s78, 0
      %p270 = por %p268, %p269
      %p271 = scmp.ne.s32.totalorder %s259, %s260
      %p272 = scmp.eq.s32.totalorder %s79, 3
      %p273 = por %p271, %p272
      %p275 = scmp.ne.s32.totalorder %s260, %s274
      %p276 = scmp.eq.s32.totalorder %s79, 0
      %p277 = por %p275, %p276
      %s279 = sadd.s32 %s278, 1
      %p282 = scmp.eq.s32.totalorder %s73, 3
      %p283 = scmp.ne.s32.totalorder %s278, %s280
      %p284 = scmp.eq.s32.totalorder %s73, 0
      %p285 = por %p283, %p284
      %p286 = scmp.ne.s32.totalorder %s278, %s280
      %p287 = scmp.eq.s32.totalorder %s78, 3
      %p288 = por %p286, %p287
      %p289 = scmp.ne.s32.totalorder %s280, %s281
      %p290 = scmp.eq.s32.totalorder %s78, 0
      %p291 = por %p289, %p290
      %p292 = scmp.ne.s32.totalorder %s280, %s281
      %p293 = scmp.eq.s32.totalorder %s79, 3
      %p294 = por %p292, %p293
      %p296 = scmp.ne.s32.totalorder %s281, %s295
      %p297 = scmp.eq.s32.totalorder %s79, 0
      %p298 = por %p296, %p297
      %s300 = sadd.s32 %s299, 1
      %p303 = scmp.eq.s32.totalorder %s73, 3
      %p304 = scmp.ne.s32.totalorder %s299, %s301
      %p305 = scmp.eq.s32.totalorder %s73, 0
      %p306 = por %p304, %p305
      %p307 = scmp.ne.s32.totalorder %s299, %s301
      %p308 = scmp.eq.s32.totalorder %s78, 3
      %p309 = por %p307, %p308
      %p310 = scmp.ne.s32.totalorder %s301, %s302
      %p311 = scmp.eq.s32.totalorder %s78, 0
      %p312 = por %p310, %p311
      %p313 = scmp.ne.s32.totalorder %s301, %s302
      %p314 = scmp.eq.s32.totalorder %s79, 3
      %p315 = por %p313, %p314
      %p317 = scmp.ne.s32.totalorder %s302, %s316
      %p318 = scmp.eq.s32.totalorder %s79, 0
      %p319 = por %p317, %p318
      %s321 = sadd.s32 %s320, 1
      %p324 = scmp.eq.s32.totalorder %s73, 3
      %p325 = scmp.ne.s32.totalorder %s320, %s322
      %p326 = scmp.eq.s32.totalorder %s73, 0
      %p327 = por %p325, %p326
      %p328 = scmp.ne.s32.totalorder %s320, %s322
      %p329 = scmp.eq.s32.totalorder %s78, 3
      %p330 = por %p328, %p329
      %p331 = scmp.ne.s32.totalorder %s322, %s323
      %p332 = scmp.eq.s32.totalorder %s78, 0
      %p333 = por %p331, %p332
      %p334 = scmp.ne.s32.totalorder %s322, %s323
      %p335 = scmp.eq.s32.totalorder %s79, 3
      %p336 = por %p334, %p335
      %p338 = scmp.ne.s32.totalorder %s323, %s337
      %p339 = scmp.eq.s32.totalorder %s79, 0
      %p340 = por %p338, %p339
      %s342 = sadd.s32 %s341, 1
      %p345 = scmp.eq.s32.totalorder %s73, 3
      %p346 = scmp.ne.s32.totalorder %s341, %s343
      %p347 = scmp.eq.s32.totalorder %s73, 0
      %p348 = por %p346, %p347
      %p349 = scmp.ne.s32.totalorder %s341, %s343
      %p350 = scmp.eq.s32.totalorder %s78, 3
      %p351 = por %p349, %p350
      %p352 = scmp.ne.s32.totalorder %s343, %s344
      %p353 = scmp.eq.s32.totalorder %s78, 0
      %p354 = por %p352, %p353
      %p355 = scmp.ne.s32.totalorder %s343, %s344
      %p356 = scmp.eq.s32.totalorder %s79, 3
      %p357 = por %p355, %p356
      %p359 = scmp.ne.s32.totalorder %s344, %s358
      %p360 = scmp.eq.s32.totalorder %s79, 0
      %p361 = por %p359, %p360
      %s363 = sadd.s32 %s362, 1
      %p366 = scmp.eq.s32.totalorder %s73, 3
      %p367 = scmp.ne.s32.totalorder %s362, %s364
      %p368 = scmp.eq.s32.totalorder %s73, 0
      %p369 = por %p367, %p368
      %p370 = scmp.ne.s32.totalorder %s362, %s364
      %p371 = scmp.eq.s32.totalorder %s78, 3
      %p372 = por %p370, %p371
      %p373 = scmp.ne.s32.totalorder %s364, %s365
      %p374 = scmp.eq.s32.totalorder %s78, 0
      %p375 = por %p373, %p374
      %p376 = scmp.ne.s32.totalorder %s364, %s365
      %p377 = scmp.eq.s32.totalorder %s79, 3
      %p378 = por %p376, %p377
      %p380 = scmp.ne.s32.totalorder %s365, %s379
      %p381 = scmp.eq.s32.totalorder %s79, 0
      %p382 = por %p380, %p381
      %s384 = sadd.s32 %s383, 1
      %p387 = scmp.eq.s32.totalorder %s73, 3
      %p388 = scmp.ne.s32.totalorder %s383, %s385
      %p389 = scmp.eq.s32.totalorder %s73, 0
      %p390 = por %p388, %p389
      %p391 = scmp.ne.s32.totalorder %s383, %s385
      %p392 = scmp.eq.s32.totalorder %s78, 3
      %p393 = por %p391, %p392
      %p394 = scmp.ne.s32.totalorder %s385, %s386
      %p395 = scmp.eq.s32.totalorder %s78, 0
      %p396 = por %p394, %p395
      %p397 = scmp.ne.s32.totalorder %s385, %s386
      %p398 = scmp.eq.s32.totalorder %s79, 3
      %p399 = por %p397, %p398
      %p401 = scmp.ne.s32.totalorder %s386, %s400
      %p402 = scmp.eq.s32.totalorder %s79, 0
      %p403 = por %p401, %p402
      %s405 = sadd.s32 %s404, 1
      %p408 = scmp.eq.s32.totalorder %s73, 3
      %p409 = scmp.ne.s32.totalorder %s404, %s406
      %p410 = scmp.eq.s32.totalorder %s73, 0
      %p411 = por %p409, %p410
      %p412 = scmp.ne.s32.totalorder %s404, %s406
      %p413 = scmp.eq.s32.totalorder %s78, 3
      %p414 = por %p412, %p413
      %p415 = scmp.ne.s32.totalorder %s406, %s407
      %p416 = scmp.eq.s32.totalorder %s78, 0
      %p417 = por %p415, %p416
      %p418 = scmp.ne.s32.totalorder %s406, %s407
      %p419 = scmp.eq.s32.totalorder %s79, 3
      %p420 = por %p418, %p419
      %p422 = scmp.ne.s32.totalorder %s407, %s421
      %p423 = scmp.eq.s32.totalorder %s79, 0
      %p424 = por %p422, %p423
      %s426 = sadd.s32 %s425, 1
      %p429 = scmp.eq.s32.totalorder %s73, 3
      %p430 = scmp.ne.s32.totalorder %s425, %s427
      %p431 = scmp.eq.s32.totalorder %s73, 0
      %p432 = por %p430, %p431
      %p433 = scmp.ne.s32.totalorder %s425, %s427
      %p434 = scmp.eq.s32.totalorder %s78, 3
      %p435 = por %p433, %p434
      %p436 = scmp.ne.s32.totalorder %s427, %s428
      %p437 = scmp.eq.s32.totalorder %s78, 0
      %p438 = por %p436, %p437
      %p439 = scmp.ne.s32.totalorder %s427, %s428
      %p440 = scmp.eq.s32.totalorder %s79, 3
      %p441 = por %p439, %p440
      %p443 = scmp.ne.s32.totalorder %s428, %s442
      %p444 = scmp.eq.s32.totalorder %s79, 0
      %p445 = por %p443, %p444
      %s447 = sadd.s32 %s446, 1
      %p450 = scmp.eq.s32.totalorder %s73, 3
      %p451 = scmp.ne.s32.totalorder %s446, %s448
      %p452 = scmp.eq.s32.totalorder %s73, 0
      %p453 = por %p451, %p452
      %p454 = scmp.ne.s32.totalorder %s446, %s448
      %p455 = scmp.eq.s32.totalorder %s78, 3
      %p456 = por %p454, %p455
      %p457 = scmp.ne.s32.totalorder %s448, %s449
      %p458 = scmp.eq.s32.totalorder %s78, 0
      %p459 = por %p457, %p458
      %p460 = scmp.ne.s32.totalorder %s448, %s449
      %p461 = scmp.eq.s32.totalorder %s79, 3
      %p462 = por %p460, %p461
      %p464 = scmp.ne.s32.totalorder %s449, %s463
      %p465 = scmp.eq.s32.totalorder %s79, 0
      %p466 = por %p464, %p465
      %s468 = sadd.s32 %s467, 1
      %p471 = scmp.eq.s32.totalorder %s73, 3
      %p472 = scmp.ne.s32.totalorder %s467, %s469
      %p473 = scmp.eq.s32.totalorder %s73, 0
      %p474 = por %p472, %p473
      %p475 = scmp.ne.s32.totalorder %s467, %s469
      %p476 = scmp.eq.s32.totalorder %s78, 3
      %p477 = por %p475, %p476
      %p478 = scmp.ne.s32.totalorder %s469, %s470
      %p479 = scmp.eq.s32.totalorder %s78, 0
      %p480 = por %p478, %p479
      %p481 = scmp.ne.s32.totalorder %s469, %s470
      %p482 = scmp.eq.s32.totalorder %s79, 3
      %p483 = por %p481, %p482
      %p485 = scmp.ne.s32.totalorder %s470, %s484
      %p486 = scmp.eq.s32.totalorder %s79, 0
      %p487 = por %p485, %p486
      %s489 = sadd.s32 %s488, 1
      %p492 = scmp.eq.s32.totalorder %s73, 3
      %p493 = scmp.ne.s32.totalorder %s488, %s490
      %p494 = scmp.eq.s32.totalorder %s73, 0
      %p495 = por %p493, %p494
      %p496 = scmp.ne.s32.totalorder %s488, %s490
      %p497 = scmp.eq.s32.totalorder %s78, 3
      %p498 = por %p496, %p497
      %p499 = scmp.ne.s32.totalorder %s490, %s491
      %p500 = scmp.eq.s32.totalorder %s78, 0
      %p501 = por %p499, %p500
      %p502 = scmp.ne.s32.totalorder %s490, %s491
      %p503 = scmp.eq.s32.totalorder %s79, 3
      %p504 = por %p502, %p503
      %p506 = scmp.ne.s32.totalorder %s491, %s505
      %p507 = scmp.eq.s32.totalorder %s79, 0
      %p508 = por %p506, %p507
      %s510 = sadd.s32 %s509, 1
      %p513 = scmp.eq.s32.totalorder %s73, 3
      %p514 = scmp.ne.s32.totalorder %s509, %s511
      %p515 = scmp.eq.s32.totalorder %s73, 0
      %p516 = por %p514, %p515
      %p517 = scmp.ne.s32.totalorder %s509, %s511
      %p518 = scmp.eq.s32.totalorder %s78, 3
      %p519 = por %p517, %p518
      %p520 = scmp.ne.s32.totalorder %s511, %s512
      %p521 = scmp.eq.s32.totalorder %s78, 0
      %p522 = por %p520, %p521
      %p523 = scmp.ne.s32.totalorder %s511, %s512
      %p524 = scmp.eq.s32.totalorder %s79, 3
      %p525 = por %p523, %p524
      %p527 = scmp.ne.s32.totalorder %s512, %s526
      %p528 = scmp.eq.s32.totalorder %s79, 0
      %p529 = por %p527, %p528
      %s531 = sadd.s32 %s530, 1
      %p534 = scmp.eq.s32.totalorder %s73, 3
      %p535 = scmp.ne.s32.totalorder %s530, %s532
      %p536 = scmp.eq.s32.totalorder %s73, 0
      %p537 = por %p535, %p536
      %p538 = scmp.ne.s32.totalorder %s530, %s532
      %p539 = scmp.eq.s32.totalorder %s78, 3
      %p540 = por %p538, %p539
      %p541 = scmp.ne.s32.totalorder %s532, %s533
      %p542 = scmp.eq.s32.totalorder %s78, 0
      %p543 = por %p541, %p542
      %p544 = scmp.ne.s32.totalorder %s532, %s533
      %p545 = scmp.eq.s32.totalorder %s79, 3
      %p546 = por %p544, %p545
      %p548 = scmp.ne.s32.totalorder %s533, %s547
      %p549 = scmp.eq.s32.totalorder %s79, 0
      %p550 = por %p548, %p549
      %s552 = sadd.s32 %s551, 1
      %p555 = scmp.eq.s32.totalorder %s73, 3
      %p556 = scmp.ne.s32.totalorder %s551, %s553
      %p557 = scmp.eq.s32.totalorder %s73, 0
      %p558 = por %p556, %p557
      %p559 = scmp.ne.s32.totalorder %s551, %s553
      %p560 = scmp.eq.s32.totalorder %s78, 3
      %p561 = por %p559, %p560
      %p562 = scmp.ne.s32.totalorder %s553, %s554
      %p563 = scmp.eq.s32.totalorder %s78, 0
      %p564 = por %p562, %p563
      %p565 = scmp.ne.s32.totalorder %s553, %s554
      %p566 = scmp.eq.s32.totalorder %s79, 3
      %p567 = por %p565, %p566
      %p569 = scmp.ne.s32.totalorder %s554, %s568
      %p570 = scmp.eq.s32.totalorder %s79, 0
      %p571 = por %p569, %p570
      %s573 = sadd.s32 %s572, 1
      %p576 = scmp.eq.s32.totalorder %s73, 3
      %p577 = scmp.ne.s32.totalorder %s572, %s574
      %p578 = scmp.eq.s32.totalorder %s73, 0
      %p579 = por %p577, %p578
      %p580 = scmp.ne.s32.totalorder %s572, %s574
      %p581 = scmp.eq.s32.totalorder %s78, 3
      %p582 = por %p580, %p581
      %p583 = scmp.ne.s32.totalorder %s574, %s575
      %p584 = scmp.eq.s32.totalorder %s78, 0
      %p585 = por %p583, %p584
      %p586 = scmp.ne.s32.totalorder %s574, %s575
      %p587 = scmp.eq.s32.totalorder %s79, 3
      %p588 = por %p586, %p587
      %p590 = scmp.ne.s32.totalorder %s575, %s589
      %p591 = scmp.eq.s32.totalorder %s79, 0
      %p592 = por %p590, %p591
      %s594 = sadd.s32 %s593, 1
      %p597 = scmp.eq.s32.totalorder %s73, 3
      %p598 = scmp.ne.s32.totalorder %s593, %s595
      %p599 = scmp.eq.s32.totalorder %s73, 0
      %p600 = por %p598, %p599
      %p601 = scmp.ne.s32.totalorder %s593, %s595
      %p602 = scmp.eq.s32.totalorder %s78, 3
      %p603 = por %p601, %p602
      %p604 = scmp.ne.s32.totalorder %s595, %s596
      %p605 = scmp.eq.s32.totalorder %s78, 0
      %p606 = por %p604, %p605
      %p607 = scmp.ne.s32.totalorder %s595, %s596
      %p608 = scmp.eq.s32.totalorder %s79, 3
      %p609 = por %p607, %p608
      %p611 = scmp.ne.s32.totalorder %s596, %s610
      %p612 = scmp.eq.s32.totalorder %s79, 0
      %p613 = por %p611, %p612
      %s615 = sadd.s32 %s614, 1
      %p618 = scmp.eq.s32.totalorder %s73, 3
      %p619 = scmp.ne.s32.totalorder %s614, %s616
      %p620 = scmp.eq.s32.totalorder %s73, 0
      %p621 = por %p619, %p620
      %p622 = scmp.ne.s32.totalorder %s614, %s616
      %p623 = scmp.eq.s32.totalorder %s78, 3
      %p624 = por %p622, %p623
      %p625 = scmp.ne.s32.totalorder %s616, %s617
      %p626 = scmp.eq.s32.totalorder %s78, 0
      %p627 = por %p625, %p626
      %p628 = scmp.ne.s32.totalorder %s616, %s617
      %p629 = scmp.eq.s32.totalorder %s79, 3
      %p630 = por %p628, %p629
      %p632 = scmp.ne.s32.totalorder %s617, %s631
      %p633 = scmp.eq.s32.totalorder %s79, 0
      %p634 = por %p632, %p633
      %s636 = sadd.s32 %s635, 1
      %p639 = scmp.eq.s32.totalorder %s73, 3
      %p640 = scmp.ne.s32.totalorder %s635, %s637
      %p641 = scmp.eq.s32.totalorder %s73, 0
      %p642 = por %p640, %p641
      %p643 = scmp.ne.s32.totalorder %s635, %s637
      %p644 = scmp.eq.s32.totalorder %s78, 3
      %p645 = por %p643, %p644
      %p646 = scmp.ne.s32.totalorder %s637, %s638
      %p647 = scmp.eq.s32.totalorder %s78, 0
      %p648 = por %p646, %p647
      %p649 = scmp.ne.s32.totalorder %s637, %s638
      %p650 = scmp.eq.s32.totalorder %s79, 3
      %p651 = por %p649, %p650
      %p653 = scmp.ne.s32.totalorder %s638, %s652
      %p654 = scmp.eq.s32.totalorder %s79, 0
      %p655 = por %p653, %p654
      %s657 = sadd.s32 %s656, 1
      %p660 = scmp.eq.s32.totalorder %s73, 3
      %p661 = scmp.ne.s32.totalorder %s656, %s658
      %p662 = scmp.eq.s32.totalorder %s73, 0
      %p663 = por %p661, %p662
      %p664 = scmp.ne.s32.totalorder %s656, %s658
      %p665 = scmp.eq.s32.totalorder %s78, 3
      %p666 = por %p664, %p665
      %p667 = scmp.ne.s32.totalorder %s658, %s659
      %p668 = scmp.eq.s32.totalorder %s78, 0
      %p669 = por %p667, %p668
      %p670 = scmp.ne.s32.totalorder %s658, %s659
      %p671 = scmp.eq.s32.totalorder %s79, 3
      %p672 = por %p670, %p671
      %p674 = scmp.ne.s32.totalorder %s659, %s673
      %p675 = scmp.eq.s32.totalorder %s79, 0
      %p676 = por %p674, %p675
      %s678 = sadd.s32 %s677, 1
      %p681 = scmp.eq.s32.totalorder %s73, 3
      %p682 = scmp.ne.s32.totalorder %s677, %s679
      %p683 = scmp.eq.s32.totalorder %s73, 0
      %p684 = por %p682, %p683
      %p685 = scmp.ne.s32.totalorder %s677, %s679
      %p686 = scmp.eq.s32.totalorder %s78, 3
      %p687 = por %p685, %p686
      %p688 = scmp.ne.s32.totalorder %s679, %s680
      %p689 = scmp.eq.s32.totalorder %s78, 0
      %p690 = por %p688, %p689
      %p691 = scmp.ne.s32.totalorder %s679, %s680
      %p692 = scmp.eq.s32.totalorder %s79, 3
      %p693 = por %p691, %p692
      %p695 = scmp.ne.s32.totalorder %s680, %s694
      %p696 = scmp.eq.s32.totalorder %s79, 0
      %p697 = por %p695, %p696
      %s699 = sadd.s32 %s698, 1
      %p702 = scmp.eq.s32.totalorder %s73, 3
      %p703 = scmp.ne.s32.totalorder %s698, %s700
      %p704 = scmp.eq.s32.totalorder %s73, 0
      %p705 = por %p703, %p704
      %p706 = scmp.ne.s32.totalorder %s698, %s700
      %p707 = scmp.eq.s32.totalorder %s78, 3
      %p708 = por %p706, %p707
      %p709 = scmp.ne.s32.totalorder %s700, %s701
      %p710 = scmp.eq.s32.totalorder %s78, 0
      %p711 = por %p709, %p710
      %p712 = scmp.ne.s32.totalorder %s700, %s701
      %p713 = scmp.eq.s32.totalorder %s79, 3
      %p714 = por %p712, %p713
      %p716 = scmp.ne.s32.totalorder %s701, %s715
      %p717 = scmp.eq.s32.totalorder %s79, 0
      %p718 = por %p716, %p717
      %s719 = ssub.s32 %s80, %s92
      %s720 = ssub.s32 %s81, %s88
      %s721 = sor.u32 %s719, %s720
      %p722 = scmp.eq.s32.totalorder %s721, 0
      %s724 = sadd.s32 %s723, 1
      %s725 = scalar_select %p722, %s723, %s724
      %p728 = pneg %p722
      %p729 = scmp.eq.s32.totalorder %s73, 3
      %p730 = por %p728, %p729
      %p731 = scmp.ne.s32.totalorder %s723, %s726
      %p732 = scmp.eq.s32.totalorder %s73, 0
      %p733 = por %p731, %p732
      %p734 = scmp.ne.s32.totalorder %s723, %s726
      %p735 = scmp.eq.s32.totalorder %s78, 3
      %p736 = por %p734, %p735
      %p737 = scmp.ne.s32.totalorder %s726, %s727
      %p738 = scmp.eq.s32.totalorder %s78, 0
      %p739 = por %p737, %p738
      %p740 = scmp.ne.s32.totalorder %s726, %s727
      %p741 = scmp.eq.s32.totalorder %s79, 3
      %p742 = por %p740, %p741
      %p744 = scmp.ne.s32.totalorder %s727, %s743
      %p745 = scmp.eq.s32.totalorder %s79, 0
      %p746 = por %p744, %p745
      %s747 = ssub.s32 %s80, %s92
      %s748 = ssub.s32 %s81, %s88
      %s749 = sor.u32 %s747, %s748
      %p750 = scmp.eq.s32.totalorder %s749, 0
      %s752 = sadd.s32 %s751, 1
      %s753 = scalar_select %p750, %s751, %s752
      %p756 = pneg %p750
      %p757 = scmp.eq.s32.totalorder %s73, 3
      %p758 = por %p756, %p757
      %p759 = scmp.ne.s32.totalorder %s751, %s754
      %p760 = scmp.eq.s32.totalorder %s73, 0
      %p761 = por %p759, %p760
      %p762 = scmp.ne.s32.totalorder %s751, %s754
      %p763 = scmp.eq.s32.totalorder %s78, 3
      %p764 = por %p762, %p763
      %p765 = scmp.ne.s32.totalorder %s754, %s755
      %p766 = scmp.eq.s32.totalorder %s78, 0
      %p767 = por %p765, %p766
      %p768 = scmp.ne.s32.totalorder %s754, %s755
      %p769 = scmp.eq.s32.totalorder %s79, 3
      %p770 = por %p768, %p769
      %p772 = scmp.ne.s32.totalorder %s755, %s771
      %p773 = scmp.eq.s32.totalorder %s79, 0
      %p774 = por %p772, %p773
      %p775 = scmp.le.s32.totalorder 1, %s73
      %p776 = scmp.lt.s32.totalorder %s73, 5
      %p777 = pnand %p775, %p776
      %p778 = pneg %p777
      // Predicated region
      $region9: #{transformer3d_forward.2} parent=5 // pred_check
        _
      $region10: #{transformer3d_forward.2} parent=5 // pred_check_branch
        %780 = sbr.rel (%p777) target = $region12
      $region11: #{transformer3d_forward.2} parent=5 // pred_region
        %s781 = ssub.s32 %s73, 1
        // Predicated region
        $region13: #{transformer3d_forward.2} parent=11 // pred_check
          %p782 = pneg %p186
        $region14: #{transformer3d_forward.2} parent=11 // pred_check_branch
          %784 = sbr.rel (%p782) target = $region16
        $region15: #{transformer3d_forward.2} parent=11 // pred_region
          _
        $region16: #{transformer3d_forward.2} parent=11 // pred_fallthru
          _
        // Predicated region
        $region17: #{transformer3d_forward.2} parent=11 // pred_check
          %p785 = pneg %p207
        $region18: #{transformer3d_forward.2} parent=11 // pred_check_branch
          %787 = sbr.rel (%p785) target = $region20
        $region19: #{transformer3d_forward.2} parent=11 // pred_region
          %s789 = ssub.s32 16, 16
          %790 = vsyncadd [#allocation5], %s789
          %s792 = sshll.u32 [#allocation4], 4
          %s793 = int_to_ptr.vmem [resolvable:$true] %s792
          %795 = dma.hbm_to_vmem [thread:$0]  %s9, 16, %s793, [#allocation5]
        $region20: #{transformer3d_forward.2} parent=11 // pred_fallthru
          _
        // Predicated region
        $region21: #{transformer3d_forward.2} parent=11 // pred_check
          %p796 = pneg %p228
        $region22: #{transformer3d_forward.2} parent=11 // pred_check_branch
          %798 = sbr.rel (%p796) target = $region24
        $region23: #{transformer3d_forward.2} parent=11 // pred_region
          _
        $region24: #{transformer3d_forward.2} parent=11 // pred_fallthru
          _
        // Predicated region
        $region25: #{transformer3d_forward.2} parent=11 // pred_check
          %p799 = pneg %p249
        $region26: #{transformer3d_forward.2} parent=11 // pred_check_branch
          %801 = sbr.rel (%p799) target = $region28
        $region27: #{transformer3d_forward.2} parent=11 // pred_region
          %s803 = ssub.s32 16, 16
          %804 = vsyncadd [#allocation7], %s803
          %s806 = sshll.u32 [#allocation6], 4
          %s807 = int_to_ptr.vmem [resolvable:$true] %s806
          %809 = dma.hbm_to_vmem [thread:$0]  %s13, 16, %s807, [#allocation7]
        $region28: #{transformer3d_forward.2} parent=11 // pred_fallthru
          _
        // Predicated region
        $region29: #{transformer3d_forward.2} parent=11 // pred_check
          %p810 = pneg %p270
        $region30: #{transformer3d_forward.2} parent=11 // pred_check_branch
          %812 = sbr.rel (%p810) target = $region32
        $region31: #{transformer3d_forward.2} parent=11 // pred_region
          _
        $region32: #{transformer3d_forward.2} parent=11 // pred_fallthru
          _
        // Predicated region
        $region33: #{transformer3d_forward.2} parent=11 // pred_check
          %p813 = pneg %p291
        $region34: #{transformer3d_forward.2} parent=11 // pred_check_branch
          %815 = sbr.rel (%p813) target = $region36
        $region35: #{transformer3d_forward.2} parent=11 // pred_region
          %s817 = ssub.s32 16, 16
          %818 = vsyncadd [#allocation7], %s817
          %s820 = sshll.u32 [#allocation8], 4
          %s821 = int_to_ptr.vmem [resolvable:$true] %s820
          %823 = dma.hbm_to_vmem [thread:$0]  %s17, 16, %s821, [#allocation7]
        $region36: #{transformer3d_forward.2} parent=11 // pred_fallthru
          _
        // Predicated region
        $region37: #{transformer3d_forward.2} parent=11 // pred_check
          %p824 = pneg %p312
        $region38: #{transformer3d_forward.2} parent=11 // pred_check_branch
          %826 = sbr.rel (%p824) target = $region40
        $region39: #{transformer3d_forward.2} parent=11 // pred_region
          _
        $region40: #{transformer3d_forward.2} parent=11 // pred_fallthru
          _
        // Predicated region
        $region41: #{transformer3d_forward.2} parent=11 // pred_check
          %p827 = pneg %p333
        $region42: #{transformer3d_forward.2} parent=11 // pred_check_branch
          %829 = sbr.rel (%p827) target = $region44
        $region43: #{transformer3d_forward.2} parent=11 // pred_region
          _
        $region44: #{transformer3d_forward.2} parent=11 // pred_fallthru
          _
        // Predicated region
        $region45: #{transformer3d_forward.2} parent=11 // pred_check
          %p830 = pneg %p354
        $region46: #{transformer3d_forward.2} parent=11 // pred_check_branch
          %832 = sbr.rel (%p830) target = $region48
        $region47: #{transformer3d_forward.2} parent=11 // pred_region
          _
        $region48: #{transformer3d_forward.2} parent=11 // pred_fallthru
          _
        // Predicated region
        $region49: #{transformer3d_forward.2} parent=11 // pred_check
          %p833 = pneg %p375
        $region50: #{transformer3d_forward.2} parent=11 // pred_check_branch
          %835 = sbr.rel (%p833) target = $region52
        $region51: #{transformer3d_forward.2} parent=11 // pred_region
          %s837 = ssub.s32 16, 16
          %838 = vsyncadd [#allocation10], %s837
          %s840 = sshll.u32 [#allocation9], 4
          %s841 = int_to_ptr.vmem [resolvable:$true] %s840
          %843 = dma.hbm_to_vmem [thread:$0]  %s25, 16, %s841, [#allocation10]
        $region52: #{transformer3d_forward.2} parent=11 // pred_fallthru
          _
        // Predicated region
        $region53: #{transformer3d_forward.2} parent=11 // pred_check
          %p844 = pneg %p396
        $region54: #{transformer3d_forward.2} parent=11 // pred_check_branch
          %846 = sbr.rel (%p844) target = $region56
        $region55: #{transformer3d_forward.2} parent=11 // pred_region
          _
        $region56: #{transformer3d_forward.2} parent=11 // pred_fallthru
          _
        // Predicated region
        $region57: #{transformer3d_forward.2} parent=11 // pred_check
          %p847 = pneg %p417
        $region58: #{transformer3d_forward.2} parent=11 // pred_check_branch
          %849 = sbr.rel (%p847) target = $region60
        $region59: #{transformer3d_forward.2} parent=11 // pred_region
          _
        $region60: #{transformer3d_forward.2} parent=11 // pred_fallthru
          _
        // Predicated region
        $region61: #{transformer3d_forward.2} parent=11 // pred_check
          %p850 = pneg %p438
        $region62: #{transformer3d_forward.2} parent=11 // pred_check_branch
          %852 = sbr.rel (%p850) target = $region64
        $region63: #{transformer3d_forward.2} parent=11 // pred_region
          _
        $region64: #{transformer3d_forward.2} parent=11 // pred_fallthru
          _
        // Predicated region
        $region65: #{transformer3d_forward.2} parent=11 // pred_check
          %p853 = pneg %p459
        $region66: #{transformer3d_forward.2} parent=11 // pred_check_branch
          %855 = sbr.rel (%p853) target = $region68
        $region67: #{transformer3d_forward.2} parent=11 // pred_region
          _
        $region68: #{transformer3d_forward.2} parent=11 // pred_fallthru
          _
        // Predicated region
        $region69: #{transformer3d_forward.2} parent=11 // pred_check
          %p856 = pneg %p480
        $region70: #{transformer3d_forward.2} parent=11 // pred_check_branch
          %858 = sbr.rel (%p856) target = $region72
        $region71: #{transformer3d_forward.2} parent=11 // pred_region
          _
        $region72: #{transformer3d_forward.2} parent=11 // pred_fallthru
          _
        // Predicated region
        $region73: #{transformer3d_forward.2} parent=11 // pred_check
          %p859 = pneg %p501
        $region74: #{transformer3d_forward.2} parent=11 // pred_check_branch
          %861 = sbr.rel (%p859) target = $region76
        $region75: #{transformer3d_forward.2} parent=11 // pred_region
          _
        $region76: #{transformer3d_forward.2} parent=11 // pred_fallthru
          _
        // Predicated region
        $region77: #{transformer3d_forward.2} parent=11 // pred_check
          %p862 = pneg %p522
        $region78: #{transformer3d_forward.2} parent=11 // pred_check_branch
          %864 = sbr.rel (%p862) target = $region80
        $region79: #{transformer3d_forward.2} parent=11 // pred_region
          _
        $region80: #{transformer3d_forward.2} parent=11 // pred_fallthru
          _
        // Predicated region
        $region81: #{transformer3d_forward.2} parent=11 // pred_check
          %p865 = pneg %p543
        $region82: #{transformer3d_forward.2} parent=11 // pred_check_branch
          %867 = sbr.rel (%p865) target = $region84
        $region83: #{transformer3d_forward.2} parent=11 // pred_region
          _
        $region84: #{transformer3d_forward.2} parent=11 // pred_fallthru
          _
        // Predicated region
        $region85: #{transformer3d_forward.2} parent=11 // pred_check
          %p868 = pneg %p564
        $region86: #{transformer3d_forward.2} parent=11 // pred_check_branch
          %870 = sbr.rel (%p868) target = $region88
        $region87: #{transformer3d_forward.2} parent=11 // pred_region
          _
        $region88: #{transformer3d_forward.2} parent=11 // pred_fallthru
          _
        // Predicated region
        $region89: #{transformer3d_forward.2} parent=11 // pred_check
          %p871 = pneg %p585
        $region90: #{transformer3d_forward.2} parent=11 // pred_check_branch
          %873 = sbr.rel (%p871) target = $region92
        $region91: #{transformer3d_forward.2} parent=11 // pred_region
          _
        $region92: #{transformer3d_forward.2} parent=11 // pred_fallthru
          _
        // Predicated region
        $region93: #{transformer3d_forward.2} parent=11 // pred_check
          %p874 = pneg %p606
        $region94: #{transformer3d_forward.2} parent=11 // pred_check_branch
          %876 = sbr.rel (%p874) target = $region96
        $region95: #{transformer3d_forward.2} parent=11 // pred_region
          _
        $region96: #{transformer3d_forward.2} parent=11 // pred_fallthru
          _
        // Predicated region
        $region97: #{transformer3d_forward.2} parent=11 // pred_check
          %p877 = pneg %p627
        $region98: #{transformer3d_forward.2} parent=11 // pred_check_branch
          %879 = sbr.rel (%p877) target = $region100
        $region99: #{transformer3d_forward.2} parent=11 // pred_region
          _
        $region100: #{transformer3d_forward.2} parent=11 // pred_fallthru
          _
        // Predicated region
        $region101: #{transformer3d_forward.2} parent=11 // pred_check
          %p880 = pneg %p648
        $region102: #{transformer3d_forward.2} parent=11 // pred_check_branch
          %882 = sbr.rel (%p880) target = $region104
        $region103: #{transformer3d_forward.2} parent=11 // pred_region
          %s884 = ssub.s32 16, 16
          %885 = vsyncadd [#allocation10], %s884
          %s887 = sshll.u32 [#allocation11], 4
          %s888 = int_to_ptr.vmem [resolvable:$true] %s887
          %890 = dma.hbm_to_vmem [thread:$0]  %s51, 16, %s888, [#allocation10]
        $region104: #{transformer3d_forward.2} parent=11 // pred_fallthru
          _
        // Predicated region
        $region105: #{transformer3d_forward.2} parent=11 // pred_check
          %p891 = pneg %p669
        $region106: #{transformer3d_forward.2} parent=11 // pred_check_branch
          %893 = sbr.rel (%p891) target = $region108
        $region107: #{transformer3d_forward.2} parent=11 // pred_region
          %s895 = ssub.s32 16, 16
          %896 = vsyncadd [#allocation13], %s895
          %s898 = sshll.u32 [#allocation12], 4
          %s899 = int_to_ptr.vmem [resolvable:$true] %s898
          %901 = dma.hbm_to_vmem [thread:$0]  %s53, 16, %s899, [#allocation13]
        $region108: #{transformer3d_forward.2} parent=11 // pred_fallthru
          _
        // Predicated region
        $region109: #{transformer3d_forward.2} parent=11 // pred_check
          %p902 = pneg %p690
        $region110: #{transformer3d_forward.2} parent=11 // pred_check_branch
          %904 = sbr.rel (%p902) target = $region112
        $region111: #{transformer3d_forward.2} parent=11 // pred_region
          %s906 = ssub.s32 16, 16
          %907 = vsyncadd [#allocation13], %s906
          %s909 = sshll.u32 [#allocation14], 4
          %s910 = int_to_ptr.vmem [resolvable:$true] %s909
          %912 = dma.hbm_to_vmem [thread:$0]  %s55, 16, %s910, [#allocation13]
        $region112: #{transformer3d_forward.2} parent=11 // pred_fallthru
          _
        // Predicated region
        $region113: #{transformer3d_forward.2} parent=11 // pred_check
          %p913 = pneg %p711
        $region114: #{transformer3d_forward.2} parent=11 // pred_check_branch
          %915 = sbr.rel (%p913) target = $region116
        $region115: #{transformer3d_forward.2} parent=11 // pred_region
          %s917 = ssub.s32 16, 16
          %918 = vsyncadd [#allocation16], %s917
          %s920 = sshll.u32 [#allocation15], 4
          %s921 = int_to_ptr.vmem [resolvable:$true] %s920
          %923 = dma.hbm_to_vmem [thread:$0]  %s57, 16, %s921, [#allocation16]
        $region116: #{transformer3d_forward.2} parent=11 // pred_fallthru
          _
      $region12: #{transformer3d_forward.2} parent=5 // pred_fallthru
        _
      %p924 = scmp.lt.s32.totalorder %s73, 4
      // Predicated region
      $region117: #{transformer3d_forward.2} parent=5 // pred_check
        %p925 = pneg %p924
      $region118: #{transformer3d_forward.2} parent=5 // pred_check_branch
        %927 = sbr.rel (%p925) target = $region120
      $region119: #{transformer3d_forward.2} parent=5 // pred_region
        // Predicated region
        $region121: #{transformer3d_forward.2} parent=119 // pred_check
          %p928 = pneg %p105
        $region122: #{transformer3d_forward.2} parent=119 // pred_check_branch
          %930 = sbr.rel (%p928) target = $region124
        $region123: #{transformer3d_forward.2} parent=119 // pred_region
          %p931 = scmp.lt.s32.totalorder %s80, 1
          %s932 = scalar_select %p931, %s80, 1
          %s933 = smul.addr %s932, 2
          %s934 = smul.addr %s933, 8
          %s935 = scalar_lea.vmem %s1, %s934
        $region124: #{transformer3d_forward.2} parent=119 // pred_fallthru
          _
        // Predicated region
        $region125: #{transformer3d_forward.2} parent=119 // pred_check
          %p936 = pneg %p131
        $region126: #{transformer3d_forward.2} parent=119 // pred_check_branch
          %938 = sbr.rel (%p936) target = $region128
        $region127: #{transformer3d_forward.2} parent=119 // pred_region
          %p939 = scmp.lt.s32.totalorder %s80, 1
          %s940 = scalar_select %p939, %s80, 1
          %s941 = smul.addr %s940, 2
          %s942 = smul.addr %s941, 8
          %s943 = scalar_lea.vmem %s3, %s942
        $region128: #{transformer3d_forward.2} parent=119 // pred_fallthru
          _
        // Predicated region
        $region129: #{transformer3d_forward.2} parent=119 // pred_check
          %p944 = pneg %p159
        $region130: #{transformer3d_forward.2} parent=119 // pred_check_branch
          %946 = sbr.rel (%p944) target = $region132
        $region131: #{transformer3d_forward.2} parent=119 // pred_region
          %p947 = scmp.lt.s32.totalorder %s80, 1
          %s948 = scalar_select %p947, %s80, 1
          %p949 = scmp.lt.s32.totalorder %s81, 1
          %s950 = scalar_select %p949, %s81, 1
          %s951 = smul.addr %s948, 2
          %s952 = sadd.s32 %s950, %s951
          %s953 = smul.addr %s952, 8
          %s954 = scalar_lea.vmem %s5, %s953
        $region132: #{transformer3d_forward.2} parent=119 // pred_fallthru
          _
      $region120: #{transformer3d_forward.2} parent=5 // pred_fallthru
        _
      %p955 = scmp.le.s32.totalorder 1, %s73
      %p956 = scmp.lt.s32.totalorder %s73, 5
      %p957 = pnand %p955, %p956
      %p958 = pneg %p957
      // Predicated region
      $region133: #{transformer3d_forward.2} parent=5 // pred_check
        _
      $region134: #{transformer3d_forward.2} parent=5 // pred_check_branch
        %960 = sbr.rel (%p957) target = $region136
      $region135: #{transformer3d_forward.2} parent=5 // pred_region
        %s961 = ssub.s32 %s73, 1
        // Predicated region
        $region137: #{transformer3d_forward.2} parent=135 // pred_check
          %p962 = pneg %p207
        $region138: #{transformer3d_forward.2} parent=135 // pred_check_branch
          %964 = sbr.rel (%p962) target = $region140
        $region139: #{transformer3d_forward.2} parent=135 // pred_region
          %965 = dma.done [#allocation5], 16
        $region140: #{transformer3d_forward.2} parent=135 // pred_fallthru
          _
        // Predicated region
        $region141: #{transformer3d_forward.2} parent=135 // pred_check
          %p966 = pneg %p249
        $region142: #{transformer3d_forward.2} parent=135 // pred_check_branch
          %968 = sbr.rel (%p966) target = $region144
        $region143: #{transformer3d_forward.2} parent=135 // pred_region
          %969 = dma.done [#allocation7], 16
        $region144: #{transformer3d_forward.2} parent=135 // pred_fallthru
          _
        // Predicated region
        $region145: #{transformer3d_forward.2} parent=135 // pred_check
          %p970 = pneg %p291
        $region146: #{transformer3d_forward.2} parent=135 // pred_check_branch
          %972 = sbr.rel (%p970) target = $region148
        $region147: #{transformer3d_forward.2} parent=135 // pred_region
          %973 = dma.done [#allocation7], 16
        $region148: #{transformer3d_forward.2} parent=135 // pred_fallthru
          _
        // Predicated region
        $region149: #{transformer3d_forward.2} parent=135 // pred_check
          %p974 = pneg %p375
        $region150: #{transformer3d_forward.2} parent=135 // pred_check_branch
          %976 = sbr.rel (%p974) target = $region152
        $region151: #{transformer3d_forward.2} parent=135 // pred_region
          %977 = dma.done [#allocation10], 16
        $region152: #{transformer3d_forward.2} parent=135 // pred_fallthru
          _
        // Predicated region
        $region153: #{transformer3d_forward.2} parent=135 // pred_check
          %p978 = pneg %p648
        $region154: #{transformer3d_forward.2} parent=135 // pred_check_branch
          %980 = sbr.rel (%p978) target = $region156
        $region155: #{transformer3d_forward.2} parent=135 // pred_region
          %981 = dma.done [#allocation10], 16
        $region156: #{transformer3d_forward.2} parent=135 // pred_fallthru
          _
        // Predicated region
        $region157: #{transformer3d_forward.2} parent=135 // pred_check
          %p982 = pneg %p669
        $region158: #{transformer3d_forward.2} parent=135 // pred_check_branch
          %984 = sbr.rel (%p982) target = $region160
        $region159: #{transformer3d_forward.2} parent=135 // pred_region
          %985 = dma.done [#allocation13], 16
        $region160: #{transformer3d_forward.2} parent=135 // pred_fallthru
          _
        // Predicated region
        $region161: #{transformer3d_forward.2} parent=135 // pred_check
          %p986 = pneg %p690
        $region162: #{transformer3d_forward.2} parent=135 // pred_check_branch
          %988 = sbr.rel (%p986) target = $region164
        $region163: #{transformer3d_forward.2} parent=135 // pred_region
          %989 = dma.done [#allocation13], 16
        $region164: #{transformer3d_forward.2} parent=135 // pred_fallthru
          _
        // Predicated region
        $region165: #{transformer3d_forward.2} parent=135 // pred_check
          %p990 = pneg %p711
        $region166: #{transformer3d_forward.2} parent=135 // pred_check_branch
          %992 = sbr.rel (%p990) target = $region168
        $region167: #{transformer3d_forward.2} parent=135 // pred_region
          %993 = dma.done [#allocation16], 16
        $region168: #{transformer3d_forward.2} parent=135 // pred_fallthru
          _
        %p994 = scmp.lt.s32.totalorder %s82, 1
        %s995 = scalar_select %p994, %s82, 1
        %s996 = smul.addr %s995, 2
        %s997 = smul.addr %s996, 8
        %s998 = scalar_lea.vmem %s1, %s997
        %p999 = pneg %p111
        %p1000 = pneg %p108
        %p1001 = scmp.lt.s32.totalorder %s82, 1
        %s1002 = scalar_select %p1001, %s82, 1
        %s1003 = smul.addr %s1002, 2
        %s1004 = smul.addr %s1003, 8
        %s1005 = scalar_lea.vmem %s3, %s1004
        %p1006 = pneg %p137
        %p1007 = pneg %p134
        %p1008 = scmp.lt.s32.totalorder %s82, 1
        %s1009 = scalar_select %p1008, %s82, 1
        %p1010 = scmp.lt.s32.totalorder %s83, 1
        %s1011 = scalar_select %p1010, %s83, 1
        %s1012 = smul.addr %s1009, 2
        %s1013 = sadd.s32 %s1011, %s1012
        %s1014 = smul.addr %s1013, 8
        %s1015 = scalar_lea.vmem %s5, %s1014
        %p1016 = pneg %p165
        %p1017 = pneg %p162
        %p1018 = pneg %p186
        %p1019 = pneg %p183
        %p1020 = pneg %p207
        %p1021 = pneg %p204
        %p1022 = pneg %p228
        %p1023 = pneg %p225
        %p1024 = pneg %p249
        %p1025 = pneg %p246
        %p1026 = pneg %p270
        %p1027 = pneg %p267
        %p1028 = pneg %p291
        %p1029 = pneg %p288
        %p1030 = pneg %p312
        %p1031 = pneg %p309
        %p1032 = pneg %p333
        %p1033 = pneg %p330
        %p1034 = pneg %p354
        %p1035 = pneg %p351
        %p1036 = pneg %p375
        %p1037 = pneg %p372
        %p1038 = pneg %p396
        %p1039 = pneg %p393
        %p1040 = pneg %p417
        %p1041 = pneg %p414
        %p1042 = pneg %p438
        %p1043 = pneg %p435
        %p1044 = pneg %p459
        %p1045 = pneg %p456
        %p1046 = pneg %p480
        %p1047 = pneg %p477
        %p1048 = pneg %p501
        %p1049 = pneg %p498
        %p1050 = pneg %p522
        %p1051 = pneg %p519
        %p1052 = pneg %p543
        %p1053 = pneg %p540
        %p1054 = pneg %p564
        %p1055 = pneg %p561
        %p1056 = pneg %p585
        %p1057 = pneg %p582
        %p1058 = pneg %p606
        %p1059 = pneg %p603
        %p1060 = pneg %p627
        %p1061 = pneg %p624
        %p1062 = pneg %p648
        %p1063 = pneg %p645
        %p1064 = pneg %p669
        %p1065 = pneg %p666
        %p1066 = pneg %p690
        %p1067 = pneg %p687
        %p1068 = pneg %p711
        %p1069 = pneg %p708
        %p1070 = pneg %p739
        %p1071 = pneg %p736
        %p1072 = scmp.lt.s32.totalorder %s82, 1
        %s1073 = scalar_select %p1072, %s82, 1
        %p1074 = scmp.lt.s32.totalorder %s83, 1
        %s1075 = scalar_select %p1074, %s83, 1
        %s1076 = smul.addr %s1073, 2
        %s1077 = sadd.s32 %s1075, %s1076
        %s1078 = smul.addr %s1077, 8
        %s1079 = scalar_lea.vmem %s59, %s1078
        %p1080 = pneg %p767
        %p1081 = pneg %p764
        %p1082 = scmp.lt.s32.totalorder %s82, 1
        %s1083 = scalar_select %p1082, %s82, 1
        %p1084 = scmp.lt.s32.totalorder %s83, 1
        %s1085 = scalar_select %p1084, %s83, 1
        %s1086 = smul.addr %s1083, 2
        %s1087 = sadd.s32 %s1085, %s1086
        %s1088 = smul.addr %s1087, 8
        %s1089 = scalar_lea.vmem %s61, %s1088
        %p1090 = scmp.lt.s32.totalorder %s82, 1
        %s1091 = scalar_select %p1090, %s82, 1
        %s1092 = smul.addr %s1091, 2
        %s1093 = smul.addr %s1092, 8
        %s1094 = scalar_lea.vmem %s1, %s1093
        %p1095 = scmp.lt.s32.totalorder %s82, 1
        %s1096 = scalar_select %p1095, %s82, 1
        %s1097 = smul.addr %s1096, 2
        %s1098 = smul.addr %s1097, 8
        %s1099 = scalar_lea.vmem %s3, %s1098
        %p1100 = scmp.lt.s32.totalorder %s82, 1
        %s1101 = scalar_select %p1100, %s82, 1
        %p1102 = scmp.lt.s32.totalorder %s83, 1
        %s1103 = scalar_select %p1102, %s83, 1
        %s1104 = smul.addr %s1101, 2
        %s1105 = sadd.s32 %s1103, %s1104
        %s1106 = smul.addr %s1105, 8
        %s1107 = scalar_lea.vmem %s5, %s1106
        %p1108 = scmp.lt.s32.totalorder %s82, 1
        %s1109 = scalar_select %p1108, %s82, 1
        %p1110 = scmp.lt.s32.totalorder %s83, 1
        %s1111 = scalar_select %p1110, %s83, 1
        %s1112 = smul.addr %s1109, 2
        %s1113 = sadd.s32 %s1111, %s1112
        %s1114 = smul.addr %s1113, 8
        %s1115 = scalar_lea.vmem %s59, %s1114
        %p1116 = scmp.lt.s32.totalorder %s82, 1
        %s1117 = scalar_select %p1116, %s82, 1
        %p1118 = scmp.lt.s32.totalorder %s83, 1
        %s1119 = scalar_select %p1118, %s83, 1
        %s1120 = smul.addr %s1117, 2
        %s1121 = sadd.s32 %s1119, %s1120
        %s1122 = smul.addr %s1121, 8
        %s1123 = scalar_lea.vmem %s61, %s1122
        %p1124 = scmp.eq.s32.totalorder %s83, 0
        // Predicated region
        $region169: #{transformer3d_forward.2} parent=135 // pred_check
          %p1125 = pneg %p1124
        $region170: #{transformer3d_forward.2} parent=135 // pred_check_branch
          %1127 = sbr.rel (%p1125) target = $region172
        $region171: #{transformer3d_forward.2} parent=135 // pred_region
          %v1128 = vld [vmem:[%s1094] sm:$0xff]
          %v1129 = vld [vmem:[%s1094 + $0x8] sm:$0xff]
          %v1130 = vld [vmem:[%s1099] sm:$0xff]
          %v1131 = vld [vmem:[%s1099 + $0x8] sm:$0xff]
          %v1132 = vld [vmem:[%s11] sm:$0xff]
          %v1133 = vld [vmem:[%s11 + $0x8] sm:$0xff]
          %v1134 = vld [vmem:[%s11 + $0x10] sm:$0xff]
          %v1135 = vld [vmem:[%s11 + $0x18] sm:$0xff]
          %v1136 = vld [vmem:[#allocation6] sm:$0x1]
          %v1138 = vlaneseq
          %v1139 = vshrl.u32 %v1138, 7
          %v1140 = vsub.s32 0, %v1139
          %v1141 = vrot.slane %v1136, %v1140
          %vm1143 = vcmask 261120
          %v1145 = vsel %vm1143, %v1128, 0
          %v1148 = vsel %vm1143, %v1129, 0
          %1150 = vmatprep.subr.mxu0 0.0
          %1151 = vmatpush1.msra.mxu0 %v1132
          %1152 = vmatprep.subr.mxu0 0.0
          %1153 = vmatpush1.msra.mxu0 %v1133
          %1154 = vmatprep.subr.mxu0 0.0
          %1155 = vmatpush1.msra.mxu0 %v1134
          %1156 = vmatprep.subr.mxu0 0.0
          %1157 = vmatpush1.msra.mxu0 %v1135
          %1158 = vmatprep.subr.mxu0 0.0
          %1159 = vmatpush1.msra.mxu0 0.0
          %1160 = vmatprep.subr.mxu0 0.0
          %1161 = vmatpush1.msra.mxu0 0.0
          %1162 = vmatprep.subr.mxu0 0.0
          %1163 = vmatpush1.msra.mxu0 0.0
          %1164 = vmatprep.subr.mxu0 0.0
          %1165 = vmatpush1.msra.mxu0 0.0
          %1166 = vmatprep.subr.mxu0 0.0
          %1167 = vmatpush1.msra.mxu0 0.0
          %1168 = vmatprep.subr.mxu0 0.0
          %1169 = vmatpush1.msra.mxu0 0.0
          %1170 = vmatprep.subr.mxu0 0.0
          %1171 = vmatpush1.msra.mxu0 0.0
          %1172 = vmatprep.subr.mxu0 0.0
          %1173 = vmatpush1.msra.mxu0 0.0
          %1174 = vmatprep.subr.mxu0 0.0
          %1175 = vmatpush1.msra.mxu0 0.0
          %1176 = vmatprep.subr.mxu0 0.0
          %1177 = vmatpush1.msra.mxu0 0.0
          %1178 = vmatprep.subr.mxu0 0.0
          %1179 = vmatpush1.msra.mxu0 0.0
          %1180 = vmatprep.subr.mxu0 0.0
          %1181 = vmatpush1.msra.mxu0 0.0
          %1182 = vmatprep.subr.mxu0 0.0
          %1183 = vmatpush1.msra.mxu0 0.0
          %1184 = vmatprep.subr.mxu0 0.0
          %1185 = vmatpush1.msra.mxu0 0.0
          %1186 = vmatprep.subr.mxu0 0.0
          %1187 = vmatpush1.msra.mxu0 0.0
          %1188 = vmatprep.subr.mxu0 0.0
          %1189 = vmatpush1.msra.mxu0 0.0
          %1190 = vmatprep.subr.mxu0 0.0
          %1191 = vmatpush1.msra.mxu0 0.0
          %1192 = vmatprep.subr.mxu0 0.0
          %1193 = vmatpush1.msra.mxu0 0.0
          %1194 = vmatprep.subr.mxu0 0.0
          %1195 = vmatpush1.msra.mxu0 0.0
          %1196 = vmatprep.subr.mxu0 0.0
          %1197 = vmatpush1.msra.mxu0 0.0
          %1198 = vmatprep.subr.mxu0 0.0
          %1199 = vmatpush1.msra.mxu0 0.0
          %1200 = vmatprep.subr.mxu0 0.0
          %1201 = vmatpush1.msra.mxu0 0.0
          %1202 = vmatprep.subr.mxu0 0.0
          %1203 = vmatpush1.msra.mxu0 0.0
          %1204 = vmatprep.subr.mxu0 0.0
          %1205 = vmatpush1.msra.mxu0 0.0
          %1206 = vmatprep.subr.mxu0 0.0
          %1207 = vmatpush1.msra.mxu0 0.0
          %1208 = vmatprep.subr.mxu0 0.0
          %1209 = vmatpush1.msra.mxu0 0.0
          %1210 = vmatprep.subr.mxu0 0.0
          %1211 = vmatpush1.msra.mxu0 0.0
          %1212 = vmatprep.subr.mxu0 0.0
          %1213 = vmatpush1.msra.mxu0 0.0
          %1214 = vmatprep.mubr.f32.mxu0 0.0
          %1215 = vmatmul.mubr.f32.gmra.mrb[0].mxu0 %v1145
          %v1216 = vpop.f32.mrb[0].mxu0
          %v1217 = vadd.f32 %v1141, %v1216
          %v1218 = vpop.f32.mrb[0].mxu0
          %1219 = vmatprep.mubr.f32.mxu0 0.0
          %1220 = vmatmul.mubr.f32.gmra.mrb[0].mxu0 %v1148
          %v1221 = vpop.f32.mrb[0].mxu0
          %v1222 = vadd.f32 %v1141, %v1221
          %v1223 = vpop.f32.mrb[0].mxu0
          %1224 = vdwg.mxu0
          %vm1225 = vcmask 523264
          %1226 = vst.msk [vmem:[#allocation2] sm:$0xff] %vm1225, %v1217
          %1227 = vst.msk [vmem:[#allocation2 + $0x8] sm:$0xff] %vm1225, %v1222
          %v1228 = vld [vmem:[%s31] sm:$0xff]
          %v1229 = vld [vmem:[%s31 + $0x8] sm:$0xff]
          %v1230 = vld [vmem:[%s31 + $0x10] sm:$0xff]
          %v1231 = vld [vmem:[%s31 + $0x18] sm:$0xff]
          %v1232 = vld [vmem:[%s33] sm:$0x1]
          %v1234 = vlaneseq
          %v1235 = vshrl.u32 %v1234, 7
          %v1236 = vsub.s32 0, %v1235
          %v1237 = vrot.slane %v1232, %v1236
          %v1240 = vsel %vm1143, %v1130, 0
          %v1243 = vsel %vm1143, %v1131, 0
          %1245 = vmatprep.subr.mxu0 0.0
          %1246 = vmatpush1.msra.mxu0 %v1228
          %1247 = vmatprep.subr.mxu0 0.0
          %1248 = vmatpush1.msra.mxu0 %v1229
          %1249 = vmatprep.subr.mxu0 0.0
          %1250 = vmatpush1.msra.mxu0 %v1230
          %1251 = vmatprep.subr.mxu0 0.0
          %1252 = vmatpush1.msra.mxu0 %v1231
          %1253 = vmatprep.subr.mxu0 0.0
          %1254 = vmatpush1.msra.mxu0 0.0
          %1255 = vmatprep.subr.mxu0 0.0
          %1256 = vmatpush1.msra.mxu0 0.0
          %1257 = vmatprep.subr.mxu0 0.0
          %1258 = vmatpush1.msra.mxu0 0.0
          %1259 = vmatprep.subr.mxu0 0.0
          %1260 = vmatpush1.msra.mxu0 0.0
          %1261 = vmatprep.subr.mxu0 0.0
          %1262 = vmatpush1.msra.mxu0 0.0
          %1263 = vmatprep.subr.mxu0 0.0
          %1264 = vmatpush1.msra.mxu0 0.0
          %1265 = vmatprep.subr.mxu0 0.0
          %1266 = vmatpush1.msra.mxu0 0.0
          %1267 = vmatprep.subr.mxu0 0.0
          %1268 = vmatpush1.msra.mxu0 0.0
          %1269 = vmatprep.subr.mxu0 0.0
          %1270 = vmatpush1.msra.mxu0 0.0
          %1271 = vmatprep.subr.mxu0 0.0
          %1272 = vmatpush1.msra.mxu0 0.0
          %1273 = vmatprep.subr.mxu0 0.0
          %1274 = vmatpush1.msra.mxu0 0.0
          %1275 = vmatprep.subr.mxu0 0.0
          %1276 = vmatpush1.msra.mxu0 0.0
          %1277 = vmatprep.subr.mxu0 0.0
          %1278 = vmatpush1.msra.mxu0 0.0
          %1279 = vmatprep.subr.mxu0 0.0
          %1280 = vmatpush1.msra.mxu0 0.0
          %1281 = vmatprep.subr.mxu0 0.0
          %1282 = vmatpush1.msra.mxu0 0.0
          %1283 = vmatprep.subr.mxu0 0.0
          %1284 = vmatpush1.msra.mxu0 0.0
          %1285 = vmatprep.subr.mxu0 0.0
          %1286 = vmatpush1.msra.mxu0 0.0
          %1287 = vmatprep.subr.mxu0 0.0
          %1288 = vmatpush1.msra.mxu0 0.0
          %1289 = vmatprep.subr.mxu0 0.0
          %1290 = vmatpush1.msra.mxu0 0.0
          %1291 = vmatprep.subr.mxu0 0.0
          %1292 = vmatpush1.msra.mxu0 0.0
          %1293 = vmatprep.subr.mxu0 0.0
          %1294 = vmatpush1.msra.mxu0 0.0
          %1295 = vmatprep.subr.mxu0 0.0
          %1296 = vmatpush1.msra.mxu0 0.0
          %1297 = vmatprep.subr.mxu0 0.0
          %1298 = vmatpush1.msra.mxu0 0.0
          %1299 = vmatprep.subr.mxu0 0.0
          %1300 = vmatpush1.msra.mxu0 0.0
          %1301 = vmatprep.subr.mxu0 0.0
          %1302 = vmatpush1.msra.mxu0 0.0
          %1303 = vmatprep.subr.mxu0 0.0
          %1304 = vmatpush1.msra.mxu0 0.0
          %1305 = vmatprep.subr.mxu0 0.0
          %1306 = vmatpush1.msra.mxu0 0.0
          %1307 = vmatprep.subr.mxu0 0.0
          %1308 = vmatpush1.msra.mxu0 0.0
          %1309 = vmatprep.mubr.f32.mxu0 0.0
          %1310 = vmatmul.mubr.f32.gmra.mrb[0].mxu0 %v1240
          %v1311 = vpop.f32.mrb[0].mxu0
          %v1312 = vadd.f32 %v1237, %v1311
          %v1313 = vpop.f32.mrb[0].mxu0
          %1314 = vmatprep.mubr.f32.mxu0 0.0
          %1315 = vmatmul.mubr.f32.gmra.mrb[0].mxu0 %v1243
          %v1316 = vpop.f32.mrb[0].mxu0
          %v1317 = vadd.f32 %v1237, %v1316
          %v1318 = vpop.f32.mrb[0].mxu0
          %1319 = vdwg.mxu0
          %1320 = vst.msk [vmem:[#allocation3] sm:$0xff] %vm1225, %v1312
          %1321 = vst.msk [vmem:[#allocation3 + $0x8] sm:$0xff] %vm1225, %v1317
        $region172: #{transformer3d_forward.2} parent=135 // pred_fallthru
          _
        %s1322 = smul.u32 %s83, 8
        %s1323 = scalar_lea.vmem %s1094, %s1322
        %v1324 = vld [vmem:[%s1323] sm:$0xff]
        %v1325 = vld [vmem:[%s7] sm:$0xff]
        %v1326 = vld [vmem:[%s7 + $0x8] sm:$0xff]
        %v1327 = vld [vmem:[%s7 + $0x10] sm:$0xff]
        %v1328 = vld [vmem:[%s7 + $0x18] sm:$0xff]
        %v1329 = vld [vmem:[#allocation4] sm:$0x1]
        %v1331 = vlaneseq
        %v1332 = vshrl.u32 %v1331, 7
        %v1333 = vsub.s32 0, %v1332
        %v1334 = vrot.slane %v1329, %v1333
        %vm1336 = vcmask 261120
        %v1338 = vsel %vm1336, %v1324, 0
        %1340 = vmatprep.subr.mxu0 0.0
        %1341 = vmatpush1.msra.mxu0 %v1325
        %1342 = vmatprep.subr.mxu0 0.0
        %1343 = vmatpush1.msra.mxu0 %v1326
        %1344 = vmatprep.subr.mxu0 0.0
        %1345 = vmatpush1.msra.mxu0 %v1327
        %1346 = vmatprep.subr.mxu0 0.0
        %1347 = vmatpush1.msra.mxu0 %v1328
        %1348 = vmatprep.subr.mxu0 0.0
        %1349 = vmatpush1.msra.mxu0 0.0
        %1350 = vmatprep.subr.mxu0 0.0
        %1351 = vmatpush1.msra.mxu0 0.0
        %1352 = vmatprep.subr.mxu0 0.0
        %1353 = vmatpush1.msra.mxu0 0.0
        %1354 = vmatprep.subr.mxu0 0.0
        %1355 = vmatpush1.msra.mxu0 0.0
        %1356 = vmatprep.subr.mxu0 0.0
        %1357 = vmatpush1.msra.mxu0 0.0
        %1358 = vmatprep.subr.mxu0 0.0
        %1359 = vmatpush1.msra.mxu0 0.0
        %1360 = vmatprep.subr.mxu0 0.0
        %1361 = vmatpush1.msra.mxu0 0.0
        %1362 = vmatprep.subr.mxu0 0.0
        %1363 = vmatpush1.msra.mxu0 0.0
        %1364 = vmatprep.subr.mxu0 0.0
        %1365 = vmatpush1.msra.mxu0 0.0
        %1366 = vmatprep.subr.mxu0 0.0
        %1367 = vmatpush1.msra.mxu0 0.0
        %1368 = vmatprep.subr.mxu0 0.0
        %1369 = vmatpush1.msra.mxu0 0.0
        %1370 = vmatprep.subr.mxu0 0.0
        %1371 = vmatpush1.msra.mxu0 0.0
        %1372 = vmatprep.subr.mxu0 0.0
        %1373 = vmatpush1.msra.mxu0 0.0
        %1374 = vmatprep.subr.mxu0 0.0
        %1375 = vmatpush1.msra.mxu0 0.0
        %1376 = vmatprep.subr.mxu0 0.0
        %1377 = vmatpush1.msra.mxu0 0.0
        %1378 = vmatprep.subr.mxu0 0.0
        %1379 = vmatpush1.msra.mxu0 0.0
        %1380 = vmatprep.subr.mxu0 0.0
        %1381 = vmatpush1.msra.mxu0 0.0
        %1382 = vmatprep.subr.mxu0 0.0
        %1383 = vmatpush1.msra.mxu0 0.0
        %1384 = vmatprep.subr.mxu0 0.0
        %1385 = vmatpush1.msra.mxu0 0.0
        %1386 = vmatprep.subr.mxu0 0.0
        %1387 = vmatpush1.msra.mxu0 0.0
        %1388 = vmatprep.subr.mxu0 0.0
        %1389 = vmatpush1.msra.mxu0 0.0
        %1390 = vmatprep.subr.mxu0 0.0
        %1391 = vmatpush1.msra.mxu0 0.0
        %1392 = vmatprep.subr.mxu0 0.0
        %1393 = vmatpush1.msra.mxu0 0.0
        %1394 = vmatprep.subr.mxu0 0.0
        %1395 = vmatpush1.msra.mxu0 0.0
        %1396 = vmatprep.subr.mxu0 0.0
        %1397 = vmatpush1.msra.mxu0 0.0
        %1398 = vmatprep.subr.mxu0 0.0
        %1399 = vmatpush1.msra.mxu0 0.0
        %1400 = vmatprep.subr.mxu0 0.0
        %1401 = vmatpush1.msra.mxu0 0.0
        %1402 = vmatprep.subr.mxu0 0.0
        %1403 = vmatpush1.msra.mxu0 0.0
        %1404 = vmatprep.mubr.f32.mxu0 0.0
        %1405 = vmatmul.mubr.f32.gmra.mrb[0].mxu0 %v1338
        %v1406 = vpop.f32.mrb[0].mxu0
        %v1407 = vadd.f32 %v1334, %v1406
        %v1408 = vpop.f32.mrb[0].mxu0
        %1409 = vdwg.mxu0
        %v1410 = vld [vmem:[#allocation2] sm:$0xff]
        %v1411 = vld [vmem:[#allocation2 + $0x8] sm:$0xff]
        %v1412 = vld [vmem:[%s15] sm:$0xff]
        %v1413 = vld [vmem:[%s15 + $0x8] sm:$0xff]
        %v1414 = vld [vmem:[%s15 + $0x10] sm:$0xff]
        %v1415 = vld [vmem:[%s15 + $0x18] sm:$0xff]
        %v1416 = vld [vmem:[#allocation8] sm:$0x1]
        %v1417 = vmul.f32 %v1407, 0.35355338
        %vm1418 = vcmask 64512
        %v1420 = vsel %vm1418, %v1417, 0
        %v1423 = vsel %vm1418, %v1410, 0
        %v1426 = vsel %vm1418, %v1411, 0
        %1428 = vmatprep.subr.mxu0 0.0
        %1429 = vmatpush1.xpose.msra.mxu0 %v1423
        %1430 = vmatprep.subr.mxu0 0.0
        %1431 = vmatpush1.xpose.msra.mxu0 %v1426
        %1432 = vmatprep.subr.mxu0 0.0
        %1433 = vmatpush1.xpose.msra.mxu0 0.0
        %1434 = vmatprep.subr.mxu0 0.0
        %1435 = vmatpush1.xpose.msra.mxu0 0.0
        %1436 = vmatprep.subr.mxu0 0.0
        %1437 = vmatpush1.xpose.msra.mxu0 0.0
        %1438 = vmatprep.subr.mxu0 0.0
        %1439 = vmatpush1.xpose.msra.mxu0 0.0
        %1440 = vmatprep.subr.mxu0 0.0
        %1441 = vmatpush1.xpose.msra.mxu0 0.0
        %1442 = vmatprep.subr.mxu0 0.0
        %1443 = vmatpush1.xpose.msra.mxu0 0.0
        %1444 = vmatprep.subr.mxu0 0.0
        %1445 = vmatpush1.xpose.msra.mxu0 0.0
        %1446 = vmatprep.subr.mxu0 0.0
        %1447 = vmatpush1.xpose.msra.mxu0 0.0
        %1448 = vmatprep.subr.mxu0 0.0
        %1449 = vmatpush1.xpose.msra.mxu0 0.0
        %1450 = vmatprep.subr.mxu0 0.0
        %1451 = vmatpush1.xpose.msra.mxu0 0.0
        %1452 = vmatprep.subr.mxu0 0.0
        %1453 = vmatpush1.xpose.msra.mxu0 0.0
        %1454 = vmatprep.subr.mxu0 0.0
        %1455 = vmatpush1.xpose.msra.mxu0 0.0
        %1456 = vmatprep.subr.mxu0 0.0
        %1457 = vmatpush1.xpose.msra.mxu0 0.0
        %1458 = vmatprep.subr.mxu0 0.0
        %1459 = vmatpush1.xpose.msra.mxu0 0.0
        %1460 = vmatprep.subr.mxu0 0.0
        %1461 = vmatpush1.xpose.msra.mxu0 0.0
        %1462 = vmatprep.subr.mxu0 0.0
        %1463 = vmatpush1.xpose.msra.mxu0 0.0
        %1464 = vmatprep.subr.mxu0 0.0
        %1465 = vmatpush1.xpose.msra.mxu0 0.0
        %1466 = vmatprep.subr.mxu0 0.0
        %1467 = vmatpush1.xpose.msra.mxu0 0.0
        %1468 = vmatprep.subr.mxu0 0.0
        %1469 = vmatpush1.xpose.msra.mxu0 0.0
        %1470 = vmatprep.subr.mxu0 0.0
        %1471 = vmatpush1.xpose.msra.mxu0 0.0
        %1472 = vmatprep.subr.mxu0 0.0
        %1473 = vmatpush1.xpose.msra.mxu0 0.0
        %1474 = vmatprep.subr.mxu0 0.0
        %1475 = vmatpush1.xpose.msra.mxu0 0.0
        %1476 = vmatprep.subr.mxu0 0.0
        %1477 = vmatpush1.xpose.msra.mxu0 0.0
        %1478 = vmatprep.subr.mxu0 0.0
        %1479 = vmatpush1.xpose.msra.mxu0 0.0
        %1480 = vmatprep.subr.mxu0 0.0
        %1481 = vmatpush1.xpose.msra.mxu0 0.0
        %1482 = vmatprep.subr.mxu0 0.0
        %1483 = vmatpush1.xpose.msra.mxu0 0.0
        %1484 = vmatprep.subr.mxu0 0.0
        %1485 = vmatpush1.xpose.msra.mxu0 0.0
        %1486 = vmatprep.subr.mxu0 0.0
        %1487 = vmatpush1.xpose.msra.mxu0 0.0
        %1488 = vmatprep.subr.mxu0 0.0
        %1489 = vmatpush1.xpose.msra.mxu0 0.0
        %1490 = vmatprep.subr.mxu0 0.0
        %1491 = vmatpush1.xpose.msra.mxu0 0.0
        %1492 = vmatprep.mubr.f32.mxu0 0.0
        %1493 = vmatmul.mubr.f32.gmra.mrb[0].mxu0 %v1420
        %v1494 = vpop.f32.mrb[0].mxu0
        %v1495 = vadd.f32 0.0, %v1494
        %v1496 = vpop.f32.mrb[0].mxu0
        %1497 = vdwg.mxu0
        %vm1498 = vcmask 130048
        %v1499 = vsel %vm1498, %v1495, -inf
        %1500 = vmax.xlane.f32.xlu0 %v1499
        %v1501 = vpop.xlane.xlu0 %1500
        %v1502 = vsub.f32 %v1495, %v1501
        %v1503 = vmul.f32 %v1502, 1.442695
        %v1504 = vpow.pop %v1503
        %v1505 = vsel %vm1498, %v1504, 0.0
        %1506 = vadd.xlane.f32.xlu0 %v1505
        %v1507 = vpop.xlane.xlu0 %1506
        %1508 = vrot.lane.b32.xlu0 %v1410, 96
        %v1509 = vpop.permute.xlu0 %1508
        %1510 = vrot.lane.b32.xlu0 %v1411, 96
        %v1511 = vpop.permute.xlu0 %1510
        %v1515 = vsel %vm1498, %v1504, 0
        %1517 = vmatprep.subr.mxu0 0.0
        %1518 = vmatpush1.msra.mxu0 %v1509
        %1519 = vmatprep.subr.mxu0 0.0
        %1520 = vmatpush1.msra.mxu0 %v1511
        %1521 = vmatprep.subr.mxu0 0.0
        %1522 = vmatpush1.msra.mxu0 0.0
        %1523 = vmatprep.subr.mxu0 0.0
        %1524 = vmatpush1.msra.mxu0 0.0
        %1525 = vmatprep.subr.mxu0 0.0
        %1526 = vmatpush1.msra.mxu0 0.0
        %1527 = vmatprep.subr.mxu0 0.0
        %1528 = vmatpush1.msra.mxu0 0.0
        %1529 = vmatprep.subr.mxu0 0.0
        %1530 = vmatpush1.msra.mxu0 0.0
        %1531 = vmatprep.subr.mxu0 0.0
        %1532 = vmatpush1.msra.mxu0 0.0
        %1533 = vmatprep.subr.mxu0 0.0
        %1534 = vmatpush1.msra.mxu0 0.0
        %1535 = vmatprep.subr.mxu0 0.0
        %1536 = vmatpush1.msra.mxu0 0.0
        %1537 = vmatprep.subr.mxu0 0.0
        %1538 = vmatpush1.msra.mxu0 0.0
        %1539 = vmatprep.subr.mxu0 0.0
        %1540 = vmatpush1.msra.mxu0 0.0
        %1541 = vmatprep.subr.mxu0 0.0
        %1542 = vmatpush1.msra.mxu0 0.0
        %1543 = vmatprep.subr.mxu0 0.0
        %1544 = vmatpush1.msra.mxu0 0.0
        %1545 = vmatprep.subr.mxu0 0.0
        %1546 = vmatpush1.msra.mxu0 0.0
        %1547 = vmatprep.subr.mxu0 0.0
        %1548 = vmatpush1.msra.mxu0 0.0
        %1549 = vmatprep.subr.mxu0 0.0
        %1550 = vmatpush1.msra.mxu0 0.0
        %1551 = vmatprep.subr.mxu0 0.0
        %1552 = vmatpush1.msra.mxu0 0.0
        %1553 = vmatprep.subr.mxu0 0.0
        %1554 = vmatpush1.msra.mxu0 0.0
        %1555 = vmatprep.subr.mxu0 0.0
        %1556 = vmatpush1.msra.mxu0 0.0
        %1557 = vmatprep.subr.mxu0 0.0
        %1558 = vmatpush1.msra.mxu0 0.0
        %1559 = vmatprep.subr.mxu0 0.0
        %1560 = vmatpush1.msra.mxu0 0.0
        %1561 = vmatprep.subr.mxu0 0.0
        %1562 = vmatpush1.msra.mxu0 0.0
        %1563 = vmatprep.subr.mxu0 0.0
        %1564 = vmatpush1.msra.mxu0 0.0
        %1565 = vmatprep.subr.mxu0 0.0
        %1566 = vmatpush1.msra.mxu0 0.0
        %1567 = vmatprep.subr.mxu0 0.0
        %1568 = vmatpush1.msra.mxu0 0.0
        %1569 = vmatprep.subr.mxu0 0.0
        %1570 = vmatpush1.msra.mxu0 0.0
        %1571 = vmatprep.subr.mxu0 0.0
        %1572 = vmatpush1.msra.mxu0 0.0
        %1573 = vmatprep.subr.mxu0 0.0
        %1574 = vmatpush1.msra.mxu0 0.0
        %1575 = vmatprep.subr.mxu0 0.0
        %1576 = vmatpush1.msra.mxu0 0.0
        %1577 = vmatprep.subr.mxu0 0.0
        %1578 = vmatpush1.msra.mxu0 0.0
        %1579 = vmatprep.subr.mxu0 0.0
        %1580 = vmatpush1.msra.mxu0 0.0
        %1581 = vmatprep.mubr.f32.mxu0 0.0
        %1582 = vmatmul.mubr.f32.gmra.mrb[0].mxu0 %v1515
        %v1583 = vpop.f32.mrb[0].mxu0
        %v1584 = vadd.f32 0.0, %v1583
        %v1585 = vpop.f32.mrb[0].mxu0
        %1586 = vdwg.mxu0
        %v1587 = vrcp.pop %v1507
        %v1588 = vmul.f32 %v1584, %v1587
        %1589 = vrot.lane.b32.xlu0 %v1417, 120
        %v1590 = vpop.permute.xlu0 %1589
        %1591 = vrot.lane.b32.xlu0 %v1410, 120
        %v1592 = vpop.permute.xlu0 %1591
        %1593 = vrot.lane.b32.xlu0 %v1411, 120
        %v1594 = vpop.permute.xlu0 %1593
        %v1595 = vsel %vm1418, %v1590, 0
        %v1597 = vsel %vm1418, %v1592, 0
        %v1599 = vsel %vm1418, %v1594, 0
        %1601 = vmatprep.subr.mxu0 0.0
        %1602 = vmatpush1.xpose.msra.mxu0 %v1597
        %1603 = vmatprep.subr.mxu0 0.0
        %1604 = vmatpush1.xpose.msra.mxu0 %v1599
        %1605 = vmatprep.subr.mxu0 0.0
        %1606 = vmatpush1.xpose.msra.mxu0 0.0
        %1607 = vmatprep.subr.mxu0 0.0
        %1608 = vmatpush1.xpose.msra.mxu0 0.0
        %1609 = vmatprep.subr.mxu0 0.0
        %1610 = vmatpush1.xpose.msra.mxu0 0.0
        %1611 = vmatprep.subr.mxu0 0.0
        %1612 = vmatpush1.xpose.msra.mxu0 0.0
        %1613 = vmatprep.subr.mxu0 0.0
        %1614 = vmatpush1.xpose.msra.mxu0 0.0
        %1615 = vmatprep.subr.mxu0 0.0
        %1616 = vmatpush1.xpose.msra.mxu0 0.0
        %1617 = vmatprep.subr.mxu0 0.0
        %1618 = vmatpush1.xpose.msra.mxu0 0.0
        %1619 = vmatprep.subr.mxu0 0.0
        %1620 = vmatpush1.xpose.msra.mxu0 0.0
        %1621 = vmatprep.subr.mxu0 0.0
        %1622 = vmatpush1.xpose.msra.mxu0 0.0
        %1623 = vmatprep.subr.mxu0 0.0
        %1624 = vmatpush1.xpose.msra.mxu0 0.0
        %1625 = vmatprep.subr.mxu0 0.0
        %1626 = vmatpush1.xpose.msra.mxu0 0.0
        %1627 = vmatprep.subr.mxu0 0.0
        %1628 = vmatpush1.xpose.msra.mxu0 0.0
        %1629 = vmatprep.subr.mxu0 0.0
        %1630 = vmatpush1.xpose.msra.mxu0 0.0
        %1631 = vmatprep.subr.mxu0 0.0
        %1632 = vmatpush1.xpose.msra.mxu0 0.0
        %1633 = vmatprep.subr.mxu0 0.0
        %1634 = vmatpush1.xpose.msra.mxu0 0.0
        %1635 = vmatprep.subr.mxu0 0.0
        %1636 = vmatpush1.xpose.msra.mxu0 0.0
        %1637 = vmatprep.subr.mxu0 0.0
        %1638 = vmatpush1.xpose.msra.mxu0 0.0
        %1639 = vmatprep.subr.mxu0 0.0
        %1640 = vmatpush1.xpose.msra.mxu0 0.0
        %1641 = vmatprep.subr.mxu0 0.0
        %1642 = vmatpush1.xpose.msra.mxu0 0.0
        %1643 = vmatprep.subr.mxu0 0.0
        %1644 = vmatpush1.xpose.msra.mxu0 0.0
        %1645 = vmatprep.subr.mxu0 0.0
        %1646 = vmatpush1.xpose.msra.mxu0 0.0
        %1647 = vmatprep.subr.mxu0 0.0
        %1648 = vmatpush1.xpose.msra.mxu0 0.0
        %1649 = vmatprep.subr.mxu0 0.0
        %1650 = vmatpush1.xpose.msra.mxu0 0.0
        %1651 = vmatprep.subr.mxu0 0.0
        %1652 = vmatpush1.xpose.msra.mxu0 0.0
        %1653 = vmatprep.subr.mxu0 0.0
        %1654 = vmatpush1.xpose.msra.mxu0 0.0
        %1655 = vmatprep.subr.mxu0 0.0
        %1656 = vmatpush1.xpose.msra.mxu0 0.0
        %1657 = vmatprep.subr.mxu0 0.0
        %1658 = vmatpush1.xpose.msra.mxu0 0.0
        %1659 = vmatprep.subr.mxu0 0.0
        %1660 = vmatpush1.xpose.msra.mxu0 0.0
        %1661 = vmatprep.subr.mxu0 0.0
        %1662 = vmatpush1.xpose.msra.mxu0 0.0
        %1663 = vmatprep.subr.mxu0 0.0
        %1664 = vmatpush1.xpose.msra.mxu0 0.0
        %1665 = vmatprep.mubr.f32.mxu0 0.0
        %1666 = vmatmul.mubr.f32.gmra.mrb[0].mxu0 %v1595
        %v1667 = vpop.f32.mrb[0].mxu0
        %v1668 = vadd.f32 0.0, %v1667
        %v1669 = vpop.f32.mrb[0].mxu0
        %1670 = vdwg.mxu0
        %v1671 = vsel %vm1498, %v1668, -inf
        %1672 = vmax.xlane.f32.xlu0 %v1671
        %v1673 = vpop.xlane.xlu0 %1672
        %v1674 = vsub.f32 %v1668, %v1673
        %v1675 = vmul.f32 %v1674, 1.442695
        %v1676 = vpow.pop %v1675
        %v1677 = vsel %vm1498, %v1676, 0.0
        %1678 = vadd.xlane.f32.xlu0 %v1677
        %v1679 = vpop.xlane.xlu0 %1678
        %1680 = vrot.lane.b32.xlu0 %v1410, 88
        %v1681 = vpop.permute.xlu0 %1680
        %1682 = vrot.lane.b32.xlu0 %v1411, 88
        %v1683 = vpop.permute.xlu0 %1682
        %v1687 = vsel %vm1498, %v1676, 0
        %1689 = vmatprep.subr.mxu0 0.0
        %1690 = vmatpush1.msra.mxu0 %v1681
        %1691 = vmatprep.subr.mxu0 0.0
        %1692 = vmatpush1.msra.mxu0 %v1683
        %1693 = vmatprep.subr.mxu0 0.0
        %1694 = vmatpush1.msra.mxu0 0.0
        %1695 = vmatprep.subr.mxu0 0.0
        %1696 = vmatpush1.msra.mxu0 0.0
        %1697 = vmatprep.subr.mxu0 0.0
        %1698 = vmatpush1.msra.mxu0 0.0
        %1699 = vmatprep.subr.mxu0 0.0
        %1700 = vmatpush1.msra.mxu0 0.0
        %1701 = vmatprep.subr.mxu0 0.0
        %1702 = vmatpush1.msra.mxu0 0.0
        %1703 = vmatprep.subr.mxu0 0.0
        %1704 = vmatpush1.msra.mxu0 0.0
        %1705 = vmatprep.subr.mxu0 0.0
        %1706 = vmatpush1.msra.mxu0 0.0
        %1707 = vmatprep.subr.mxu0 0.0
        %1708 = vmatpush1.msra.mxu0 0.0
        %1709 = vmatprep.subr.mxu0 0.0
        %1710 = vmatpush1.msra.mxu0 0.0
        %1711 = vmatprep.subr.mxu0 0.0
        %1712 = vmatpush1.msra.mxu0 0.0
        %1713 = vmatprep.subr.mxu0 0.0
        %1714 = vmatpush1.msra.mxu0 0.0
        %1715 = vmatprep.subr.mxu0 0.0
        %1716 = vmatpush1.msra.mxu0 0.0
        %1717 = vmatprep.subr.mxu0 0.0
        %1718 = vmatpush1.msra.mxu0 0.0
        %1719 = vmatprep.subr.mxu0 0.0
        %1720 = vmatpush1.msra.mxu0 0.0
        %1721 = vmatprep.subr.mxu0 0.0
        %1722 = vmatpush1.msra.mxu0 0.0
        %1723 = vmatprep.subr.mxu0 0.0
        %1724 = vmatpush1.msra.mxu0 0.0
        %1725 = vmatprep.subr.mxu0 0.0
        %1726 = vmatpush1.msra.mxu0 0.0
        %1727 = vmatprep.subr.mxu0 0.0
        %1728 = vmatpush1.msra.mxu0 0.0
        %1729 = vmatprep.subr.mxu0 0.0
        %1730 = vmatpush1.msra.mxu0 0.0
        %1731 = vmatprep.subr.mxu0 0.0
        %1732 = vmatpush1.msra.mxu0 0.0
        %1733 = vmatprep.subr.mxu0 0.0
        %1734 = vmatpush1.msra.mxu0 0.0
        %1735 = vmatprep.subr.mxu0 0.0
        %1736 = vmatpush1.msra.mxu0 0.0
        %1737 = vmatprep.subr.mxu0 0.0
        %1738 = vmatpush1.msra.mxu0 0.0
        %1739 = vmatprep.subr.mxu0 0.0
        %1740 = vmatpush1.msra.mxu0 0.0
        %1741 = vmatprep.subr.mxu0 0.0
        %1742 = vmatpush1.msra.mxu0 0.0
        %1743 = vmatprep.subr.mxu0 0.0
        %1744 = vmatpush1.msra.mxu0 0.0
        %1745 = vmatprep.subr.mxu0 0.0
        %1746 = vmatpush1.msra.mxu0 0.0
        %1747 = vmatprep.subr.mxu0 0.0
        %1748 = vmatpush1.msra.mxu0 0.0
        %1749 = vmatprep.subr.mxu0 0.0
        %1750 = vmatpush1.msra.mxu0 0.0
        %1751 = vmatprep.subr.mxu0 0.0
        %1752 = vmatpush1.msra.mxu0 0.0
        %1753 = vmatprep.mubr.f32.mxu0 0.0
        %1754 = vmatmul.mubr.f32.gmra.mrb[0].mxu0 %v1687
        %v1755 = vpop.f32.mrb[0].mxu0
        %v1756 = vadd.f32 0.0, %v1755
        %v1757 = vpop.f32.mrb[0].mxu0
        %1758 = vdwg.mxu0
        %v1759 = vrcp.pop %v1679
        %v1760 = vmul.f32 %v1756, %v1759
        %1761 = vrot.lane.b32.xlu0 %v1417, 112
        %v1762 = vpop.permute.xlu0 %1761
        %1763 = vrot.lane.b32.xlu0 %v1410, 112
        %v1764 = vpop.permute.xlu0 %1763
        %1765 = vrot.lane.b32.xlu0 %v1411, 112
        %v1766 = vpop.permute.xlu0 %1765
        %v1767 = vsel %vm1418, %v1762, 0
        %v1769 = vsel %vm1418, %v1764, 0
        %v1771 = vsel %vm1418, %v1766, 0
        %1773 = vmatprep.subr.mxu0 0.0
        %1774 = vmatpush1.xpose.msra.mxu0 %v1769
        %1775 = vmatprep.subr.mxu0 0.0
        %1776 = vmatpush1.xpose.msra.mxu0 %v1771
        %1777 = vmatprep.subr.mxu0 0.0
        %1778 = vmatpush1.xpose.msra.mxu0 0.0
        %1779 = vmatprep.subr.mxu0 0.0
        %1780 = vmatpush1.xpose.msra.mxu0 0.0
        %1781 = vmatprep.subr.mxu0 0.0
        %1782 = vmatpush1.xpose.msra.mxu0 0.0
        %1783 = vmatprep.subr.mxu0 0.0
        %1784 = vmatpush1.xpose.msra.mxu0 0.0
        %1785 = vmatprep.subr.mxu0 0.0
        %1786 = vmatpush1.xpose.msra.mxu0 0.0
        %1787 = vmatprep.subr.mxu0 0.0
        %1788 = vmatpush1.xpose.msra.mxu0 0.0
        %1789 = vmatprep.subr.mxu0 0.0
        %1790 = vmatpush1.xpose.msra.mxu0 0.0
        %1791 = vmatprep.subr.mxu0 0.0
        %1792 = vmatpush1.xpose.msra.mxu0 0.0
        %1793 = vmatprep.subr.mxu0 0.0
        %1794 = vmatpush1.xpose.msra.mxu0 0.0
        %1795 = vmatprep.subr.mxu0 0.0
        %1796 = vmatpush1.xpose.msra.mxu0 0.0
        %1797 = vmatprep.subr.mxu0 0.0
        %1798 = vmatpush1.xpose.msra.mxu0 0.0
        %1799 = vmatprep.subr.mxu0 0.0
        %1800 = vmatpush1.xpose.msra.mxu0 0.0
        %1801 = vmatprep.subr.mxu0 0.0
        %1802 = vmatpush1.xpose.msra.mxu0 0.0
        %1803 = vmatprep.subr.mxu0 0.0
        %1804 = vmatpush1.xpose.msra.mxu0 0.0
        %1805 = vmatprep.subr.mxu0 0.0
        %1806 = vmatpush1.xpose.msra.mxu0 0.0
        %1807 = vmatprep.subr.mxu0 0.0
        %1808 = vmatpush1.xpose.msra.mxu0 0.0
        %1809 = vmatprep.subr.mxu0 0.0
        %1810 = vmatpush1.xpose.msra.mxu0 0.0
        %1811 = vmatprep.subr.mxu0 0.0
        %1812 = vmatpush1.xpose.msra.mxu0 0.0
        %1813 = vmatprep.subr.mxu0 0.0
        %1814 = vmatpush1.xpose.msra.mxu0 0.0
        %1815 = vmatprep.subr.mxu0 0.0
        %1816 = vmatpush1.xpose.msra.mxu0 0.0
        %1817 = vmatprep.subr.mxu0 0.0
        %1818 = vmatpush1.xpose.msra.mxu0 0.0
        %1819 = vmatprep.subr.mxu0 0.0
        %1820 = vmatpush1.xpose.msra.mxu0 0.0
        %1821 = vmatprep.subr.mxu0 0.0
        %1822 = vmatpush1.xpose.msra.mxu0 0.0
        %1823 = vmatprep.subr.mxu0 0.0
        %1824 = vmatpush1.xpose.msra.mxu0 0.0
        %1825 = vmatprep.subr.mxu0 0.0
        %1826 = vmatpush1.xpose.msra.mxu0 0.0
        %1827 = vmatprep.subr.mxu0 0.0
        %1828 = vmatpush1.xpose.msra.mxu0 0.0
        %1829 = vmatprep.subr.mxu0 0.0
        %1830 = vmatpush1.xpose.msra.mxu0 0.0
        %1831 = vmatprep.subr.mxu0 0.0
        %1832 = vmatpush1.xpose.msra.mxu0 0.0
        %1833 = vmatprep.subr.mxu0 0.0
        %1834 = vmatpush1.xpose.msra.mxu0 0.0
        %1835 = vmatprep.subr.mxu0 0.0
        %1836 = vmatpush1.xpose.msra.mxu0 0.0
        %1837 = vmatprep.mubr.f32.mxu0 0.0
        %1838 = vmatmul.mubr.f32.gmra.mrb[0].mxu0 %v1767
        %v1839 = vpop.f32.mrb[0].mxu0
        %v1840 = vadd.f32 0.0, %v1839
        %v1841 = vpop.f32.mrb[0].mxu0
        %1842 = vdwg.mxu0
        %v1843 = vsel %vm1498, %v1840, -inf
        %1844 = vmax.xlane.f32.xlu0 %v1843
        %v1845 = vpop.xlane.xlu0 %1844
        %v1846 = vsub.f32 %v1840, %v1845
        %v1847 = vmul.f32 %v1846, 1.442695
        %v1848 = vpow.pop %v1847
        %v1849 = vsel %vm1498, %v1848, 0.0
        %1850 = vadd.xlane.f32.xlu0 %v1849
        %v1851 = vpop.xlane.xlu0 %1850
        %1852 = vrot.lane.b32.xlu0 %v1410, 80
        %v1853 = vpop.permute.xlu0 %1852
        %1854 = vrot.lane.b32.xlu0 %v1411, 80
        %v1855 = vpop.permute.xlu0 %1854
        %v1859 = vsel %vm1498, %v1848, 0
        %1861 = vmatprep.subr.mxu0 0.0
        %1862 = vmatpush1.msra.mxu0 %v1853
        %1863 = vmatprep.subr.mxu0 0.0
        %1864 = vmatpush1.msra.mxu0 %v1855
        %1865 = vmatprep.subr.mxu0 0.0
        %1866 = vmatpush1.msra.mxu0 0.0
        %1867 = vmatprep.subr.mxu0 0.0
        %1868 = vmatpush1.msra.mxu0 0.0
        %1869 = vmatprep.subr.mxu0 0.0
        %1870 = vmatpush1.msra.mxu0 0.0
        %1871 = vmatprep.subr.mxu0 0.0
        %1872 = vmatpush1.msra.mxu0 0.0
        %1873 = vmatprep.subr.mxu0 0.0
        %1874 = vmatpush1.msra.mxu0 0.0
        %1875 = vmatprep.subr.mxu0 0.0
        %1876 = vmatpush1.msra.mxu0 0.0
        %1877 = vmatprep.subr.mxu0 0.0
        %1878 = vmatpush1.msra.mxu0 0.0
        %1879 = vmatprep.subr.mxu0 0.0
        %1880 = vmatpush1.msra.mxu0 0.0
        %1881 = vmatprep.subr.mxu0 0.0
        %1882 = vmatpush1.msra.mxu0 0.0
        %1883 = vmatprep.subr.mxu0 0.0
        %1884 = vmatpush1.msra.mxu0 0.0
        %1885 = vmatprep.subr.mxu0 0.0
        %1886 = vmatpush1.msra.mxu0 0.0
        %1887 = vmatprep.subr.mxu0 0.0
        %1888 = vmatpush1.msra.mxu0 0.0
        %1889 = vmatprep.subr.mxu0 0.0
        %1890 = vmatpush1.msra.mxu0 0.0
        %1891 = vmatprep.subr.mxu0 0.0
        %1892 = vmatpush1.msra.mxu0 0.0
        %1893 = vmatprep.subr.mxu0 0.0
        %1894 = vmatpush1.msra.mxu0 0.0
        %1895 = vmatprep.subr.mxu0 0.0
        %1896 = vmatpush1.msra.mxu0 0.0
        %1897 = vmatprep.subr.mxu0 0.0
        %1898 = vmatpush1.msra.mxu0 0.0
        %1899 = vmatprep.subr.mxu0 0.0
        %1900 = vmatpush1.msra.mxu0 0.0
        %1901 = vmatprep.subr.mxu0 0.0
        %1902 = vmatpush1.msra.mxu0 0.0
        %1903 = vmatprep.subr.mxu0 0.0
        %1904 = vmatpush1.msra.mxu0 0.0
        %1905 = vmatprep.subr.mxu0 0.0
        %1906 = vmatpush1.msra.mxu0 0.0
        %1907 = vmatprep.subr.mxu0 0.0
        %1908 = vmatpush1.msra.mxu0 0.0
        %1909 = vmatprep.subr.mxu0 0.0
        %1910 = vmatpush1.msra.mxu0 0.0
        %1911 = vmatprep.subr.mxu0 0.0
        %1912 = vmatpush1.msra.mxu0 0.0
        %1913 = vmatprep.subr.mxu0 0.0
        %1914 = vmatpush1.msra.mxu0 0.0
        %1915 = vmatprep.subr.mxu0 0.0
        %1916 = vmatpush1.msra.mxu0 0.0
        %1917 = vmatprep.subr.mxu0 0.0
        %1918 = vmatpush1.msra.mxu0 0.0
        %1919 = vmatprep.subr.mxu0 0.0
        %1920 = vmatpush1.msra.mxu0 0.0
        %1921 = vmatprep.subr.mxu0 0.0
        %1922 = vmatpush1.msra.mxu0 0.0
        %1923 = vmatprep.subr.mxu0 0.0
        %1924 = vmatpush1.msra.mxu0 0.0
        %1925 = vmatprep.mubr.f32.mxu0 0.0
        %1926 = vmatmul.mubr.f32.gmra.mrb[0].mxu0 %v1859
        %v1927 = vpop.f32.mrb[0].mxu0
        %v1928 = vadd.f32 0.0, %v1927
        %v1929 = vpop.f32.mrb[0].mxu0
        %1930 = vdwg.mxu0
        %v1931 = vrcp.pop %v1851
        %v1932 = vmul.f32 %v1928, %v1931
        %1933 = vrot.lane.b32.xlu0 %v1417, 104
        %v1934 = vpop.permute.xlu0 %1933
        %1935 = vrot.lane.b32.xlu0 %v1410, 104
        %v1936 = vpop.permute.xlu0 %1935
        %1937 = vrot.lane.b32.xlu0 %v1411, 104
        %v1938 = vpop.permute.xlu0 %1937
        %v1939 = vsel %vm1418, %v1934, 0
        %v1941 = vsel %vm1418, %v1936, 0
        %v1943 = vsel %vm1418, %v1938, 0
        %1945 = vmatprep.subr.mxu0 0.0
        %1946 = vmatpush1.xpose.msra.mxu0 %v1941
        %1947 = vmatprep.subr.mxu0 0.0
        %1948 = vmatpush1.xpose.msra.mxu0 %v1943
        %1949 = vmatprep.subr.mxu0 0.0
        %1950 = vmatpush1.xpose.msra.mxu0 0.0
        %1951 = vmatprep.subr.mxu0 0.0
        %1952 = vmatpush1.xpose.msra.mxu0 0.0
        %1953 = vmatprep.subr.mxu0 0.0
        %1954 = vmatpush1.xpose.msra.mxu0 0.0
        %1955 = vmatprep.subr.mxu0 0.0
        %1956 = vmatpush1.xpose.msra.mxu0 0.0
        %1957 = vmatprep.subr.mxu0 0.0
        %1958 = vmatpush1.xpose.msra.mxu0 0.0
        %1959 = vmatprep.subr.mxu0 0.0
        %1960 = vmatpush1.xpose.msra.mxu0 0.0
        %1961 = vmatprep.subr.mxu0 0.0
        %1962 = vmatpush1.xpose.msra.mxu0 0.0
        %1963 = vmatprep.subr.mxu0 0.0
        %1964 = vmatpush1.xpose.msra.mxu0 0.0
        %1965 = vmatprep.subr.mxu0 0.0
        %1966 = vmatpush1.xpose.msra.mxu0 0.0
        %1967 = vmatprep.subr.mxu0 0.0
        %1968 = vmatpush1.xpose.msra.mxu0 0.0
        %1969 = vmatprep.subr.mxu0 0.0
        %1970 = vmatpush1.xpose.msra.mxu0 0.0
        %1971 = vmatprep.subr.mxu0 0.0
        %1972 = vmatpush1.xpose.msra.mxu0 0.0
        %1973 = vmatprep.subr.mxu0 0.0
        %1974 = vmatpush1.xpose.msra.mxu0 0.0
        %1975 = vmatprep.subr.mxu0 0.0
        %1976 = vmatpush1.xpose.msra.mxu0 0.0
        %1977 = vmatprep.subr.mxu0 0.0
        %1978 = vmatpush1.xpose.msra.mxu0 0.0
        %1979 = vmatprep.subr.mxu0 0.0
        %1980 = vmatpush1.xpose.msra.mxu0 0.0
        %1981 = vmatprep.subr.mxu0 0.0
        %1982 = vmatpush1.xpose.msra.mxu0 0.0
        %1983 = vmatprep.subr.mxu0 0.0
        %1984 = vmatpush1.xpose.msra.mxu0 0.0
        %1985 = vmatprep.subr.mxu0 0.0
        %1986 = vmatpush1.xpose.msra.mxu0 0.0
        %1987 = vmatprep.subr.mxu0 0.0
        %1988 = vmatpush1.xpose.msra.mxu0 0.0
        %1989 = vmatprep.subr.mxu0 0.0
        %1990 = vmatpush1.xpose.msra.mxu0 0.0
        %1991 = vmatprep.subr.mxu0 0.0
        %1992 = vmatpush1.xpose.msra.mxu0 0.0
        %1993 = vmatprep.subr.mxu0 0.0
        %1994 = vmatpush1.xpose.msra.mxu0 0.0
        %1995 = vmatprep.subr.mxu0 0.0
        %1996 = vmatpush1.xpose.msra.mxu0 0.0
        %1997 = vmatprep.subr.mxu0 0.0
        %1998 = vmatpush1.xpose.msra.mxu0 0.0
        %1999 = vmatprep.subr.mxu0 0.0
        %2000 = vmatpush1.xpose.msra.mxu0 0.0
        %2001 = vmatprep.subr.mxu0 0.0
        %2002 = vmatpush1.xpose.msra.mxu0 0.0
        %2003 = vmatprep.subr.mxu0 0.0
        %2004 = vmatpush1.xpose.msra.mxu0 0.0
        %2005 = vmatprep.subr.mxu0 0.0
        %2006 = vmatpush1.xpose.msra.mxu0 0.0
        %2007 = vmatprep.subr.mxu0 0.0
        %2008 = vmatpush1.xpose.msra.mxu0 0.0
        %2009 = vmatprep.mubr.f32.mxu0 0.0
        %2010 = vmatmul.mubr.f32.gmra.mrb[0].mxu0 %v1939
        %v2011 = vpop.f32.mrb[0].mxu0
        %v2012 = vadd.f32 0.0, %v2011
        %v2013 = vpop.f32.mrb[0].mxu0
        %2014 = vdwg.mxu0
        %v2015 = vsel %vm1498, %v2012, -inf
        %2016 = vmax.xlane.f32.xlu0 %v2015
        %v2017 = vpop.xlane.xlu0 %2016
        %v2018 = vsub.f32 %v2012, %v2017
        %v2019 = vmul.f32 %v2018, 1.442695
        %v2020 = vpow.pop %v2019
        %v2021 = vsel %vm1498, %v2020, 0.0
        %2022 = vadd.xlane.f32.xlu0 %v2021
        %v2023 = vpop.xlane.xlu0 %2022
        %2024 = vrot.lane.b32.xlu0 %v1410, 72
        %v2025 = vpop.permute.xlu0 %2024
        %2026 = vrot.lane.b32.xlu0 %v1411, 72
        %v2027 = vpop.permute.xlu0 %2026
        %v2031 = vsel %vm1498, %v2020, 0
        %2033 = vmatprep.subr.mxu0 0.0
        %2034 = vmatpush1.msra.mxu0 %v2025
        %2035 = vmatprep.subr.mxu0 0.0
        %2036 = vmatpush1.msra.mxu0 %v2027
        %2037 = vmatprep.subr.mxu0 0.0
        %2038 = vmatpush1.msra.mxu0 0.0
        %2039 = vmatprep.subr.mxu0 0.0
        %2040 = vmatpush1.msra.mxu0 0.0
        %2041 = vmatprep.subr.mxu0 0.0
        %2042 = vmatpush1.msra.mxu0 0.0
        %2043 = vmatprep.subr.mxu0 0.0
        %2044 = vmatpush1.msra.mxu0 0.0
        %2045 = vmatprep.subr.mxu0 0.0
        %2046 = vmatpush1.msra.mxu0 0.0
        %2047 = vmatprep.subr.mxu0 0.0
        %2048 = vmatpush1.msra.mxu0 0.0
        %2049 = vmatprep.subr.mxu0 0.0
        %2050 = vmatpush1.msra.mxu0 0.0
        %2051 = vmatprep.subr.mxu0 0.0
        %2052 = vmatpush1.msra.mxu0 0.0
        %2053 = vmatprep.subr.mxu0 0.0
        %2054 = vmatpush1.msra.mxu0 0.0
        %2055 = vmatprep.subr.mxu0 0.0
        %2056 = vmatpush1.msra.mxu0 0.0
        %2057 = vmatprep.subr.mxu0 0.0
        %2058 = vmatpush1.msra.mxu0 0.0
        %2059 = vmatprep.subr.mxu0 0.0
        %2060 = vmatpush1.msra.mxu0 0.0
        %2061 = vmatprep.subr.mxu0 0.0
        %2062 = vmatpush1.msra.mxu0 0.0
        %2063 = vmatprep.subr.mxu0 0.0
        %2064 = vmatpush1.msra.mxu0 0.0
        %2065 = vmatprep.subr.mxu0 0.0
        %2066 = vmatpush1.msra.mxu0 0.0
        %2067 = vmatprep.subr.mxu0 0.0
        %2068 = vmatpush1.msra.mxu0 0.0
        %2069 = vmatprep.subr.mxu0 0.0
        %2070 = vmatpush1.msra.mxu0 0.0
        %2071 = vmatprep.subr.mxu0 0.0
        %2072 = vmatpush1.msra.mxu0 0.0
        %2073 = vmatprep.subr.mxu0 0.0
        %2074 = vmatpush1.msra.mxu0 0.0
        %2075 = vmatprep.subr.mxu0 0.0
        %2076 = vmatpush1.msra.mxu0 0.0
        %2077 = vmatprep.subr.mxu0 0.0
        %2078 = vmatpush1.msra.mxu0 0.0
        %2079 = vmatprep.subr.mxu0 0.0
        %2080 = vmatpush1.msra.mxu0 0.0
        %2081 = vmatprep.subr.mxu0 0.0
        %2082 = vmatpush1.msra.mxu0 0.0
        %2083 = vmatprep.subr.mxu0 0.0
        %2084 = vmatpush1.msra.mxu0 0.0
        %2085 = vmatprep.subr.mxu0 0.0
        %2086 = vmatpush1.msra.mxu0 0.0
        %2087 = vmatprep.subr.mxu0 0.0
        %2088 = vmatpush1.msra.mxu0 0.0
        %2089 = vmatprep.subr.mxu0 0.0
        %2090 = vmatpush1.msra.mxu0 0.0
        %2091 = vmatprep.subr.mxu0 0.0
        %2092 = vmatpush1.msra.mxu0 0.0
        %2093 = vmatprep.subr.mxu0 0.0
        %2094 = vmatpush1.msra.mxu0 0.0
        %2095 = vmatprep.subr.mxu0 0.0
        %2096 = vmatpush1.msra.mxu0 0.0
        %2097 = vmatprep.mubr.f32.mxu0 0.0
        %2098 = vmatmul.mubr.f32.gmra.mrb[0].mxu0 %v2031
        %v2099 = vpop.f32.mrb[0].mxu0
        %v2100 = vadd.f32 0.0, %v2099
        %v2101 = vpop.f32.mrb[0].mxu0
        %2102 = vdwg.mxu0
        %v2103 = vrcp.pop %v2023
        %v2104 = vmul.f32 %v2100, %v2103
        %2106 = vrot.lane.b32.xlu0 %v1760, 8
        %v2107 = vpop.permute.xlu0 %2106
        %2110 = vrot.lane.b32.xlu0 %v1932, 16
        %v2111 = vpop.permute.xlu0 %2110
        %2114 = vrot.lane.b32.xlu0 %v2104, 24
        %v2115 = vpop.permute.xlu0 %2114
        %v2117 = vsel %vm1418, %v1588, %v2107
        %v2118 = vsel %vm1498, %v2117, %v2111
        %vm2119 = vcmask 195584
        %v2120 = vsel %vm2119, %v2118, %v2115
        %v2122 = vlaneseq
        %v2123 = vshrl.u32 %v2122, 7
        %v2124 = vsub.s32 0, %v2123
        %v2125 = vrot.slane %v1416, %v2124
        %v2128 = vsel %vm1336, %v2120, 0
        %2130 = vmatprep.subr.mxu0 0.0
        %2131 = vmatpush1.msra.mxu0 %v1412
        %2132 = vmatprep.subr.mxu0 0.0
        %2133 = vmatpush1.msra.mxu0 %v1413
        %2134 = vmatprep.subr.mxu0 0.0
        %2135 = vmatpush1.msra.mxu0 %v1414
        %2136 = vmatprep.subr.mxu0 0.0
        %2137 = vmatpush1.msra.mxu0 %v1415
        %2138 = vmatprep.subr.mxu0 0.0
        %2139 = vmatpush1.msra.mxu0 0.0
        %2140 = vmatprep.subr.mxu0 0.0
        %2141 = vmatpush1.msra.mxu0 0.0
        %2142 = vmatprep.subr.mxu0 0.0
        %2143 = vmatpush1.msra.mxu0 0.0
        %2144 = vmatprep.subr.mxu0 0.0
        %2145 = vmatpush1.msra.mxu0 0.0
        %2146 = vmatprep.subr.mxu0 0.0
        %2147 = vmatpush1.msra.mxu0 0.0
        %2148 = vmatprep.subr.mxu0 0.0
        %2149 = vmatpush1.msra.mxu0 0.0
        %2150 = vmatprep.subr.mxu0 0.0
        %2151 = vmatpush1.msra.mxu0 0.0
        %2152 = vmatprep.subr.mxu0 0.0
        %2153 = vmatpush1.msra.mxu0 0.0
        %2154 = vmatprep.subr.mxu0 0.0
        %2155 = vmatpush1.msra.mxu0 0.0
        %2156 = vmatprep.subr.mxu0 0.0
        %2157 = vmatpush1.msra.mxu0 0.0
        %2158 = vmatprep.subr.mxu0 0.0
        %2159 = vmatpush1.msra.mxu0 0.0
        %2160 = vmatprep.subr.mxu0 0.0
        %2161 = vmatpush1.msra.mxu0 0.0
        %2162 = vmatprep.subr.mxu0 0.0
        %2163 = vmatpush1.msra.mxu0 0.0
        %2164 = vmatprep.subr.mxu0 0.0
        %2165 = vmatpush1.msra.mxu0 0.0
        %2166 = vmatprep.subr.mxu0 0.0
        %2167 = vmatpush1.msra.mxu0 0.0
        %2168 = vmatprep.subr.mxu0 0.0
        %2169 = vmatpush1.msra.mxu0 0.0
        %2170 = vmatprep.subr.mxu0 0.0
        %2171 = vmatpush1.msra.mxu0 0.0
        %2172 = vmatprep.subr.mxu0 0.0
        %2173 = vmatpush1.msra.mxu0 0.0
        %2174 = vmatprep.subr.mxu0 0.0
        %2175 = vmatpush1.msra.mxu0 0.0
        %2176 = vmatprep.subr.mxu0 0.0
        %2177 = vmatpush1.msra.mxu0 0.0
        %2178 = vmatprep.subr.mxu0 0.0
        %2179 = vmatpush1.msra.mxu0 0.0
        %2180 = vmatprep.subr.mxu0 0.0
        %2181 = vmatpush1.msra.mxu0 0.0
        %2182 = vmatprep.subr.mxu0 0.0
        %2183 = vmatpush1.msra.mxu0 0.0
        %2184 = vmatprep.subr.mxu0 0.0
        %2185 = vmatpush1.msra.mxu0 0.0
        %2186 = vmatprep.subr.mxu0 0.0
        %2187 = vmatpush1.msra.mxu0 0.0
        %2188 = vmatprep.subr.mxu0 0.0
        %2189 = vmatpush1.msra.mxu0 0.0
        %2190 = vmatprep.subr.mxu0 0.0
        %2191 = vmatpush1.msra.mxu0 0.0
        %2192 = vmatprep.subr.mxu0 0.0
        %2193 = vmatpush1.msra.mxu0 0.0
        %2194 = vmatprep.mubr.f32.mxu0 0.0
        %2195 = vmatmul.mubr.f32.gmra.mrb[0].mxu0 %v2128
        %v2196 = vpop.f32.mrb[0].mxu0
        %v2197 = vadd.f32 %v2125, %v2196
        %v2198 = vpop.f32.mrb[0].mxu0
        %2199 = vdwg.mxu0
        %v2200 = vadd.f32 %v1324, %v2197
        %v2201 = vld [vmem:[%s19] sm:$0x1]
        %v2202 = vld [vmem:[%s21] sm:$0x1]
        %v2203 = vsel %vm1336, %v2200, 0.0
        %2204 = vadd.xlane.f32.xlu0 %v2203
        %v2205 = vpop.xlane.xlu0 %2204
        %v2206 = vrcp.pop 32.0
        %v2207 = vmul.f32 %v2205, %v2206
        %v2208 = vsub.f32 %v2200, %v2207
        %v2209 = vmul.f32 %v2208, %v2208
        %v2210 = vsel %vm1336, %v2209, 0.0
        %2211 = vadd.xlane.f32.xlu0 %v2210
        %v2212 = vpop.xlane.xlu0 %2211
        %v2213 = vmul.f32 %v2212, %v2206
        %v2214 = vadd.f32 %v2213, 1e-05
        %v2215 = vrsqrt.pop %v2214
        %v2216 = vmul.f32 %v2208, %v2215
        %v2218 = vlaneseq
        %v2219 = vshrl.u32 %v2218, 7
        %v2220 = vsub.s32 0, %v2219
        %v2221 = vrot.slane %v2201, %v2220
        %v2223 = vmul.f32 %v2216, %v2221
        %v2225 = vlaneseq
        %v2226 = vshrl.u32 %v2225, 7
        %v2227 = vsub.s32 0, %v2226
        %v2228 = vrot.slane %v2202, %v2227
        %v2230 = vadd.f32 %v2223, %v2228
        %v2231 = vld [vmem:[%s23] sm:$0xff]
        %v2232 = vld [vmem:[%s23 + $0x8] sm:$0xff]
        %v2233 = vld [vmem:[%s23 + $0x10] sm:$0xff]
        %v2234 = vld [vmem:[%s23 + $0x18] sm:$0xff]
        %v2235 = vld [vmem:[#allocation9] sm:$0x1]
        %v2237 = vlaneseq
        %v2238 = vshrl.u32 %v2237, 7
        %v2239 = vsub.s32 0, %v2238
        %v2240 = vrot.slane %v2235, %v2239
        %v2243 = vsel %vm1336, %v2230, 0
        %2245 = vmatprep.subr.mxu0 0.0
        %2246 = vmatpush1.msra.mxu0 %v2231
        %2247 = vmatprep.subr.mxu0 0.0
        %2248 = vmatpush1.msra.mxu0 %v2232
        %2249 = vmatprep.subr.mxu0 0.0
        %2250 = vmatpush1.msra.mxu0 %v2233
        %2251 = vmatprep.subr.mxu0 0.0
        %2252 = vmatpush1.msra.mxu0 %v2234
        %2253 = vmatprep.subr.mxu0 0.0
        %2254 = vmatpush1.msra.mxu0 0.0
        %2255 = vmatprep.subr.mxu0 0.0
        %2256 = vmatpush1.msra.mxu0 0.0
        %2257 = vmatprep.subr.mxu0 0.0
        %2258 = vmatpush1.msra.mxu0 0.0
        %2259 = vmatprep.subr.mxu0 0.0
        %2260 = vmatpush1.msra.mxu0 0.0
        %2261 = vmatprep.subr.mxu0 0.0
        %2262 = vmatpush1.msra.mxu0 0.0
        %2263 = vmatprep.subr.mxu0 0.0
        %2264 = vmatpush1.msra.mxu0 0.0
        %2265 = vmatprep.subr.mxu0 0.0
        %2266 = vmatpush1.msra.mxu0 0.0
        %2267 = vmatprep.subr.mxu0 0.0
        %2268 = vmatpush1.msra.mxu0 0.0
        %2269 = vmatprep.subr.mxu0 0.0
        %2270 = vmatpush1.msra.mxu0 0.0
        %2271 = vmatprep.subr.mxu0 0.0
        %2272 = vmatpush1.msra.mxu0 0.0
        %2273 = vmatprep.subr.mxu0 0.0
        %2274 = vmatpush1.msra.mxu0 0.0
        %2275 = vmatprep.subr.mxu0 0.0
        %2276 = vmatpush1.msra.mxu0 0.0
        %2277 = vmatprep.subr.mxu0 0.0
        %2278 = vmatpush1.msra.mxu0 0.0
        %2279 = vmatprep.subr.mxu0 0.0
        %2280 = vmatpush1.msra.mxu0 0.0
        %2281 = vmatprep.subr.mxu0 0.0
        %2282 = vmatpush1.msra.mxu0 0.0
        %2283 = vmatprep.subr.mxu0 0.0
        %2284 = vmatpush1.msra.mxu0 0.0
        %2285 = vmatprep.subr.mxu0 0.0
        %2286 = vmatpush1.msra.mxu0 0.0
        %2287 = vmatprep.subr.mxu0 0.0
        %2288 = vmatpush1.msra.mxu0 0.0
        %2289 = vmatprep.subr.mxu0 0.0
        %2290 = vmatpush1.msra.mxu0 0.0
        %2291 = vmatprep.subr.mxu0 0.0
        %2292 = vmatpush1.msra.mxu0 0.0
        %2293 = vmatprep.subr.mxu0 0.0
        %2294 = vmatpush1.msra.mxu0 0.0
        %2295 = vmatprep.subr.mxu0 0.0
        %2296 = vmatpush1.msra.mxu0 0.0
        %2297 = vmatprep.subr.mxu0 0.0
        %2298 = vmatpush1.msra.mxu0 0.0
        %2299 = vmatprep.subr.mxu0 0.0
        %2300 = vmatpush1.msra.mxu0 0.0
        %2301 = vmatprep.subr.mxu0 0.0
        %2302 = vmatpush1.msra.mxu0 0.0
        %2303 = vmatprep.subr.mxu0 0.0
        %2304 = vmatpush1.msra.mxu0 0.0
        %2305 = vmatprep.subr.mxu0 0.0
        %2306 = vmatpush1.msra.mxu0 0.0
        %2307 = vmatprep.subr.mxu0 0.0
        %2308 = vmatpush1.msra.mxu0 0.0
        %2309 = vmatprep.mubr.f32.mxu0 0.0
        %2310 = vmatmul.mubr.f32.gmra.mrb[0].mxu0 %v2243
        %v2311 = vpop.f32.mrb[0].mxu0
        %v2312 = vadd.f32 %v2240, %v2311
        %v2313 = vpop.f32.mrb[0].mxu0
        %2314 = vdwg.mxu0
        %v2315 = vld [vmem:[%s1107] sm:$0xff]
        %v2316 = vadd.f32 %v2315, %v2312
        %2317 = vst [vmem:[%s1123] sm:$0xff] %v2316
        %v2318 = vld [vmem:[%s27] sm:$0xff]
        %v2319 = vld [vmem:[%s27 + $0x8] sm:$0xff]
        %v2320 = vld [vmem:[%s27 + $0x10] sm:$0xff]
        %v2321 = vld [vmem:[%s27 + $0x18] sm:$0xff]
        %v2322 = vld [vmem:[%s29] sm:$0x1]
        %v2324 = vlaneseq
        %v2325 = vshrl.u32 %v2324, 7
        %v2326 = vsub.s32 0, %v2325
        %v2327 = vrot.slane %v2322, %v2326
        %2329 = vmatprep.subr.mxu0 0.0
        %2330 = vmatpush1.msra.mxu0 %v2318
        %2331 = vmatprep.subr.mxu0 0.0
        %2332 = vmatpush1.msra.mxu0 %v2319
        %2333 = vmatprep.subr.mxu0 0.0
        %2334 = vmatpush1.msra.mxu0 %v2320
        %2335 = vmatprep.subr.mxu0 0.0
        %2336 = vmatpush1.msra.mxu0 %v2321
        %2337 = vmatprep.subr.mxu0 0.0
        %2338 = vmatpush1.msra.mxu0 0.0
        %2339 = vmatprep.subr.mxu0 0.0
        %2340 = vmatpush1.msra.mxu0 0.0
        %2341 = vmatprep.subr.mxu0 0.0
        %2342 = vmatpush1.msra.mxu0 0.0
        %2343 = vmatprep.subr.mxu0 0.0
        %2344 = vmatpush1.msra.mxu0 0.0
        %2345 = vmatprep.subr.mxu0 0.0
        %2346 = vmatpush1.msra.mxu0 0.0
        %2347 = vmatprep.subr.mxu0 0.0
        %2348 = vmatpush1.msra.mxu0 0.0
        %2349 = vmatprep.subr.mxu0 0.0
        %2350 = vmatpush1.msra.mxu0 0.0
        %2351 = vmatprep.subr.mxu0 0.0
        %2352 = vmatpush1.msra.mxu0 0.0
        %2353 = vmatprep.subr.mxu0 0.0
        %2354 = vmatpush1.msra.mxu0 0.0
        %2355 = vmatprep.subr.mxu0 0.0
        %2356 = vmatpush1.msra.mxu0 0.0
        %2357 = vmatprep.subr.mxu0 0.0
        %2358 = vmatpush1.msra.mxu0 0.0
        %2359 = vmatprep.subr.mxu0 0.0
        %2360 = vmatpush1.msra.mxu0 0.0
        %2361 = vmatprep.subr.mxu0 0.0
        %2362 = vmatpush1.msra.mxu0 0.0
        %2363 = vmatprep.subr.mxu0 0.0
        %2364 = vmatpush1.msra.mxu0 0.0
        %2365 = vmatprep.subr.mxu0 0.0
        %2366 = vmatpush1.msra.mxu0 0.0
        %2367 = vmatprep.subr.mxu0 0.0
        %2368 = vmatpush1.msra.mxu0 0.0
        %2369 = vmatprep.subr.mxu0 0.0
        %2370 = vmatpush1.msra.mxu0 0.0
        %2371 = vmatprep.subr.mxu0 0.0
        %2372 = vmatpush1.msra.mxu0 0.0
        %2373 = vmatprep.subr.mxu0 0.0
        %2374 = vmatpush1.msra.mxu0 0.0
        %2375 = vmatprep.subr.mxu0 0.0
        %2376 = vmatpush1.msra.mxu0 0.0
        %2377 = vmatprep.subr.mxu0 0.0
        %2378 = vmatpush1.msra.mxu0 0.0
        %2379 = vmatprep.subr.mxu0 0.0
        %2380 = vmatpush1.msra.mxu0 0.0
        %2381 = vmatprep.subr.mxu0 0.0
        %2382 = vmatpush1.msra.mxu0 0.0
        %2383 = vmatprep.subr.mxu0 0.0
        %2384 = vmatpush1.msra.mxu0 0.0
        %2385 = vmatprep.subr.mxu0 0.0
        %2386 = vmatpush1.msra.mxu0 0.0
        %2387 = vmatprep.subr.mxu0 0.0
        %2388 = vmatpush1.msra.mxu0 0.0
        %2389 = vmatprep.subr.mxu0 0.0
        %2390 = vmatpush1.msra.mxu0 0.0
        %2391 = vmatprep.subr.mxu0 0.0
        %2392 = vmatpush1.msra.mxu0 0.0
        %2393 = vmatprep.mubr.f32.mxu0 0.0
        %2394 = vmatmul.mubr.f32.gmra.mrb[0].mxu0 %v2243
        %v2395 = vpop.f32.mrb[0].mxu0
        %v2396 = vadd.f32 %v2327, %v2395
        %v2397 = vpop.f32.mrb[0].mxu0
        %2398 = vdwg.mxu0
        %v2399 = vld [vmem:[#allocation3] sm:$0xff]
        %v2400 = vld [vmem:[#allocation3 + $0x8] sm:$0xff]
        %v2401 = vld [vmem:[%s35] sm:$0xff]
        %v2402 = vld [vmem:[%s35 + $0x8] sm:$0xff]
        %v2403 = vld [vmem:[%s35 + $0x10] sm:$0xff]
        %v2404 = vld [vmem:[%s35 + $0x18] sm:$0xff]
        %v2405 = vld [vmem:[%s37] sm:$0x1]
        %v2406 = vmul.f32 %v2396, 0.35355338
        %v2408 = vsel %vm1418, %v2406, 0
        %v2411 = vsel %vm1418, %v2399, 0
        %v2414 = vsel %vm1418, %v2400, 0
        %2416 = vmatprep.subr.mxu0 0.0
        %2417 = vmatpush1.xpose.msra.mxu0 %v2411
        %2418 = vmatprep.subr.mxu0 0.0
        %2419 = vmatpush1.xpose.msra.mxu0 %v2414
        %2420 = vmatprep.subr.mxu0 0.0
        %2421 = vmatpush1.xpose.msra.mxu0 0.0
        %2422 = vmatprep.subr.mxu0 0.0
        %2423 = vmatpush1.xpose.msra.mxu0 0.0
        %2424 = vmatprep.subr.mxu0 0.0
        %2425 = vmatpush1.xpose.msra.mxu0 0.0
        %2426 = vmatprep.subr.mxu0 0.0
        %2427 = vmatpush1.xpose.msra.mxu0 0.0
        %2428 = vmatprep.subr.mxu0 0.0
        %2429 = vmatpush1.xpose.msra.mxu0 0.0
        %2430 = vmatprep.subr.mxu0 0.0
        %2431 = vmatpush1.xpose.msra.mxu0 0.0
        %2432 = vmatprep.subr.mxu0 0.0
        %2433 = vmatpush1.xpose.msra.mxu0 0.0
        %2434 = vmatprep.subr.mxu0 0.0
        %2435 = vmatpush1.xpose.msra.mxu0 0.0
        %2436 = vmatprep.subr.mxu0 0.0
        %2437 = vmatpush1.xpose.msra.mxu0 0.0
        %2438 = vmatprep.subr.mxu0 0.0
        %2439 = vmatpush1.xpose.msra.mxu0 0.0
        %2440 = vmatprep.subr.mxu0 0.0
        %2441 = vmatpush1.xpose.msra.mxu0 0.0
        %2442 = vmatprep.subr.mxu0 0.0
        %2443 = vmatpush1.xpose.msra.mxu0 0.0
        %2444 = vmatprep.subr.mxu0 0.0
        %2445 = vmatpush1.xpose.msra.mxu0 0.0
        %2446 = vmatprep.subr.mxu0 0.0
        %2447 = vmatpush1.xpose.msra.mxu0 0.0
        %2448 = vmatprep.subr.mxu0 0.0
        %2449 = vmatpush1.xpose.msra.mxu0 0.0
        %2450 = vmatprep.subr.mxu0 0.0
        %2451 = vmatpush1.xpose.msra.mxu0 0.0
        %2452 = vmatprep.subr.mxu0 0.0
        %2453 = vmatpush1.xpose.msra.mxu0 0.0
        %2454 = vmatprep.subr.mxu0 0.0
        %2455 = vmatpush1.xpose.msra.mxu0 0.0
        %2456 = vmatprep.subr.mxu0 0.0
        %2457 = vmatpush1.xpose.msra.mxu0 0.0
        %2458 = vmatprep.subr.mxu0 0.0
        %2459 = vmatpush1.xpose.msra.mxu0 0.0
        %2460 = vmatprep.subr.mxu0 0.0
        %2461 = vmatpush1.xpose.msra.mxu0 0.0
        %2462 = vmatprep.subr.mxu0 0.0
        %2463 = vmatpush1.xpose.msra.mxu0 0.0
        %2464 = vmatprep.subr.mxu0 0.0
        %2465 = vmatpush1.xpose.msra.mxu0 0.0
        %2466 = vmatprep.subr.mxu0 0.0
        %2467 = vmatpush1.xpose.msra.mxu0 0.0
        %2468 = vmatprep.subr.mxu0 0.0
        %2469 = vmatpush1.xpose.msra.mxu0 0.0
        %2470 = vmatprep.subr.mxu0 0.0
        %2471 = vmatpush1.xpose.msra.mxu0 0.0
        %2472 = vmatprep.subr.mxu0 0.0
        %2473 = vmatpush1.xpose.msra.mxu0 0.0
        %2474 = vmatprep.subr.mxu0 0.0
        %2475 = vmatpush1.xpose.msra.mxu0 0.0
        %2476 = vmatprep.subr.mxu0 0.0
        %2477 = vmatpush1.xpose.msra.mxu0 0.0
        %2478 = vmatprep.subr.mxu0 0.0
        %2479 = vmatpush1.xpose.msra.mxu0 0.0
        %2480 = vmatprep.mubr.f32.mxu0 0.0
        %2481 = vmatmul.mubr.f32.gmra.mrb[0].mxu0 %v2408
        %v2482 = vpop.f32.mrb[0].mxu0
        %v2483 = vadd.f32 0.0, %v2482
        %v2484 = vpop.f32.mrb[0].mxu0
        %2485 = vdwg.mxu0
        %v2486 = vsel %vm1498, %v2483, -inf
        %2487 = vmax.xlane.f32.xlu0 %v2486
        %v2488 = vpop.xlane.xlu0 %2487
        %v2489 = vsub.f32 %v2483, %v2488
        %v2490 = vmul.f32 %v2489, 1.442695
        %v2491 = vpow.pop %v2490
        %v2492 = vsel %vm1498, %v2491, 0.0
        %2493 = vadd.xlane.f32.xlu0 %v2492
        %v2494 = vpop.xlane.xlu0 %2493
        %2495 = vrot.lane.b32.xlu0 %v2399, 96
        %v2496 = vpop.permute.xlu0 %2495
        %2497 = vrot.lane.b32.xlu0 %v2400, 96
        %v2498 = vpop.permute.xlu0 %2497
        %v2502 = vsel %vm1498, %v2491, 0
        %2504 = vmatprep.subr.mxu0 0.0
        %2505 = vmatpush1.msra.mxu0 %v2496
        %2506 = vmatprep.subr.mxu0 0.0
        %2507 = vmatpush1.msra.mxu0 %v2498
        %2508 = vmatprep.subr.mxu0 0.0
        %2509 = vmatpush1.msra.mxu0 0.0
        %2510 = vmatprep.subr.mxu0 0.0
        %2511 = vmatpush1.msra.mxu0 0.0
        %2512 = vmatprep.subr.mxu0 0.0
        %2513 = vmatpush1.msra.mxu0 0.0
        %2514 = vmatprep.subr.mxu0 0.0
        %2515 = vmatpush1.msra.mxu0 0.0
        %2516 = vmatprep.subr.mxu0 0.0
        %2517 = vmatpush1.msra.mxu0 0.0
        %2518 = vmatprep.subr.mxu0 0.0
        %2519 = vmatpush1.msra.mxu0 0.0
        %2520 = vmatprep.subr.mxu0 0.0
        %2521 = vmatpush1.msra.mxu0 0.0
        %2522 = vmatprep.subr.mxu0 0.0
        %2523 = vmatpush1.msra.mxu0 0.0
        %2524 = vmatprep.subr.mxu0 0.0
        %2525 = vmatpush1.msra.mxu0 0.0
        %2526 = vmatprep.subr.mxu0 0.0
        %2527 = vmatpush1.msra.mxu0 0.0
        %2528 = vmatprep.subr.mxu0 0.0
        %2529 = vmatpush1.msra.mxu0 0.0
        %2530 = vmatprep.subr.mxu0 0.0
        %2531 = vmatpush1.msra.mxu0 0.0
        %2532 = vmatprep.subr.mxu0 0.0
        %2533 = vmatpush1.msra.mxu0 0.0
        %2534 = vmatprep.subr.mxu0 0.0
        %2535 = vmatpush1.msra.mxu0 0.0
        %2536 = vmatprep.subr.mxu0 0.0
        %2537 = vmatpush1.msra.mxu0 0.0
        %2538 = vmatprep.subr.mxu0 0.0
        %2539 = vmatpush1.msra.mxu0 0.0
        %2540 = vmatprep.subr.mxu0 0.0
        %2541 = vmatpush1.msra.mxu0 0.0
        %2542 = vmatprep.subr.mxu0 0.0
        %2543 = vmatpush1.msra.mxu0 0.0
        %2544 = vmatprep.subr.mxu0 0.0
        %2545 = vmatpush1.msra.mxu0 0.0
        %2546 = vmatprep.subr.mxu0 0.0
        %2547 = vmatpush1.msra.mxu0 0.0
        %2548 = vmatprep.subr.mxu0 0.0
        %2549 = vmatpush1.msra.mxu0 0.0
        %2550 = vmatprep.subr.mxu0 0.0
        %2551 = vmatpush1.msra.mxu0 0.0
        %2552 = vmatprep.subr.mxu0 0.0
        %2553 = vmatpush1.msra.mxu0 0.0
        %2554 = vmatprep.subr.mxu0 0.0
        %2555 = vmatpush1.msra.mxu0 0.0
        %2556 = vmatprep.subr.mxu0 0.0
        %2557 = vmatpush1.msra.mxu0 0.0
        %2558 = vmatprep.subr.mxu0 0.0
        %2559 = vmatpush1.msra.mxu0 0.0
        %2560 = vmatprep.subr.mxu0 0.0
        %2561 = vmatpush1.msra.mxu0 0.0
        %2562 = vmatprep.subr.mxu0 0.0
        %2563 = vmatpush1.msra.mxu0 0.0
        %2564 = vmatprep.subr.mxu0 0.0
        %2565 = vmatpush1.msra.mxu0 0.0
        %2566 = vmatprep.subr.mxu0 0.0
        %2567 = vmatpush1.msra.mxu0 0.0
        %2568 = vmatprep.mubr.f32.mxu0 0.0
        %2569 = vmatmul.mubr.f32.gmra.mrb[0].mxu0 %v2502
        %v2570 = vpop.f32.mrb[0].mxu0
        %v2571 = vadd.f32 0.0, %v2570
        %v2572 = vpop.f32.mrb[0].mxu0
        %2573 = vdwg.mxu0
        %v2574 = vrcp.pop %v2494
        %v2575 = vmul.f32 %v2571, %v2574
        %2576 = vrot.lane.b32.xlu0 %v2406, 120
        %v2577 = vpop.permute.xlu0 %2576
        %2578 = vrot.lane.b32.xlu0 %v2399, 120
        %v2579 = vpop.permute.xlu0 %2578
        %2580 = vrot.lane.b32.xlu0 %v2400, 120
        %v2581 = vpop.permute.xlu0 %2580
        %v2582 = vsel %vm1418, %v2577, 0
        %v2584 = vsel %vm1418, %v2579, 0
        %v2586 = vsel %vm1418, %v2581, 0
        %2588 = vmatprep.subr.mxu0 0.0
        %2589 = vmatpush1.xpose.msra.mxu0 %v2584
        %2590 = vmatprep.subr.mxu0 0.0
        %2591 = vmatpush1.xpose.msra.mxu0 %v2586
        %2592 = vmatprep.subr.mxu0 0.0
        %2593 = vmatpush1.xpose.msra.mxu0 0.0
        %2594 = vmatprep.subr.mxu0 0.0
        %2595 = vmatpush1.xpose.msra.mxu0 0.0
        %2596 = vmatprep.subr.mxu0 0.0
        %2597 = vmatpush1.xpose.msra.mxu0 0.0
        %2598 = vmatprep.subr.mxu0 0.0
        %2599 = vmatpush1.xpose.msra.mxu0 0.0
        %2600 = vmatprep.subr.mxu0 0.0
        %2601 = vmatpush1.xpose.msra.mxu0 0.0
        %2602 = vmatprep.subr.mxu0 0.0
        %2603 = vmatpush1.xpose.msra.mxu0 0.0
        %2604 = vmatprep.subr.mxu0 0.0
        %2605 = vmatpush1.xpose.msra.mxu0 0.0
        %2606 = vmatprep.subr.mxu0 0.0
        %2607 = vmatpush1.xpose.msra.mxu0 0.0
        %2608 = vmatprep.subr.mxu0 0.0
        %2609 = vmatpush1.xpose.msra.mxu0 0.0
        %2610 = vmatprep.subr.mxu0 0.0
        %2611 = vmatpush1.xpose.msra.mxu0 0.0
        %2612 = vmatprep.subr.mxu0 0.0
        %2613 = vmatpush1.xpose.msra.mxu0 0.0
        %2614 = vmatprep.subr.mxu0 0.0
        %2615 = vmatpush1.xpose.msra.mxu0 0.0
        %2616 = vmatprep.subr.mxu0 0.0
        %2617 = vmatpush1.xpose.msra.mxu0 0.0
        %2618 = vmatprep.subr.mxu0 0.0
        %2619 = vmatpush1.xpose.msra.mxu0 0.0
        %2620 = vmatprep.subr.mxu0 0.0
        %2621 = vmatpush1.xpose.msra.mxu0 0.0
        %2622 = vmatprep.subr.mxu0 0.0
        %2623 = vmatpush1.xpose.msra.mxu0 0.0
        %2624 = vmatprep.subr.mxu0 0.0
        %2625 = vmatpush1.xpose.msra.mxu0 0.0
        %2626 = vmatprep.subr.mxu0 0.0
        %2627 = vmatpush1.xpose.msra.mxu0 0.0
        %2628 = vmatprep.subr.mxu0 0.0
        %2629 = vmatpush1.xpose.msra.mxu0 0.0
        %2630 = vmatprep.subr.mxu0 0.0
        %2631 = vmatpush1.xpose.msra.mxu0 0.0
        %2632 = vmatprep.subr.mxu0 0.0
        %2633 = vmatpush1.xpose.msra.mxu0 0.0
        %2634 = vmatprep.subr.mxu0 0.0
        %2635 = vmatpush1.xpose.msra.mxu0 0.0
        %2636 = vmatprep.subr.mxu0 0.0
        %2637 = vmatpush1.xpose.msra.mxu0 0.0
        %2638 = vmatprep.subr.mxu0 0.0
        %2639 = vmatpush1.xpose.msra.mxu0 0.0
        %2640 = vmatprep.subr.mxu0 0.0
        %2641 = vmatpush1.xpose.msra.mxu0 0.0
        %2642 = vmatprep.subr.mxu0 0.0
        %2643 = vmatpush1.xpose.msra.mxu0 0.0
        %2644 = vmatprep.subr.mxu0 0.0
        %2645 = vmatpush1.xpose.msra.mxu0 0.0
        %2646 = vmatprep.subr.mxu0 0.0
        %2647 = vmatpush1.xpose.msra.mxu0 0.0
        %2648 = vmatprep.subr.mxu0 0.0
        %2649 = vmatpush1.xpose.msra.mxu0 0.0
        %2650 = vmatprep.subr.mxu0 0.0
        %2651 = vmatpush1.xpose.msra.mxu0 0.0
        %2652 = vmatprep.mubr.f32.mxu0 0.0
        %2653 = vmatmul.mubr.f32.gmra.mrb[0].mxu0 %v2582
        %v2654 = vpop.f32.mrb[0].mxu0
        %v2655 = vadd.f32 0.0, %v2654
        %v2656 = vpop.f32.mrb[0].mxu0
        %2657 = vdwg.mxu0
        %v2658 = vsel %vm1498, %v2655, -inf
        %2659 = vmax.xlane.f32.xlu0 %v2658
        %v2660 = vpop.xlane.xlu0 %2659
        %v2661 = vsub.f32 %v2655, %v2660
        %v2662 = vmul.f32 %v2661, 1.442695
        %v2663 = vpow.pop %v2662
        %v2664 = vsel %vm1498, %v2663, 0.0
        %2665 = vadd.xlane.f32.xlu0 %v2664
        %v2666 = vpop.xlane.xlu0 %2665
        %2667 = vrot.lane.b32.xlu0 %v2399, 88
        %v2668 = vpop.permute.xlu0 %2667
        %2669 = vrot.lane.b32.xlu0 %v2400, 88
        %v2670 = vpop.permute.xlu0 %2669
        %v2674 = vsel %vm1498, %v2663, 0
        %2676 = vmatprep.subr.mxu0 0.0
        %2677 = vmatpush1.msra.mxu0 %v2668
        %2678 = vmatprep.subr.mxu0 0.0
        %2679 = vmatpush1.msra.mxu0 %v2670
        %2680 = vmatprep.subr.mxu0 0.0
        %2681 = vmatpush1.msra.mxu0 0.0
        %2682 = vmatprep.subr.mxu0 0.0
        %2683 = vmatpush1.msra.mxu0 0.0
        %2684 = vmatprep.subr.mxu0 0.0
        %2685 = vmatpush1.msra.mxu0 0.0
        %2686 = vmatprep.subr.mxu0 0.0
        %2687 = vmatpush1.msra.mxu0 0.0
        %2688 = vmatprep.subr.mxu0 0.0
        %2689 = vmatpush1.msra.mxu0 0.0
        %2690 = vmatprep.subr.mxu0 0.0
        %2691 = vmatpush1.msra.mxu0 0.0
        %2692 = vmatprep.subr.mxu0 0.0
        %2693 = vmatpush1.msra.mxu0 0.0
        %2694 = vmatprep.subr.mxu0 0.0
        %2695 = vmatpush1.msra.mxu0 0.0
        %2696 = vmatprep.subr.mxu0 0.0
        %2697 = vmatpush1.msra.mxu0 0.0
        %2698 = vmatprep.subr.mxu0 0.0
        %2699 = vmatpush1.msra.mxu0 0.0
        %2700 = vmatprep.subr.mxu0 0.0
        %2701 = vmatpush1.msra.mxu0 0.0
        %2702 = vmatprep.subr.mxu0 0.0
        %2703 = vmatpush1.msra.mxu0 0.0
        %2704 = vmatprep.subr.mxu0 0.0
        %2705 = vmatpush1.msra.mxu0 0.0
        %2706 = vmatprep.subr.mxu0 0.0
        %2707 = vmatpush1.msra.mxu0 0.0
        %2708 = vmatprep.subr.mxu0 0.0
        %2709 = vmatpush1.msra.mxu0 0.0
        %2710 = vmatprep.subr.mxu0 0.0
        %2711 = vmatpush1.msra.mxu0 0.0
        %2712 = vmatprep.subr.mxu0 0.0
        %2713 = vmatpush1.msra.mxu0 0.0
        %2714 = vmatprep.subr.mxu0 0.0
        %2715 = vmatpush1.msra.mxu0 0.0
        %2716 = vmatprep.subr.mxu0 0.0
        %2717 = vmatpush1.msra.mxu0 0.0
        %2718 = vmatprep.subr.mxu0 0.0
        %2719 = vmatpush1.msra.mxu0 0.0
        %2720 = vmatprep.subr.mxu0 0.0
        %2721 = vmatpush1.msra.mxu0 0.0
        %2722 = vmatprep.subr.mxu0 0.0
        %2723 = vmatpush1.msra.mxu0 0.0
        %2724 = vmatprep.subr.mxu0 0.0
        %2725 = vmatpush1.msra.mxu0 0.0
        %2726 = vmatprep.subr.mxu0 0.0
        %2727 = vmatpush1.msra.mxu0 0.0
        %2728 = vmatprep.subr.mxu0 0.0
        %2729 = vmatpush1.msra.mxu0 0.0
        %2730 = vmatprep.subr.mxu0 0.0
        %2731 = vmatpush1.msra.mxu0 0.0
        %2732 = vmatprep.subr.mxu0 0.0
        %2733 = vmatpush1.msra.mxu0 0.0
        %2734 = vmatprep.subr.mxu0 0.0
        %2735 = vmatpush1.msra.mxu0 0.0
        %2736 = vmatprep.subr.mxu0 0.0
        %2737 = vmatpush1.msra.mxu0 0.0
        %2738 = vmatprep.subr.mxu0 0.0
        %2739 = vmatpush1.msra.mxu0 0.0
        %2740 = vmatprep.mubr.f32.mxu0 0.0
        %2741 = vmatmul.mubr.f32.gmra.mrb[0].mxu0 %v2674
        %v2742 = vpop.f32.mrb[0].mxu0
        %v2743 = vadd.f32 0.0, %v2742
        %v2744 = vpop.f32.mrb[0].mxu0
        %2745 = vdwg.mxu0
        %v2746 = vrcp.pop %v2666
        %v2747 = vmul.f32 %v2743, %v2746
        %2748 = vrot.lane.b32.xlu0 %v2406, 112
        %v2749 = vpop.permute.xlu0 %2748
        %2750 = vrot.lane.b32.xlu0 %v2399, 112
        %v2751 = vpop.permute.xlu0 %2750
        %2752 = vrot.lane.b32.xlu0 %v2400, 112
        %v2753 = vpop.permute.xlu0 %2752
        %v2754 = vsel %vm1418, %v2749, 0
        %v2756 = vsel %vm1418, %v2751, 0
        %v2758 = vsel %vm1418, %v2753, 0
        %2760 = vmatprep.subr.mxu0 0.0
        %2761 = vmatpush1.xpose.msra.mxu0 %v2756
        %2762 = vmatprep.subr.mxu0 0.0
        %2763 = vmatpush1.xpose.msra.mxu0 %v2758
        %2764 = vmatprep.subr.mxu0 0.0
        %2765 = vmatpush1.xpose.msra.mxu0 0.0
        %2766 = vmatprep.subr.mxu0 0.0
        %2767 = vmatpush1.xpose.msra.mxu0 0.0
        %2768 = vmatprep.subr.mxu0 0.0
        %2769 = vmatpush1.xpose.msra.mxu0 0.0
        %2770 = vmatprep.subr.mxu0 0.0
        %2771 = vmatpush1.xpose.msra.mxu0 0.0
        %2772 = vmatprep.subr.mxu0 0.0
        %2773 = vmatpush1.xpose.msra.mxu0 0.0
        %2774 = vmatprep.subr.mxu0 0.0
        %2775 = vmatpush1.xpose.msra.mxu0 0.0
        %2776 = vmatprep.subr.mxu0 0.0
        %2777 = vmatpush1.xpose.msra.mxu0 0.0
        %2778 = vmatprep.subr.mxu0 0.0
        %2779 = vmatpush1.xpose.msra.mxu0 0.0
        %2780 = vmatprep.subr.mxu0 0.0
        %2781 = vmatpush1.xpose.msra.mxu0 0.0
        %2782 = vmatprep.subr.mxu0 0.0
        %2783 = vmatpush1.xpose.msra.mxu0 0.0
        %2784 = vmatprep.subr.mxu0 0.0
        %2785 = vmatpush1.xpose.msra.mxu0 0.0
        %2786 = vmatprep.subr.mxu0 0.0
        %2787 = vmatpush1.xpose.msra.mxu0 0.0
        %2788 = vmatprep.subr.mxu0 0.0
        %2789 = vmatpush1.xpose.msra.mxu0 0.0
        %2790 = vmatprep.subr.mxu0 0.0
        %2791 = vmatpush1.xpose.msra.mxu0 0.0
        %2792 = vmatprep.subr.mxu0 0.0
        %2793 = vmatpush1.xpose.msra.mxu0 0.0
        %2794 = vmatprep.subr.mxu0 0.0
        %2795 = vmatpush1.xpose.msra.mxu0 0.0
        %2796 = vmatprep.subr.mxu0 0.0
        %2797 = vmatpush1.xpose.msra.mxu0 0.0
        %2798 = vmatprep.subr.mxu0 0.0
        %2799 = vmatpush1.xpose.msra.mxu0 0.0
        %2800 = vmatprep.subr.mxu0 0.0
        %2801 = vmatpush1.xpose.msra.mxu0 0.0
        %2802 = vmatprep.subr.mxu0 0.0
        %2803 = vmatpush1.xpose.msra.mxu0 0.0
        %2804 = vmatprep.subr.mxu0 0.0
        %2805 = vmatpush1.xpose.msra.mxu0 0.0
        %2806 = vmatprep.subr.mxu0 0.0
        %2807 = vmatpush1.xpose.msra.mxu0 0.0
        %2808 = vmatprep.subr.mxu0 0.0
        %2809 = vmatpush1.xpose.msra.mxu0 0.0
        %2810 = vmatprep.subr.mxu0 0.0
        %2811 = vmatpush1.xpose.msra.mxu0 0.0
        %2812 = vmatprep.subr.mxu0 0.0
        %2813 = vmatpush1.xpose.msra.mxu0 0.0
        %2814 = vmatprep.subr.mxu0 0.0
        %2815 = vmatpush1.xpose.msra.mxu0 0.0
        %2816 = vmatprep.subr.mxu0 0.0
        %2817 = vmatpush1.xpose.msra.mxu0 0.0
        %2818 = vmatprep.subr.mxu0 0.0
        %2819 = vmatpush1.xpose.msra.mxu0 0.0
        %2820 = vmatprep.subr.mxu0 0.0
        %2821 = vmatpush1.xpose.msra.mxu0 0.0
        %2822 = vmatprep.subr.mxu0 0.0
        %2823 = vmatpush1.xpose.msra.mxu0 0.0
        %2824 = vmatprep.mubr.f32.mxu0 0.0
        %2825 = vmatmul.mubr.f32.gmra.mrb[0].mxu0 %v2754
        %v2826 = vpop.f32.mrb[0].mxu0
        %v2827 = vadd.f32 0.0, %v2826
        %v2828 = vpop.f32.mrb[0].mxu0
        %2829 = vdwg.mxu0
        %v2830 = vsel %vm1498, %v2827, -inf
        %2831 = vmax.xlane.f32.xlu0 %v2830
        %v2832 = vpop.xlane.xlu0 %2831
        %v2833 = vsub.f32 %v2827, %v2832
        %v2834 = vmul.f32 %v2833, 1.442695
        %v2835 = vpow.pop %v2834
        %v2836 = vsel %vm1498, %v2835, 0.0
        %2837 = vadd.xlane.f32.xlu0 %v2836
        %v2838 = vpop.xlane.xlu0 %2837
        %2839 = vrot.lane.b32.xlu0 %v2399, 80
        %v2840 = vpop.permute.xlu0 %2839
        %2841 = vrot.lane.b32.xlu0 %v2400, 80
        %v2842 = vpop.permute.xlu0 %2841
        %v2846 = vsel %vm1498, %v2835, 0
        %2848 = vmatprep.subr.mxu0 0.0
        %2849 = vmatpush1.msra.mxu0 %v2840
        %2850 = vmatprep.subr.mxu0 0.0
        %2851 = vmatpush1.msra.mxu0 %v2842
        %2852 = vmatprep.subr.mxu0 0.0
        %2853 = vmatpush1.msra.mxu0 0.0
        %2854 = vmatprep.subr.mxu0 0.0
        %2855 = vmatpush1.msra.mxu0 0.0
        %2856 = vmatprep.subr.mxu0 0.0
        %2857 = vmatpush1.msra.mxu0 0.0
        %2858 = vmatprep.subr.mxu0 0.0
        %2859 = vmatpush1.msra.mxu0 0.0
        %2860 = vmatprep.subr.mxu0 0.0
        %2861 = vmatpush1.msra.mxu0 0.0
        %2862 = vmatprep.subr.mxu0 0.0
        %2863 = vmatpush1.msra.mxu0 0.0
        %2864 = vmatprep.subr.mxu0 0.0
        %2865 = vmatpush1.msra.mxu0 0.0
        %2866 = vmatprep.subr.mxu0 0.0
        %2867 = vmatpush1.msra.mxu0 0.0
        %2868 = vmatprep.subr.mxu0 0.0
        %2869 = vmatpush1.msra.mxu0 0.0
        %2870 = vmatprep.subr.mxu0 0.0
        %2871 = vmatpush1.msra.mxu0 0.0
        %2872 = vmatprep.subr.mxu0 0.0
        %2873 = vmatpush1.msra.mxu0 0.0
        %2874 = vmatprep.subr.mxu0 0.0
        %2875 = vmatpush1.msra.mxu0 0.0
        %2876 = vmatprep.subr.mxu0 0.0
        %2877 = vmatpush1.msra.mxu0 0.0
        %2878 = vmatprep.subr.mxu0 0.0
        %2879 = vmatpush1.msra.mxu0 0.0
        %2880 = vmatprep.subr.mxu0 0.0
        %2881 = vmatpush1.msra.mxu0 0.0
        %2882 = vmatprep.subr.mxu0 0.0
        %2883 = vmatpush1.msra.mxu0 0.0
        %2884 = vmatprep.subr.mxu0 0.0
        %2885 = vmatpush1.msra.mxu0 0.0
        %2886 = vmatprep.subr.mxu0 0.0
        %2887 = vmatpush1.msra.mxu0 0.0
        %2888 = vmatprep.subr.mxu0 0.0
        %2889 = vmatpush1.msra.mxu0 0.0
        %2890 = vmatprep.subr.mxu0 0.0
        %2891 = vmatpush1.msra.mxu0 0.0
        %2892 = vmatprep.subr.mxu0 0.0
        %2893 = vmatpush1.msra.mxu0 0.0
        %2894 = vmatprep.subr.mxu0 0.0
        %2895 = vmatpush1.msra.mxu0 0.0
        %2896 = vmatprep.subr.mxu0 0.0
        %2897 = vmatpush1.msra.mxu0 0.0
        %2898 = vmatprep.subr.mxu0 0.0
        %2899 = vmatpush1.msra.mxu0 0.0
        %2900 = vmatprep.subr.mxu0 0.0
        %2901 = vmatpush1.msra.mxu0 0.0
        %2902 = vmatprep.subr.mxu0 0.0
        %2903 = vmatpush1.msra.mxu0 0.0
        %2904 = vmatprep.subr.mxu0 0.0
        %2905 = vmatpush1.msra.mxu0 0.0
        %2906 = vmatprep.subr.mxu0 0.0
        %2907 = vmatpush1.msra.mxu0 0.0
        %2908 = vmatprep.subr.mxu0 0.0
        %2909 = vmatpush1.msra.mxu0 0.0
        %2910 = vmatprep.subr.mxu0 0.0
        %2911 = vmatpush1.msra.mxu0 0.0
        %2912 = vmatprep.mubr.f32.mxu0 0.0
        %2913 = vmatmul.mubr.f32.gmra.mrb[0].mxu0 %v2846
        %v2914 = vpop.f32.mrb[0].mxu0
        %v2915 = vadd.f32 0.0, %v2914
        %v2916 = vpop.f32.mrb[0].mxu0
        %2917 = vdwg.mxu0
        %v2918 = vrcp.pop %v2838
        %v2919 = vmul.f32 %v2915, %v2918
        %2920 = vrot.lane.b32.xlu0 %v2406, 104
        %v2921 = vpop.permute.xlu0 %2920
        %2922 = vrot.lane.b32.xlu0 %v2399, 104
        %v2923 = vpop.permute.xlu0 %2922
        %2924 = vrot.lane.b32.xlu0 %v2400, 104
        %v2925 = vpop.permute.xlu0 %2924
        %v2926 = vsel %vm1418, %v2921, 0
        %v2928 = vsel %vm1418, %v2923, 0
        %v2930 = vsel %vm1418, %v2925, 0
        %2932 = vmatprep.subr.mxu0 0.0
        %2933 = vmatpush1.xpose.msra.mxu0 %v2928
        %2934 = vmatprep.subr.mxu0 0.0
        %2935 = vmatpush1.xpose.msra.mxu0 %v2930
        %2936 = vmatprep.subr.mxu0 0.0
        %2937 = vmatpush1.xpose.msra.mxu0 0.0
        %2938 = vmatprep.subr.mxu0 0.0
        %2939 = vmatpush1.xpose.msra.mxu0 0.0
        %2940 = vmatprep.subr.mxu0 0.0
        %2941 = vmatpush1.xpose.msra.mxu0 0.0
        %2942 = vmatprep.subr.mxu0 0.0
        %2943 = vmatpush1.xpose.msra.mxu0 0.0
        %2944 = vmatprep.subr.mxu0 0.0
        %2945 = vmatpush1.xpose.msra.mxu0 0.0
        %2946 = vmatprep.subr.mxu0 0.0
        %2947 = vmatpush1.xpose.msra.mxu0 0.0
        %2948 = vmatprep.subr.mxu0 0.0
        %2949 = vmatpush1.xpose.msra.mxu0 0.0
        %2950 = vmatprep.subr.mxu0 0.0
        %2951 = vmatpush1.xpose.msra.mxu0 0.0
        %2952 = vmatprep.subr.mxu0 0.0
        %2953 = vmatpush1.xpose.msra.mxu0 0.0
        %2954 = vmatprep.subr.mxu0 0.0
        %2955 = vmatpush1.xpose.msra.mxu0 0.0
        %2956 = vmatprep.subr.mxu0 0.0
        %2957 = vmatpush1.xpose.msra.mxu0 0.0
        %2958 = vmatprep.subr.mxu0 0.0
        %2959 = vmatpush1.xpose.msra.mxu0 0.0
        %2960 = vmatprep.subr.mxu0 0.0
        %2961 = vmatpush1.xpose.msra.mxu0 0.0
        %2962 = vmatprep.subr.mxu0 0.0
        %2963 = vmatpush1.xpose.msra.mxu0 0.0
        %2964 = vmatprep.subr.mxu0 0.0
        %2965 = vmatpush1.xpose.msra.mxu0 0.0
        %2966 = vmatprep.subr.mxu0 0.0
        %2967 = vmatpush1.xpose.msra.mxu0 0.0
        %2968 = vmatprep.subr.mxu0 0.0
        %2969 = vmatpush1.xpose.msra.mxu0 0.0
        %2970 = vmatprep.subr.mxu0 0.0
        %2971 = vmatpush1.xpose.msra.mxu0 0.0
        %2972 = vmatprep.subr.mxu0 0.0
        %2973 = vmatpush1.xpose.msra.mxu0 0.0
        %2974 = vmatprep.subr.mxu0 0.0
        %2975 = vmatpush1.xpose.msra.mxu0 0.0
        %2976 = vmatprep.subr.mxu0 0.0
        %2977 = vmatpush1.xpose.msra.mxu0 0.0
        %2978 = vmatprep.subr.mxu0 0.0
        %2979 = vmatpush1.xpose.msra.mxu0 0.0
        %2980 = vmatprep.subr.mxu0 0.0
        %2981 = vmatpush1.xpose.msra.mxu0 0.0
        %2982 = vmatprep.subr.mxu0 0.0
        %2983 = vmatpush1.xpose.msra.mxu0 0.0
        %2984 = vmatprep.subr.mxu0 0.0
        %2985 = vmatpush1.xpose.msra.mxu0 0.0
        %2986 = vmatprep.subr.mxu0 0.0
        %2987 = vmatpush1.xpose.msra.mxu0 0.0
        %2988 = vmatprep.subr.mxu0 0.0
        %2989 = vmatpush1.xpose.msra.mxu0 0.0
        %2990 = vmatprep.subr.mxu0 0.0
        %2991 = vmatpush1.xpose.msra.mxu0 0.0
        %2992 = vmatprep.subr.mxu0 0.0
        %2993 = vmatpush1.xpose.msra.mxu0 0.0
        %2994 = vmatprep.subr.mxu0 0.0
        %2995 = vmatpush1.xpose.msra.mxu0 0.0
        %2996 = vmatprep.mubr.f32.mxu0 0.0
        %2997 = vmatmul.mubr.f32.gmra.mrb[0].mxu0 %v2926
        %v2998 = vpop.f32.mrb[0].mxu0
        %v2999 = vadd.f32 0.0, %v2998
        %v3000 = vpop.f32.mrb[0].mxu0
        %3001 = vdwg.mxu0
        %v3002 = vsel %vm1498, %v2999, -inf
        %3003 = vmax.xlane.f32.xlu0 %v3002
        %v3004 = vpop.xlane.xlu0 %3003
        %v3005 = vsub.f32 %v2999, %v3004
        %v3006 = vmul.f32 %v3005, 1.442695
        %v3007 = vpow.pop %v3006
        %v3008 = vsel %vm1498, %v3007, 0.0
        %3009 = vadd.xlane.f32.xlu0 %v3008
        %v3010 = vpop.xlane.xlu0 %3009
        %3011 = vrot.lane.b32.xlu0 %v2399, 72
        %v3012 = vpop.permute.xlu0 %3011
        %3013 = vrot.lane.b32.xlu0 %v2400, 72
        %v3014 = vpop.permute.xlu0 %3013
        %v3018 = vsel %vm1498, %v3007, 0
        %3020 = vmatprep.subr.mxu0 0.0
        %3021 = vmatpush1.msra.mxu0 %v3012
        %3022 = vmatprep.subr.mxu0 0.0
        %3023 = vmatpush1.msra.mxu0 %v3014
        %3024 = vmatprep.subr.mxu0 0.0
        %3025 = vmatpush1.msra.mxu0 0.0
        %3026 = vmatprep.subr.mxu0 0.0
        %3027 = vmatpush1.msra.mxu0 0.0
        %3028 = vmatprep.subr.mxu0 0.0
        %3029 = vmatpush1.msra.mxu0 0.0
        %3030 = vmatprep.subr.mxu0 0.0
        %3031 = vmatpush1.msra.mxu0 0.0
        %3032 = vmatprep.subr.mxu0 0.0
        %3033 = vmatpush1.msra.mxu0 0.0
        %3034 = vmatprep.subr.mxu0 0.0
        %3035 = vmatpush1.msra.mxu0 0.0
        %3036 = vmatprep.subr.mxu0 0.0
        %3037 = vmatpush1.msra.mxu0 0.0
        %3038 = vmatprep.subr.mxu0 0.0
        %3039 = vmatpush1.msra.mxu0 0.0
        %3040 = vmatprep.subr.mxu0 0.0
        %3041 = vmatpush1.msra.mxu0 0.0
        %3042 = vmatprep.subr.mxu0 0.0
        %3043 = vmatpush1.msra.mxu0 0.0
        %3044 = vmatprep.subr.mxu0 0.0
        %3045 = vmatpush1.msra.mxu0 0.0
        %3046 = vmatprep.subr.mxu0 0.0
        %3047 = vmatpush1.msra.mxu0 0.0
        %3048 = vmatprep.subr.mxu0 0.0
        %3049 = vmatpush1.msra.mxu0 0.0
        %3050 = vmatprep.subr.mxu0 0.0
        %3051 = vmatpush1.msra.mxu0 0.0
        %3052 = vmatprep.subr.mxu0 0.0
        %3053 = vmatpush1.msra.mxu0 0.0
        %3054 = vmatprep.subr.mxu0 0.0
        %3055 = vmatpush1.msra.mxu0 0.0
        %3056 = vmatprep.subr.mxu0 0.0
        %3057 = vmatpush1.msra.mxu0 0.0
        %3058 = vmatprep.subr.mxu0 0.0
        %3059 = vmatpush1.msra.mxu0 0.0
        %3060 = vmatprep.subr.mxu0 0.0
        %3061 = vmatpush1.msra.mxu0 0.0
        %3062 = vmatprep.subr.mxu0 0.0
        %3063 = vmatpush1.msra.mxu0 0.0
        %3064 = vmatprep.subr.mxu0 0.0
        %3065 = vmatpush1.msra.mxu0 0.0
        %3066 = vmatprep.subr.mxu0 0.0
        %3067 = vmatpush1.msra.mxu0 0.0
        %3068 = vmatprep.subr.mxu0 0.0
        %3069 = vmatpush1.msra.mxu0 0.0
        %3070 = vmatprep.subr.mxu0 0.0
        %3071 = vmatpush1.msra.mxu0 0.0
        %3072 = vmatprep.subr.mxu0 0.0
        %3073 = vmatpush1.msra.mxu0 0.0
        %3074 = vmatprep.subr.mxu0 0.0
        %3075 = vmatpush1.msra.mxu0 0.0
        %3076 = vmatprep.subr.mxu0 0.0
        %3077 = vmatpush1.msra.mxu0 0.0
        %3078 = vmatprep.subr.mxu0 0.0
        %3079 = vmatpush1.msra.mxu0 0.0
        %3080 = vmatprep.subr.mxu0 0.0
        %3081 = vmatpush1.msra.mxu0 0.0
        %3082 = vmatprep.subr.mxu0 0.0
        %3083 = vmatpush1.msra.mxu0 0.0
        %3084 = vmatprep.mubr.f32.mxu0 0.0
        %3085 = vmatmul.mubr.f32.gmra.mrb[0].mxu0 %v3018
        %v3086 = vpop.f32.mrb[0].mxu0
        %v3087 = vadd.f32 0.0, %v3086
        %v3088 = vpop.f32.mrb[0].mxu0
        %3089 = vdwg.mxu0
        %v3090 = vrcp.pop %v3010
        %v3091 = vmul.f32 %v3087, %v3090
        %3093 = vrot.lane.b32.xlu0 %v2747, 8
        %v3094 = vpop.permute.xlu0 %3093
        %3097 = vrot.lane.b32.xlu0 %v2919, 16
        %v3098 = vpop.permute.xlu0 %3097
        %3101 = vrot.lane.b32.xlu0 %v3091, 24
        %v3102 = vpop.permute.xlu0 %3101
        %v3104 = vsel %vm1418, %v2575, %v3094
        %v3105 = vsel %vm1498, %v3104, %v3098
        %v3106 = vsel %vm2119, %v3105, %v3102
        %v3108 = vlaneseq
        %v3109 = vshrl.u32 %v3108, 7
        %v3110 = vsub.s32 0, %v3109
        %v3111 = vrot.slane %v2405, %v3110
        %v3114 = vsel %vm1336, %v3106, 0
        %3116 = vmatprep.subr.mxu0 0.0
        %3117 = vmatpush1.msra.mxu0 %v2401
        %3118 = vmatprep.subr.mxu0 0.0
        %3119 = vmatpush1.msra.mxu0 %v2402
        %3120 = vmatprep.subr.mxu0 0.0
        %3121 = vmatpush1.msra.mxu0 %v2403
        %3122 = vmatprep.subr.mxu0 0.0
        %3123 = vmatpush1.msra.mxu0 %v2404
        %3124 = vmatprep.subr.mxu0 0.0
        %3125 = vmatpush1.msra.mxu0 0.0
        %3126 = vmatprep.subr.mxu0 0.0
        %3127 = vmatpush1.msra.mxu0 0.0
        %3128 = vmatprep.subr.mxu0 0.0
        %3129 = vmatpush1.msra.mxu0 0.0
        %3130 = vmatprep.subr.mxu0 0.0
        %3131 = vmatpush1.msra.mxu0 0.0
        %3132 = vmatprep.subr.mxu0 0.0
        %3133 = vmatpush1.msra.mxu0 0.0
        %3134 = vmatprep.subr.mxu0 0.0
        %3135 = vmatpush1.msra.mxu0 0.0
        %3136 = vmatprep.subr.mxu0 0.0
        %3137 = vmatpush1.msra.mxu0 0.0
        %3138 = vmatprep.subr.mxu0 0.0
        %3139 = vmatpush1.msra.mxu0 0.0
        %3140 = vmatprep.subr.mxu0 0.0
        %3141 = vmatpush1.msra.mxu0 0.0
        %3142 = vmatprep.subr.mxu0 0.0
        %3143 = vmatpush1.msra.mxu0 0.0
        %3144 = vmatprep.subr.mxu0 0.0
        %3145 = vmatpush1.msra.mxu0 0.0
        %3146 = vmatprep.subr.mxu0 0.0
        %3147 = vmatpush1.msra.mxu0 0.0
        %3148 = vmatprep.subr.mxu0 0.0
        %3149 = vmatpush1.msra.mxu0 0.0
        %3150 = vmatprep.subr.mxu0 0.0
        %3151 = vmatpush1.msra.mxu0 0.0
        %3152 = vmatprep.subr.mxu0 0.0
        %3153 = vmatpush1.msra.mxu0 0.0
        %3154 = vmatprep.subr.mxu0 0.0
        %3155 = vmatpush1.msra.mxu0 0.0
        %3156 = vmatprep.subr.mxu0 0.0
        %3157 = vmatpush1.msra.mxu0 0.0
        %3158 = vmatprep.subr.mxu0 0.0
        %3159 = vmatpush1.msra.mxu0 0.0
        %3160 = vmatprep.subr.mxu0 0.0
        %3161 = vmatpush1.msra.mxu0 0.0
        %3162 = vmatprep.subr.mxu0 0.0
        %3163 = vmatpush1.msra.mxu0 0.0
        %3164 = vmatprep.subr.mxu0 0.0
        %3165 = vmatpush1.msra.mxu0 0.0
        %3166 = vmatprep.subr.mxu0 0.0
        %3167 = vmatpush1.msra.mxu0 0.0
        %3168 = vmatprep.subr.mxu0 0.0
        %3169 = vmatpush1.msra.mxu0 0.0
        %3170 = vmatprep.subr.mxu0 0.0
        %3171 = vmatpush1.msra.mxu0 0.0
        %3172 = vmatprep.subr.mxu0 0.0
        %3173 = vmatpush1.msra.mxu0 0.0
        %3174 = vmatprep.subr.mxu0 0.0
        %3175 = vmatpush1.msra.mxu0 0.0
        %3176 = vmatprep.subr.mxu0 0.0
        %3177 = vmatpush1.msra.mxu0 0.0
        %3178 = vmatprep.subr.mxu0 0.0
        %3179 = vmatpush1.msra.mxu0 0.0
        %3180 = vmatprep.mubr.f32.mxu0 0.0
        %3181 = vmatmul.mubr.f32.gmra.mrb[0].mxu0 %v3114
        %v3182 = vpop.f32.mrb[0].mxu0
        %v3183 = vadd.f32 %v3111, %v3182
        %v3184 = vpop.f32.mrb[0].mxu0
        %3185 = vdwg.mxu0
        %v3186 = vadd.f32 %v2230, %v3183
        %v3187 = vld [vmem:[%s39] sm:$0x1]
        %v3188 = vld [vmem:[%s41] sm:$0x1]
        %v3189 = vsel %vm1336, %v3186, 0.0
        %3190 = vadd.xlane.f32.xlu0 %v3189
        %v3191 = vpop.xlane.xlu0 %3190
        %v3192 = vmul.f32 %v3191, %v2206
        %v3193 = vsub.f32 %v3186, %v3192
        %v3194 = vmul.f32 %v3193, %v3193
        %v3195 = vsel %vm1336, %v3194, 0.0
        %3196 = vadd.xlane.f32.xlu0 %v3195
        %v3197 = vpop.xlane.xlu0 %3196
        %v3198 = vmul.f32 %v3197, %v2206
        %v3199 = vadd.f32 %v3198, 1e-05
        %v3200 = vrsqrt.pop %v3199
        %v3201 = vmul.f32 %v3193, %v3200
        %v3203 = vlaneseq
        %v3204 = vshrl.u32 %v3203, 7
        %v3205 = vsub.s32 0, %v3204
        %v3206 = vrot.slane %v3187, %v3205
        %v3208 = vmul.f32 %v3201, %v3206
        %v3210 = vlaneseq
        %v3211 = vshrl.u32 %v3210, 7
        %v3212 = vsub.s32 0, %v3211
        %v3213 = vrot.slane %v3188, %v3212
        %v3215 = vadd.f32 %v3208, %v3213
        %v3216 = vld [vmem:[%s43] sm:$0xff]
        %v3217 = vld [vmem:[%s43 + $0x8] sm:$0xff]
        %v3218 = vld [vmem:[%s43 + $0x10] sm:$0xff]
        %v3219 = vld [vmem:[%s43 + $0x18] sm:$0xff]
        %v3220 = vld [vmem:[%s45] sm:$0x1]
        %v3222 = vlaneseq
        %v3223 = vshrl.u32 %v3222, 7
        %v3224 = vsub.s32 0, %v3223
        %v3225 = vrot.slane %v3220, %v3224
        %v3228 = vsel %vm1336, %v3215, 0
        %3230 = vmatprep.subr.mxu0 0.0
        %3231 = vmatpush1.msra.mxu0 %v3216
        %3232 = vmatprep.subr.mxu0 0.0
        %3233 = vmatpush1.msra.mxu0 %v3217
        %3234 = vmatprep.subr.mxu0 0.0
        %3235 = vmatpush1.msra.mxu0 %v3218
        %3236 = vmatprep.subr.mxu0 0.0
        %3237 = vmatpush1.msra.mxu0 %v3219
        %3238 = vmatprep.subr.mxu0 0.0
        %3239 = vmatpush1.msra.mxu0 0.0
        %3240 = vmatprep.subr.mxu0 0.0
        %3241 = vmatpush1.msra.mxu0 0.0
        %3242 = vmatprep.subr.mxu0 0.0
        %3243 = vmatpush1.msra.mxu0 0.0
        %3244 = vmatprep.subr.mxu0 0.0
        %3245 = vmatpush1.msra.mxu0 0.0
        %3246 = vmatprep.subr.mxu0 0.0
        %3247 = vmatpush1.msra.mxu0 0.0
        %3248 = vmatprep.subr.mxu0 0.0
        %3249 = vmatpush1.msra.mxu0 0.0
        %3250 = vmatprep.subr.mxu0 0.0
        %3251 = vmatpush1.msra.mxu0 0.0
        %3252 = vmatprep.subr.mxu0 0.0
        %3253 = vmatpush1.msra.mxu0 0.0
        %3254 = vmatprep.subr.mxu0 0.0
        %3255 = vmatpush1.msra.mxu0 0.0
        %3256 = vmatprep.subr.mxu0 0.0
        %3257 = vmatpush1.msra.mxu0 0.0
        %3258 = vmatprep.subr.mxu0 0.0
        %3259 = vmatpush1.msra.mxu0 0.0
        %3260 = vmatprep.subr.mxu0 0.0
        %3261 = vmatpush1.msra.mxu0 0.0
        %3262 = vmatprep.subr.mxu0 0.0
        %3263 = vmatpush1.msra.mxu0 0.0
        %3264 = vmatprep.subr.mxu0 0.0
        %3265 = vmatpush1.msra.mxu0 0.0
        %3266 = vmatprep.subr.mxu0 0.0
        %3267 = vmatpush1.msra.mxu0 0.0
        %3268 = vmatprep.subr.mxu0 0.0
        %3269 = vmatpush1.msra.mxu0 0.0
        %3270 = vmatprep.subr.mxu0 0.0
        %3271 = vmatpush1.msra.mxu0 0.0
        %3272 = vmatprep.subr.mxu0 0.0
        %3273 = vmatpush1.msra.mxu0 0.0
        %3274 = vmatprep.subr.mxu0 0.0
        %3275 = vmatpush1.msra.mxu0 0.0
        %3276 = vmatprep.subr.mxu0 0.0
        %3277 = vmatpush1.msra.mxu0 0.0
        %3278 = vmatprep.subr.mxu0 0.0
        %3279 = vmatpush1.msra.mxu0 0.0
        %3280 = vmatprep.subr.mxu0 0.0
        %3281 = vmatpush1.msra.mxu0 0.0
        %3282 = vmatprep.subr.mxu0 0.0
        %3283 = vmatpush1.msra.mxu0 0.0
        %3284 = vmatprep.subr.mxu0 0.0
        %3285 = vmatpush1.msra.mxu0 0.0
        %3286 = vmatprep.subr.mxu0 0.0
        %3287 = vmatpush1.msra.mxu0 0.0
        %3288 = vmatprep.subr.mxu0 0.0
        %3289 = vmatpush1.msra.mxu0 0.0
        %3290 = vmatprep.subr.mxu0 0.0
        %3291 = vmatpush1.msra.mxu0 0.0
        %3292 = vmatprep.subr.mxu0 0.0
        %3293 = vmatpush1.msra.mxu0 0.0
        %3294 = vmatprep.mubr.f32.mxu0 0.0
        %3295 = vmatmul.mubr.f32.gmra.mrb[0].mxu0 %v3228
        %v3296 = vpop.f32.mrb[0].mxu0
        %v3297 = vadd.f32 %v3225, %v3296
        %v3298 = vpop.f32.mrb[0].mxu0
        %3299 = vdwg.mxu0
        %v3300 = vmul.f32 %v3297, 0.5
        %v3301 = vmul.f32 %v3297, 0.044715
        %v3302 = vmul.f32 %v3301, %v3297
        %v3303 = vmul.f32 %v3302, %v3297
        %v3304 = vadd.f32 %v3297, %v3303
        %v3305 = vmul.f32 %v3304, 0.7978846
        %v3306 = vtanh.pop %v3305
        %v3307 = vadd.f32 %v3306, 1.0
        %v3308 = vmul.f32 %v3300, %v3307
        %v3309 = vld [vmem:[%s47] sm:$0xff]
        %v3310 = vld [vmem:[%s47 + $0x8] sm:$0xff]
        %v3311 = vld [vmem:[%s47 + $0x10] sm:$0xff]
        %v3312 = vld [vmem:[%s47 + $0x18] sm:$0xff]
        %v3313 = vld [vmem:[%s47 + $0x20] sm:$0xff]
        %v3314 = vld [vmem:[%s47 + $0x28] sm:$0xff]
        %v3315 = vld [vmem:[%s47 + $0x30] sm:$0xff]
        %v3316 = vld [vmem:[%s47 + $0x38] sm:$0xff]
        %v3317 = vld [vmem:[%s49] sm:$0x1]
        %v3319 = vlaneseq
        %v3320 = vshrl.u32 %v3319, 7
        %v3321 = vsub.s32 0, %v3320
        %v3322 = vrot.slane %v3317, %v3321
        %vm3324 = vcmask 523264
        %v3326 = vsel %vm3324, %v3308, 0
        %3328 = vmatprep.subr.mxu0 0.0
        %3329 = vmatpush1.msra.mxu0 %v3309
        %3330 = vmatprep.subr.mxu0 0.0
        %3331 = vmatpush1.msra.mxu0 %v3310
        %3332 = vmatprep.subr.mxu0 0.0
        %3333 = vmatpush1.msra.mxu0 %v3311
        %3334 = vmatprep.subr.mxu0 0.0
        %3335 = vmatpush1.msra.mxu0 %v3312
        %3336 = vmatprep.subr.mxu0 0.0
        %3337 = vmatpush1.msra.mxu0 %v3313
        %3338 = vmatprep.subr.mxu0 0.0
        %3339 = vmatpush1.msra.mxu0 %v3314
        %3340 = vmatprep.subr.mxu0 0.0
        %3341 = vmatpush1.msra.mxu0 %v3315
        %3342 = vmatprep.subr.mxu0 0.0
        %3343 = vmatpush1.msra.mxu0 %v3316
        %3344 = vmatprep.subr.mxu0 0.0
        %3345 = vmatpush1.msra.mxu0 0.0
        %3346 = vmatprep.subr.mxu0 0.0
        %3347 = vmatpush1.msra.mxu0 0.0
        %3348 = vmatprep.subr.mxu0 0.0
        %3349 = vmatpush1.msra.mxu0 0.0
        %3350 = vmatprep.subr.mxu0 0.0
        %3351 = vmatpush1.msra.mxu0 0.0
        %3352 = vmatprep.subr.mxu0 0.0
        %3353 = vmatpush1.msra.mxu0 0.0
        %3354 = vmatprep.subr.mxu0 0.0
        %3355 = vmatpush1.msra.mxu0 0.0
        %3356 = vmatprep.subr.mxu0 0.0
        %3357 = vmatpush1.msra.mxu0 0.0
        %3358 = vmatprep.subr.mxu0 0.0
        %3359 = vmatpush1.msra.mxu0 0.0
        %3360 = vmatprep.subr.mxu0 0.0
        %3361 = vmatpush1.msra.mxu0 0.0
        %3362 = vmatprep.subr.mxu0 0.0
        %3363 = vmatpush1.msra.mxu0 0.0
        %3364 = vmatprep.subr.mxu0 0.0
        %3365 = vmatpush1.msra.mxu0 0.0
        %3366 = vmatprep.subr.mxu0 0.0
        %3367 = vmatpush1.msra.mxu0 0.0
        %3368 = vmatprep.subr.mxu0 0.0
        %3369 = vmatpush1.msra.mxu0 0.0
        %3370 = vmatprep.subr.mxu0 0.0
        %3371 = vmatpush1.msra.mxu0 0.0
        %3372 = vmatprep.subr.mxu0 0.0
        %3373 = vmatpush1.msra.mxu0 0.0
        %3374 = vmatprep.subr.mxu0 0.0
        %3375 = vmatpush1.msra.mxu0 0.0
        %3376 = vmatprep.subr.mxu0 0.0
        %3377 = vmatpush1.msra.mxu0 0.0
        %3378 = vmatprep.subr.mxu0 0.0
        %3379 = vmatpush1.msra.mxu0 0.0
        %3380 = vmatprep.subr.mxu0 0.0
        %3381 = vmatpush1.msra.mxu0 0.0
        %3382 = vmatprep.subr.mxu0 0.0
        %3383 = vmatpush1.msra.mxu0 0.0
        %3384 = vmatprep.subr.mxu0 0.0
        %3385 = vmatpush1.msra.mxu0 0.0
        %3386 = vmatprep.subr.mxu0 0.0
        %3387 = vmatpush1.msra.mxu0 0.0
        %3388 = vmatprep.subr.mxu0 0.0
        %3389 = vmatpush1.msra.mxu0 0.0
        %3390 = vmatprep.subr.mxu0 0.0
        %3391 = vmatpush1.msra.mxu0 0.0
        %3392 = vmatprep.mubr.f32.mxu0 0.0
        %3393 = vmatmul.mubr.f32.gmra.mrb[0].mxu0 %v3326
        %v3394 = vpop.f32.mrb[0].mxu0
        %v3395 = vadd.f32 %v3322, %v3394
        %v3396 = vpop.f32.mrb[0].mxu0
        %3397 = vdwg.mxu0
        %v3398 = vadd.f32 %v3215, %v3395
        %v3399 = vld [vmem:[#allocation11] sm:$0x1]
        %v3400 = vld [vmem:[#allocation12] sm:$0x1]
        %v3401 = vsel %vm1336, %v3398, 0.0
        %3402 = vadd.xlane.f32.xlu0 %v3401
        %v3403 = vpop.xlane.xlu0 %3402
        %v3404 = vmul.f32 %v3403, %v2206
        %v3405 = vsub.f32 %v3398, %v3404
        %v3406 = vmul.f32 %v3405, %v3405
        %v3407 = vsel %vm1336, %v3406, 0.0
        %3408 = vadd.xlane.f32.xlu0 %v3407
        %v3409 = vpop.xlane.xlu0 %3408
        %v3410 = vmul.f32 %v3409, %v2206
        %v3411 = vadd.f32 %v3410, 1e-05
        %v3412 = vrsqrt.pop %v3411
        %v3413 = vmul.f32 %v3405, %v3412
        %v3415 = vlaneseq
        %v3416 = vshrl.u32 %v3415, 7
        %v3417 = vsub.s32 0, %v3416
        %v3418 = vrot.slane %v3399, %v3417
        %v3420 = vmul.f32 %v3413, %v3418
        %v3422 = vlaneseq
        %v3423 = vshrl.u32 %v3422, 7
        %v3424 = vsub.s32 0, %v3423
        %v3425 = vrot.slane %v3400, %v3424
        %v3427 = vadd.f32 %v3420, %v3425
        %3428 = vst.msk [vmem:[%s1115] sm:$0xff] %vm1336, %v3427
        %p3429 = scmp.lt.s32.totalorder %s82, 1
        %s3430 = scalar_select %p3429, %s82, 1
        %p3431 = scmp.lt.s32.totalorder %s83, 1
        %s3432 = scalar_select %p3431, %s83, 1
        %s3433 = smul.addr %s3430, 2
        %s3434 = sadd.s32 %s3432, %s3433
        %s3435 = smul.addr %s3434, 8
        %s3436 = scalar_lea.vmem %s59, %s3435
        %p3437 = scmp.lt.s32.totalorder %s82, 1
        %s3438 = scalar_select %p3437, %s82, 1
        %p3439 = scmp.lt.s32.totalorder %s83, 1
        %s3440 = scalar_select %p3439, %s83, 1
        %s3441 = smul.addr %s3438, 2
        %s3442 = sadd.s32 %s3440, %s3441
        %s3443 = smul.addr %s3442, 8
        %s3444 = scalar_lea.vmem %s61, %s3443
        // Predicated region
        $region173: #{transformer3d_forward.2} parent=135 // pred_check
          %p3445 = pneg %p736
        $region174: #{transformer3d_forward.2} parent=135 // pred_check_branch
          %3447 = sbr.rel (%p3445) target = $region176
        $region175: #{transformer3d_forward.2} parent=135 // pred_region
          _
        $region176: #{transformer3d_forward.2} parent=135 // pred_fallthru
          _
        // Predicated region
        $region177: #{transformer3d_forward.2} parent=135 // pred_check
          %p3448 = pneg %p764
        $region178: #{transformer3d_forward.2} parent=135 // pred_check_branch
          %3450 = sbr.rel (%p3448) target = $region180
        $region179: #{transformer3d_forward.2} parent=135 // pred_region
          _
        $region180: #{transformer3d_forward.2} parent=135 // pred_fallthru
          _
      $region136: #{transformer3d_forward.2} parent=5 // pred_fallthru
        _
      %p3451 = scmp.le.s32.totalorder 2, %s73
      // Predicated region
      $region181: #{transformer3d_forward.2} parent=5 // pred_check
        %p3452 = pneg %p3451
      $region182: #{transformer3d_forward.2} parent=5 // pred_check_branch
        %3454 = sbr.rel (%p3452) target = $region184
      $region183: #{transformer3d_forward.2} parent=5 // pred_region
        %s3455 = ssub.s32 %s73, 2
        // Predicated region
        $region185: #{transformer3d_forward.2} parent=183 // pred_check
          %p3456 = pneg %p742
        $region186: #{transformer3d_forward.2} parent=183 // pred_check_branch
          %3458 = sbr.rel (%p3456) target = $region188
        $region187: #{transformer3d_forward.2} parent=183 // pred_region
          %p3459 = scmp.lt.s32.totalorder %s84, 1
          %s3460 = scalar_select %p3459, %s84, 1
          %p3461 = scmp.lt.s32.totalorder %s85, 1
          %s3462 = scalar_select %p3461, %s85, 1
          %s3463 = smul.addr %s3460, 2
          %s3464 = sadd.s32 %s3462, %s3463
          %s3465 = smul.addr %s3464, 8
          %s3466 = scalar_lea.vmem %s59, %s3465
        $region188: #{transformer3d_forward.2} parent=183 // pred_fallthru
          _
        // Predicated region
        $region189: #{transformer3d_forward.2} parent=183 // pred_check
          %p3467 = pneg %p770
        $region190: #{transformer3d_forward.2} parent=183 // pred_check_branch
          %3469 = sbr.rel (%p3467) target = $region192
        $region191: #{transformer3d_forward.2} parent=183 // pred_region
          %p3470 = scmp.lt.s32.totalorder %s84, 1
          %s3471 = scalar_select %p3470, %s84, 1
          %p3472 = scmp.lt.s32.totalorder %s85, 1
          %s3473 = scalar_select %p3472, %s85, 1
          %s3474 = smul.addr %s3471, 2
          %s3475 = sadd.s32 %s3473, %s3474
          %s3476 = smul.addr %s3475, 8
          %s3477 = scalar_lea.vmem %s61, %s3476
        $region192: #{transformer3d_forward.2} parent=183 // pred_fallthru
          _
      $region184: #{transformer3d_forward.2} parent=5 // pred_fallthru
        _
    $region6: #{transformer3d_forward.2} parent=1 // loop_footer
      %s77 = sadd.s32 1, %s73
    $region7: #{transformer3d_forward.2} parent=1 // loop_footer_branch
      %72 = sbr.rel target = $region3
    $region8: #{transformer3d_forward.2} parent=1 // loop_exit
      _
    %3478 = vsyncpa [#allocation5], 1
    %s3479 = scalar_lea.sflag [#allocation5], 1
    %3480 = vsyncpa %s3479, 1
    %3481 = vsyncpa [#allocation7], 1
    %3482 = vsyncpa [#allocation10], 1
    %3483 = vsyncpa [#allocation13], 1
    %3484 = vsyncpa [#allocation16], 1

// kernel: transformer3d_forward.3
$region0: #{transformer3d_forward.3}
  #allocation0 [shape = 'u32[]', space=smem, size = 0x4, offset = 0x4, fixed_abs, tag = 'smem constant byte address 0x4 - core index']
  #allocation1 [shape = 'u32[144,128]{1,0:T(1,128)}', space=vmem, size = 0x12000, scoped, tag = 'internal scratch']
  #allocation2 [shape = 'f32[16,64]{1,0:T(8,128)}', space=vmem, size = 0x2000, scoped, tag = 'scratch operand']
  #allocation3 [shape = 'f32[16,64]{1,0:T(8,128)}', space=vmem, size = 0x2000, scoped, tag = 'scratch operand']
  %s0 = inlined_call_operand.smem [shape: u32[31], index: -1, kind: input, shape index: {}]
  %s1 = sld [smem:[%s0]]
  %s2 = scalar_lea.smem %s0, 1
  %s3 = sld [smem:[%s2]]
  %s4 = scalar_lea.smem %s0, 2
  %s5 = sld [smem:[%s4]]
  %s6 = scalar_lea.smem %s0, 3
  %s7 = sld [smem:[%s6]]
  %s8 = scalar_lea.smem %s0, 4
  %s9 = sld [smem:[%s8]]
  %s10 = scalar_lea.smem %s0, 5
  %s11 = sld [smem:[%s10]]
  %s12 = scalar_lea.smem %s0, 6
  %s13 = sld [smem:[%s12]]
  %s14 = scalar_lea.smem %s0, 7
  %s15 = sld [smem:[%s14]]
  %s16 = scalar_lea.smem %s0, 8
  %s17 = sld [smem:[%s16]]
  %s18 = scalar_lea.smem %s0, 9
  %s19 = sld [smem:[%s18]]
  %s20 = scalar_lea.smem %s0, 10
  %s21 = sld [smem:[%s20]]
  %s22 = scalar_lea.smem %s0, 11
  %s23 = sld [smem:[%s22]]
  %s24 = scalar_lea.smem %s0, 12
  %s25 = sld [smem:[%s24]]
  %s26 = scalar_lea.smem %s0, 13
  %s27 = sld [smem:[%s26]]
  %s28 = scalar_lea.smem %s0, 14
  %s29 = sld [smem:[%s28]]
  %s30 = scalar_lea.smem %s0, 15
  %s31 = sld [smem:[%s30]]
  %s32 = scalar_lea.smem %s0, 16
  %s33 = sld [smem:[%s32]]
  %s34 = scalar_lea.smem %s0, 17
  %s35 = sld [smem:[%s34]]
  %s36 = scalar_lea.smem %s0, 18
  %s37 = sld [smem:[%s36]]
  %s38 = scalar_lea.smem %s0, 19
  %s39 = sld [smem:[%s38]]
  %s40 = scalar_lea.smem %s0, 20
  %s41 = sld [smem:[%s40]]
  %s42 = scalar_lea.smem %s0, 21
  %s43 = sld [smem:[%s42]]
  %s44 = scalar_lea.smem %s0, 22
  %s45 = sld [smem:[%s44]]
  %s46 = scalar_lea.smem %s0, 23
  %s47 = sld [smem:[%s46]]
  %s48 = scalar_lea.smem %s0, 24
  %s49 = sld [smem:[%s48]]
  %s50 = scalar_lea.smem %s0, 25
  %s51 = sld [smem:[%s50]]
  %s52 = scalar_lea.smem %s0, 26
  %s53 = sld [smem:[%s52]]
  %s54 = scalar_lea.smem %s0, 27
  %s55 = sld [smem:[%s54]]
  %s56 = scalar_lea.smem %s0, 28
  %s57 = sld [smem:[%s56]]
  %s58 = scalar_lea.smem %s0, 29
  %s59 = sld [smem:[%s58]]
  %s60 = scalar_lea.smem %s0, 30
  %s61 = sld [smem:[%s60]]
  %62 = xla_tuple %s59, %s61
  %s63 = sld [smem:[#allocation0]]
  $region177: #{transformer3d_forward.3} parent=0
    _
  %s65 = ssub.s32 1, %s63
  %s66 = scalar_select 0, %s65, %s63
  $region1: #{transformer3d_forward.3} parent=0
    #allocation4 [shape = 'u8[512]{0}', space=vmem, size = 0x400, scoped, tag = 'input window, operand 22, single buffered']
    #allocation5 [shape = 's32[2]{0}', space=sflag, size = 0x8, scoped, tag = 'scoped memory for transformer3d_forward.3']
    #allocation6 [shape = 's32[2]{0}', space=sflag, size = 0x8, scoped, tag = 'scoped memory for transformer3d_forward.3']
    #allocation7 [shape = 'u8[512]{0}', space=vmem, size = 0x400, scoped, tag = 'input window, operand 24, single buffered']
    #allocation8 [shape = 's32[1]{0}', space=sflag, size = 0x4, scoped, tag = 'scoped memory for transformer3d_forward.3']
    #allocation9 [shape = 'u8[512]{0}', space=vmem, size = 0x400, scoped, tag = 'input window, operand 25, single buffered']
    #allocation10 [shape = 'u8[512]{0}', space=vmem, size = 0x400, scoped, tag = 'input window, operand 26, single buffered']
    #allocation11 [shape = 's32[1]{0}', space=sflag, size = 0x4, scoped, tag = 'scoped memory for transformer3d_forward.3']
    #allocation12 [shape = 'u8[8192]{0}', space=vmem, size = 0x2000, scoped, tag = 'output window, operand 0']
    %67 = vsyncpa [#allocation5], 0
    %68 = vsyncpa [#allocation8], 0
    %69 = vsyncpa [#allocation11], 0
    %70 = vsyncpa [#allocation6], 0
    %s71 = scalar_lea.sflag [#allocation6], 1
    %72 = vsyncpa %s71, 0
    loop: start=0, step=1, limit=6
    $region2: #{transformer3d_forward.3} parent=1 // loop_pre_header
      _
    $region3: #{transformer3d_forward.3} parent=1 // loop_header
      %s74 = sphi 0, %s78
      %p75 = scmp.ge.s32.totalorder %s74, 6
      %s81 = sphi 0, %s93
      %s82 = sphi 0, %s89
      %s83 = sphi 0, %s81
      %s84 = sphi 0, %s82
      %s85 = sphi 0, %s83
      %s86 = sphi 0, %s84
      %s96 = sphi 0, %s98
      %s99 = sphi 0, %s96
      %s100 = sphi 0, %s99
      %s116 = sphi 0, %s100
      %s122 = sphi 0, %s124
      %s125 = sphi 0, %s122
      %s126 = sphi 0, %s125
      %s142 = sphi 0, %s126
      %s150 = sphi 0, %s152
      %s153 = sphi 0, %s150
      %s154 = sphi 0, %s153
      %s170 = sphi 0, %s154
      %s174 = sphi 0, %s174
      %s176 = sphi 0, %s174
      %s177 = sphi 0, %s176
      %s191 = sphi 0, %s177
      %s195 = sphi 0, %s195
      %s197 = sphi 0, %s195
      %s198 = sphi 0, %s197
      %s212 = sphi 0, %s198
      %s216 = sphi 0, %s216
      %s218 = sphi 0, %s216
      %s219 = sphi 0, %s218
      %s233 = sphi 0, %s219
      %s237 = sphi 0, %s237
      %s239 = sphi 0, %s237
      %s240 = sphi 0, %s239
      %s254 = sphi 0, %s240
      %s258 = sphi 0, %s258
      %s260 = sphi 0, %s258
      %s261 = sphi 0, %s260
      %s275 = sphi 0, %s261
      %s279 = sphi 0, %s279
      %s281 = sphi 0, %s279
      %s282 = sphi 0, %s281
      %s296 = sphi 0, %s282
      %s300 = sphi 0, %s300
      %s302 = sphi 0, %s300
      %s303 = sphi 0, %s302
      %s317 = sphi 0, %s303
      %s321 = sphi 0, %s321
      %s323 = sphi 0, %s321
      %s324 = sphi 0, %s323
      %s338 = sphi 0, %s324
      %s342 = sphi 0, %s342
      %s344 = sphi 0, %s342
      %s345 = sphi 0, %s344
      %s359 = sphi 0, %s345
      %s363 = sphi 0, %s363
      %s365 = sphi 0, %s363
      %s366 = sphi 0, %s365
      %s380 = sphi 0, %s366
      %s384 = sphi 0, %s384
      %s386 = sphi 0, %s384
      %s387 = sphi 0, %s386
      %s401 = sphi 0, %s387
      %s405 = sphi 0, %s405
      %s407 = sphi 0, %s405
      %s408 = sphi 0, %s407
      %s422 = sphi 0, %s408
      %s426 = sphi 0, %s426
      %s428 = sphi 0, %s426
      %s429 = sphi 0, %s428
      %s443 = sphi 0, %s429
      %s447 = sphi 0, %s447
      %s449 = sphi 0, %s447
      %s450 = sphi 0, %s449
      %s464 = sphi 0, %s450
      %s468 = sphi 0, %s468
      %s470 = sphi 0, %s468
      %s471 = sphi 0, %s470
      %s485 = sphi 0, %s471
      %s489 = sphi 0, %s489
      %s491 = sphi 0, %s489
      %s492 = sphi 0, %s491
      %s506 = sphi 0, %s492
      %s510 = sphi 0, %s510
      %s512 = sphi 0, %s510
      %s513 = sphi 0, %s512
      %s527 = sphi 0, %s513
      %s531 = sphi 0, %s531
      %s533 = sphi 0, %s531
      %s534 = sphi 0, %s533
      %s548 = sphi 0, %s534
      %s552 = sphi 0, %s552
      %s554 = sphi 0, %s552
      %s555 = sphi 0, %s554
      %s569 = sphi 0, %s555
      %s573 = sphi 0, %s573
      %s575 = sphi 0, %s573
      %s576 = sphi 0, %s575
      %s590 = sphi 0, %s576
      %s594 = sphi 0, %s594
      %s596 = sphi 0, %s594
      %s597 = sphi 0, %s596
      %s611 = sphi 0, %s597
      %s615 = sphi 0, %s615
      %s617 = sphi 0, %s615
      %s618 = sphi 0, %s617
      %s632 = sphi 0, %s618
      %s636 = sphi 0, %s636
      %s638 = sphi 0, %s636
      %s639 = sphi 0, %s638
      %s653 = sphi 0, %s639
      %s657 = sphi 0, %s657
      %s659 = sphi 0, %s657
      %s660 = sphi 0, %s659
      %s674 = sphi 0, %s660
      %s678 = sphi 0, %s678
      %s680 = sphi 0, %s678
      %s681 = sphi 0, %s680
      %s695 = sphi 0, %s681
      %s699 = sphi 0, %s699
      %s701 = sphi 0, %s699
      %s702 = sphi 0, %s701
      %s716 = sphi 0, %s702
      %s724 = sphi 0, %s726
      %s727 = sphi 0, %s724
      %s728 = sphi 0, %s727
      %s744 = sphi 0, %s728
      %s752 = sphi 0, %s754
      %s755 = sphi 0, %s752
      %s756 = sphi 0, %s755
      %s772 = sphi 0, %s756
    $region4: #{transformer3d_forward.3} parent=1 // loop_header_branch
      %77 = sbr.rel (%p75) target = $region8
    $region5: #{transformer3d_forward.3} parent=1 // loop_body
      %s79 = ssub.s32 %s74, 1
      %s80 = ssub.s32 %s74, 2
      %s87 = sadd.s32 1, %s82
      %p88 = scmp.ge.s32.totalorder %s87, 2
      %s89 = scalar_select %p88, 0, %s87
      %s90 = sadd.s32 1, %s81
      %s91 = scalar_select %p88, %s90, %s81
      %p92 = scmp.ge.s32.totalorder %s91, 2
      %s93 = scalar_select %p92, 0, %s91
      %s94 = ssub.s32 %s81, %s93
      %p95 = scmp.eq.s32.totalorder %s94, 0
      %s97 = sadd.s32 %s96, 1
      %s98 = scalar_select %p95, %s96, %s97
      %p101 = pneg %p95
      %p102 = scmp.eq.s32.totalorder %s74, 3
      %p103 = por %p101, %p102
      %p104 = scmp.ne.s32.totalorder %s96, %s99
      %p105 = scmp.eq.s32.totalorder %s74, 0
      %p106 = por %p104, %p105
      %p107 = scmp.ne.s32.totalorder %s96, %s99
      %p108 = scmp.eq.s32.totalorder %s79, 3
      %p109 = por %p107, %p108
      %p110 = scmp.ne.s32.totalorder %s99, %s100
      %p111 = scmp.eq.s32.totalorder %s79, 0
      %p112 = por %p110, %p111
      %p113 = scmp.ne.s32.totalorder %s99, %s100
      %p114 = scmp.eq.s32.totalorder %s80, 3
      %p115 = por %p113, %p114
      %p117 = scmp.ne.s32.totalorder %s100, %s116
      %p118 = scmp.eq.s32.totalorder %s80, 0
      %p119 = por %p117, %p118
      %s120 = ssub.s32 %s81, %s93
      %p121 = scmp.eq.s32.totalorder %s120, 0
      %s123 = sadd.s32 %s122, 1
      %s124 = scalar_select %p121, %s122, %s123
      %p127 = pneg %p121
      %p128 = scmp.eq.s32.totalorder %s74, 3
      %p129 = por %p127, %p128
      %p130 = scmp.ne.s32.totalorder %s122, %s125
      %p131 = scmp.eq.s32.totalorder %s74, 0
      %p132 = por %p130, %p131
      %p133 = scmp.ne.s32.totalorder %s122, %s125
      %p134 = scmp.eq.s32.totalorder %s79, 3
      %p135 = por %p133, %p134
      %p136 = scmp.ne.s32.totalorder %s125, %s126
      %p137 = scmp.eq.s32.totalorder %s79, 0
      %p138 = por %p136, %p137
      %p139 = scmp.ne.s32.totalorder %s125, %s126
      %p140 = scmp.eq.s32.totalorder %s80, 3
      %p141 = por %p139, %p140
      %p143 = scmp.ne.s32.totalorder %s126, %s142
      %p144 = scmp.eq.s32.totalorder %s80, 0
      %p145 = por %p143, %p144
      %s146 = ssub.s32 %s81, %s93
      %s147 = ssub.s32 %s82, %s89
      %s148 = sor.u32 %s146, %s147
      %p149 = scmp.eq.s32.totalorder %s148, 0
      %s151 = sadd.s32 %s150, 1
      %s152 = scalar_select %p149, %s150, %s151
      %p155 = pneg %p149
      %p156 = scmp.eq.s32.totalorder %s74, 3
      %p157 = por %p155, %p156
      %p158 = scmp.ne.s32.totalorder %s150, %s153
      %p159 = scmp.eq.s32.totalorder %s74, 0
      %p160 = por %p158, %p159
      %p161 = scmp.ne.s32.totalorder %s150, %s153
      %p162 = scmp.eq.s32.totalorder %s79, 3
      %p163 = por %p161, %p162
      %p164 = scmp.ne.s32.totalorder %s153, %s154
      %p165 = scmp.eq.s32.totalorder %s79, 0
      %p166 = por %p164, %p165
      %p167 = scmp.ne.s32.totalorder %s153, %s154
      %p168 = scmp.eq.s32.totalorder %s80, 3
      %p169 = por %p167, %p168
      %p171 = scmp.ne.s32.totalorder %s154, %s170
      %p172 = scmp.eq.s32.totalorder %s80, 0
      %p173 = por %p171, %p172
      %s175 = sadd.s32 %s174, 1
      %p178 = scmp.eq.s32.totalorder %s74, 3
      %p179 = scmp.ne.s32.totalorder %s174, %s176
      %p180 = scmp.eq.s32.totalorder %s74, 0
      %p181 = por %p179, %p180
      %p182 = scmp.ne.s32.totalorder %s174, %s176
      %p183 = scmp.eq.s32.totalorder %s79, 3
      %p184 = por %p182, %p183
      %p185 = scmp.ne.s32.totalorder %s176, %s177
      %p186 = scmp.eq.s32.totalorder %s79, 0
      %p187 = por %p185, %p186
      %p188 = scmp.ne.s32.totalorder %s176, %s177
      %p189 = scmp.eq.s32.totalorder %s80, 3
      %p190 = por %p188, %p189
      %p192 = scmp.ne.s32.totalorder %s177, %s191
      %p193 = scmp.eq.s32.totalorder %s80, 0
      %p194 = por %p192, %p193
      %s196 = sadd.s32 %s195, 1
      %p199 = scmp.eq.s32.totalorder %s74, 3
      %p200 = scmp.ne.s32.totalorder %s195, %s197
      %p201 = scmp.eq.s32.totalorder %s74, 0
      %p202 = por %p200, %p201
      %p203 = scmp.ne.s32.totalorder %s195, %s197
      %p204 = scmp.eq.s32.totalorder %s79, 3
      %p205 = por %p203, %p204
      %p206 = scmp.ne.s32.totalorder %s197, %s198
      %p207 = scmp.eq.s32.totalorder %s79, 0
      %p208 = por %p206, %p207
      %p209 = scmp.ne.s32.totalorder %s197, %s198
      %p210 = scmp.eq.s32.totalorder %s80, 3
      %p211 = por %p209, %p210
      %p213 = scmp.ne.s32.totalorder %s198, %s212
      %p214 = scmp.eq.s32.totalorder %s80, 0
      %p215 = por %p213, %p214
      %s217 = sadd.s32 %s216, 1
      %p220 = scmp.eq.s32.totalorder %s74, 3
      %p221 = scmp.ne.s32.totalorder %s216, %s218
      %p222 = scmp.eq.s32.totalorder %s74, 0
      %p223 = por %p221, %p222
      %p224 = scmp.ne.s32.totalorder %s216, %s218
      %p225 = scmp.eq.s32.totalorder %s79, 3
      %p226 = por %p224, %p225
      %p227 = scmp.ne.s32.totalorder %s218, %s219
      %p228 = scmp.eq.s32.totalorder %s79, 0
      %p229 = por %p227, %p228
      %p230 = scmp.ne.s32.totalorder %s218, %s219
      %p231 = scmp.eq.s32.totalorder %s80, 3
      %p232 = por %p230, %p231
      %p234 = scmp.ne.s32.totalorder %s219, %s233
      %p235 = scmp.eq.s32.totalorder %s80, 0
      %p236 = por %p234, %p235
      %s238 = sadd.s32 %s237, 1
      %p241 = scmp.eq.s32.totalorder %s74, 3
      %p242 = scmp.ne.s32.totalorder %s237, %s239
      %p243 = scmp.eq.s32.totalorder %s74, 0
      %p244 = por %p242, %p243
      %p245 = scmp.ne.s32.totalorder %s237, %s239
      %p246 = scmp.eq.s32.totalorder %s79, 3
      %p247 = por %p245, %p246
      %p248 = scmp.ne.s32.totalorder %s239, %s240
      %p249 = scmp.eq.s32.totalorder %s79, 0
      %p250 = por %p248, %p249
      %p251 = scmp.ne.s32.totalorder %s239, %s240
      %p252 = scmp.eq.s32.totalorder %s80, 3
      %p253 = por %p251, %p252
      %p255 = scmp.ne.s32.totalorder %s240, %s254
      %p256 = scmp.eq.s32.totalorder %s80, 0
      %p257 = por %p255, %p256
      %s259 = sadd.s32 %s258, 1
      %p262 = scmp.eq.s32.totalorder %s74, 3
      %p263 = scmp.ne.s32.totalorder %s258, %s260
      %p264 = scmp.eq.s32.totalorder %s74, 0
      %p265 = por %p263, %p264
      %p266 = scmp.ne.s32.totalorder %s258, %s260
      %p267 = scmp.eq.s32.totalorder %s79, 3
      %p268 = por %p266, %p267
      %p269 = scmp.ne.s32.totalorder %s260, %s261
      %p270 = scmp.eq.s32.totalorder %s79, 0
      %p271 = por %p269, %p270
      %p272 = scmp.ne.s32.totalorder %s260, %s261
      %p273 = scmp.eq.s32.totalorder %s80, 3
      %p274 = por %p272, %p273
      %p276 = scmp.ne.s32.totalorder %s261, %s275
      %p277 = scmp.eq.s32.totalorder %s80, 0
      %p278 = por %p276, %p277
      %s280 = sadd.s32 %s279, 1
      %p283 = scmp.eq.s32.totalorder %s74, 3
      %p284 = scmp.ne.s32.totalorder %s279, %s281
      %p285 = scmp.eq.s32.totalorder %s74, 0
      %p286 = por %p284, %p285
      %p287 = scmp.ne.s32.totalorder %s279, %s281
      %p288 = scmp.eq.s32.totalorder %s79, 3
      %p289 = por %p287, %p288
      %p290 = scmp.ne.s32.totalorder %s281, %s282
      %p291 = scmp.eq.s32.totalorder %s79, 0
      %p292 = por %p290, %p291
      %p293 = scmp.ne.s32.totalorder %s281, %s282
      %p294 = scmp.eq.s32.totalorder %s80, 3
      %p295 = por %p293, %p294
      %p297 = scmp.ne.s32.totalorder %s282, %s296
      %p298 = scmp.eq.s32.totalorder %s80, 0
      %p299 = por %p297, %p298
      %s301 = sadd.s32 %s300, 1
      %p304 = scmp.eq.s32.totalorder %s74, 3
      %p305 = scmp.ne.s32.totalorder %s300, %s302
      %p306 = scmp.eq.s32.totalorder %s74, 0
      %p307 = por %p305, %p306
      %p308 = scmp.ne.s32.totalorder %s300, %s302
      %p309 = scmp.eq.s32.totalorder %s79, 3
      %p310 = por %p308, %p309
      %p311 = scmp.ne.s32.totalorder %s302, %s303
      %p312 = scmp.eq.s32.totalorder %s79, 0
      %p313 = por %p311, %p312
      %p314 = scmp.ne.s32.totalorder %s302, %s303
      %p315 = scmp.eq.s32.totalorder %s80, 3
      %p316 = por %p314, %p315
      %p318 = scmp.ne.s32.totalorder %s303, %s317
      %p319 = scmp.eq.s32.totalorder %s80, 0
      %p320 = por %p318, %p319
      %s322 = sadd.s32 %s321, 1
      %p325 = scmp.eq.s32.totalorder %s74, 3
      %p326 = scmp.ne.s32.totalorder %s321, %s323
      %p327 = scmp.eq.s32.totalorder %s74, 0
      %p328 = por %p326, %p327
      %p329 = scmp.ne.s32.totalorder %s321, %s323
      %p330 = scmp.eq.s32.totalorder %s79, 3
      %p331 = por %p329, %p330
      %p332 = scmp.ne.s32.totalorder %s323, %s324
      %p333 = scmp.eq.s32.totalorder %s79, 0
      %p334 = por %p332, %p333
      %p335 = scmp.ne.s32.totalorder %s323, %s324
      %p336 = scmp.eq.s32.totalorder %s80, 3
      %p337 = por %p335, %p336
      %p339 = scmp.ne.s32.totalorder %s324, %s338
      %p340 = scmp.eq.s32.totalorder %s80, 0
      %p341 = por %p339, %p340
      %s343 = sadd.s32 %s342, 1
      %p346 = scmp.eq.s32.totalorder %s74, 3
      %p347 = scmp.ne.s32.totalorder %s342, %s344
      %p348 = scmp.eq.s32.totalorder %s74, 0
      %p349 = por %p347, %p348
      %p350 = scmp.ne.s32.totalorder %s342, %s344
      %p351 = scmp.eq.s32.totalorder %s79, 3
      %p352 = por %p350, %p351
      %p353 = scmp.ne.s32.totalorder %s344, %s345
      %p354 = scmp.eq.s32.totalorder %s79, 0
      %p355 = por %p353, %p354
      %p356 = scmp.ne.s32.totalorder %s344, %s345
      %p357 = scmp.eq.s32.totalorder %s80, 3
      %p358 = por %p356, %p357
      %p360 = scmp.ne.s32.totalorder %s345, %s359
      %p361 = scmp.eq.s32.totalorder %s80, 0
      %p362 = por %p360, %p361
      %s364 = sadd.s32 %s363, 1
      %p367 = scmp.eq.s32.totalorder %s74, 3
      %p368 = scmp.ne.s32.totalorder %s363, %s365
      %p369 = scmp.eq.s32.totalorder %s74, 0
      %p370 = por %p368, %p369
      %p371 = scmp.ne.s32.totalorder %s363, %s365
      %p372 = scmp.eq.s32.totalorder %s79, 3
      %p373 = por %p371, %p372
      %p374 = scmp.ne.s32.totalorder %s365, %s366
      %p375 = scmp.eq.s32.totalorder %s79, 0
      %p376 = por %p374, %p375
      %p377 = scmp.ne.s32.totalorder %s365, %s366
      %p378 = scmp.eq.s32.totalorder %s80, 3
      %p379 = por %p377, %p378
      %p381 = scmp.ne.s32.totalorder %s366, %s380
      %p382 = scmp.eq.s32.totalorder %s80, 0
      %p383 = por %p381, %p382
      %s385 = sadd.s32 %s384, 1
      %p388 = scmp.eq.s32.totalorder %s74, 3
      %p389 = scmp.ne.s32.totalorder %s384, %s386
      %p390 = scmp.eq.s32.totalorder %s74, 0
      %p391 = por %p389, %p390
      %p392 = scmp.ne.s32.totalorder %s384, %s386
      %p393 = scmp.eq.s32.totalorder %s79, 3
      %p394 = por %p392, %p393
      %p395 = scmp.ne.s32.totalorder %s386, %s387
      %p396 = scmp.eq.s32.totalorder %s79, 0
      %p397 = por %p395, %p396
      %p398 = scmp.ne.s32.totalorder %s386, %s387
      %p399 = scmp.eq.s32.totalorder %s80, 3
      %p400 = por %p398, %p399
      %p402 = scmp.ne.s32.totalorder %s387, %s401
      %p403 = scmp.eq.s32.totalorder %s80, 0
      %p404 = por %p402, %p403
      %s406 = sadd.s32 %s405, 1
      %p409 = scmp.eq.s32.totalorder %s74, 3
      %p410 = scmp.ne.s32.totalorder %s405, %s407
      %p411 = scmp.eq.s32.totalorder %s74, 0
      %p412 = por %p410, %p411
      %p413 = scmp.ne.s32.totalorder %s405, %s407
      %p414 = scmp.eq.s32.totalorder %s79, 3
      %p415 = por %p413, %p414
      %p416 = scmp.ne.s32.totalorder %s407, %s408
      %p417 = scmp.eq.s32.totalorder %s79, 0
      %p418 = por %p416, %p417
      %p419 = scmp.ne.s32.totalorder %s407, %s408
      %p420 = scmp.eq.s32.totalorder %s80, 3
      %p421 = por %p419, %p420
      %p423 = scmp.ne.s32.totalorder %s408, %s422
      %p424 = scmp.eq.s32.totalorder %s80, 0
      %p425 = por %p423, %p424
      %s427 = sadd.s32 %s426, 1
      %p430 = scmp.eq.s32.totalorder %s74, 3
      %p431 = scmp.ne.s32.totalorder %s426, %s428
      %p432 = scmp.eq.s32.totalorder %s74, 0
      %p433 = por %p431, %p432
      %p434 = scmp.ne.s32.totalorder %s426, %s428
      %p435 = scmp.eq.s32.totalorder %s79, 3
      %p436 = por %p434, %p435
      %p437 = scmp.ne.s32.totalorder %s428, %s429
      %p438 = scmp.eq.s32.totalorder %s79, 0
      %p439 = por %p437, %p438
      %p440 = scmp.ne.s32.totalorder %s428, %s429
      %p441 = scmp.eq.s32.totalorder %s80, 3
      %p442 = por %p440, %p441
      %p444 = scmp.ne.s32.totalorder %s429, %s443
      %p445 = scmp.eq.s32.totalorder %s80, 0
      %p446 = por %p444, %p445
      %s448 = sadd.s32 %s447, 1
      %p451 = scmp.eq.s32.totalorder %s74, 3
      %p452 = scmp.ne.s32.totalorder %s447, %s449
      %p453 = scmp.eq.s32.totalorder %s74, 0
      %p454 = por %p452, %p453
      %p455 = scmp.ne.s32.totalorder %s447, %s449
      %p456 = scmp.eq.s32.totalorder %s79, 3
      %p457 = por %p455, %p456
      %p458 = scmp.ne.s32.totalorder %s449, %s450
      %p459 = scmp.eq.s32.totalorder %s79, 0
      %p460 = por %p458, %p459
      %p461 = scmp.ne.s32.totalorder %s449, %s450
      %p462 = scmp.eq.s32.totalorder %s80, 3
      %p463 = por %p461, %p462
      %p465 = scmp.ne.s32.totalorder %s450, %s464
      %p466 = scmp.eq.s32.totalorder %s80, 0
      %p467 = por %p465, %p466
      %s469 = sadd.s32 %s468, 1
      %p472 = scmp.eq.s32.totalorder %s74, 3
      %p473 = scmp.ne.s32.totalorder %s468, %s470
      %p474 = scmp.eq.s32.totalorder %s74, 0
      %p475 = por %p473, %p474
      %p476 = scmp.ne.s32.totalorder %s468, %s470
      %p477 = scmp.eq.s32.totalorder %s79, 3
      %p478 = por %p476, %p477
      %p479 = scmp.ne.s32.totalorder %s470, %s471
      %p480 = scmp.eq.s32.totalorder %s79, 0
      %p481 = por %p479, %p480
      %p482 = scmp.ne.s32.totalorder %s470, %s471
      %p483 = scmp.eq.s32.totalorder %s80, 3
      %p484 = por %p482, %p483
      %p486 = scmp.ne.s32.totalorder %s471, %s485
      %p487 = scmp.eq.s32.totalorder %s80, 0
      %p488 = por %p486, %p487
      %s490 = sadd.s32 %s489, 1
      %p493 = scmp.eq.s32.totalorder %s74, 3
      %p494 = scmp.ne.s32.totalorder %s489, %s491
      %p495 = scmp.eq.s32.totalorder %s74, 0
      %p496 = por %p494, %p495
      %p497 = scmp.ne.s32.totalorder %s489, %s491
      %p498 = scmp.eq.s32.totalorder %s79, 3
      %p499 = por %p497, %p498
      %p500 = scmp.ne.s32.totalorder %s491, %s492
      %p501 = scmp.eq.s32.totalorder %s79, 0
      %p502 = por %p500, %p501
      %p503 = scmp.ne.s32.totalorder %s491, %s492
      %p504 = scmp.eq.s32.totalorder %s80, 3
      %p505 = por %p503, %p504
      %p507 = scmp.ne.s32.totalorder %s492, %s506
      %p508 = scmp.eq.s32.totalorder %s80, 0
      %p509 = por %p507, %p508
      %s511 = sadd.s32 %s510, 1
      %p514 = scmp.eq.s32.totalorder %s74, 3
      %p515 = scmp.ne.s32.totalorder %s510, %s512
      %p516 = scmp.eq.s32.totalorder %s74, 0
      %p517 = por %p515, %p516
      %p518 = scmp.ne.s32.totalorder %s510, %s512
      %p519 = scmp.eq.s32.totalorder %s79, 3
      %p520 = por %p518, %p519
      %p521 = scmp.ne.s32.totalorder %s512, %s513
      %p522 = scmp.eq.s32.totalorder %s79, 0
      %p523 = por %p521, %p522
      %p524 = scmp.ne.s32.totalorder %s512, %s513
      %p525 = scmp.eq.s32.totalorder %s80, 3
      %p526 = por %p524, %p525
      %p528 = scmp.ne.s32.totalorder %s513, %s527
      %p529 = scmp.eq.s32.totalorder %s80, 0
      %p530 = por %p528, %p529
      %s532 = sadd.s32 %s531, 1
      %p535 = scmp.eq.s32.totalorder %s74, 3
      %p536 = scmp.ne.s32.totalorder %s531, %s533
      %p537 = scmp.eq.s32.totalorder %s74, 0
      %p538 = por %p536, %p537
      %p539 = scmp.ne.s32.totalorder %s531, %s533
      %p540 = scmp.eq.s32.totalorder %s79, 3
      %p541 = por %p539, %p540
      %p542 = scmp.ne.s32.totalorder %s533, %s534
      %p543 = scmp.eq.s32.totalorder %s79, 0
      %p544 = por %p542, %p543
      %p545 = scmp.ne.s32.totalorder %s533, %s534
      %p546 = scmp.eq.s32.totalorder %s80, 3
      %p547 = por %p545, %p546
      %p549 = scmp.ne.s32.totalorder %s534, %s548
      %p550 = scmp.eq.s32.totalorder %s80, 0
      %p551 = por %p549, %p550
      %s553 = sadd.s32 %s552, 1
      %p556 = scmp.eq.s32.totalorder %s74, 3
      %p557 = scmp.ne.s32.totalorder %s552, %s554
      %p558 = scmp.eq.s32.totalorder %s74, 0
      %p559 = por %p557, %p558
      %p560 = scmp.ne.s32.totalorder %s552, %s554
      %p561 = scmp.eq.s32.totalorder %s79, 3
      %p562 = por %p560, %p561
      %p563 = scmp.ne.s32.totalorder %s554, %s555
      %p564 = scmp.eq.s32.totalorder %s79, 0
      %p565 = por %p563, %p564
      %p566 = scmp.ne.s32.totalorder %s554, %s555
      %p567 = scmp.eq.s32.totalorder %s80, 3
      %p568 = por %p566, %p567
      %p570 = scmp.ne.s32.totalorder %s555, %s569
      %p571 = scmp.eq.s32.totalorder %s80, 0
      %p572 = por %p570, %p571
      %s574 = sadd.s32 %s573, 1
      %p577 = scmp.eq.s32.totalorder %s74, 3
      %p578 = scmp.ne.s32.totalorder %s573, %s575
      %p579 = scmp.eq.s32.totalorder %s74, 0
      %p580 = por %p578, %p579
      %p581 = scmp.ne.s32.totalorder %s573, %s575
      %p582 = scmp.eq.s32.totalorder %s79, 3
      %p583 = por %p581, %p582
      %p584 = scmp.ne.s32.totalorder %s575, %s576
      %p585 = scmp.eq.s32.totalorder %s79, 0
      %p586 = por %p584, %p585
      %p587 = scmp.ne.s32.totalorder %s575, %s576
      %p588 = scmp.eq.s32.totalorder %s80, 3
      %p589 = por %p587, %p588
      %p591 = scmp.ne.s32.totalorder %s576, %s590
      %p592 = scmp.eq.s32.totalorder %s80, 0
      %p593 = por %p591, %p592
      %s595 = sadd.s32 %s594, 1
      %p598 = scmp.eq.s32.totalorder %s74, 3
      %p599 = scmp.ne.s32.totalorder %s594, %s596
      %p600 = scmp.eq.s32.totalorder %s74, 0
      %p601 = por %p599, %p600
      %p602 = scmp.ne.s32.totalorder %s594, %s596
      %p603 = scmp.eq.s32.totalorder %s79, 3
      %p604 = por %p602, %p603
      %p605 = scmp.ne.s32.totalorder %s596, %s597
      %p606 = scmp.eq.s32.totalorder %s79, 0
      %p607 = por %p605, %p606
      %p608 = scmp.ne.s32.totalorder %s596, %s597
      %p609 = scmp.eq.s32.totalorder %s80, 3
      %p610 = por %p608, %p609
      %p612 = scmp.ne.s32.totalorder %s597, %s611
      %p613 = scmp.eq.s32.totalorder %s80, 0
      %p614 = por %p612, %p613
      %s616 = sadd.s32 %s615, 1
      %p619 = scmp.eq.s32.totalorder %s74, 3
      %p620 = scmp.ne.s32.totalorder %s615, %s617
      %p621 = scmp.eq.s32.totalorder %s74, 0
      %p622 = por %p620, %p621
      %p623 = scmp.ne.s32.totalorder %s615, %s617
      %p624 = scmp.eq.s32.totalorder %s79, 3
      %p625 = por %p623, %p624
      %p626 = scmp.ne.s32.totalorder %s617, %s618
      %p627 = scmp.eq.s32.totalorder %s79, 0
      %p628 = por %p626, %p627
      %p629 = scmp.ne.s32.totalorder %s617, %s618
      %p630 = scmp.eq.s32.totalorder %s80, 3
      %p631 = por %p629, %p630
      %p633 = scmp.ne.s32.totalorder %s618, %s632
      %p634 = scmp.eq.s32.totalorder %s80, 0
      %p635 = por %p633, %p634
      %s637 = sadd.s32 %s636, 1
      %p640 = scmp.eq.s32.totalorder %s74, 3
      %p641 = scmp.ne.s32.totalorder %s636, %s638
      %p642 = scmp.eq.s32.totalorder %s74, 0
      %p643 = por %p641, %p642
      %p644 = scmp.ne.s32.totalorder %s636, %s638
      %p645 = scmp.eq.s32.totalorder %s79, 3
      %p646 = por %p644, %p645
      %p647 = scmp.ne.s32.totalorder %s638, %s639
      %p648 = scmp.eq.s32.totalorder %s79, 0
      %p649 = por %p647, %p648
      %p650 = scmp.ne.s32.totalorder %s638, %s639
      %p651 = scmp.eq.s32.totalorder %s80, 3
      %p652 = por %p650, %p651
      %p654 = scmp.ne.s32.totalorder %s639, %s653
      %p655 = scmp.eq.s32.totalorder %s80, 0
      %p656 = por %p654, %p655
      %s658 = sadd.s32 %s657, 1
      %p661 = scmp.eq.s32.totalorder %s74, 3
      %p662 = scmp.ne.s32.totalorder %s657, %s659
      %p663 = scmp.eq.s32.totalorder %s74, 0
      %p664 = por %p662, %p663
      %p665 = scmp.ne.s32.totalorder %s657, %s659
      %p666 = scmp.eq.s32.totalorder %s79, 3
      %p667 = por %p665, %p666
      %p668 = scmp.ne.s32.totalorder %s659, %s660
      %p669 = scmp.eq.s32.totalorder %s79, 0
      %p670 = por %p668, %p669
      %p671 = scmp.ne.s32.totalorder %s659, %s660
      %p672 = scmp.eq.s32.totalorder %s80, 3
      %p673 = por %p671, %p672
      %p675 = scmp.ne.s32.totalorder %s660, %s674
      %p676 = scmp.eq.s32.totalorder %s80, 0
      %p677 = por %p675, %p676
      %s679 = sadd.s32 %s678, 1
      %p682 = scmp.eq.s32.totalorder %s74, 3
      %p683 = scmp.ne.s32.totalorder %s678, %s680
      %p684 = scmp.eq.s32.totalorder %s74, 0
      %p685 = por %p683, %p684
      %p686 = scmp.ne.s32.totalorder %s678, %s680
      %p687 = scmp.eq.s32.totalorder %s79, 3
      %p688 = por %p686, %p687
      %p689 = scmp.ne.s32.totalorder %s680, %s681
      %p690 = scmp.eq.s32.totalorder %s79, 0
      %p691 = por %p689, %p690
      %p692 = scmp.ne.s32.totalorder %s680, %s681
      %p693 = scmp.eq.s32.totalorder %s80, 3
      %p694 = por %p692, %p693
      %p696 = scmp.ne.s32.totalorder %s681, %s695
      %p697 = scmp.eq.s32.totalorder %s80, 0
      %p698 = por %p696, %p697
      %s700 = sadd.s32 %s699, 1
      %p703 = scmp.eq.s32.totalorder %s74, 3
      %p704 = scmp.ne.s32.totalorder %s699, %s701
      %p705 = scmp.eq.s32.totalorder %s74, 0
      %p706 = por %p704, %p705
      %p707 = scmp.ne.s32.totalorder %s699, %s701
      %p708 = scmp.eq.s32.totalorder %s79, 3
      %p709 = por %p707, %p708
      %p710 = scmp.ne.s32.totalorder %s701, %s702
      %p711 = scmp.eq.s32.totalorder %s79, 0
      %p712 = por %p710, %p711
      %p713 = scmp.ne.s32.totalorder %s701, %s702
      %p714 = scmp.eq.s32.totalorder %s80, 3
      %p715 = por %p713, %p714
      %p717 = scmp.ne.s32.totalorder %s702, %s716
      %p718 = scmp.eq.s32.totalorder %s80, 0
      %p719 = por %p717, %p718
      %s720 = ssub.s32 %s81, %s93
      %s721 = ssub.s32 %s82, %s89
      %s722 = sor.u32 %s720, %s721
      %p723 = scmp.eq.s32.totalorder %s722, 0
      %s725 = sadd.s32 %s724, 1
      %s726 = scalar_select %p723, %s724, %s725
      %p729 = pneg %p723
      %p730 = scmp.eq.s32.totalorder %s74, 3
      %p731 = por %p729, %p730
      %p732 = scmp.ne.s32.totalorder %s724, %s727
      %p733 = scmp.eq.s32.totalorder %s74, 0
      %p734 = por %p732, %p733
      %p735 = scmp.ne.s32.totalorder %s724, %s727
      %p736 = scmp.eq.s32.totalorder %s79, 3
      %p737 = por %p735, %p736
      %p738 = scmp.ne.s32.totalorder %s727, %s728
      %p739 = scmp.eq.s32.totalorder %s79, 0
      %p740 = por %p738, %p739
      %p741 = scmp.ne.s32.totalorder %s727, %s728
      %p742 = scmp.eq.s32.totalorder %s80, 3
      %p743 = por %p741, %p742
      %p745 = scmp.ne.s32.totalorder %s728, %s744
      %p746 = scmp.eq.s32.totalorder %s80, 0
      %p747 = por %p745, %p746
      %s748 = ssub.s32 %s81, %s93
      %s749 = ssub.s32 %s82, %s89
      %s750 = sor.u32 %s748, %s749
      %p751 = scmp.eq.s32.totalorder %s750, 0
      %s753 = sadd.s32 %s752, 1
      %s754 = scalar_select %p751, %s752, %s753
      %p757 = pneg %p751
      %p758 = scmp.eq.s32.totalorder %s74, 3
      %p759 = por %p757, %p758
      %p760 = scmp.ne.s32.totalorder %s752, %s755
      %p761 = scmp.eq.s32.totalorder %s74, 0
      %p762 = por %p760, %p761
      %p763 = scmp.ne.s32.totalorder %s752, %s755
      %p764 = scmp.eq.s32.totalorder %s79, 3
      %p765 = por %p763, %p764
      %p766 = scmp.ne.s32.totalorder %s755, %s756
      %p767 = scmp.eq.s32.totalorder %s79, 0
      %p768 = por %p766, %p767
      %p769 = scmp.ne.s32.totalorder %s755, %s756
      %p770 = scmp.eq.s32.totalorder %s80, 3
      %p771 = por %p769, %p770
      %p773 = scmp.ne.s32.totalorder %s756, %s772
      %p774 = scmp.eq.s32.totalorder %s80, 0
      %p775 = por %p773, %p774
      %p776 = scmp.le.s32.totalorder 1, %s74
      %p777 = scmp.lt.s32.totalorder %s74, 5
      %p778 = pnand %p776, %p777
      %p779 = pneg %p778
      // Predicated region
      $region9: #{transformer3d_forward.3} parent=5 // pred_check
        _
      $region10: #{transformer3d_forward.3} parent=5 // pred_check_branch
        %781 = sbr.rel (%p778) target = $region12
      $region11: #{transformer3d_forward.3} parent=5 // pred_region
        %s782 = ssub.s32 %s74, 1
        // Predicated region
        $region13: #{transformer3d_forward.3} parent=11 // pred_check
          %p783 = pneg %p187
        $region14: #{transformer3d_forward.3} parent=11 // pred_check_branch
          %785 = sbr.rel (%p783) target = $region16
        $region15: #{transformer3d_forward.3} parent=11 // pred_region
          _
        $region16: #{transformer3d_forward.3} parent=11 // pred_fallthru
          _
        // Predicated region
        $region17: #{transformer3d_forward.3} parent=11 // pred_check
          %p786 = pneg %p208
        $region18: #{transformer3d_forward.3} parent=11 // pred_check_branch
          %788 = sbr.rel (%p786) target = $region20
        $region19: #{transformer3d_forward.3} parent=11 // pred_region
          _
        $region20: #{transformer3d_forward.3} parent=11 // pred_fallthru
          _
        // Predicated region
        $region21: #{transformer3d_forward.3} parent=11 // pred_check
          %p789 = pneg %p229
        $region22: #{transformer3d_forward.3} parent=11 // pred_check_branch
          %791 = sbr.rel (%p789) target = $region24
        $region23: #{transformer3d_forward.3} parent=11 // pred_region
          _
        $region24: #{transformer3d_forward.3} parent=11 // pred_fallthru
          _
        // Predicated region
        $region25: #{transformer3d_forward.3} parent=11 // pred_check
          %p792 = pneg %p250
        $region26: #{transformer3d_forward.3} parent=11 // pred_check_branch
          %794 = sbr.rel (%p792) target = $region28
        $region27: #{transformer3d_forward.3} parent=11 // pred_region
          _
        $region28: #{transformer3d_forward.3} parent=11 // pred_fallthru
          _
        // Predicated region
        $region29: #{transformer3d_forward.3} parent=11 // pred_check
          %p795 = pneg %p271
        $region30: #{transformer3d_forward.3} parent=11 // pred_check_branch
          %797 = sbr.rel (%p795) target = $region32
        $region31: #{transformer3d_forward.3} parent=11 // pred_region
          _
        $region32: #{transformer3d_forward.3} parent=11 // pred_fallthru
          _
        // Predicated region
        $region33: #{transformer3d_forward.3} parent=11 // pred_check
          %p798 = pneg %p292
        $region34: #{transformer3d_forward.3} parent=11 // pred_check_branch
          %800 = sbr.rel (%p798) target = $region36
        $region35: #{transformer3d_forward.3} parent=11 // pred_region
          _
        $region36: #{transformer3d_forward.3} parent=11 // pred_fallthru
          _
        // Predicated region
        $region37: #{transformer3d_forward.3} parent=11 // pred_check
          %p801 = pneg %p313
        $region38: #{transformer3d_forward.3} parent=11 // pred_check_branch
          %803 = sbr.rel (%p801) target = $region40
        $region39: #{transformer3d_forward.3} parent=11 // pred_region
          _
        $region40: #{transformer3d_forward.3} parent=11 // pred_fallthru
          _
        // Predicated region
        $region41: #{transformer3d_forward.3} parent=11 // pred_check
          %p804 = pneg %p334
        $region42: #{transformer3d_forward.3} parent=11 // pred_check_branch
          %806 = sbr.rel (%p804) target = $region44
        $region43: #{transformer3d_forward.3} parent=11 // pred_region
          _
        $region44: #{transformer3d_forward.3} parent=11 // pred_fallthru
          _
        // Predicated region
        $region45: #{transformer3d_forward.3} parent=11 // pred_check
          %p807 = pneg %p355
        $region46: #{transformer3d_forward.3} parent=11 // pred_check_branch
          %809 = sbr.rel (%p807) target = $region48
        $region47: #{transformer3d_forward.3} parent=11 // pred_region
          _
        $region48: #{transformer3d_forward.3} parent=11 // pred_fallthru
          _
        // Predicated region
        $region49: #{transformer3d_forward.3} parent=11 // pred_check
          %p810 = pneg %p376
        $region50: #{transformer3d_forward.3} parent=11 // pred_check_branch
          %812 = sbr.rel (%p810) target = $region52
        $region51: #{transformer3d_forward.3} parent=11 // pred_region
          _
        $region52: #{transformer3d_forward.3} parent=11 // pred_fallthru
          _
        // Predicated region
        $region53: #{transformer3d_forward.3} parent=11 // pred_check
          %p813 = pneg %p397
        $region54: #{transformer3d_forward.3} parent=11 // pred_check_branch
          %815 = sbr.rel (%p813) target = $region56
        $region55: #{transformer3d_forward.3} parent=11 // pred_region
          _
        $region56: #{transformer3d_forward.3} parent=11 // pred_fallthru
          _
        // Predicated region
        $region57: #{transformer3d_forward.3} parent=11 // pred_check
          %p816 = pneg %p418
        $region58: #{transformer3d_forward.3} parent=11 // pred_check_branch
          %818 = sbr.rel (%p816) target = $region60
        $region59: #{transformer3d_forward.3} parent=11 // pred_region
          _
        $region60: #{transformer3d_forward.3} parent=11 // pred_fallthru
          _
        // Predicated region
        $region61: #{transformer3d_forward.3} parent=11 // pred_check
          %p819 = pneg %p439
        $region62: #{transformer3d_forward.3} parent=11 // pred_check_branch
          %821 = sbr.rel (%p819) target = $region64
        $region63: #{transformer3d_forward.3} parent=11 // pred_region
          _
        $region64: #{transformer3d_forward.3} parent=11 // pred_fallthru
          _
        // Predicated region
        $region65: #{transformer3d_forward.3} parent=11 // pred_check
          %p822 = pneg %p460
        $region66: #{transformer3d_forward.3} parent=11 // pred_check_branch
          %824 = sbr.rel (%p822) target = $region68
        $region67: #{transformer3d_forward.3} parent=11 // pred_region
          _
        $region68: #{transformer3d_forward.3} parent=11 // pred_fallthru
          _
        // Predicated region
        $region69: #{transformer3d_forward.3} parent=11 // pred_check
          %p825 = pneg %p481
        $region70: #{transformer3d_forward.3} parent=11 // pred_check_branch
          %827 = sbr.rel (%p825) target = $region72
        $region71: #{transformer3d_forward.3} parent=11 // pred_region
          _
        $region72: #{transformer3d_forward.3} parent=11 // pred_fallthru
          _
        // Predicated region
        $region73: #{transformer3d_forward.3} parent=11 // pred_check
          %p828 = pneg %p502
        $region74: #{transformer3d_forward.3} parent=11 // pred_check_branch
          %830 = sbr.rel (%p828) target = $region76
        $region75: #{transformer3d_forward.3} parent=11 // pred_region
          _
        $region76: #{transformer3d_forward.3} parent=11 // pred_fallthru
          _
        // Predicated region
        $region77: #{transformer3d_forward.3} parent=11 // pred_check
          %p831 = pneg %p523
        $region78: #{transformer3d_forward.3} parent=11 // pred_check_branch
          %833 = sbr.rel (%p831) target = $region80
        $region79: #{transformer3d_forward.3} parent=11 // pred_region
          _
        $region80: #{transformer3d_forward.3} parent=11 // pred_fallthru
          _
        // Predicated region
        $region81: #{transformer3d_forward.3} parent=11 // pred_check
          %p834 = pneg %p544
        $region82: #{transformer3d_forward.3} parent=11 // pred_check_branch
          %836 = sbr.rel (%p834) target = $region84
        $region83: #{transformer3d_forward.3} parent=11 // pred_region
          _
        $region84: #{transformer3d_forward.3} parent=11 // pred_fallthru
          _
        // Predicated region
        $region85: #{transformer3d_forward.3} parent=11 // pred_check
          %p837 = pneg %p565
        $region86: #{transformer3d_forward.3} parent=11 // pred_check_branch
          %839 = sbr.rel (%p837) target = $region88
        $region87: #{transformer3d_forward.3} parent=11 // pred_region
          _
        $region88: #{transformer3d_forward.3} parent=11 // pred_fallthru
          _
        // Predicated region
        $region89: #{transformer3d_forward.3} parent=11 // pred_check
          %p840 = pneg %p586
        $region90: #{transformer3d_forward.3} parent=11 // pred_check_branch
          %842 = sbr.rel (%p840) target = $region92
        $region91: #{transformer3d_forward.3} parent=11 // pred_region
          %s844 = ssub.s32 16, 16
          %845 = vsyncadd [#allocation5], %s844
          %s847 = sshll.u32 [#allocation4], 4
          %s848 = int_to_ptr.vmem [resolvable:$true] %s847
          %850 = dma.hbm_to_vmem [thread:$0]  %s45, 16, %s848, [#allocation5]
        $region92: #{transformer3d_forward.3} parent=11 // pred_fallthru
          _
        // Predicated region
        $region93: #{transformer3d_forward.3} parent=11 // pred_check
          %p851 = pneg %p607
        $region94: #{transformer3d_forward.3} parent=11 // pred_check_branch
          %853 = sbr.rel (%p851) target = $region96
        $region95: #{transformer3d_forward.3} parent=11 // pred_region
          _
        $region96: #{transformer3d_forward.3} parent=11 // pred_fallthru
          _
        // Predicated region
        $region97: #{transformer3d_forward.3} parent=11 // pred_check
          %p854 = pneg %p628
        $region98: #{transformer3d_forward.3} parent=11 // pred_check_branch
          %856 = sbr.rel (%p854) target = $region100
        $region99: #{transformer3d_forward.3} parent=11 // pred_region
          %s858 = ssub.s32 16, 16
          %859 = vsyncadd [#allocation8], %s858
          %s861 = sshll.u32 [#allocation7], 4
          %s862 = int_to_ptr.vmem [resolvable:$true] %s861
          %864 = dma.hbm_to_vmem [thread:$0]  %s49, 16, %s862, [#allocation8]
        $region100: #{transformer3d_forward.3} parent=11 // pred_fallthru
          _
        // Predicated region
        $region101: #{transformer3d_forward.3} parent=11 // pred_check
          %p865 = pneg %p649
        $region102: #{transformer3d_forward.3} parent=11 // pred_check_branch
          %867 = sbr.rel (%p865) target = $region104
        $region103: #{transformer3d_forward.3} parent=11 // pred_region
          %s869 = ssub.s32 16, 16
          %870 = vsyncadd [#allocation8], %s869
          %s872 = sshll.u32 [#allocation9], 4
          %s873 = int_to_ptr.vmem [resolvable:$true] %s872
          %875 = dma.hbm_to_vmem [thread:$0]  %s51, 16, %s873, [#allocation8]
        $region104: #{transformer3d_forward.3} parent=11 // pred_fallthru
          _
        // Predicated region
        $region105: #{transformer3d_forward.3} parent=11 // pred_check
          %p876 = pneg %p670
        $region106: #{transformer3d_forward.3} parent=11 // pred_check_branch
          %878 = sbr.rel (%p876) target = $region108
        $region107: #{transformer3d_forward.3} parent=11 // pred_region
          %s880 = ssub.s32 16, 16
          %881 = vsyncadd [#allocation11], %s880
          %s883 = sshll.u32 [#allocation10], 4
          %s884 = int_to_ptr.vmem [resolvable:$true] %s883
          %886 = dma.hbm_to_vmem [thread:$0]  %s53, 16, %s884, [#allocation11]
        $region108: #{transformer3d_forward.3} parent=11 // pred_fallthru
          _
        // Predicated region
        $region109: #{transformer3d_forward.3} parent=11 // pred_check
          %p887 = pneg %p691
        $region110: #{transformer3d_forward.3} parent=11 // pred_check_branch
          %889 = sbr.rel (%p887) target = $region112
        $region111: #{transformer3d_forward.3} parent=11 // pred_region
          _
        $region112: #{transformer3d_forward.3} parent=11 // pred_fallthru
          _
        // Predicated region
        $region113: #{transformer3d_forward.3} parent=11 // pred_check
          %p890 = pneg %p712
        $region114: #{transformer3d_forward.3} parent=11 // pred_check_branch
          %892 = sbr.rel (%p890) target = $region116
        $region115: #{transformer3d_forward.3} parent=11 // pred_region
          _
        $region116: #{transformer3d_forward.3} parent=11 // pred_fallthru
          _
      $region12: #{transformer3d_forward.3} parent=5 // pred_fallthru
        _
      %p893 = scmp.lt.s32.totalorder %s74, 4
      // Predicated region
      $region117: #{transformer3d_forward.3} parent=5 // pred_check
        %p894 = pneg %p893
      $region118: #{transformer3d_forward.3} parent=5 // pred_check_branch
        %896 = sbr.rel (%p894) target = $region120
      $region119: #{transformer3d_forward.3} parent=5 // pred_region
        // Predicated region
        $region121: #{transformer3d_forward.3} parent=119 // pred_check
          %p897 = pneg %p106
        $region122: #{transformer3d_forward.3} parent=119 // pred_check_branch
          %899 = sbr.rel (%p897) target = $region124
        $region123: #{transformer3d_forward.3} parent=119 // pred_region
          %p900 = scmp.lt.s32.totalorder %s81, 1
          %s901 = scalar_select %p900, %s81, 1
          %s902 = smul.addr %s901, 2
          %s903 = smul.addr %s902, 8
          %s904 = scalar_lea.vmem %s1, %s903
        $region124: #{transformer3d_forward.3} parent=119 // pred_fallthru
          _
        // Predicated region
        $region125: #{transformer3d_forward.3} parent=119 // pred_check
          %p905 = pneg %p132
        $region126: #{transformer3d_forward.3} parent=119 // pred_check_branch
          %907 = sbr.rel (%p905) target = $region128
        $region127: #{transformer3d_forward.3} parent=119 // pred_region
          %p908 = scmp.lt.s32.totalorder %s81, 1
          %s909 = scalar_select %p908, %s81, 1
          %s910 = smul.addr %s909, 2
          %s911 = smul.addr %s910, 8
          %s912 = scalar_lea.vmem %s3, %s911
        $region128: #{transformer3d_forward.3} parent=119 // pred_fallthru
          _
        // Predicated region
        $region129: #{transformer3d_forward.3} parent=119 // pred_check
          %p913 = pneg %p160
        $region130: #{transformer3d_forward.3} parent=119 // pred_check_branch
          %915 = sbr.rel (%p913) target = $region132
        $region131: #{transformer3d_forward.3} parent=119 // pred_region
          %p916 = scmp.lt.s32.totalorder %s81, 1
          %s917 = scalar_select %p916, %s81, 1
          %p918 = scmp.lt.s32.totalorder %s82, 1
          %s919 = scalar_select %p918, %s82, 1
          %s920 = smul.addr %s917, 2
          %s921 = sadd.s32 %s919, %s920
          %s922 = smul.addr %s921, 8
          %s923 = scalar_lea.vmem %s5, %s922
        $region132: #{transformer3d_forward.3} parent=119 // pred_fallthru
          _
      $region120: #{transformer3d_forward.3} parent=5 // pred_fallthru
        _
      %p924 = scmp.le.s32.totalorder 1, %s74
      %p925 = scmp.lt.s32.totalorder %s74, 5
      %p926 = pnand %p924, %p925
      %p927 = pneg %p926
      // Predicated region
      $region133: #{transformer3d_forward.3} parent=5 // pred_check
        _
      $region134: #{transformer3d_forward.3} parent=5 // pred_check_branch
        %929 = sbr.rel (%p926) target = $region136
      $region135: #{transformer3d_forward.3} parent=5 // pred_region
        %s930 = ssub.s32 %s74, 1
        // Predicated region
        $region137: #{transformer3d_forward.3} parent=135 // pred_check
          %p931 = pneg %p586
        $region138: #{transformer3d_forward.3} parent=135 // pred_check_branch
          %933 = sbr.rel (%p931) target = $region140
        $region139: #{transformer3d_forward.3} parent=135 // pred_region
          %934 = dma.done [#allocation5], 16
        $region140: #{transformer3d_forward.3} parent=135 // pred_fallthru
          _
        // Predicated region
        $region141: #{transformer3d_forward.3} parent=135 // pred_check
          %p935 = pneg %p628
        $region142: #{transformer3d_forward.3} parent=135 // pred_check_branch
          %937 = sbr.rel (%p935) target = $region144
        $region143: #{transformer3d_forward.3} parent=135 // pred_region
          %938 = dma.done [#allocation8], 16
        $region144: #{transformer3d_forward.3} parent=135 // pred_fallthru
          _
        // Predicated region
        $region145: #{transformer3d_forward.3} parent=135 // pred_check
          %p939 = pneg %p649
        $region146: #{transformer3d_forward.3} parent=135 // pred_check_branch
          %941 = sbr.rel (%p939) target = $region148
        $region147: #{transformer3d_forward.3} parent=135 // pred_region
          %942 = dma.done [#allocation8], 16
        $region148: #{transformer3d_forward.3} parent=135 // pred_fallthru
          _
        // Predicated region
        $region149: #{transformer3d_forward.3} parent=135 // pred_check
          %p943 = pneg %p670
        $region150: #{transformer3d_forward.3} parent=135 // pred_check_branch
          %945 = sbr.rel (%p943) target = $region152
        $region151: #{transformer3d_forward.3} parent=135 // pred_region
          %946 = dma.done [#allocation11], 16
        $region152: #{transformer3d_forward.3} parent=135 // pred_fallthru
          _
        %p947 = scmp.lt.s32.totalorder %s83, 1
        %s948 = scalar_select %p947, %s83, 1
        %s949 = smul.addr %s948, 2
        %s950 = smul.addr %s949, 8
        %s951 = scalar_lea.vmem %s1, %s950
        %p952 = pneg %p112
        %p953 = pneg %p109
        %p954 = scmp.lt.s32.totalorder %s83, 1
        %s955 = scalar_select %p954, %s83, 1
        %s956 = smul.addr %s955, 2
        %s957 = smul.addr %s956, 8
        %s958 = scalar_lea.vmem %s3, %s957
        %p959 = pneg %p138
        %p960 = pneg %p135
        %p961 = scmp.lt.s32.totalorder %s83, 1
        %s962 = scalar_select %p961, %s83, 1
        %p963 = scmp.lt.s32.totalorder %s84, 1
        %s964 = scalar_select %p963, %s84, 1
        %s965 = smul.addr %s962, 2
        %s966 = sadd.s32 %s964, %s965
        %s967 = smul.addr %s966, 8
        %s968 = scalar_lea.vmem %s5, %s967
        %p969 = pneg %p166
        %p970 = pneg %p163
        %p971 = pneg %p187
        %p972 = pneg %p184
        %p973 = pneg %p208
        %p974 = pneg %p205
        %p975 = pneg %p229
        %p976 = pneg %p226
        %p977 = pneg %p250
        %p978 = pneg %p247
        %p979 = pneg %p271
        %p980 = pneg %p268
        %p981 = pneg %p292
        %p982 = pneg %p289
        %p983 = pneg %p313
        %p984 = pneg %p310
        %p985 = pneg %p334
        %p986 = pneg %p331
        %p987 = pneg %p355
        %p988 = pneg %p352
        %p989 = pneg %p376
        %p990 = pneg %p373
        %p991 = pneg %p397
        %p992 = pneg %p394
        %p993 = pneg %p418
        %p994 = pneg %p415
        %p995 = pneg %p439
        %p996 = pneg %p436
        %p997 = pneg %p460
        %p998 = pneg %p457
        %p999 = pneg %p481
        %p1000 = pneg %p478
        %p1001 = pneg %p502
        %p1002 = pneg %p499
        %p1003 = pneg %p523
        %p1004 = pneg %p520
        %p1005 = pneg %p544
        %p1006 = pneg %p541
        %p1007 = pneg %p565
        %p1008 = pneg %p562
        %p1009 = pneg %p586
        %p1010 = pneg %p583
        %p1011 = pneg %p607
        %p1012 = pneg %p604
        %p1013 = pneg %p628
        %p1014 = pneg %p625
        %p1015 = pneg %p649
        %p1016 = pneg %p646
        %p1017 = pneg %p670
        %p1018 = pneg %p667
        %p1019 = pneg %p691
        %p1020 = pneg %p688
        %p1021 = pneg %p712
        %p1022 = pneg %p709
        %p1023 = pneg %p740
        %p1024 = pneg %p737
        %s1025 = sand.u32 %s727, 1
        %s1026 = scalar_lea.sflag [#allocation6], %s1025
        %s1027 = sand.u32 %s727, 1
        %s1028 = smul.addr %s1027, 8
        %s1029 = scalar_lea.vmem [#allocation12], %s1028
        %p1030 = pneg %p768
        %p1031 = pneg %p765
        %p1032 = scmp.lt.s32.totalorder %s83, 1
        %s1033 = scalar_select %p1032, %s83, 1
        %p1034 = scmp.lt.s32.totalorder %s84, 1
        %s1035 = scalar_select %p1034, %s84, 1
        %s1036 = smul.addr %s1033, 2
        %s1037 = sadd.s32 %s1035, %s1036
        %s1038 = smul.addr %s1037, 8
        %s1039 = scalar_lea.vmem %s61, %s1038
        %p1040 = scmp.lt.s32.totalorder %s83, 1
        %s1041 = scalar_select %p1040, %s83, 1
        %s1042 = smul.addr %s1041, 2
        %s1043 = smul.addr %s1042, 8
        %s1044 = scalar_lea.vmem %s1, %s1043
        %p1045 = scmp.lt.s32.totalorder %s83, 1
        %s1046 = scalar_select %p1045, %s83, 1
        %s1047 = smul.addr %s1046, 2
        %s1048 = smul.addr %s1047, 8
        %s1049 = scalar_lea.vmem %s3, %s1048
        %p1050 = scmp.lt.s32.totalorder %s83, 1
        %s1051 = scalar_select %p1050, %s83, 1
        %p1052 = scmp.lt.s32.totalorder %s84, 1
        %s1053 = scalar_select %p1052, %s84, 1
        %s1054 = smul.addr %s1051, 2
        %s1055 = sadd.s32 %s1053, %s1054
        %s1056 = smul.addr %s1055, 8
        %s1057 = scalar_lea.vmem %s5, %s1056
        %p1058 = scmp.lt.s32.totalorder %s83, 1
        %s1059 = scalar_select %p1058, %s83, 1
        %p1060 = scmp.lt.s32.totalorder %s84, 1
        %s1061 = scalar_select %p1060, %s84, 1
        %s1062 = smul.addr %s1059, 2
        %s1063 = sadd.s32 %s1061, %s1062
        %s1064 = smul.addr %s1063, 8
        %s1065 = scalar_lea.vmem %s61, %s1064
        %p1066 = scmp.eq.s32.totalorder %s84, 0
        // Predicated region
        $region153: #{transformer3d_forward.3} parent=135 // pred_check
          %p1067 = pneg %p1066
        $region154: #{transformer3d_forward.3} parent=135 // pred_check_branch
          %1069 = sbr.rel (%p1067) target = $region156
        $region155: #{transformer3d_forward.3} parent=135 // pred_region
          %v1070 = vld [vmem:[%s1044] sm:$0xff]
          %v1071 = vld [vmem:[%s1044 + $0x8] sm:$0xff]
          %v1072 = vld [vmem:[%s1049] sm:$0xff]
          %v1073 = vld [vmem:[%s1049 + $0x8] sm:$0xff]
          %v1074 = vld [vmem:[%s11] sm:$0xff]
          %v1075 = vld [vmem:[%s11 + $0x8] sm:$0xff]
          %v1076 = vld [vmem:[%s11 + $0x10] sm:$0xff]
          %v1077 = vld [vmem:[%s11 + $0x18] sm:$0xff]
          %v1078 = vld [vmem:[%s13] sm:$0x1]
          %v1080 = vlaneseq
          %v1081 = vshrl.u32 %v1080, 7
          %v1082 = vsub.s32 0, %v1081
          %v1083 = vrot.slane %v1078, %v1082
          %vm1085 = vcmask 261120
          %v1087 = vsel %vm1085, %v1070, 0
          %v1090 = vsel %vm1085, %v1071, 0
          %1092 = vmatprep.subr.mxu0 0.0
          %1093 = vmatpush1.msra.mxu0 %v1074
          %1094 = vmatprep.subr.mxu0 0.0
          %1095 = vmatpush1.msra.mxu0 %v1075
          %1096 = vmatprep.subr.mxu0 0.0
          %1097 = vmatpush1.msra.mxu0 %v1076
          %1098 = vmatprep.subr.mxu0 0.0
          %1099 = vmatpush1.msra.mxu0 %v1077
          %1100 = vmatprep.subr.mxu0 0.0
          %1101 = vmatpush1.msra.mxu0 0.0
          %1102 = vmatprep.subr.mxu0 0.0
          %1103 = vmatpush1.msra.mxu0 0.0
          %1104 = vmatprep.subr.mxu0 0.0
          %1105 = vmatpush1.msra.mxu0 0.0
          %1106 = vmatprep.subr.mxu0 0.0
          %1107 = vmatpush1.msra.mxu0 0.0
          %1108 = vmatprep.subr.mxu0 0.0
          %1109 = vmatpush1.msra.mxu0 0.0
          %1110 = vmatprep.subr.mxu0 0.0
          %1111 = vmatpush1.msra.mxu0 0.0
          %1112 = vmatprep.subr.mxu0 0.0
          %1113 = vmatpush1.msra.mxu0 0.0
          %1114 = vmatprep.subr.mxu0 0.0
          %1115 = vmatpush1.msra.mxu0 0.0
          %1116 = vmatprep.subr.mxu0 0.0
          %1117 = vmatpush1.msra.mxu0 0.0
          %1118 = vmatprep.subr.mxu0 0.0
          %1119 = vmatpush1.msra.mxu0 0.0
          %1120 = vmatprep.subr.mxu0 0.0
          %1121 = vmatpush1.msra.mxu0 0.0
          %1122 = vmatprep.subr.mxu0 0.0
          %1123 = vmatpush1.msra.mxu0 0.0
          %1124 = vmatprep.subr.mxu0 0.0
          %1125 = vmatpush1.msra.mxu0 0.0
          %1126 = vmatprep.subr.mxu0 0.0
          %1127 = vmatpush1.msra.mxu0 0.0
          %1128 = vmatprep.subr.mxu0 0.0
          %1129 = vmatpush1.msra.mxu0 0.0
          %1130 = vmatprep.subr.mxu0 0.0
          %1131 = vmatpush1.msra.mxu0 0.0
          %1132 = vmatprep.subr.mxu0 0.0
          %1133 = vmatpush1.msra.mxu0 0.0
          %1134 = vmatprep.subr.mxu0 0.0
          %1135 = vmatpush1.msra.mxu0 0.0
          %1136 = vmatprep.subr.mxu0 0.0
          %1137 = vmatpush1.msra.mxu0 0.0
          %1138 = vmatprep.subr.mxu0 0.0
          %1139 = vmatpush1.msra.mxu0 0.0
          %1140 = vmatprep.subr.mxu0 0.0
          %1141 = vmatpush1.msra.mxu0 0.0
          %1142 = vmatprep.subr.mxu0 0.0
          %1143 = vmatpush1.msra.mxu0 0.0
          %1144 = vmatprep.subr.mxu0 0.0
          %1145 = vmatpush1.msra.mxu0 0.0
          %1146 = vmatprep.subr.mxu0 0.0
          %1147 = vmatpush1.msra.mxu0 0.0
          %1148 = vmatprep.subr.mxu0 0.0
          %1149 = vmatpush1.msra.mxu0 0.0
          %1150 = vmatprep.subr.mxu0 0.0
          %1151 = vmatpush1.msra.mxu0 0.0
          %1152 = vmatprep.subr.mxu0 0.0
          %1153 = vmatpush1.msra.mxu0 0.0
          %1154 = vmatprep.subr.mxu0 0.0
          %1155 = vmatpush1.msra.mxu0 0.0
          %1156 = vmatprep.mubr.f32.mxu0 0.0
          %1157 = vmatmul.mubr.f32.gmra.mrb[0].mxu0 %v1087
          %v1158 = vpop.f32.mrb[0].mxu0
          %v1159 = vadd.f32 %v1083, %v1158
          %v1160 = vpop.f32.mrb[0].mxu0
          %1161 = vmatprep.mubr.f32.mxu0 0.0
          %1162 = vmatmul.mubr.f32.gmra.mrb[0].mxu0 %v1090
          %v1163 = vpop.f32.mrb[0].mxu0
          %v1164 = vadd.f32 %v1083, %v1163
          %v1165 = vpop.f32.mrb[0].mxu0
          %1166 = vdwg.mxu0
          %vm1167 = vcmask 523264
          %1168 = vst.msk [vmem:[#allocation2] sm:$0xff] %vm1167, %v1159
          %1169 = vst.msk [vmem:[#allocation2 + $0x8] sm:$0xff] %vm1167, %v1164
          %v1170 = vld [vmem:[%s31] sm:$0xff]
          %v1171 = vld [vmem:[%s31 + $0x8] sm:$0xff]
          %v1172 = vld [vmem:[%s31 + $0x10] sm:$0xff]
          %v1173 = vld [vmem:[%s31 + $0x18] sm:$0xff]
          %v1174 = vld [vmem:[%s33] sm:$0x1]
          %v1176 = vlaneseq
          %v1177 = vshrl.u32 %v1176, 7
          %v1178 = vsub.s32 0, %v1177
          %v1179 = vrot.slane %v1174, %v1178
          %v1182 = vsel %vm1085, %v1072, 0
          %v1185 = vsel %vm1085, %v1073, 0
          %1187 = vmatprep.subr.mxu0 0.0
          %1188 = vmatpush1.msra.mxu0 %v1170
          %1189 = vmatprep.subr.mxu0 0.0
          %1190 = vmatpush1.msra.mxu0 %v1171
          %1191 = vmatprep.subr.mxu0 0.0
          %1192 = vmatpush1.msra.mxu0 %v1172
          %1193 = vmatprep.subr.mxu0 0.0
          %1194 = vmatpush1.msra.mxu0 %v1173
          %1195 = vmatprep.subr.mxu0 0.0
          %1196 = vmatpush1.msra.mxu0 0.0
          %1197 = vmatprep.subr.mxu0 0.0
          %1198 = vmatpush1.msra.mxu0 0.0
          %1199 = vmatprep.subr.mxu0 0.0
          %1200 = vmatpush1.msra.mxu0 0.0
          %1201 = vmatprep.subr.mxu0 0.0
          %1202 = vmatpush1.msra.mxu0 0.0
          %1203 = vmatprep.subr.mxu0 0.0
          %1204 = vmatpush1.msra.mxu0 0.0
          %1205 = vmatprep.subr.mxu0 0.0
          %1206 = vmatpush1.msra.mxu0 0.0
          %1207 = vmatprep.subr.mxu0 0.0
          %1208 = vmatpush1.msra.mxu0 0.0
          %1209 = vmatprep.subr.mxu0 0.0
          %1210 = vmatpush1.msra.mxu0 0.0
          %1211 = vmatprep.subr.mxu0 0.0
          %1212 = vmatpush1.msra.mxu0 0.0
          %1213 = vmatprep.subr.mxu0 0.0
          %1214 = vmatpush1.msra.mxu0 0.0
          %1215 = vmatprep.subr.mxu0 0.0
          %1216 = vmatpush1.msra.mxu0 0.0
          %1217 = vmatprep.subr.mxu0 0.0
          %1218 = vmatpush1.msra.mxu0 0.0
          %1219 = vmatprep.subr.mxu0 0.0
          %1220 = vmatpush1.msra.mxu0 0.0
          %1221 = vmatprep.subr.mxu0 0.0
          %1222 = vmatpush1.msra.mxu0 0.0
          %1223 = vmatprep.subr.mxu0 0.0
          %1224 = vmatpush1.msra.mxu0 0.0
          %1225 = vmatprep.subr.mxu0 0.0
          %1226 = vmatpush1.msra.mxu0 0.0
          %1227 = vmatprep.subr.mxu0 0.0
          %1228 = vmatpush1.msra.mxu0 0.0
          %1229 = vmatprep.subr.mxu0 0.0
          %1230 = vmatpush1.msra.mxu0 0.0
          %1231 = vmatprep.subr.mxu0 0.0
          %1232 = vmatpush1.msra.mxu0 0.0
          %1233 = vmatprep.subr.mxu0 0.0
          %1234 = vmatpush1.msra.mxu0 0.0
          %1235 = vmatprep.subr.mxu0 0.0
          %1236 = vmatpush1.msra.mxu0 0.0
          %1237 = vmatprep.subr.mxu0 0.0
          %1238 = vmatpush1.msra.mxu0 0.0
          %1239 = vmatprep.subr.mxu0 0.0
          %1240 = vmatpush1.msra.mxu0 0.0
          %1241 = vmatprep.subr.mxu0 0.0
          %1242 = vmatpush1.msra.mxu0 0.0
          %1243 = vmatprep.subr.mxu0 0.0
          %1244 = vmatpush1.msra.mxu0 0.0
          %1245 = vmatprep.subr.mxu0 0.0
          %1246 = vmatpush1.msra.mxu0 0.0
          %1247 = vmatprep.subr.mxu0 0.0
          %1248 = vmatpush1.msra.mxu0 0.0
          %1249 = vmatprep.subr.mxu0 0.0
          %1250 = vmatpush1.msra.mxu0 0.0
          %1251 = vmatprep.mubr.f32.mxu0 0.0
          %1252 = vmatmul.mubr.f32.gmra.mrb[0].mxu0 %v1182
          %v1253 = vpop.f32.mrb[0].mxu0
          %v1254 = vadd.f32 %v1179, %v1253
          %v1255 = vpop.f32.mrb[0].mxu0
          %1256 = vmatprep.mubr.f32.mxu0 0.0
          %1257 = vmatmul.mubr.f32.gmra.mrb[0].mxu0 %v1185
          %v1258 = vpop.f32.mrb[0].mxu0
          %v1259 = vadd.f32 %v1179, %v1258
          %v1260 = vpop.f32.mrb[0].mxu0
          %1261 = vdwg.mxu0
          %1262 = vst.msk [vmem:[#allocation3] sm:$0xff] %vm1167, %v1254
          %1263 = vst.msk [vmem:[#allocation3 + $0x8] sm:$0xff] %vm1167, %v1259
        $region156: #{transformer3d_forward.3} parent=135 // pred_fallthru
          _
        %s1264 = smul.u32 %s84, 8
        %s1265 = scalar_lea.vmem %s1044, %s1264
        %v1266 = vld [vmem:[%s1265] sm:$0xff]
        %v1267 = vld [vmem:[%s7] sm:$0xff]
        %v1268 = vld [vmem:[%s7 + $0x8] sm:$0xff]
        %v1269 = vld [vmem:[%s7 + $0x10] sm:$0xff]
        %v1270 = vld [vmem:[%s7 + $0x18] sm:$0xff]
        %v1271 = vld [vmem:[%s9] sm:$0x1]
        %v1273 = vlaneseq
        %v1274 = vshrl.u32 %v1273, 7
        %v1275 = vsub.s32 0, %v1274
        %v1276 = vrot.slane %v1271, %v1275
        %vm1278 = vcmask 261120
        %v1280 = vsel %vm1278, %v1266, 0
        %1282 = vmatprep.subr.mxu0 0.0
        %1283 = vmatpush1.msra.mxu0 %v1267
        %1284 = vmatprep.subr.mxu0 0.0
        %1285 = vmatpush1.msra.mxu0 %v1268
        %1286 = vmatprep.subr.mxu0 0.0
        %1287 = vmatpush1.msra.mxu0 %v1269
        %1288 = vmatprep.subr.mxu0 0.0
        %1289 = vmatpush1.msra.mxu0 %v1270
        %1290 = vmatprep.subr.mxu0 0.0
        %1291 = vmatpush1.msra.mxu0 0.0
        %1292 = vmatprep.subr.mxu0 0.0
        %1293 = vmatpush1.msra.mxu0 0.0
        %1294 = vmatprep.subr.mxu0 0.0
        %1295 = vmatpush1.msra.mxu0 0.0
        %1296 = vmatprep.subr.mxu0 0.0
        %1297 = vmatpush1.msra.mxu0 0.0
        %1298 = vmatprep.subr.mxu0 0.0
        %1299 = vmatpush1.msra.mxu0 0.0
        %1300 = vmatprep.subr.mxu0 0.0
        %1301 = vmatpush1.msra.mxu0 0.0
        %1302 = vmatprep.subr.mxu0 0.0
        %1303 = vmatpush1.msra.mxu0 0.0
        %1304 = vmatprep.subr.mxu0 0.0
        %1305 = vmatpush1.msra.mxu0 0.0
        %1306 = vmatprep.subr.mxu0 0.0
        %1307 = vmatpush1.msra.mxu0 0.0
        %1308 = vmatprep.subr.mxu0 0.0
        %1309 = vmatpush1.msra.mxu0 0.0
        %1310 = vmatprep.subr.mxu0 0.0
        %1311 = vmatpush1.msra.mxu0 0.0
        %1312 = vmatprep.subr.mxu0 0.0
        %1313 = vmatpush1.msra.mxu0 0.0
        %1314 = vmatprep.subr.mxu0 0.0
        %1315 = vmatpush1.msra.mxu0 0.0
        %1316 = vmatprep.subr.mxu0 0.0
        %1317 = vmatpush1.msra.mxu0 0.0
        %1318 = vmatprep.subr.mxu0 0.0
        %1319 = vmatpush1.msra.mxu0 0.0
        %1320 = vmatprep.subr.mxu0 0.0
        %1321 = vmatpush1.msra.mxu0 0.0
        %1322 = vmatprep.subr.mxu0 0.0
        %1323 = vmatpush1.msra.mxu0 0.0
        %1324 = vmatprep.subr.mxu0 0.0
        %1325 = vmatpush1.msra.mxu0 0.0
        %1326 = vmatprep.subr.mxu0 0.0
        %1327 = vmatpush1.msra.mxu0 0.0
        %1328 = vmatprep.subr.mxu0 0.0
        %1329 = vmatpush1.msra.mxu0 0.0
        %1330 = vmatprep.subr.mxu0 0.0
        %1331 = vmatpush1.msra.mxu0 0.0
        %1332 = vmatprep.subr.mxu0 0.0
        %1333 = vmatpush1.msra.mxu0 0.0
        %1334 = vmatprep.subr.mxu0 0.0
        %1335 = vmatpush1.msra.mxu0 0.0
        %1336 = vmatprep.subr.mxu0 0.0
        %1337 = vmatpush1.msra.mxu0 0.0
        %1338 = vmatprep.subr.mxu0 0.0
        %1339 = vmatpush1.msra.mxu0 0.0
        %1340 = vmatprep.subr.mxu0 0.0
        %1341 = vmatpush1.msra.mxu0 0.0
        %1342 = vmatprep.subr.mxu0 0.0
        %1343 = vmatpush1.msra.mxu0 0.0
        %1344 = vmatprep.subr.mxu0 0.0
        %1345 = vmatpush1.msra.mxu0 0.0
        %1346 = vmatprep.mubr.f32.mxu0 0.0
        %1347 = vmatmul.mubr.f32.gmra.mrb[0].mxu0 %v1280
        %v1348 = vpop.f32.mrb[0].mxu0
        %v1349 = vadd.f32 %v1276, %v1348
        %v1350 = vpop.f32.mrb[0].mxu0
        %1351 = vdwg.mxu0
        %v1352 = vld [vmem:[#allocation2] sm:$0xff]
        %v1353 = vld [vmem:[#allocation2 + $0x8] sm:$0xff]
        %v1354 = vld [vmem:[%s15] sm:$0xff]
        %v1355 = vld [vmem:[%s15 + $0x8] sm:$0xff]
        %v1356 = vld [vmem:[%s15 + $0x10] sm:$0xff]
        %v1357 = vld [vmem:[%s15 + $0x18] sm:$0xff]
        %v1358 = vld [vmem:[%s17] sm:$0x1]
        %v1359 = vmul.f32 %v1349, 0.35355338
        %vm1360 = vcmask 64512
        %v1362 = vsel %vm1360, %v1359, 0
        %v1365 = vsel %vm1360, %v1352, 0
        %v1368 = vsel %vm1360, %v1353, 0
        %1370 = vmatprep.subr.mxu0 0.0
        %1371 = vmatpush1.xpose.msra.mxu0 %v1365
        %1372 = vmatprep.subr.mxu0 0.0
        %1373 = vmatpush1.xpose.msra.mxu0 %v1368
        %1374 = vmatprep.subr.mxu0 0.0
        %1375 = vmatpush1.xpose.msra.mxu0 0.0
        %1376 = vmatprep.subr.mxu0 0.0
        %1377 = vmatpush1.xpose.msra.mxu0 0.0
        %1378 = vmatprep.subr.mxu0 0.0
        %1379 = vmatpush1.xpose.msra.mxu0 0.0
        %1380 = vmatprep.subr.mxu0 0.0
        %1381 = vmatpush1.xpose.msra.mxu0 0.0
        %1382 = vmatprep.subr.mxu0 0.0
        %1383 = vmatpush1.xpose.msra.mxu0 0.0
        %1384 = vmatprep.subr.mxu0 0.0
        %1385 = vmatpush1.xpose.msra.mxu0 0.0
        %1386 = vmatprep.subr.mxu0 0.0
        %1387 = vmatpush1.xpose.msra.mxu0 0.0
        %1388 = vmatprep.subr.mxu0 0.0
        %1389 = vmatpush1.xpose.msra.mxu0 0.0
        %1390 = vmatprep.subr.mxu0 0.0
        %1391 = vmatpush1.xpose.msra.mxu0 0.0
        %1392 = vmatprep.subr.mxu0 0.0
        %1393 = vmatpush1.xpose.msra.mxu0 0.0
        %1394 = vmatprep.subr.mxu0 0.0
        %1395 = vmatpush1.xpose.msra.mxu0 0.0
        %1396 = vmatprep.subr.mxu0 0.0
        %1397 = vmatpush1.xpose.msra.mxu0 0.0
        %1398 = vmatprep.subr.mxu0 0.0
        %1399 = vmatpush1.xpose.msra.mxu0 0.0
        %1400 = vmatprep.subr.mxu0 0.0
        %1401 = vmatpush1.xpose.msra.mxu0 0.0
        %1402 = vmatprep.subr.mxu0 0.0
        %1403 = vmatpush1.xpose.msra.mxu0 0.0
        %1404 = vmatprep.subr.mxu0 0.0
        %1405 = vmatpush1.xpose.msra.mxu0 0.0
        %1406 = vmatprep.subr.mxu0 0.0
        %1407 = vmatpush1.xpose.msra.mxu0 0.0
        %1408 = vmatprep.subr.mxu0 0.0
        %1409 = vmatpush1.xpose.msra.mxu0 0.0
        %1410 = vmatprep.subr.mxu0 0.0
        %1411 = vmatpush1.xpose.msra.mxu0 0.0
        %1412 = vmatprep.subr.mxu0 0.0
        %1413 = vmatpush1.xpose.msra.mxu0 0.0
        %1414 = vmatprep.subr.mxu0 0.0
        %1415 = vmatpush1.xpose.msra.mxu0 0.0
        %1416 = vmatprep.subr.mxu0 0.0
        %1417 = vmatpush1.xpose.msra.mxu0 0.0
        %1418 = vmatprep.subr.mxu0 0.0
        %1419 = vmatpush1.xpose.msra.mxu0 0.0
        %1420 = vmatprep.subr.mxu0 0.0
        %1421 = vmatpush1.xpose.msra.mxu0 0.0
        %1422 = vmatprep.subr.mxu0 0.0
        %1423 = vmatpush1.xpose.msra.mxu0 0.0
        %1424 = vmatprep.subr.mxu0 0.0
        %1425 = vmatpush1.xpose.msra.mxu0 0.0
        %1426 = vmatprep.subr.mxu0 0.0
        %1427 = vmatpush1.xpose.msra.mxu0 0.0
        %1428 = vmatprep.subr.mxu0 0.0
        %1429 = vmatpush1.xpose.msra.mxu0 0.0
        %1430 = vmatprep.subr.mxu0 0.0
        %1431 = vmatpush1.xpose.msra.mxu0 0.0
        %1432 = vmatprep.subr.mxu0 0.0
        %1433 = vmatpush1.xpose.msra.mxu0 0.0
        %1434 = vmatprep.mubr.f32.mxu0 0.0
        %1435 = vmatmul.mubr.f32.gmra.mrb[0].mxu0 %v1362
        %v1436 = vpop.f32.mrb[0].mxu0
        %v1437 = vadd.f32 0.0, %v1436
        %v1438 = vpop.f32.mrb[0].mxu0
        %1439 = vdwg.mxu0
        %vm1440 = vcmask 130048
        %v1441 = vsel %vm1440, %v1437, -inf
        %1442 = vmax.xlane.f32.xlu0 %v1441
        %v1443 = vpop.xlane.xlu0 %1442
        %v1444 = vsub.f32 %v1437, %v1443
        %v1445 = vmul.f32 %v1444, 1.442695
        %v1446 = vpow.pop %v1445
        %v1447 = vsel %vm1440, %v1446, 0.0
        %1448 = vadd.xlane.f32.xlu0 %v1447
        %v1449 = vpop.xlane.xlu0 %1448
        %1450 = vrot.lane.b32.xlu0 %v1352, 96
        %v1451 = vpop.permute.xlu0 %1450
        %1452 = vrot.lane.b32.xlu0 %v1353, 96
        %v1453 = vpop.permute.xlu0 %1452
        %v1457 = vsel %vm1440, %v1446, 0
        %1459 = vmatprep.subr.mxu0 0.0
        %1460 = vmatpush1.msra.mxu0 %v1451
        %1461 = vmatprep.subr.mxu0 0.0
        %1462 = vmatpush1.msra.mxu0 %v1453
        %1463 = vmatprep.subr.mxu0 0.0
        %1464 = vmatpush1.msra.mxu0 0.0
        %1465 = vmatprep.subr.mxu0 0.0
        %1466 = vmatpush1.msra.mxu0 0.0
        %1467 = vmatprep.subr.mxu0 0.0
        %1468 = vmatpush1.msra.mxu0 0.0
        %1469 = vmatprep.subr.mxu0 0.0
        %1470 = vmatpush1.msra.mxu0 0.0
        %1471 = vmatprep.subr.mxu0 0.0
        %1472 = vmatpush1.msra.mxu0 0.0
        %1473 = vmatprep.subr.mxu0 0.0
        %1474 = vmatpush1.msra.mxu0 0.0
        %1475 = vmatprep.subr.mxu0 0.0
        %1476 = vmatpush1.msra.mxu0 0.0
        %1477 = vmatprep.subr.mxu0 0.0
        %1478 = vmatpush1.msra.mxu0 0.0
        %1479 = vmatprep.subr.mxu0 0.0
        %1480 = vmatpush1.msra.mxu0 0.0
        %1481 = vmatprep.subr.mxu0 0.0
        %1482 = vmatpush1.msra.mxu0 0.0
        %1483 = vmatprep.subr.mxu0 0.0
        %1484 = vmatpush1.msra.mxu0 0.0
        %1485 = vmatprep.subr.mxu0 0.0
        %1486 = vmatpush1.msra.mxu0 0.0
        %1487 = vmatprep.subr.mxu0 0.0
        %1488 = vmatpush1.msra.mxu0 0.0
        %1489 = vmatprep.subr.mxu0 0.0
        %1490 = vmatpush1.msra.mxu0 0.0
        %1491 = vmatprep.subr.mxu0 0.0
        %1492 = vmatpush1.msra.mxu0 0.0
        %1493 = vmatprep.subr.mxu0 0.0
        %1494 = vmatpush1.msra.mxu0 0.0
        %1495 = vmatprep.subr.mxu0 0.0
        %1496 = vmatpush1.msra.mxu0 0.0
        %1497 = vmatprep.subr.mxu0 0.0
        %1498 = vmatpush1.msra.mxu0 0.0
        %1499 = vmatprep.subr.mxu0 0.0
        %1500 = vmatpush1.msra.mxu0 0.0
        %1501 = vmatprep.subr.mxu0 0.0
        %1502 = vmatpush1.msra.mxu0 0.0
        %1503 = vmatprep.subr.mxu0 0.0
        %1504 = vmatpush1.msra.mxu0 0.0
        %1505 = vmatprep.subr.mxu0 0.0
        %1506 = vmatpush1.msra.mxu0 0.0
        %1507 = vmatprep.subr.mxu0 0.0
        %1508 = vmatpush1.msra.mxu0 0.0
        %1509 = vmatprep.subr.mxu0 0.0
        %1510 = vmatpush1.msra.mxu0 0.0
        %1511 = vmatprep.subr.mxu0 0.0
        %1512 = vmatpush1.msra.mxu0 0.0
        %1513 = vmatprep.subr.mxu0 0.0
        %1514 = vmatpush1.msra.mxu0 0.0
        %1515 = vmatprep.subr.mxu0 0.0
        %1516 = vmatpush1.msra.mxu0 0.0
        %1517 = vmatprep.subr.mxu0 0.0
        %1518 = vmatpush1.msra.mxu0 0.0
        %1519 = vmatprep.subr.mxu0 0.0
        %1520 = vmatpush1.msra.mxu0 0.0
        %1521 = vmatprep.subr.mxu0 0.0
        %1522 = vmatpush1.msra.mxu0 0.0
        %1523 = vmatprep.mubr.f32.mxu0 0.0
        %1524 = vmatmul.mubr.f32.gmra.mrb[0].mxu0 %v1457
        %v1525 = vpop.f32.mrb[0].mxu0
        %v1526 = vadd.f32 0.0, %v1525
        %v1527 = vpop.f32.mrb[0].mxu0
        %1528 = vdwg.mxu0
        %v1529 = vrcp.pop %v1449
        %v1530 = vmul.f32 %v1526, %v1529
        %1531 = vrot.lane.b32.xlu0 %v1359, 120
        %v1532 = vpop.permute.xlu0 %1531
        %1533 = vrot.lane.b32.xlu0 %v1352, 120
        %v1534 = vpop.permute.xlu0 %1533
        %1535 = vrot.lane.b32.xlu0 %v1353, 120
        %v1536 = vpop.permute.xlu0 %1535
        %v1537 = vsel %vm1360, %v1532, 0
        %v1539 = vsel %vm1360, %v1534, 0
        %v1541 = vsel %vm1360, %v1536, 0
        %1543 = vmatprep.subr.mxu0 0.0
        %1544 = vmatpush1.xpose.msra.mxu0 %v1539
        %1545 = vmatprep.subr.mxu0 0.0
        %1546 = vmatpush1.xpose.msra.mxu0 %v1541
        %1547 = vmatprep.subr.mxu0 0.0
        %1548 = vmatpush1.xpose.msra.mxu0 0.0
        %1549 = vmatprep.subr.mxu0 0.0
        %1550 = vmatpush1.xpose.msra.mxu0 0.0
        %1551 = vmatprep.subr.mxu0 0.0
        %1552 = vmatpush1.xpose.msra.mxu0 0.0
        %1553 = vmatprep.subr.mxu0 0.0
        %1554 = vmatpush1.xpose.msra.mxu0 0.0
        %1555 = vmatprep.subr.mxu0 0.0
        %1556 = vmatpush1.xpose.msra.mxu0 0.0
        %1557 = vmatprep.subr.mxu0 0.0
        %1558 = vmatpush1.xpose.msra.mxu0 0.0
        %1559 = vmatprep.subr.mxu0 0.0
        %1560 = vmatpush1.xpose.msra.mxu0 0.0
        %1561 = vmatprep.subr.mxu0 0.0
        %1562 = vmatpush1.xpose.msra.mxu0 0.0
        %1563 = vmatprep.subr.mxu0 0.0
        %1564 = vmatpush1.xpose.msra.mxu0 0.0
        %1565 = vmatprep.subr.mxu0 0.0
        %1566 = vmatpush1.xpose.msra.mxu0 0.0
        %1567 = vmatprep.subr.mxu0 0.0
        %1568 = vmatpush1.xpose.msra.mxu0 0.0
        %1569 = vmatprep.subr.mxu0 0.0
        %1570 = vmatpush1.xpose.msra.mxu0 0.0
        %1571 = vmatprep.subr.mxu0 0.0
        %1572 = vmatpush1.xpose.msra.mxu0 0.0
        %1573 = vmatprep.subr.mxu0 0.0
        %1574 = vmatpush1.xpose.msra.mxu0 0.0
        %1575 = vmatprep.subr.mxu0 0.0
        %1576 = vmatpush1.xpose.msra.mxu0 0.0
        %1577 = vmatprep.subr.mxu0 0.0
        %1578 = vmatpush1.xpose.msra.mxu0 0.0
        %1579 = vmatprep.subr.mxu0 0.0
        %1580 = vmatpush1.xpose.msra.mxu0 0.0
        %1581 = vmatprep.subr.mxu0 0.0
        %1582 = vmatpush1.xpose.msra.mxu0 0.0
        %1583 = vmatprep.subr.mxu0 0.0
        %1584 = vmatpush1.xpose.msra.mxu0 0.0
        %1585 = vmatprep.subr.mxu0 0.0
        %1586 = vmatpush1.xpose.msra.mxu0 0.0
        %1587 = vmatprep.subr.mxu0 0.0
        %1588 = vmatpush1.xpose.msra.mxu0 0.0
        %1589 = vmatprep.subr.mxu0 0.0
        %1590 = vmatpush1.xpose.msra.mxu0 0.0
        %1591 = vmatprep.subr.mxu0 0.0
        %1592 = vmatpush1.xpose.msra.mxu0 0.0
        %1593 = vmatprep.subr.mxu0 0.0
        %1594 = vmatpush1.xpose.msra.mxu0 0.0
        %1595 = vmatprep.subr.mxu0 0.0
        %1596 = vmatpush1.xpose.msra.mxu0 0.0
        %1597 = vmatprep.subr.mxu0 0.0
        %1598 = vmatpush1.xpose.msra.mxu0 0.0
        %1599 = vmatprep.subr.mxu0 0.0
        %1600 = vmatpush1.xpose.msra.mxu0 0.0
        %1601 = vmatprep.subr.mxu0 0.0
        %1602 = vmatpush1.xpose.msra.mxu0 0.0
        %1603 = vmatprep.subr.mxu0 0.0
        %1604 = vmatpush1.xpose.msra.mxu0 0.0
        %1605 = vmatprep.subr.mxu0 0.0
        %1606 = vmatpush1.xpose.msra.mxu0 0.0
        %1607 = vmatprep.mubr.f32.mxu0 0.0
        %1608 = vmatmul.mubr.f32.gmra.mrb[0].mxu0 %v1537
        %v1609 = vpop.f32.mrb[0].mxu0
        %v1610 = vadd.f32 0.0, %v1609
        %v1611 = vpop.f32.mrb[0].mxu0
        %1612 = vdwg.mxu0
        %v1613 = vsel %vm1440, %v1610, -inf
        %1614 = vmax.xlane.f32.xlu0 %v1613
        %v1615 = vpop.xlane.xlu0 %1614
        %v1616 = vsub.f32 %v1610, %v1615
        %v1617 = vmul.f32 %v1616, 1.442695
        %v1618 = vpow.pop %v1617
        %v1619 = vsel %vm1440, %v1618, 0.0
        %1620 = vadd.xlane.f32.xlu0 %v1619
        %v1621 = vpop.xlane.xlu0 %1620
        %1622 = vrot.lane.b32.xlu0 %v1352, 88
        %v1623 = vpop.permute.xlu0 %1622
        %1624 = vrot.lane.b32.xlu0 %v1353, 88
        %v1625 = vpop.permute.xlu0 %1624
        %v1629 = vsel %vm1440, %v1618, 0
        %1631 = vmatprep.subr.mxu0 0.0
        %1632 = vmatpush1.msra.mxu0 %v1623
        %1633 = vmatprep.subr.mxu0 0.0
        %1634 = vmatpush1.msra.mxu0 %v1625
        %1635 = vmatprep.subr.mxu0 0.0
        %1636 = vmatpush1.msra.mxu0 0.0
        %1637 = vmatprep.subr.mxu0 0.0
        %1638 = vmatpush1.msra.mxu0 0.0
        %1639 = vmatprep.subr.mxu0 0.0
        %1640 = vmatpush1.msra.mxu0 0.0
        %1641 = vmatprep.subr.mxu0 0.0
        %1642 = vmatpush1.msra.mxu0 0.0
        %1643 = vmatprep.subr.mxu0 0.0
        %1644 = vmatpush1.msra.mxu0 0.0
        %1645 = vmatprep.subr.mxu0 0.0
        %1646 = vmatpush1.msra.mxu0 0.0
        %1647 = vmatprep.subr.mxu0 0.0
        %1648 = vmatpush1.msra.mxu0 0.0
        %1649 = vmatprep.subr.mxu0 0.0
        %1650 = vmatpush1.msra.mxu0 0.0
        %1651 = vmatprep.subr.mxu0 0.0
        %1652 = vmatpush1.msra.mxu0 0.0
        %1653 = vmatprep.subr.mxu0 0.0
        %1654 = vmatpush1.msra.mxu0 0.0
        %1655 = vmatprep.subr.mxu0 0.0
        %1656 = vmatpush1.msra.mxu0 0.0
        %1657 = vmatprep.subr.mxu0 0.0
        %1658 = vmatpush1.msra.mxu0 0.0
        %1659 = vmatprep.subr.mxu0 0.0
        %1660 = vmatpush1.msra.mxu0 0.0
        %1661 = vmatprep.subr.mxu0 0.0
        %1662 = vmatpush1.msra.mxu0 0.0
        %1663 = vmatprep.subr.mxu0 0.0
        %1664 = vmatpush1.msra.mxu0 0.0
        %1665 = vmatprep.subr.mxu0 0.0
        %1666 = vmatpush1.msra.mxu0 0.0
        %1667 = vmatprep.subr.mxu0 0.0
        %1668 = vmatpush1.msra.mxu0 0.0
        %1669 = vmatprep.subr.mxu0 0.0
        %1670 = vmatpush1.msra.mxu0 0.0
        %1671 = vmatprep.subr.mxu0 0.0
        %1672 = vmatpush1.msra.mxu0 0.0
        %1673 = vmatprep.subr.mxu0 0.0
        %1674 = vmatpush1.msra.mxu0 0.0
        %1675 = vmatprep.subr.mxu0 0.0
        %1676 = vmatpush1.msra.mxu0 0.0
        %1677 = vmatprep.subr.mxu0 0.0
        %1678 = vmatpush1.msra.mxu0 0.0
        %1679 = vmatprep.subr.mxu0 0.0
        %1680 = vmatpush1.msra.mxu0 0.0
        %1681 = vmatprep.subr.mxu0 0.0
        %1682 = vmatpush1.msra.mxu0 0.0
        %1683 = vmatprep.subr.mxu0 0.0
        %1684 = vmatpush1.msra.mxu0 0.0
        %1685 = vmatprep.subr.mxu0 0.0
        %1686 = vmatpush1.msra.mxu0 0.0
        %1687 = vmatprep.subr.mxu0 0.0
        %1688 = vmatpush1.msra.mxu0 0.0
        %1689 = vmatprep.subr.mxu0 0.0
        %1690 = vmatpush1.msra.mxu0 0.0
        %1691 = vmatprep.subr.mxu0 0.0
        %1692 = vmatpush1.msra.mxu0 0.0
        %1693 = vmatprep.subr.mxu0 0.0
        %1694 = vmatpush1.msra.mxu0 0.0
        %1695 = vmatprep.mubr.f32.mxu0 0.0
        %1696 = vmatmul.mubr.f32.gmra.mrb[0].mxu0 %v1629
        %v1697 = vpop.f32.mrb[0].mxu0
        %v1698 = vadd.f32 0.0, %v1697
        %v1699 = vpop.f32.mrb[0].mxu0
        %1700 = vdwg.mxu0
        %v1701 = vrcp.pop %v1621
        %v1702 = vmul.f32 %v1698, %v1701
        %1703 = vrot.lane.b32.xlu0 %v1359, 112
        %v1704 = vpop.permute.xlu0 %1703
        %1705 = vrot.lane.b32.xlu0 %v1352, 112
        %v1706 = vpop.permute.xlu0 %1705
        %1707 = vrot.lane.b32.xlu0 %v1353, 112
        %v1708 = vpop.permute.xlu0 %1707
        %v1709 = vsel %vm1360, %v1704, 0
        %v1711 = vsel %vm1360, %v1706, 0
        %v1713 = vsel %vm1360, %v1708, 0
        %1715 = vmatprep.subr.mxu0 0.0
        %1716 = vmatpush1.xpose.msra.mxu0 %v1711
        %1717 = vmatprep.subr.mxu0 0.0
        %1718 = vmatpush1.xpose.msra.mxu0 %v1713
        %1719 = vmatprep.subr.mxu0 0.0
        %1720 = vmatpush1.xpose.msra.mxu0 0.0
        %1721 = vmatprep.subr.mxu0 0.0
        %1722 = vmatpush1.xpose.msra.mxu0 0.0
        %1723 = vmatprep.subr.mxu0 0.0
        %1724 = vmatpush1.xpose.msra.mxu0 0.0
        %1725 = vmatprep.subr.mxu0 0.0
        %1726 = vmatpush1.xpose.msra.mxu0 0.0
        %1727 = vmatprep.subr.mxu0 0.0
        %1728 = vmatpush1.xpose.msra.mxu0 0.0
        %1729 = vmatprep.subr.mxu0 0.0
        %1730 = vmatpush1.xpose.msra.mxu0 0.0
        %1731 = vmatprep.subr.mxu0 0.0
        %1732 = vmatpush1.xpose.msra.mxu0 0.0
        %1733 = vmatprep.subr.mxu0 0.0
        %1734 = vmatpush1.xpose.msra.mxu0 0.0
        %1735 = vmatprep.subr.mxu0 0.0
        %1736 = vmatpush1.xpose.msra.mxu0 0.0
        %1737 = vmatprep.subr.mxu0 0.0
        %1738 = vmatpush1.xpose.msra.mxu0 0.0
        %1739 = vmatprep.subr.mxu0 0.0
        %1740 = vmatpush1.xpose.msra.mxu0 0.0
        %1741 = vmatprep.subr.mxu0 0.0
        %1742 = vmatpush1.xpose.msra.mxu0 0.0
        %1743 = vmatprep.subr.mxu0 0.0
        %1744 = vmatpush1.xpose.msra.mxu0 0.0
        %1745 = vmatprep.subr.mxu0 0.0
        %1746 = vmatpush1.xpose.msra.mxu0 0.0
        %1747 = vmatprep.subr.mxu0 0.0
        %1748 = vmatpush1.xpose.msra.mxu0 0.0
        %1749 = vmatprep.subr.mxu0 0.0
        %1750 = vmatpush1.xpose.msra.mxu0 0.0
        %1751 = vmatprep.subr.mxu0 0.0
        %1752 = vmatpush1.xpose.msra.mxu0 0.0
        %1753 = vmatprep.subr.mxu0 0.0
        %1754 = vmatpush1.xpose.msra.mxu0 0.0
        %1755 = vmatprep.subr.mxu0 0.0
        %1756 = vmatpush1.xpose.msra.mxu0 0.0
        %1757 = vmatprep.subr.mxu0 0.0
        %1758 = vmatpush1.xpose.msra.mxu0 0.0
        %1759 = vmatprep.subr.mxu0 0.0
        %1760 = vmatpush1.xpose.msra.mxu0 0.0
        %1761 = vmatprep.subr.mxu0 0.0
        %1762 = vmatpush1.xpose.msra.mxu0 0.0
        %1763 = vmatprep.subr.mxu0 0.0
        %1764 = vmatpush1.xpose.msra.mxu0 0.0
        %1765 = vmatprep.subr.mxu0 0.0
        %1766 = vmatpush1.xpose.msra.mxu0 0.0
        %1767 = vmatprep.subr.mxu0 0.0
        %1768 = vmatpush1.xpose.msra.mxu0 0.0
        %1769 = vmatprep.subr.mxu0 0.0
        %1770 = vmatpush1.xpose.msra.mxu0 0.0
        %1771 = vmatprep.subr.mxu0 0.0
        %1772 = vmatpush1.xpose.msra.mxu0 0.0
        %1773 = vmatprep.subr.mxu0 0.0
        %1774 = vmatpush1.xpose.msra.mxu0 0.0
        %1775 = vmatprep.subr.mxu0 0.0
        %1776 = vmatpush1.xpose.msra.mxu0 0.0
        %1777 = vmatprep.subr.mxu0 0.0
        %1778 = vmatpush1.xpose.msra.mxu0 0.0
        %1779 = vmatprep.mubr.f32.mxu0 0.0
        %1780 = vmatmul.mubr.f32.gmra.mrb[0].mxu0 %v1709
        %v1781 = vpop.f32.mrb[0].mxu0
        %v1782 = vadd.f32 0.0, %v1781
        %v1783 = vpop.f32.mrb[0].mxu0
        %1784 = vdwg.mxu0
        %v1785 = vsel %vm1440, %v1782, -inf
        %1786 = vmax.xlane.f32.xlu0 %v1785
        %v1787 = vpop.xlane.xlu0 %1786
        %v1788 = vsub.f32 %v1782, %v1787
        %v1789 = vmul.f32 %v1788, 1.442695
        %v1790 = vpow.pop %v1789
        %v1791 = vsel %vm1440, %v1790, 0.0
        %1792 = vadd.xlane.f32.xlu0 %v1791
        %v1793 = vpop.xlane.xlu0 %1792
        %1794 = vrot.lane.b32.xlu0 %v1352, 80
        %v1795 = vpop.permute.xlu0 %1794
        %1796 = vrot.lane.b32.xlu0 %v1353, 80
        %v1797 = vpop.permute.xlu0 %1796
        %v1801 = vsel %vm1440, %v1790, 0
        %1803 = vmatprep.subr.mxu0 0.0
        %1804 = vmatpush1.msra.mxu0 %v1795
        %1805 = vmatprep.subr.mxu0 0.0
        %1806 = vmatpush1.msra.mxu0 %v1797
        %1807 = vmatprep.subr.mxu0 0.0
        %1808 = vmatpush1.msra.mxu0 0.0
        %1809 = vmatprep.subr.mxu0 0.0
        %1810 = vmatpush1.msra.mxu0 0.0
        %1811 = vmatprep.subr.mxu0 0.0
        %1812 = vmatpush1.msra.mxu0 0.0
        %1813 = vmatprep.subr.mxu0 0.0
        %1814 = vmatpush1.msra.mxu0 0.0
        %1815 = vmatprep.subr.mxu0 0.0
        %1816 = vmatpush1.msra.mxu0 0.0
        %1817 = vmatprep.subr.mxu0 0.0
        %1818 = vmatpush1.msra.mxu0 0.0
        %1819 = vmatprep.subr.mxu0 0.0
        %1820 = vmatpush1.msra.mxu0 0.0
        %1821 = vmatprep.subr.mxu0 0.0
        %1822 = vmatpush1.msra.mxu0 0.0
        %1823 = vmatprep.subr.mxu0 0.0
        %1824 = vmatpush1.msra.mxu0 0.0
        %1825 = vmatprep.subr.mxu0 0.0
        %1826 = vmatpush1.msra.mxu0 0.0
        %1827 = vmatprep.subr.mxu0 0.0
        %1828 = vmatpush1.msra.mxu0 0.0
        %1829 = vmatprep.subr.mxu0 0.0
        %1830 = vmatpush1.msra.mxu0 0.0
        %1831 = vmatprep.subr.mxu0 0.0
        %1832 = vmatpush1.msra.mxu0 0.0
        %1833 = vmatprep.subr.mxu0 0.0
        %1834 = vmatpush1.msra.mxu0 0.0
        %1835 = vmatprep.subr.mxu0 0.0
        %1836 = vmatpush1.msra.mxu0 0.0
        %1837 = vmatprep.subr.mxu0 0.0
        %1838 = vmatpush1.msra.mxu0 0.0
        %1839 = vmatprep.subr.mxu0 0.0
        %1840 = vmatpush1.msra.mxu0 0.0
        %1841 = vmatprep.subr.mxu0 0.0
        %1842 = vmatpush1.msra.mxu0 0.0
        %1843 = vmatprep.subr.mxu0 0.0
        %1844 = vmatpush1.msra.mxu0 0.0
        %1845 = vmatprep.subr.mxu0 0.0
        %1846 = vmatpush1.msra.mxu0 0.0
        %1847 = vmatprep.subr.mxu0 0.0
        %1848 = vmatpush1.msra.mxu0 0.0
        %1849 = vmatprep.subr.mxu0 0.0
        %1850 = vmatpush1.msra.mxu0 0.0
        %1851 = vmatprep.subr.mxu0 0.0
        %1852 = vmatpush1.msra.mxu0 0.0
        %1853 = vmatprep.subr.mxu0 0.0
        %1854 = vmatpush1.msra.mxu0 0.0
        %1855 = vmatprep.subr.mxu0 0.0
        %1856 = vmatpush1.msra.mxu0 0.0
        %1857 = vmatprep.subr.mxu0 0.0
        %1858 = vmatpush1.msra.mxu0 0.0
        %1859 = vmatprep.subr.mxu0 0.0
        %1860 = vmatpush1.msra.mxu0 0.0
        %1861 = vmatprep.subr.mxu0 0.0
        %1862 = vmatpush1.msra.mxu0 0.0
        %1863 = vmatprep.subr.mxu0 0.0
        %1864 = vmatpush1.msra.mxu0 0.0
        %1865 = vmatprep.subr.mxu0 0.0
        %1866 = vmatpush1.msra.mxu0 0.0
        %1867 = vmatprep.mubr.f32.mxu0 0.0
        %1868 = vmatmul.mubr.f32.gmra.mrb[0].mxu0 %v1801
        %v1869 = vpop.f32.mrb[0].mxu0
        %v1870 = vadd.f32 0.0, %v1869
        %v1871 = vpop.f32.mrb[0].mxu0
        %1872 = vdwg.mxu0
        %v1873 = vrcp.pop %v1793
        %v1874 = vmul.f32 %v1870, %v1873
        %1875 = vrot.lane.b32.xlu0 %v1359, 104
        %v1876 = vpop.permute.xlu0 %1875
        %1877 = vrot.lane.b32.xlu0 %v1352, 104
        %v1878 = vpop.permute.xlu0 %1877
        %1879 = vrot.lane.b32.xlu0 %v1353, 104
        %v1880 = vpop.permute.xlu0 %1879
        %v1881 = vsel %vm1360, %v1876, 0
        %v1883 = vsel %vm1360, %v1878, 0
        %v1885 = vsel %vm1360, %v1880, 0
        %1887 = vmatprep.subr.mxu0 0.0
        %1888 = vmatpush1.xpose.msra.mxu0 %v1883
        %1889 = vmatprep.subr.mxu0 0.0
        %1890 = vmatpush1.xpose.msra.mxu0 %v1885
        %1891 = vmatprep.subr.mxu0 0.0
        %1892 = vmatpush1.xpose.msra.mxu0 0.0
        %1893 = vmatprep.subr.mxu0 0.0
        %1894 = vmatpush1.xpose.msra.mxu0 0.0
        %1895 = vmatprep.subr.mxu0 0.0
        %1896 = vmatpush1.xpose.msra.mxu0 0.0
        %1897 = vmatprep.subr.mxu0 0.0
        %1898 = vmatpush1.xpose.msra.mxu0 0.0
        %1899 = vmatprep.subr.mxu0 0.0
        %1900 = vmatpush1.xpose.msra.mxu0 0.0
        %1901 = vmatprep.subr.mxu0 0.0
        %1902 = vmatpush1.xpose.msra.mxu0 0.0
        %1903 = vmatprep.subr.mxu0 0.0
        %1904 = vmatpush1.xpose.msra.mxu0 0.0
        %1905 = vmatprep.subr.mxu0 0.0
        %1906 = vmatpush1.xpose.msra.mxu0 0.0
        %1907 = vmatprep.subr.mxu0 0.0
        %1908 = vmatpush1.xpose.msra.mxu0 0.0
        %1909 = vmatprep.subr.mxu0 0.0
        %1910 = vmatpush1.xpose.msra.mxu0 0.0
        %1911 = vmatprep.subr.mxu0 0.0
        %1912 = vmatpush1.xpose.msra.mxu0 0.0
        %1913 = vmatprep.subr.mxu0 0.0
        %1914 = vmatpush1.xpose.msra.mxu0 0.0
        %1915 = vmatprep.subr.mxu0 0.0
        %1916 = vmatpush1.xpose.msra.mxu0 0.0
        %1917 = vmatprep.subr.mxu0 0.0
        %1918 = vmatpush1.xpose.msra.mxu0 0.0
        %1919 = vmatprep.subr.mxu0 0.0
        %1920 = vmatpush1.xpose.msra.mxu0 0.0
        %1921 = vmatprep.subr.mxu0 0.0
        %1922 = vmatpush1.xpose.msra.mxu0 0.0
        %1923 = vmatprep.subr.mxu0 0.0
        %1924 = vmatpush1.xpose.msra.mxu0 0.0
        %1925 = vmatprep.subr.mxu0 0.0
        %1926 = vmatpush1.xpose.msra.mxu0 0.0
        %1927 = vmatprep.subr.mxu0 0.0
        %1928 = vmatpush1.xpose.msra.mxu0 0.0
        %1929 = vmatprep.subr.mxu0 0.0
        %1930 = vmatpush1.xpose.msra.mxu0 0.0
        %1931 = vmatprep.subr.mxu0 0.0
        %1932 = vmatpush1.xpose.msra.mxu0 0.0
        %1933 = vmatprep.subr.mxu0 0.0
        %1934 = vmatpush1.xpose.msra.mxu0 0.0
        %1935 = vmatprep.subr.mxu0 0.0
        %1936 = vmatpush1.xpose.msra.mxu0 0.0
        %1937 = vmatprep.subr.mxu0 0.0
        %1938 = vmatpush1.xpose.msra.mxu0 0.0
        %1939 = vmatprep.subr.mxu0 0.0
        %1940 = vmatpush1.xpose.msra.mxu0 0.0
        %1941 = vmatprep.subr.mxu0 0.0
        %1942 = vmatpush1.xpose.msra.mxu0 0.0
        %1943 = vmatprep.subr.mxu0 0.0
        %1944 = vmatpush1.xpose.msra.mxu0 0.0
        %1945 = vmatprep.subr.mxu0 0.0
        %1946 = vmatpush1.xpose.msra.mxu0 0.0
        %1947 = vmatprep.subr.mxu0 0.0
        %1948 = vmatpush1.xpose.msra.mxu0 0.0
        %1949 = vmatprep.subr.mxu0 0.0
        %1950 = vmatpush1.xpose.msra.mxu0 0.0
        %1951 = vmatprep.mubr.f32.mxu0 0.0
        %1952 = vmatmul.mubr.f32.gmra.mrb[0].mxu0 %v1881
        %v1953 = vpop.f32.mrb[0].mxu0
        %v1954 = vadd.f32 0.0, %v1953
        %v1955 = vpop.f32.mrb[0].mxu0
        %1956 = vdwg.mxu0
        %v1957 = vsel %vm1440, %v1954, -inf
        %1958 = vmax.xlane.f32.xlu0 %v1957
        %v1959 = vpop.xlane.xlu0 %1958
        %v1960 = vsub.f32 %v1954, %v1959
        %v1961 = vmul.f32 %v1960, 1.442695
        %v1962 = vpow.pop %v1961
        %v1963 = vsel %vm1440, %v1962, 0.0
        %1964 = vadd.xlane.f32.xlu0 %v1963
        %v1965 = vpop.xlane.xlu0 %1964
        %1966 = vrot.lane.b32.xlu0 %v1352, 72
        %v1967 = vpop.permute.xlu0 %1966
        %1968 = vrot.lane.b32.xlu0 %v1353, 72
        %v1969 = vpop.permute.xlu0 %1968
        %v1973 = vsel %vm1440, %v1962, 0
        %1975 = vmatprep.subr.mxu0 0.0
        %1976 = vmatpush1.msra.mxu0 %v1967
        %1977 = vmatprep.subr.mxu0 0.0
        %1978 = vmatpush1.msra.mxu0 %v1969
        %1979 = vmatprep.subr.mxu0 0.0
        %1980 = vmatpush1.msra.mxu0 0.0
        %1981 = vmatprep.subr.mxu0 0.0
        %1982 = vmatpush1.msra.mxu0 0.0
        %1983 = vmatprep.subr.mxu0 0.0
        %1984 = vmatpush1.msra.mxu0 0.0
        %1985 = vmatprep.subr.mxu0 0.0
        %1986 = vmatpush1.msra.mxu0 0.0
        %1987 = vmatprep.subr.mxu0 0.0
        %1988 = vmatpush1.msra.mxu0 0.0
        %1989 = vmatprep.subr.mxu0 0.0
        %1990 = vmatpush1.msra.mxu0 0.0
        %1991 = vmatprep.subr.mxu0 0.0
        %1992 = vmatpush1.msra.mxu0 0.0
        %1993 = vmatprep.subr.mxu0 0.0
        %1994 = vmatpush1.msra.mxu0 0.0
        %1995 = vmatprep.subr.mxu0 0.0
        %1996 = vmatpush1.msra.mxu0 0.0
        %1997 = vmatprep.subr.mxu0 0.0
        %1998 = vmatpush1.msra.mxu0 0.0
        %1999 = vmatprep.subr.mxu0 0.0
        %2000 = vmatpush1.msra.mxu0 0.0
        %2001 = vmatprep.subr.mxu0 0.0
        %2002 = vmatpush1.msra.mxu0 0.0
        %2003 = vmatprep.subr.mxu0 0.0
        %2004 = vmatpush1.msra.mxu0 0.0
        %2005 = vmatprep.subr.mxu0 0.0
        %2006 = vmatpush1.msra.mxu0 0.0
        %2007 = vmatprep.subr.mxu0 0.0
        %2008 = vmatpush1.msra.mxu0 0.0
        %2009 = vmatprep.subr.mxu0 0.0
        %2010 = vmatpush1.msra.mxu0 0.0
        %2011 = vmatprep.subr.mxu0 0.0
        %2012 = vmatpush1.msra.mxu0 0.0
        %2013 = vmatprep.subr.mxu0 0.0
        %2014 = vmatpush1.msra.mxu0 0.0
        %2015 = vmatprep.subr.mxu0 0.0
        %2016 = vmatpush1.msra.mxu0 0.0
        %2017 = vmatprep.subr.mxu0 0.0
        %2018 = vmatpush1.msra.mxu0 0.0
        %2019 = vmatprep.subr.mxu0 0.0
        %2020 = vmatpush1.msra.mxu0 0.0
        %2021 = vmatprep.subr.mxu0 0.0
        %2022 = vmatpush1.msra.mxu0 0.0
        %2023 = vmatprep.subr.mxu0 0.0
        %2024 = vmatpush1.msra.mxu0 0.0
        %2025 = vmatprep.subr.mxu0 0.0
        %2026 = vmatpush1.msra.mxu0 0.0
        %2027 = vmatprep.subr.mxu0 0.0
        %2028 = vmatpush1.msra.mxu0 0.0
        %2029 = vmatprep.subr.mxu0 0.0
        %2030 = vmatpush1.msra.mxu0 0.0
        %2031 = vmatprep.subr.mxu0 0.0
        %2032 = vmatpush1.msra.mxu0 0.0
        %2033 = vmatprep.subr.mxu0 0.0
        %2034 = vmatpush1.msra.mxu0 0.0
        %2035 = vmatprep.subr.mxu0 0.0
        %2036 = vmatpush1.msra.mxu0 0.0
        %2037 = vmatprep.subr.mxu0 0.0
        %2038 = vmatpush1.msra.mxu0 0.0
        %2039 = vmatprep.mubr.f32.mxu0 0.0
        %2040 = vmatmul.mubr.f32.gmra.mrb[0].mxu0 %v1973
        %v2041 = vpop.f32.mrb[0].mxu0
        %v2042 = vadd.f32 0.0, %v2041
        %v2043 = vpop.f32.mrb[0].mxu0
        %2044 = vdwg.mxu0
        %v2045 = vrcp.pop %v1965
        %v2046 = vmul.f32 %v2042, %v2045
        %2048 = vrot.lane.b32.xlu0 %v1702, 8
        %v2049 = vpop.permute.xlu0 %2048
        %2052 = vrot.lane.b32.xlu0 %v1874, 16
        %v2053 = vpop.permute.xlu0 %2052
        %2056 = vrot.lane.b32.xlu0 %v2046, 24
        %v2057 = vpop.permute.xlu0 %2056
        %v2059 = vsel %vm1360, %v1530, %v2049
        %v2060 = vsel %vm1440, %v2059, %v2053
        %vm2061 = vcmask 195584
        %v2062 = vsel %vm2061, %v2060, %v2057
        %v2064 = vlaneseq
        %v2065 = vshrl.u32 %v2064, 7
        %v2066 = vsub.s32 0, %v2065
        %v2067 = vrot.slane %v1358, %v2066
        %v2070 = vsel %vm1278, %v2062, 0
        %2072 = vmatprep.subr.mxu0 0.0
        %2073 = vmatpush1.msra.mxu0 %v1354
        %2074 = vmatprep.subr.mxu0 0.0
        %2075 = vmatpush1.msra.mxu0 %v1355
        %2076 = vmatprep.subr.mxu0 0.0
        %2077 = vmatpush1.msra.mxu0 %v1356
        %2078 = vmatprep.subr.mxu0 0.0
        %2079 = vmatpush1.msra.mxu0 %v1357
        %2080 = vmatprep.subr.mxu0 0.0
        %2081 = vmatpush1.msra.mxu0 0.0
        %2082 = vmatprep.subr.mxu0 0.0
        %2083 = vmatpush1.msra.mxu0 0.0
        %2084 = vmatprep.subr.mxu0 0.0
        %2085 = vmatpush1.msra.mxu0 0.0
        %2086 = vmatprep.subr.mxu0 0.0
        %2087 = vmatpush1.msra.mxu0 0.0
        %2088 = vmatprep.subr.mxu0 0.0
        %2089 = vmatpush1.msra.mxu0 0.0
        %2090 = vmatprep.subr.mxu0 0.0
        %2091 = vmatpush1.msra.mxu0 0.0
        %2092 = vmatprep.subr.mxu0 0.0
        %2093 = vmatpush1.msra.mxu0 0.0
        %2094 = vmatprep.subr.mxu0 0.0
        %2095 = vmatpush1.msra.mxu0 0.0
        %2096 = vmatprep.subr.mxu0 0.0
        %2097 = vmatpush1.msra.mxu0 0.0
        %2098 = vmatprep.subr.mxu0 0.0
        %2099 = vmatpush1.msra.mxu0 0.0
        %2100 = vmatprep.subr.mxu0 0.0
        %2101 = vmatpush1.msra.mxu0 0.0
        %2102 = vmatprep.subr.mxu0 0.0
        %2103 = vmatpush1.msra.mxu0 0.0
        %2104 = vmatprep.subr.mxu0 0.0
        %2105 = vmatpush1.msra.mxu0 0.0
        %2106 = vmatprep.subr.mxu0 0.0
        %2107 = vmatpush1.msra.mxu0 0.0
        %2108 = vmatprep.subr.mxu0 0.0
        %2109 = vmatpush1.msra.mxu0 0.0
        %2110 = vmatprep.subr.mxu0 0.0
        %2111 = vmatpush1.msra.mxu0 0.0
        %2112 = vmatprep.subr.mxu0 0.0
        %2113 = vmatpush1.msra.mxu0 0.0
        %2114 = vmatprep.subr.mxu0 0.0
        %2115 = vmatpush1.msra.mxu0 0.0
        %2116 = vmatprep.subr.mxu0 0.0
        %2117 = vmatpush1.msra.mxu0 0.0
        %2118 = vmatprep.subr.mxu0 0.0
        %2119 = vmatpush1.msra.mxu0 0.0
        %2120 = vmatprep.subr.mxu0 0.0
        %2121 = vmatpush1.msra.mxu0 0.0
        %2122 = vmatprep.subr.mxu0 0.0
        %2123 = vmatpush1.msra.mxu0 0.0
        %2124 = vmatprep.subr.mxu0 0.0
        %2125 = vmatpush1.msra.mxu0 0.0
        %2126 = vmatprep.subr.mxu0 0.0
        %2127 = vmatpush1.msra.mxu0 0.0
        %2128 = vmatprep.subr.mxu0 0.0
        %2129 = vmatpush1.msra.mxu0 0.0
        %2130 = vmatprep.subr.mxu0 0.0
        %2131 = vmatpush1.msra.mxu0 0.0
        %2132 = vmatprep.subr.mxu0 0.0
        %2133 = vmatpush1.msra.mxu0 0.0
        %2134 = vmatprep.subr.mxu0 0.0
        %2135 = vmatpush1.msra.mxu0 0.0
        %2136 = vmatprep.mubr.f32.mxu0 0.0
        %2137 = vmatmul.mubr.f32.gmra.mrb[0].mxu0 %v2070
        %v2138 = vpop.f32.mrb[0].mxu0
        %v2139 = vadd.f32 %v2067, %v2138
        %v2140 = vpop.f32.mrb[0].mxu0
        %2141 = vdwg.mxu0
        %v2142 = vadd.f32 %v1266, %v2139
        %v2143 = vld [vmem:[%s19] sm:$0x1]
        %v2144 = vld [vmem:[%s21] sm:$0x1]
        %v2145 = vsel %vm1278, %v2142, 0.0
        %2146 = vadd.xlane.f32.xlu0 %v2145
        %v2147 = vpop.xlane.xlu0 %2146
        %v2148 = vrcp.pop 32.0
        %v2149 = vmul.f32 %v2147, %v2148
        %v2150 = vsub.f32 %v2142, %v2149
        %v2151 = vmul.f32 %v2150, %v2150
        %v2152 = vsel %vm1278, %v2151, 0.0
        %2153 = vadd.xlane.f32.xlu0 %v2152
        %v2154 = vpop.xlane.xlu0 %2153
        %v2155 = vmul.f32 %v2154, %v2148
        %v2156 = vadd.f32 %v2155, 1e-05
        %v2157 = vrsqrt.pop %v2156
        %v2158 = vmul.f32 %v2150, %v2157
        %v2160 = vlaneseq
        %v2161 = vshrl.u32 %v2160, 7
        %v2162 = vsub.s32 0, %v2161
        %v2163 = vrot.slane %v2143, %v2162
        %v2165 = vmul.f32 %v2158, %v2163
        %v2167 = vlaneseq
        %v2168 = vshrl.u32 %v2167, 7
        %v2169 = vsub.s32 0, %v2168
        %v2170 = vrot.slane %v2144, %v2169
        %v2172 = vadd.f32 %v2165, %v2170
        %v2173 = vld [vmem:[%s23] sm:$0xff]
        %v2174 = vld [vmem:[%s23 + $0x8] sm:$0xff]
        %v2175 = vld [vmem:[%s23 + $0x10] sm:$0xff]
        %v2176 = vld [vmem:[%s23 + $0x18] sm:$0xff]
        %v2177 = vld [vmem:[%s25] sm:$0x1]
        %v2179 = vlaneseq
        %v2180 = vshrl.u32 %v2179, 7
        %v2181 = vsub.s32 0, %v2180
        %v2182 = vrot.slane %v2177, %v2181
        %v2185 = vsel %vm1278, %v2172, 0
        %2187 = vmatprep.subr.mxu0 0.0
        %2188 = vmatpush1.msra.mxu0 %v2173
        %2189 = vmatprep.subr.mxu0 0.0
        %2190 = vmatpush1.msra.mxu0 %v2174
        %2191 = vmatprep.subr.mxu0 0.0
        %2192 = vmatpush1.msra.mxu0 %v2175
        %2193 = vmatprep.subr.mxu0 0.0
        %2194 = vmatpush1.msra.mxu0 %v2176
        %2195 = vmatprep.subr.mxu0 0.0
        %2196 = vmatpush1.msra.mxu0 0.0
        %2197 = vmatprep.subr.mxu0 0.0
        %2198 = vmatpush1.msra.mxu0 0.0
        %2199 = vmatprep.subr.mxu0 0.0
        %2200 = vmatpush1.msra.mxu0 0.0
        %2201 = vmatprep.subr.mxu0 0.0
        %2202 = vmatpush1.msra.mxu0 0.0
        %2203 = vmatprep.subr.mxu0 0.0
        %2204 = vmatpush1.msra.mxu0 0.0
        %2205 = vmatprep.subr.mxu0 0.0
        %2206 = vmatpush1.msra.mxu0 0.0
        %2207 = vmatprep.subr.mxu0 0.0
        %2208 = vmatpush1.msra.mxu0 0.0
        %2209 = vmatprep.subr.mxu0 0.0
        %2210 = vmatpush1.msra.mxu0 0.0
        %2211 = vmatprep.subr.mxu0 0.0
        %2212 = vmatpush1.msra.mxu0 0.0
        %2213 = vmatprep.subr.mxu0 0.0
        %2214 = vmatpush1.msra.mxu0 0.0
        %2215 = vmatprep.subr.mxu0 0.0
        %2216 = vmatpush1.msra.mxu0 0.0
        %2217 = vmatprep.subr.mxu0 0.0
        %2218 = vmatpush1.msra.mxu0 0.0
        %2219 = vmatprep.subr.mxu0 0.0
        %2220 = vmatpush1.msra.mxu0 0.0
        %2221 = vmatprep.subr.mxu0 0.0
        %2222 = vmatpush1.msra.mxu0 0.0
        %2223 = vmatprep.subr.mxu0 0.0
        %2224 = vmatpush1.msra.mxu0 0.0
        %2225 = vmatprep.subr.mxu0 0.0
        %2226 = vmatpush1.msra.mxu0 0.0
        %2227 = vmatprep.subr.mxu0 0.0
        %2228 = vmatpush1.msra.mxu0 0.0
        %2229 = vmatprep.subr.mxu0 0.0
        %2230 = vmatpush1.msra.mxu0 0.0
        %2231 = vmatprep.subr.mxu0 0.0
        %2232 = vmatpush1.msra.mxu0 0.0
        %2233 = vmatprep.subr.mxu0 0.0
        %2234 = vmatpush1.msra.mxu0 0.0
        %2235 = vmatprep.subr.mxu0 0.0
        %2236 = vmatpush1.msra.mxu0 0.0
        %2237 = vmatprep.subr.mxu0 0.0
        %2238 = vmatpush1.msra.mxu0 0.0
        %2239 = vmatprep.subr.mxu0 0.0
        %2240 = vmatpush1.msra.mxu0 0.0
        %2241 = vmatprep.subr.mxu0 0.0
        %2242 = vmatpush1.msra.mxu0 0.0
        %2243 = vmatprep.subr.mxu0 0.0
        %2244 = vmatpush1.msra.mxu0 0.0
        %2245 = vmatprep.subr.mxu0 0.0
        %2246 = vmatpush1.msra.mxu0 0.0
        %2247 = vmatprep.subr.mxu0 0.0
        %2248 = vmatpush1.msra.mxu0 0.0
        %2249 = vmatprep.subr.mxu0 0.0
        %2250 = vmatpush1.msra.mxu0 0.0
        %2251 = vmatprep.mubr.f32.mxu0 0.0
        %2252 = vmatmul.mubr.f32.gmra.mrb[0].mxu0 %v2185
        %v2253 = vpop.f32.mrb[0].mxu0
        %v2254 = vadd.f32 %v2182, %v2253
        %v2255 = vpop.f32.mrb[0].mxu0
        %2256 = vdwg.mxu0
        %v2257 = vld [vmem:[%s1057] sm:$0xff]
        %v2258 = vadd.f32 %v2257, %v2254
        %2259 = vst [vmem:[%s1065] sm:$0xff] %v2258
        %v2260 = vld [vmem:[%s27] sm:$0xff]
        %v2261 = vld [vmem:[%s27 + $0x8] sm:$0xff]
        %v2262 = vld [vmem:[%s27 + $0x10] sm:$0xff]
        %v2263 = vld [vmem:[%s27 + $0x18] sm:$0xff]
        %v2264 = vld [vmem:[%s29] sm:$0x1]
        %v2266 = vlaneseq
        %v2267 = vshrl.u32 %v2266, 7
        %v2268 = vsub.s32 0, %v2267
        %v2269 = vrot.slane %v2264, %v2268
        %2271 = vmatprep.subr.mxu0 0.0
        %2272 = vmatpush1.msra.mxu0 %v2260
        %2273 = vmatprep.subr.mxu0 0.0
        %2274 = vmatpush1.msra.mxu0 %v2261
        %2275 = vmatprep.subr.mxu0 0.0
        %2276 = vmatpush1.msra.mxu0 %v2262
        %2277 = vmatprep.subr.mxu0 0.0
        %2278 = vmatpush1.msra.mxu0 %v2263
        %2279 = vmatprep.subr.mxu0 0.0
        %2280 = vmatpush1.msra.mxu0 0.0
        %2281 = vmatprep.subr.mxu0 0.0
        %2282 = vmatpush1.msra.mxu0 0.0
        %2283 = vmatprep.subr.mxu0 0.0
        %2284 = vmatpush1.msra.mxu0 0.0
        %2285 = vmatprep.subr.mxu0 0.0
        %2286 = vmatpush1.msra.mxu0 0.0
        %2287 = vmatprep.subr.mxu0 0.0
        %2288 = vmatpush1.msra.mxu0 0.0
        %2289 = vmatprep.subr.mxu0 0.0
        %2290 = vmatpush1.msra.mxu0 0.0
        %2291 = vmatprep.subr.mxu0 0.0
        %2292 = vmatpush1.msra.mxu0 0.0
        %2293 = vmatprep.subr.mxu0 0.0
        %2294 = vmatpush1.msra.mxu0 0.0
        %2295 = vmatprep.subr.mxu0 0.0
        %2296 = vmatpush1.msra.mxu0 0.0
        %2297 = vmatprep.subr.mxu0 0.0
        %2298 = vmatpush1.msra.mxu0 0.0
        %2299 = vmatprep.subr.mxu0 0.0
        %2300 = vmatpush1.msra.mxu0 0.0
        %2301 = vmatprep.subr.mxu0 0.0
        %2302 = vmatpush1.msra.mxu0 0.0
        %2303 = vmatprep.subr.mxu0 0.0
        %2304 = vmatpush1.msra.mxu0 0.0
        %2305 = vmatprep.subr.mxu0 0.0
        %2306 = vmatpush1.msra.mxu0 0.0
        %2307 = vmatprep.subr.mxu0 0.0
        %2308 = vmatpush1.msra.mxu0 0.0
        %2309 = vmatprep.subr.mxu0 0.0
        %2310 = vmatpush1.msra.mxu0 0.0
        %2311 = vmatprep.subr.mxu0 0.0
        %2312 = vmatpush1.msra.mxu0 0.0
        %2313 = vmatprep.subr.mxu0 0.0
        %2314 = vmatpush1.msra.mxu0 0.0
        %2315 = vmatprep.subr.mxu0 0.0
        %2316 = vmatpush1.msra.mxu0 0.0
        %2317 = vmatprep.subr.mxu0 0.0
        %2318 = vmatpush1.msra.mxu0 0.0
        %2319 = vmatprep.subr.mxu0 0.0
        %2320 = vmatpush1.msra.mxu0 0.0
        %2321 = vmatprep.subr.mxu0 0.0
        %2322 = vmatpush1.msra.mxu0 0.0
        %2323 = vmatprep.subr.mxu0 0.0
        %2324 = vmatpush1.msra.mxu0 0.0
        %2325 = vmatprep.subr.mxu0 0.0
        %2326 = vmatpush1.msra.mxu0 0.0
        %2327 = vmatprep.subr.mxu0 0.0
        %2328 = vmatpush1.msra.mxu0 0.0
        %2329 = vmatprep.subr.mxu0 0.0
        %2330 = vmatpush1.msra.mxu0 0.0
        %2331 = vmatprep.subr.mxu0 0.0
        %2332 = vmatpush1.msra.mxu0 0.0
        %2333 = vmatprep.subr.mxu0 0.0
        %2334 = vmatpush1.msra.mxu0 0.0
        %2335 = vmatprep.mubr.f32.mxu0 0.0
        %2336 = vmatmul.mubr.f32.gmra.mrb[0].mxu0 %v2185
        %v2337 = vpop.f32.mrb[0].mxu0
        %v2338 = vadd.f32 %v2269, %v2337
        %v2339 = vpop.f32.mrb[0].mxu0
        %2340 = vdwg.mxu0
        %v2341 = vld [vmem:[#allocation3] sm:$0xff]
        %v2342 = vld [vmem:[#allocation3 + $0x8] sm:$0xff]
        %v2343 = vld [vmem:[%s35] sm:$0xff]
        %v2344 = vld [vmem:[%s35 + $0x8] sm:$0xff]
        %v2345 = vld [vmem:[%s35 + $0x10] sm:$0xff]
        %v2346 = vld [vmem:[%s35 + $0x18] sm:$0xff]
        %v2347 = vld [vmem:[%s37] sm:$0x1]
        %v2348 = vmul.f32 %v2338, 0.35355338
        %v2350 = vsel %vm1360, %v2348, 0
        %v2353 = vsel %vm1360, %v2341, 0
        %v2356 = vsel %vm1360, %v2342, 0
        %2358 = vmatprep.subr.mxu0 0.0
        %2359 = vmatpush1.xpose.msra.mxu0 %v2353
        %2360 = vmatprep.subr.mxu0 0.0
        %2361 = vmatpush1.xpose.msra.mxu0 %v2356
        %2362 = vmatprep.subr.mxu0 0.0
        %2363 = vmatpush1.xpose.msra.mxu0 0.0
        %2364 = vmatprep.subr.mxu0 0.0
        %2365 = vmatpush1.xpose.msra.mxu0 0.0
        %2366 = vmatprep.subr.mxu0 0.0
        %2367 = vmatpush1.xpose.msra.mxu0 0.0
        %2368 = vmatprep.subr.mxu0 0.0
        %2369 = vmatpush1.xpose.msra.mxu0 0.0
        %2370 = vmatprep.subr.mxu0 0.0
        %2371 = vmatpush1.xpose.msra.mxu0 0.0
        %2372 = vmatprep.subr.mxu0 0.0
        %2373 = vmatpush1.xpose.msra.mxu0 0.0
        %2374 = vmatprep.subr.mxu0 0.0
        %2375 = vmatpush1.xpose.msra.mxu0 0.0
        %2376 = vmatprep.subr.mxu0 0.0
        %2377 = vmatpush1.xpose.msra.mxu0 0.0
        %2378 = vmatprep.subr.mxu0 0.0
        %2379 = vmatpush1.xpose.msra.mxu0 0.0
        %2380 = vmatprep.subr.mxu0 0.0
        %2381 = vmatpush1.xpose.msra.mxu0 0.0
        %2382 = vmatprep.subr.mxu0 0.0
        %2383 = vmatpush1.xpose.msra.mxu0 0.0
        %2384 = vmatprep.subr.mxu0 0.0
        %2385 = vmatpush1.xpose.msra.mxu0 0.0
        %2386 = vmatprep.subr.mxu0 0.0
        %2387 = vmatpush1.xpose.msra.mxu0 0.0
        %2388 = vmatprep.subr.mxu0 0.0
        %2389 = vmatpush1.xpose.msra.mxu0 0.0
        %2390 = vmatprep.subr.mxu0 0.0
        %2391 = vmatpush1.xpose.msra.mxu0 0.0
        %2392 = vmatprep.subr.mxu0 0.0
        %2393 = vmatpush1.xpose.msra.mxu0 0.0
        %2394 = vmatprep.subr.mxu0 0.0
        %2395 = vmatpush1.xpose.msra.mxu0 0.0
        %2396 = vmatprep.subr.mxu0 0.0
        %2397 = vmatpush1.xpose.msra.mxu0 0.0
        %2398 = vmatprep.subr.mxu0 0.0
        %2399 = vmatpush1.xpose.msra.mxu0 0.0
        %2400 = vmatprep.subr.mxu0 0.0
        %2401 = vmatpush1.xpose.msra.mxu0 0.0
        %2402 = vmatprep.subr.mxu0 0.0
        %2403 = vmatpush1.xpose.msra.mxu0 0.0
        %2404 = vmatprep.subr.mxu0 0.0
        %2405 = vmatpush1.xpose.msra.mxu0 0.0
        %2406 = vmatprep.subr.mxu0 0.0
        %2407 = vmatpush1.xpose.msra.mxu0 0.0
        %2408 = vmatprep.subr.mxu0 0.0
        %2409 = vmatpush1.xpose.msra.mxu0 0.0
        %2410 = vmatprep.subr.mxu0 0.0
        %2411 = vmatpush1.xpose.msra.mxu0 0.0
        %2412 = vmatprep.subr.mxu0 0.0
        %2413 = vmatpush1.xpose.msra.mxu0 0.0
        %2414 = vmatprep.subr.mxu0 0.0
        %2415 = vmatpush1.xpose.msra.mxu0 0.0
        %2416 = vmatprep.subr.mxu0 0.0
        %2417 = vmatpush1.xpose.msra.mxu0 0.0
        %2418 = vmatprep.subr.mxu0 0.0
        %2419 = vmatpush1.xpose.msra.mxu0 0.0
        %2420 = vmatprep.subr.mxu0 0.0
        %2421 = vmatpush1.xpose.msra.mxu0 0.0
        %2422 = vmatprep.mubr.f32.mxu0 0.0
        %2423 = vmatmul.mubr.f32.gmra.mrb[0].mxu0 %v2350
        %v2424 = vpop.f32.mrb[0].mxu0
        %v2425 = vadd.f32 0.0, %v2424
        %v2426 = vpop.f32.mrb[0].mxu0
        %2427 = vdwg.mxu0
        %v2428 = vsel %vm1440, %v2425, -inf
        %2429 = vmax.xlane.f32.xlu0 %v2428
        %v2430 = vpop.xlane.xlu0 %2429
        %v2431 = vsub.f32 %v2425, %v2430
        %v2432 = vmul.f32 %v2431, 1.442695
        %v2433 = vpow.pop %v2432
        %v2434 = vsel %vm1440, %v2433, 0.0
        %2435 = vadd.xlane.f32.xlu0 %v2434
        %v2436 = vpop.xlane.xlu0 %2435
        %2437 = vrot.lane.b32.xlu0 %v2341, 96
        %v2438 = vpop.permute.xlu0 %2437
        %2439 = vrot.lane.b32.xlu0 %v2342, 96
        %v2440 = vpop.permute.xlu0 %2439
        %v2444 = vsel %vm1440, %v2433, 0
        %2446 = vmatprep.subr.mxu0 0.0
        %2447 = vmatpush1.msra.mxu0 %v2438
        %2448 = vmatprep.subr.mxu0 0.0
        %2449 = vmatpush1.msra.mxu0 %v2440
        %2450 = vmatprep.subr.mxu0 0.0
        %2451 = vmatpush1.msra.mxu0 0.0
        %2452 = vmatprep.subr.mxu0 0.0
        %2453 = vmatpush1.msra.mxu0 0.0
        %2454 = vmatprep.subr.mxu0 0.0
        %2455 = vmatpush1.msra.mxu0 0.0
        %2456 = vmatprep.subr.mxu0 0.0
        %2457 = vmatpush1.msra.mxu0 0.0
        %2458 = vmatprep.subr.mxu0 0.0
        %2459 = vmatpush1.msra.mxu0 0.0
        %2460 = vmatprep.subr.mxu0 0.0
        %2461 = vmatpush1.msra.mxu0 0.0
        %2462 = vmatprep.subr.mxu0 0.0
        %2463 = vmatpush1.msra.mxu0 0.0
        %2464 = vmatprep.subr.mxu0 0.0
        %2465 = vmatpush1.msra.mxu0 0.0
        %2466 = vmatprep.subr.mxu0 0.0
        %2467 = vmatpush1.msra.mxu0 0.0
        %2468 = vmatprep.subr.mxu0 0.0
        %2469 = vmatpush1.msra.mxu0 0.0
        %2470 = vmatprep.subr.mxu0 0.0
        %2471 = vmatpush1.msra.mxu0 0.0
        %2472 = vmatprep.subr.mxu0 0.0
        %2473 = vmatpush1.msra.mxu0 0.0
        %2474 = vmatprep.subr.mxu0 0.0
        %2475 = vmatpush1.msra.mxu0 0.0
        %2476 = vmatprep.subr.mxu0 0.0
        %2477 = vmatpush1.msra.mxu0 0.0
        %2478 = vmatprep.subr.mxu0 0.0
        %2479 = vmatpush1.msra.mxu0 0.0
        %2480 = vmatprep.subr.mxu0 0.0
        %2481 = vmatpush1.msra.mxu0 0.0
        %2482 = vmatprep.subr.mxu0 0.0
        %2483 = vmatpush1.msra.mxu0 0.0
        %2484 = vmatprep.subr.mxu0 0.0
        %2485 = vmatpush1.msra.mxu0 0.0
        %2486 = vmatprep.subr.mxu0 0.0
        %2487 = vmatpush1.msra.mxu0 0.0
        %2488 = vmatprep.subr.mxu0 0.0
        %2489 = vmatpush1.msra.mxu0 0.0
        %2490 = vmatprep.subr.mxu0 0.0
        %2491 = vmatpush1.msra.mxu0 0.0
        %2492 = vmatprep.subr.mxu0 0.0
        %2493 = vmatpush1.msra.mxu0 0.0
        %2494 = vmatprep.subr.mxu0 0.0
        %2495 = vmatpush1.msra.mxu0 0.0
        %2496 = vmatprep.subr.mxu0 0.0
        %2497 = vmatpush1.msra.mxu0 0.0
        %2498 = vmatprep.subr.mxu0 0.0
        %2499 = vmatpush1.msra.mxu0 0.0
        %2500 = vmatprep.subr.mxu0 0.0
        %2501 = vmatpush1.msra.mxu0 0.0
        %2502 = vmatprep.subr.mxu0 0.0
        %2503 = vmatpush1.msra.mxu0 0.0
        %2504 = vmatprep.subr.mxu0 0.0
        %2505 = vmatpush1.msra.mxu0 0.0
        %2506 = vmatprep.subr.mxu0 0.0
        %2507 = vmatpush1.msra.mxu0 0.0
        %2508 = vmatprep.subr.mxu0 0.0
        %2509 = vmatpush1.msra.mxu0 0.0
        %2510 = vmatprep.mubr.f32.mxu0 0.0
        %2511 = vmatmul.mubr.f32.gmra.mrb[0].mxu0 %v2444
        %v2512 = vpop.f32.mrb[0].mxu0
        %v2513 = vadd.f32 0.0, %v2512
        %v2514 = vpop.f32.mrb[0].mxu0
        %2515 = vdwg.mxu0
        %v2516 = vrcp.pop %v2436
        %v2517 = vmul.f32 %v2513, %v2516
        %2518 = vrot.lane.b32.xlu0 %v2348, 120
        %v2519 = vpop.permute.xlu0 %2518
        %2520 = vrot.lane.b32.xlu0 %v2341, 120
        %v2521 = vpop.permute.xlu0 %2520
        %2522 = vrot.lane.b32.xlu0 %v2342, 120
        %v2523 = vpop.permute.xlu0 %2522
        %v2524 = vsel %vm1360, %v2519, 0
        %v2526 = vsel %vm1360, %v2521, 0
        %v2528 = vsel %vm1360, %v2523, 0
        %2530 = vmatprep.subr.mxu0 0.0
        %2531 = vmatpush1.xpose.msra.mxu0 %v2526
        %2532 = vmatprep.subr.mxu0 0.0
        %2533 = vmatpush1.xpose.msra.mxu0 %v2528
        %2534 = vmatprep.subr.mxu0 0.0
        %2535 = vmatpush1.xpose.msra.mxu0 0.0
        %2536 = vmatprep.subr.mxu0 0.0
        %2537 = vmatpush1.xpose.msra.mxu0 0.0
        %2538 = vmatprep.subr.mxu0 0.0
        %2539 = vmatpush1.xpose.msra.mxu0 0.0
        %2540 = vmatprep.subr.mxu0 0.0
        %2541 = vmatpush1.xpose.msra.mxu0 0.0
        %2542 = vmatprep.subr.mxu0 0.0
        %2543 = vmatpush1.xpose.msra.mxu0 0.0
        %2544 = vmatprep.subr.mxu0 0.0
        %2545 = vmatpush1.xpose.msra.mxu0 0.0
        %2546 = vmatprep.subr.mxu0 0.0
        %2547 = vmatpush1.xpose.msra.mxu0 0.0
        %2548 = vmatprep.subr.mxu0 0.0
        %2549 = vmatpush1.xpose.msra.mxu0 0.0
        %2550 = vmatprep.subr.mxu0 0.0
        %2551 = vmatpush1.xpose.msra.mxu0 0.0
        %2552 = vmatprep.subr.mxu0 0.0
        %2553 = vmatpush1.xpose.msra.mxu0 0.0
        %2554 = vmatprep.subr.mxu0 0.0
        %2555 = vmatpush1.xpose.msra.mxu0 0.0
        %2556 = vmatprep.subr.mxu0 0.0
        %2557 = vmatpush1.xpose.msra.mxu0 0.0
        %2558 = vmatprep.subr.mxu0 0.0
        %2559 = vmatpush1.xpose.msra.mxu0 0.0
        %2560 = vmatprep.subr.mxu0 0.0
        %2561 = vmatpush1.xpose.msra.mxu0 0.0
        %2562 = vmatprep.subr.mxu0 0.0
        %2563 = vmatpush1.xpose.msra.mxu0 0.0
        %2564 = vmatprep.subr.mxu0 0.0
        %2565 = vmatpush1.xpose.msra.mxu0 0.0
        %2566 = vmatprep.subr.mxu0 0.0
        %2567 = vmatpush1.xpose.msra.mxu0 0.0
        %2568 = vmatprep.subr.mxu0 0.0
        %2569 = vmatpush1.xpose.msra.mxu0 0.0
        %2570 = vmatprep.subr.mxu0 0.0
        %2571 = vmatpush1.xpose.msra.mxu0 0.0
        %2572 = vmatprep.subr.mxu0 0.0
        %2573 = vmatpush1.xpose.msra.mxu0 0.0
        %2574 = vmatprep.subr.mxu0 0.0
        %2575 = vmatpush1.xpose.msra.mxu0 0.0
        %2576 = vmatprep.subr.mxu0 0.0
        %2577 = vmatpush1.xpose.msra.mxu0 0.0
        %2578 = vmatprep.subr.mxu0 0.0
        %2579 = vmatpush1.xpose.msra.mxu0 0.0
        %2580 = vmatprep.subr.mxu0 0.0
        %2581 = vmatpush1.xpose.msra.mxu0 0.0
        %2582 = vmatprep.subr.mxu0 0.0
        %2583 = vmatpush1.xpose.msra.mxu0 0.0
        %2584 = vmatprep.subr.mxu0 0.0
        %2585 = vmatpush1.xpose.msra.mxu0 0.0
        %2586 = vmatprep.subr.mxu0 0.0
        %2587 = vmatpush1.xpose.msra.mxu0 0.0
        %2588 = vmatprep.subr.mxu0 0.0
        %2589 = vmatpush1.xpose.msra.mxu0 0.0
        %2590 = vmatprep.subr.mxu0 0.0
        %2591 = vmatpush1.xpose.msra.mxu0 0.0
        %2592 = vmatprep.subr.mxu0 0.0
        %2593 = vmatpush1.xpose.msra.mxu0 0.0
        %2594 = vmatprep.mubr.f32.mxu0 0.0
        %2595 = vmatmul.mubr.f32.gmra.mrb[0].mxu0 %v2524
        %v2596 = vpop.f32.mrb[0].mxu0
        %v2597 = vadd.f32 0.0, %v2596
        %v2598 = vpop.f32.mrb[0].mxu0
        %2599 = vdwg.mxu0
        %v2600 = vsel %vm1440, %v2597, -inf
        %2601 = vmax.xlane.f32.xlu0 %v2600
        %v2602 = vpop.xlane.xlu0 %2601
        %v2603 = vsub.f32 %v2597, %v2602
        %v2604 = vmul.f32 %v2603, 1.442695
        %v2605 = vpow.pop %v2604
        %v2606 = vsel %vm1440, %v2605, 0.0
        %2607 = vadd.xlane.f32.xlu0 %v2606
        %v2608 = vpop.xlane.xlu0 %2607
        %2609 = vrot.lane.b32.xlu0 %v2341, 88
        %v2610 = vpop.permute.xlu0 %2609
        %2611 = vrot.lane.b32.xlu0 %v2342, 88
        %v2612 = vpop.permute.xlu0 %2611
        %v2616 = vsel %vm1440, %v2605, 0
        %2618 = vmatprep.subr.mxu0 0.0
        %2619 = vmatpush1.msra.mxu0 %v2610
        %2620 = vmatprep.subr.mxu0 0.0
        %2621 = vmatpush1.msra.mxu0 %v2612
        %2622 = vmatprep.subr.mxu0 0.0
        %2623 = vmatpush1.msra.mxu0 0.0
        %2624 = vmatprep.subr.mxu0 0.0
        %2625 = vmatpush1.msra.mxu0 0.0
        %2626 = vmatprep.subr.mxu0 0.0
        %2627 = vmatpush1.msra.mxu0 0.0
        %2628 = vmatprep.subr.mxu0 0.0
        %2629 = vmatpush1.msra.mxu0 0.0
        %2630 = vmatprep.subr.mxu0 0.0
        %2631 = vmatpush1.msra.mxu0 0.0
        %2632 = vmatprep.subr.mxu0 0.0
        %2633 = vmatpush1.msra.mxu0 0.0
        %2634 = vmatprep.subr.mxu0 0.0
        %2635 = vmatpush1.msra.mxu0 0.0
        %2636 = vmatprep.subr.mxu0 0.0
        %2637 = vmatpush1.msra.mxu0 0.0
        %2638 = vmatprep.subr.mxu0 0.0
        %2639 = vmatpush1.msra.mxu0 0.0
        %2640 = vmatprep.subr.mxu0 0.0
        %2641 = vmatpush1.msra.mxu0 0.0
        %2642 = vmatprep.subr.mxu0 0.0
        %2643 = vmatpush1.msra.mxu0 0.0
        %2644 = vmatprep.subr.mxu0 0.0
        %2645 = vmatpush1.msra.mxu0 0.0
        %2646 = vmatprep.subr.mxu0 0.0
        %2647 = vmatpush1.msra.mxu0 0.0
        %2648 = vmatprep.subr.mxu0 0.0
        %2649 = vmatpush1.msra.mxu0 0.0
        %2650 = vmatprep.subr.mxu0 0.0
        %2651 = vmatpush1.msra.mxu0 0.0
        %2652 = vmatprep.subr.mxu0 0.0
        %2653 = vmatpush1.msra.mxu0 0.0
        %2654 = vmatprep.subr.mxu0 0.0
        %2655 = vmatpush1.msra.mxu0 0.0
        %2656 = vmatprep.subr.mxu0 0.0
        %2657 = vmatpush1.msra.mxu0 0.0
        %2658 = vmatprep.subr.mxu0 0.0
        %2659 = vmatpush1.msra.mxu0 0.0
        %2660 = vmatprep.subr.mxu0 0.0
        %2661 = vmatpush1.msra.mxu0 0.0
        %2662 = vmatprep.subr.mxu0 0.0
        %2663 = vmatpush1.msra.mxu0 0.0
        %2664 = vmatprep.subr.mxu0 0.0
        %2665 = vmatpush1.msra.mxu0 0.0
        %2666 = vmatprep.subr.mxu0 0.0
        %2667 = vmatpush1.msra.mxu0 0.0
        %2668 = vmatprep.subr.mxu0 0.0
        %2669 = vmatpush1.msra.mxu0 0.0
        %2670 = vmatprep.subr.mxu0 0.0
        %2671 = vmatpush1.msra.mxu0 0.0
        %2672 = vmatprep.subr.mxu0 0.0
        %2673 = vmatpush1.msra.mxu0 0.0
        %2674 = vmatprep.subr.mxu0 0.0
        %2675 = vmatpush1.msra.mxu0 0.0
        %2676 = vmatprep.subr.mxu0 0.0
        %2677 = vmatpush1.msra.mxu0 0.0
        %2678 = vmatprep.subr.mxu0 0.0
        %2679 = vmatpush1.msra.mxu0 0.0
        %2680 = vmatprep.subr.mxu0 0.0
        %2681 = vmatpush1.msra.mxu0 0.0
        %2682 = vmatprep.mubr.f32.mxu0 0.0
        %2683 = vmatmul.mubr.f32.gmra.mrb[0].mxu0 %v2616
        %v2684 = vpop.f32.mrb[0].mxu0
        %v2685 = vadd.f32 0.0, %v2684
        %v2686 = vpop.f32.mrb[0].mxu0
        %2687 = vdwg.mxu0
        %v2688 = vrcp.pop %v2608
        %v2689 = vmul.f32 %v2685, %v2688
        %2690 = vrot.lane.b32.xlu0 %v2348, 112
        %v2691 = vpop.permute.xlu0 %2690
        %2692 = vrot.lane.b32.xlu0 %v2341, 112
        %v2693 = vpop.permute.xlu0 %2692
        %2694 = vrot.lane.b32.xlu0 %v2342, 112
        %v2695 = vpop.permute.xlu0 %2694
        %v2696 = vsel %vm1360, %v2691, 0
        %v2698 = vsel %vm1360, %v2693, 0
        %v2700 = vsel %vm1360, %v2695, 0
        %2702 = vmatprep.subr.mxu0 0.0
        %2703 = vmatpush1.xpose.msra.mxu0 %v2698
        %2704 = vmatprep.subr.mxu0 0.0
        %2705 = vmatpush1.xpose.msra.mxu0 %v2700
        %2706 = vmatprep.subr.mxu0 0.0
        %2707 = vmatpush1.xpose.msra.mxu0 0.0
        %2708 = vmatprep.subr.mxu0 0.0
        %2709 = vmatpush1.xpose.msra.mxu0 0.0
        %2710 = vmatprep.subr.mxu0 0.0
        %2711 = vmatpush1.xpose.msra.mxu0 0.0
        %2712 = vmatprep.subr.mxu0 0.0
        %2713 = vmatpush1.xpose.msra.mxu0 0.0
        %2714 = vmatprep.subr.mxu0 0.0
        %2715 = vmatpush1.xpose.msra.mxu0 0.0
        %2716 = vmatprep.subr.mxu0 0.0
        %2717 = vmatpush1.xpose.msra.mxu0 0.0
        %2718 = vmatprep.subr.mxu0 0.0
        %2719 = vmatpush1.xpose.msra.mxu0 0.0
        %2720 = vmatprep.subr.mxu0 0.0
        %2721 = vmatpush1.xpose.msra.mxu0 0.0
        %2722 = vmatprep.subr.mxu0 0.0
        %2723 = vmatpush1.xpose.msra.mxu0 0.0
        %2724 = vmatprep.subr.mxu0 0.0
        %2725 = vmatpush1.xpose.msra.mxu0 0.0
        %2726 = vmatprep.subr.mxu0 0.0
        %2727 = vmatpush1.xpose.msra.mxu0 0.0
        %2728 = vmatprep.subr.mxu0 0.0
        %2729 = vmatpush1.xpose.msra.mxu0 0.0
        %2730 = vmatprep.subr.mxu0 0.0
        %2731 = vmatpush1.xpose.msra.mxu0 0.0
        %2732 = vmatprep.subr.mxu0 0.0
        %2733 = vmatpush1.xpose.msra.mxu0 0.0
        %2734 = vmatprep.subr.mxu0 0.0
        %2735 = vmatpush1.xpose.msra.mxu0 0.0
        %2736 = vmatprep.subr.mxu0 0.0
        %2737 = vmatpush1.xpose.msra.mxu0 0.0
        %2738 = vmatprep.subr.mxu0 0.0
        %2739 = vmatpush1.xpose.msra.mxu0 0.0
        %2740 = vmatprep.subr.mxu0 0.0
        %2741 = vmatpush1.xpose.msra.mxu0 0.0
        %2742 = vmatprep.subr.mxu0 0.0
        %2743 = vmatpush1.xpose.msra.mxu0 0.0
        %2744 = vmatprep.subr.mxu0 0.0
        %2745 = vmatpush1.xpose.msra.mxu0 0.0
        %2746 = vmatprep.subr.mxu0 0.0
        %2747 = vmatpush1.xpose.msra.mxu0 0.0
        %2748 = vmatprep.subr.mxu0 0.0
        %2749 = vmatpush1.xpose.msra.mxu0 0.0
        %2750 = vmatprep.subr.mxu0 0.0
        %2751 = vmatpush1.xpose.msra.mxu0 0.0
        %2752 = vmatprep.subr.mxu0 0.0
        %2753 = vmatpush1.xpose.msra.mxu0 0.0
        %2754 = vmatprep.subr.mxu0 0.0
        %2755 = vmatpush1.xpose.msra.mxu0 0.0
        %2756 = vmatprep.subr.mxu0 0.0
        %2757 = vmatpush1.xpose.msra.mxu0 0.0
        %2758 = vmatprep.subr.mxu0 0.0
        %2759 = vmatpush1.xpose.msra.mxu0 0.0
        %2760 = vmatprep.subr.mxu0 0.0
        %2761 = vmatpush1.xpose.msra.mxu0 0.0
        %2762 = vmatprep.subr.mxu0 0.0
        %2763 = vmatpush1.xpose.msra.mxu0 0.0
        %2764 = vmatprep.subr.mxu0 0.0
        %2765 = vmatpush1.xpose.msra.mxu0 0.0
        %2766 = vmatprep.mubr.f32.mxu0 0.0
        %2767 = vmatmul.mubr.f32.gmra.mrb[0].mxu0 %v2696
        %v2768 = vpop.f32.mrb[0].mxu0
        %v2769 = vadd.f32 0.0, %v2768
        %v2770 = vpop.f32.mrb[0].mxu0
        %2771 = vdwg.mxu0
        %v2772 = vsel %vm1440, %v2769, -inf
        %2773 = vmax.xlane.f32.xlu0 %v2772
        %v2774 = vpop.xlane.xlu0 %2773
        %v2775 = vsub.f32 %v2769, %v2774
        %v2776 = vmul.f32 %v2775, 1.442695
        %v2777 = vpow.pop %v2776
        %v2778 = vsel %vm1440, %v2777, 0.0
        %2779 = vadd.xlane.f32.xlu0 %v2778
        %v2780 = vpop.xlane.xlu0 %2779
        %2781 = vrot.lane.b32.xlu0 %v2341, 80
        %v2782 = vpop.permute.xlu0 %2781
        %2783 = vrot.lane.b32.xlu0 %v2342, 80
        %v2784 = vpop.permute.xlu0 %2783
        %v2788 = vsel %vm1440, %v2777, 0
        %2790 = vmatprep.subr.mxu0 0.0
        %2791 = vmatpush1.msra.mxu0 %v2782
        %2792 = vmatprep.subr.mxu0 0.0
        %2793 = vmatpush1.msra.mxu0 %v2784
        %2794 = vmatprep.subr.mxu0 0.0
        %2795 = vmatpush1.msra.mxu0 0.0
        %2796 = vmatprep.subr.mxu0 0.0
        %2797 = vmatpush1.msra.mxu0 0.0
        %2798 = vmatprep.subr.mxu0 0.0
        %2799 = vmatpush1.msra.mxu0 0.0
        %2800 = vmatprep.subr.mxu0 0.0
        %2801 = vmatpush1.msra.mxu0 0.0
        %2802 = vmatprep.subr.mxu0 0.0
        %2803 = vmatpush1.msra.mxu0 0.0
        %2804 = vmatprep.subr.mxu0 0.0
        %2805 = vmatpush1.msra.mxu0 0.0
        %2806 = vmatprep.subr.mxu0 0.0
        %2807 = vmatpush1.msra.mxu0 0.0
        %2808 = vmatprep.subr.mxu0 0.0
        %2809 = vmatpush1.msra.mxu0 0.0
        %2810 = vmatprep.subr.mxu0 0.0
        %2811 = vmatpush1.msra.mxu0 0.0
        %2812 = vmatprep.subr.mxu0 0.0
        %2813 = vmatpush1.msra.mxu0 0.0
        %2814 = vmatprep.subr.mxu0 0.0
        %2815 = vmatpush1.msra.mxu0 0.0
        %2816 = vmatprep.subr.mxu0 0.0
        %2817 = vmatpush1.msra.mxu0 0.0
        %2818 = vmatprep.subr.mxu0 0.0
        %2819 = vmatpush1.msra.mxu0 0.0
        %2820 = vmatprep.subr.mxu0 0.0
        %2821 = vmatpush1.msra.mxu0 0.0
        %2822 = vmatprep.subr.mxu0 0.0
        %2823 = vmatpush1.msra.mxu0 0.0
        %2824 = vmatprep.subr.mxu0 0.0
        %2825 = vmatpush1.msra.mxu0 0.0
        %2826 = vmatprep.subr.mxu0 0.0
        %2827 = vmatpush1.msra.mxu0 0.0
        %2828 = vmatprep.subr.mxu0 0.0
        %2829 = vmatpush1.msra.mxu0 0.0
        %2830 = vmatprep.subr.mxu0 0.0
        %2831 = vmatpush1.msra.mxu0 0.0
        %2832 = vmatprep.subr.mxu0 0.0
        %2833 = vmatpush1.msra.mxu0 0.0
        %2834 = vmatprep.subr.mxu0 0.0
        %2835 = vmatpush1.msra.mxu0 0.0
        %2836 = vmatprep.subr.mxu0 0.0
        %2837 = vmatpush1.msra.mxu0 0.0
        %2838 = vmatprep.subr.mxu0 0.0
        %2839 = vmatpush1.msra.mxu0 0.0
        %2840 = vmatprep.subr.mxu0 0.0
        %2841 = vmatpush1.msra.mxu0 0.0
        %2842 = vmatprep.subr.mxu0 0.0
        %2843 = vmatpush1.msra.mxu0 0.0
        %2844 = vmatprep.subr.mxu0 0.0
        %2845 = vmatpush1.msra.mxu0 0.0
        %2846 = vmatprep.subr.mxu0 0.0
        %2847 = vmatpush1.msra.mxu0 0.0
        %2848 = vmatprep.subr.mxu0 0.0
        %2849 = vmatpush1.msra.mxu0 0.0
        %2850 = vmatprep.subr.mxu0 0.0
        %2851 = vmatpush1.msra.mxu0 0.0
        %2852 = vmatprep.subr.mxu0 0.0
        %2853 = vmatpush1.msra.mxu0 0.0
        %2854 = vmatprep.mubr.f32.mxu0 0.0
        %2855 = vmatmul.mubr.f32.gmra.mrb[0].mxu0 %v2788
        %v2856 = vpop.f32.mrb[0].mxu0
        %v2857 = vadd.f32 0.0, %v2856
        %v2858 = vpop.f32.mrb[0].mxu0
        %2859 = vdwg.mxu0
        %v2860 = vrcp.pop %v2780
        %v2861 = vmul.f32 %v2857, %v2860
        %2862 = vrot.lane.b32.xlu0 %v2348, 104
        %v2863 = vpop.permute.xlu0 %2862
        %2864 = vrot.lane.b32.xlu0 %v2341, 104
        %v2865 = vpop.permute.xlu0 %2864
        %2866 = vrot.lane.b32.xlu0 %v2342, 104
        %v2867 = vpop.permute.xlu0 %2866
        %v2868 = vsel %vm1360, %v2863, 0
        %v2870 = vsel %vm1360, %v2865, 0
        %v2872 = vsel %vm1360, %v2867, 0
        %2874 = vmatprep.subr.mxu0 0.0
        %2875 = vmatpush1.xpose.msra.mxu0 %v2870
        %2876 = vmatprep.subr.mxu0 0.0
        %2877 = vmatpush1.xpose.msra.mxu0 %v2872
        %2878 = vmatprep.subr.mxu0 0.0
        %2879 = vmatpush1.xpose.msra.mxu0 0.0
        %2880 = vmatprep.subr.mxu0 0.0
        %2881 = vmatpush1.xpose.msra.mxu0 0.0
        %2882 = vmatprep.subr.mxu0 0.0
        %2883 = vmatpush1.xpose.msra.mxu0 0.0
        %2884 = vmatprep.subr.mxu0 0.0
        %2885 = vmatpush1.xpose.msra.mxu0 0.0
        %2886 = vmatprep.subr.mxu0 0.0
        %2887 = vmatpush1.xpose.msra.mxu0 0.0
        %2888 = vmatprep.subr.mxu0 0.0
        %2889 = vmatpush1.xpose.msra.mxu0 0.0
        %2890 = vmatprep.subr.mxu0 0.0
        %2891 = vmatpush1.xpose.msra.mxu0 0.0
        %2892 = vmatprep.subr.mxu0 0.0
        %2893 = vmatpush1.xpose.msra.mxu0 0.0
        %2894 = vmatprep.subr.mxu0 0.0
        %2895 = vmatpush1.xpose.msra.mxu0 0.0
        %2896 = vmatprep.subr.mxu0 0.0
        %2897 = vmatpush1.xpose.msra.mxu0 0.0
        %2898 = vmatprep.subr.mxu0 0.0
        %2899 = vmatpush1.xpose.msra.mxu0 0.0
        %2900 = vmatprep.subr.mxu0 0.0
        %2901 = vmatpush1.xpose.msra.mxu0 0.0
        %2902 = vmatprep.subr.mxu0 0.0
        %2903 = vmatpush1.xpose.msra.mxu0 0.0
        %2904 = vmatprep.subr.mxu0 0.0
        %2905 = vmatpush1.xpose.msra.mxu0 0.0
        %2906 = vmatprep.subr.mxu0 0.0
        %2907 = vmatpush1.xpose.msra.mxu0 0.0
        %2908 = vmatprep.subr.mxu0 0.0
        %2909 = vmatpush1.xpose.msra.mxu0 0.0
        %2910 = vmatprep.subr.mxu0 0.0
        %2911 = vmatpush1.xpose.msra.mxu0 0.0
        %2912 = vmatprep.subr.mxu0 0.0
        %2913 = vmatpush1.xpose.msra.mxu0 0.0
        %2914 = vmatprep.subr.mxu0 0.0
        %2915 = vmatpush1.xpose.msra.mxu0 0.0
        %2916 = vmatprep.subr.mxu0 0.0
        %2917 = vmatpush1.xpose.msra.mxu0 0.0
        %2918 = vmatprep.subr.mxu0 0.0
        %2919 = vmatpush1.xpose.msra.mxu0 0.0
        %2920 = vmatprep.subr.mxu0 0.0
        %2921 = vmatpush1.xpose.msra.mxu0 0.0
        %2922 = vmatprep.subr.mxu0 0.0
        %2923 = vmatpush1.xpose.msra.mxu0 0.0
        %2924 = vmatprep.subr.mxu0 0.0
        %2925 = vmatpush1.xpose.msra.mxu0 0.0
        %2926 = vmatprep.subr.mxu0 0.0
        %2927 = vmatpush1.xpose.msra.mxu0 0.0
        %2928 = vmatprep.subr.mxu0 0.0
        %2929 = vmatpush1.xpose.msra.mxu0 0.0
        %2930 = vmatprep.subr.mxu0 0.0
        %2931 = vmatpush1.xpose.msra.mxu0 0.0
        %2932 = vmatprep.subr.mxu0 0.0
        %2933 = vmatpush1.xpose.msra.mxu0 0.0
        %2934 = vmatprep.subr.mxu0 0.0
        %2935 = vmatpush1.xpose.msra.mxu0 0.0
        %2936 = vmatprep.subr.mxu0 0.0
        %2937 = vmatpush1.xpose.msra.mxu0 0.0
        %2938 = vmatprep.mubr.f32.mxu0 0.0
        %2939 = vmatmul.mubr.f32.gmra.mrb[0].mxu0 %v2868
        %v2940 = vpop.f32.mrb[0].mxu0
        %v2941 = vadd.f32 0.0, %v2940
        %v2942 = vpop.f32.mrb[0].mxu0
        %2943 = vdwg.mxu0
        %v2944 = vsel %vm1440, %v2941, -inf
        %2945 = vmax.xlane.f32.xlu0 %v2944
        %v2946 = vpop.xlane.xlu0 %2945
        %v2947 = vsub.f32 %v2941, %v2946
        %v2948 = vmul.f32 %v2947, 1.442695
        %v2949 = vpow.pop %v2948
        %v2950 = vsel %vm1440, %v2949, 0.0
        %2951 = vadd.xlane.f32.xlu0 %v2950
        %v2952 = vpop.xlane.xlu0 %2951
        %2953 = vrot.lane.b32.xlu0 %v2341, 72
        %v2954 = vpop.permute.xlu0 %2953
        %2955 = vrot.lane.b32.xlu0 %v2342, 72
        %v2956 = vpop.permute.xlu0 %2955
        %v2960 = vsel %vm1440, %v2949, 0
        %2962 = vmatprep.subr.mxu0 0.0
        %2963 = vmatpush1.msra.mxu0 %v2954
        %2964 = vmatprep.subr.mxu0 0.0
        %2965 = vmatpush1.msra.mxu0 %v2956
        %2966 = vmatprep.subr.mxu0 0.0
        %2967 = vmatpush1.msra.mxu0 0.0
        %2968 = vmatprep.subr.mxu0 0.0
        %2969 = vmatpush1.msra.mxu0 0.0
        %2970 = vmatprep.subr.mxu0 0.0
        %2971 = vmatpush1.msra.mxu0 0.0
        %2972 = vmatprep.subr.mxu0 0.0
        %2973 = vmatpush1.msra.mxu0 0.0
        %2974 = vmatprep.subr.mxu0 0.0
        %2975 = vmatpush1.msra.mxu0 0.0
        %2976 = vmatprep.subr.mxu0 0.0
        %2977 = vmatpush1.msra.mxu0 0.0
        %2978 = vmatprep.subr.mxu0 0.0
        %2979 = vmatpush1.msra.mxu0 0.0
        %2980 = vmatprep.subr.mxu0 0.0
        %2981 = vmatpush1.msra.mxu0 0.0
        %2982 = vmatprep.subr.mxu0 0.0
        %2983 = vmatpush1.msra.mxu0 0.0
        %2984 = vmatprep.subr.mxu0 0.0
        %2985 = vmatpush1.msra.mxu0 0.0
        %2986 = vmatprep.subr.mxu0 0.0
        %2987 = vmatpush1.msra.mxu0 0.0
        %2988 = vmatprep.subr.mxu0 0.0
        %2989 = vmatpush1.msra.mxu0 0.0
        %2990 = vmatprep.subr.mxu0 0.0
        %2991 = vmatpush1.msra.mxu0 0.0
        %2992 = vmatprep.subr.mxu0 0.0
        %2993 = vmatpush1.msra.mxu0 0.0
        %2994 = vmatprep.subr.mxu0 0.0
        %2995 = vmatpush1.msra.mxu0 0.0
        %2996 = vmatprep.subr.mxu0 0.0
        %2997 = vmatpush1.msra.mxu0 0.0
        %2998 = vmatprep.subr.mxu0 0.0
        %2999 = vmatpush1.msra.mxu0 0.0
        %3000 = vmatprep.subr.mxu0 0.0
        %3001 = vmatpush1.msra.mxu0 0.0
        %3002 = vmatprep.subr.mxu0 0.0
        %3003 = vmatpush1.msra.mxu0 0.0
        %3004 = vmatprep.subr.mxu0 0.0
        %3005 = vmatpush1.msra.mxu0 0.0
        %3006 = vmatprep.subr.mxu0 0.0
        %3007 = vmatpush1.msra.mxu0 0.0
        %3008 = vmatprep.subr.mxu0 0.0
        %3009 = vmatpush1.msra.mxu0 0.0
        %3010 = vmatprep.subr.mxu0 0.0
        %3011 = vmatpush1.msra.mxu0 0.0
        %3012 = vmatprep.subr.mxu0 0.0
        %3013 = vmatpush1.msra.mxu0 0.0
        %3014 = vmatprep.subr.mxu0 0.0
        %3015 = vmatpush1.msra.mxu0 0.0
        %3016 = vmatprep.subr.mxu0 0.0
        %3017 = vmatpush1.msra.mxu0 0.0
        %3018 = vmatprep.subr.mxu0 0.0
        %3019 = vmatpush1.msra.mxu0 0.0
        %3020 = vmatprep.subr.mxu0 0.0
        %3021 = vmatpush1.msra.mxu0 0.0
        %3022 = vmatprep.subr.mxu0 0.0
        %3023 = vmatpush1.msra.mxu0 0.0
        %3024 = vmatprep.subr.mxu0 0.0
        %3025 = vmatpush1.msra.mxu0 0.0
        %3026 = vmatprep.mubr.f32.mxu0 0.0
        %3027 = vmatmul.mubr.f32.gmra.mrb[0].mxu0 %v2960
        %v3028 = vpop.f32.mrb[0].mxu0
        %v3029 = vadd.f32 0.0, %v3028
        %v3030 = vpop.f32.mrb[0].mxu0
        %3031 = vdwg.mxu0
        %v3032 = vrcp.pop %v2952
        %v3033 = vmul.f32 %v3029, %v3032
        %3035 = vrot.lane.b32.xlu0 %v2689, 8
        %v3036 = vpop.permute.xlu0 %3035
        %3039 = vrot.lane.b32.xlu0 %v2861, 16
        %v3040 = vpop.permute.xlu0 %3039
        %3043 = vrot.lane.b32.xlu0 %v3033, 24
        %v3044 = vpop.permute.xlu0 %3043
        %v3046 = vsel %vm1360, %v2517, %v3036
        %v3047 = vsel %vm1440, %v3046, %v3040
        %v3048 = vsel %vm2061, %v3047, %v3044
        %v3050 = vlaneseq
        %v3051 = vshrl.u32 %v3050, 7
        %v3052 = vsub.s32 0, %v3051
        %v3053 = vrot.slane %v2347, %v3052
        %v3056 = vsel %vm1278, %v3048, 0
        %3058 = vmatprep.subr.mxu0 0.0
        %3059 = vmatpush1.msra.mxu0 %v2343
        %3060 = vmatprep.subr.mxu0 0.0
        %3061 = vmatpush1.msra.mxu0 %v2344
        %3062 = vmatprep.subr.mxu0 0.0
        %3063 = vmatpush1.msra.mxu0 %v2345
        %3064 = vmatprep.subr.mxu0 0.0
        %3065 = vmatpush1.msra.mxu0 %v2346
        %3066 = vmatprep.subr.mxu0 0.0
        %3067 = vmatpush1.msra.mxu0 0.0
        %3068 = vmatprep.subr.mxu0 0.0
        %3069 = vmatpush1.msra.mxu0 0.0
        %3070 = vmatprep.subr.mxu0 0.0
        %3071 = vmatpush1.msra.mxu0 0.0
        %3072 = vmatprep.subr.mxu0 0.0
        %3073 = vmatpush1.msra.mxu0 0.0
        %3074 = vmatprep.subr.mxu0 0.0
        %3075 = vmatpush1.msra.mxu0 0.0
        %3076 = vmatprep.subr.mxu0 0.0
        %3077 = vmatpush1.msra.mxu0 0.0
        %3078 = vmatprep.subr.mxu0 0.0
        %3079 = vmatpush1.msra.mxu0 0.0
        %3080 = vmatprep.subr.mxu0 0.0
        %3081 = vmatpush1.msra.mxu0 0.0
        %3082 = vmatprep.subr.mxu0 0.0
        %3083 = vmatpush1.msra.mxu0 0.0
        %3084 = vmatprep.subr.mxu0 0.0
        %3085 = vmatpush1.msra.mxu0 0.0
        %3086 = vmatprep.subr.mxu0 0.0
        %3087 = vmatpush1.msra.mxu0 0.0
        %3088 = vmatprep.subr.mxu0 0.0
        %3089 = vmatpush1.msra.mxu0 0.0
        %3090 = vmatprep.subr.mxu0 0.0
        %3091 = vmatpush1.msra.mxu0 0.0
        %3092 = vmatprep.subr.mxu0 0.0
        %3093 = vmatpush1.msra.mxu0 0.0
        %3094 = vmatprep.subr.mxu0 0.0
        %3095 = vmatpush1.msra.mxu0 0.0
        %3096 = vmatprep.subr.mxu0 0.0
        %3097 = vmatpush1.msra.mxu0 0.0
        %3098 = vmatprep.subr.mxu0 0.0
        %3099 = vmatpush1.msra.mxu0 0.0
        %3100 = vmatprep.subr.mxu0 0.0
        %3101 = vmatpush1.msra.mxu0 0.0
        %3102 = vmatprep.subr.mxu0 0.0
        %3103 = vmatpush1.msra.mxu0 0.0
        %3104 = vmatprep.subr.mxu0 0.0
        %3105 = vmatpush1.msra.mxu0 0.0
        %3106 = vmatprep.subr.mxu0 0.0
        %3107 = vmatpush1.msra.mxu0 0.0
        %3108 = vmatprep.subr.mxu0 0.0
        %3109 = vmatpush1.msra.mxu0 0.0
        %3110 = vmatprep.subr.mxu0 0.0
        %3111 = vmatpush1.msra.mxu0 0.0
        %3112 = vmatprep.subr.mxu0 0.0
        %3113 = vmatpush1.msra.mxu0 0.0
        %3114 = vmatprep.subr.mxu0 0.0
        %3115 = vmatpush1.msra.mxu0 0.0
        %3116 = vmatprep.subr.mxu0 0.0
        %3117 = vmatpush1.msra.mxu0 0.0
        %3118 = vmatprep.subr.mxu0 0.0
        %3119 = vmatpush1.msra.mxu0 0.0
        %3120 = vmatprep.subr.mxu0 0.0
        %3121 = vmatpush1.msra.mxu0 0.0
        %3122 = vmatprep.mubr.f32.mxu0 0.0
        %3123 = vmatmul.mubr.f32.gmra.mrb[0].mxu0 %v3056
        %v3124 = vpop.f32.mrb[0].mxu0
        %v3125 = vadd.f32 %v3053, %v3124
        %v3126 = vpop.f32.mrb[0].mxu0
        %3127 = vdwg.mxu0
        %v3128 = vadd.f32 %v2172, %v3125
        %v3129 = vld [vmem:[%s39] sm:$0x1]
        %v3130 = vld [vmem:[%s41] sm:$0x1]
        %v3131 = vsel %vm1278, %v3128, 0.0
        %3132 = vadd.xlane.f32.xlu0 %v3131
        %v3133 = vpop.xlane.xlu0 %3132
        %v3134 = vmul.f32 %v3133, %v2148
        %v3135 = vsub.f32 %v3128, %v3134
        %v3136 = vmul.f32 %v3135, %v3135
        %v3137 = vsel %vm1278, %v3136, 0.0
        %3138 = vadd.xlane.f32.xlu0 %v3137
        %v3139 = vpop.xlane.xlu0 %3138
        %v3140 = vmul.f32 %v3139, %v2148
        %v3141 = vadd.f32 %v3140, 1e-05
        %v3142 = vrsqrt.pop %v3141
        %v3143 = vmul.f32 %v3135, %v3142
        %v3145 = vlaneseq
        %v3146 = vshrl.u32 %v3145, 7
        %v3147 = vsub.s32 0, %v3146
        %v3148 = vrot.slane %v3129, %v3147
        %v3150 = vmul.f32 %v3143, %v3148
        %v3152 = vlaneseq
        %v3153 = vshrl.u32 %v3152, 7
        %v3154 = vsub.s32 0, %v3153
        %v3155 = vrot.slane %v3130, %v3154
        %v3157 = vadd.f32 %v3150, %v3155
        %v3158 = vld [vmem:[%s43] sm:$0xff]
        %v3159 = vld [vmem:[%s43 + $0x8] sm:$0xff]
        %v3160 = vld [vmem:[%s43 + $0x10] sm:$0xff]
        %v3161 = vld [vmem:[%s43 + $0x18] sm:$0xff]
        %v3162 = vld [vmem:[#allocation4] sm:$0x1]
        %v3164 = vlaneseq
        %v3165 = vshrl.u32 %v3164, 7
        %v3166 = vsub.s32 0, %v3165
        %v3167 = vrot.slane %v3162, %v3166
        %v3170 = vsel %vm1278, %v3157, 0
        %3172 = vmatprep.subr.mxu0 0.0
        %3173 = vmatpush1.msra.mxu0 %v3158
        %3174 = vmatprep.subr.mxu0 0.0
        %3175 = vmatpush1.msra.mxu0 %v3159
        %3176 = vmatprep.subr.mxu0 0.0
        %3177 = vmatpush1.msra.mxu0 %v3160
        %3178 = vmatprep.subr.mxu0 0.0
        %3179 = vmatpush1.msra.mxu0 %v3161
        %3180 = vmatprep.subr.mxu0 0.0
        %3181 = vmatpush1.msra.mxu0 0.0
        %3182 = vmatprep.subr.mxu0 0.0
        %3183 = vmatpush1.msra.mxu0 0.0
        %3184 = vmatprep.subr.mxu0 0.0
        %3185 = vmatpush1.msra.mxu0 0.0
        %3186 = vmatprep.subr.mxu0 0.0
        %3187 = vmatpush1.msra.mxu0 0.0
        %3188 = vmatprep.subr.mxu0 0.0
        %3189 = vmatpush1.msra.mxu0 0.0
        %3190 = vmatprep.subr.mxu0 0.0
        %3191 = vmatpush1.msra.mxu0 0.0
        %3192 = vmatprep.subr.mxu0 0.0
        %3193 = vmatpush1.msra.mxu0 0.0
        %3194 = vmatprep.subr.mxu0 0.0
        %3195 = vmatpush1.msra.mxu0 0.0
        %3196 = vmatprep.subr.mxu0 0.0
        %3197 = vmatpush1.msra.mxu0 0.0
        %3198 = vmatprep.subr.mxu0 0.0
        %3199 = vmatpush1.msra.mxu0 0.0
        %3200 = vmatprep.subr.mxu0 0.0
        %3201 = vmatpush1.msra.mxu0 0.0
        %3202 = vmatprep.subr.mxu0 0.0
        %3203 = vmatpush1.msra.mxu0 0.0
        %3204 = vmatprep.subr.mxu0 0.0
        %3205 = vmatpush1.msra.mxu0 0.0
        %3206 = vmatprep.subr.mxu0 0.0
        %3207 = vmatpush1.msra.mxu0 0.0
        %3208 = vmatprep.subr.mxu0 0.0
        %3209 = vmatpush1.msra.mxu0 0.0
        %3210 = vmatprep.subr.mxu0 0.0
        %3211 = vmatpush1.msra.mxu0 0.0
        %3212 = vmatprep.subr.mxu0 0.0
        %3213 = vmatpush1.msra.mxu0 0.0
        %3214 = vmatprep.subr.mxu0 0.0
        %3215 = vmatpush1.msra.mxu0 0.0
        %3216 = vmatprep.subr.mxu0 0.0
        %3217 = vmatpush1.msra.mxu0 0.0
        %3218 = vmatprep.subr.mxu0 0.0
        %3219 = vmatpush1.msra.mxu0 0.0
        %3220 = vmatprep.subr.mxu0 0.0
        %3221 = vmatpush1.msra.mxu0 0.0
        %3222 = vmatprep.subr.mxu0 0.0
        %3223 = vmatpush1.msra.mxu0 0.0
        %3224 = vmatprep.subr.mxu0 0.0
        %3225 = vmatpush1.msra.mxu0 0.0
        %3226 = vmatprep.subr.mxu0 0.0
        %3227 = vmatpush1.msra.mxu0 0.0
        %3228 = vmatprep.subr.mxu0 0.0
        %3229 = vmatpush1.msra.mxu0 0.0
        %3230 = vmatprep.subr.mxu0 0.0
        %3231 = vmatpush1.msra.mxu0 0.0
        %3232 = vmatprep.subr.mxu0 0.0
        %3233 = vmatpush1.msra.mxu0 0.0
        %3234 = vmatprep.subr.mxu0 0.0
        %3235 = vmatpush1.msra.mxu0 0.0
        %3236 = vmatprep.mubr.f32.mxu0 0.0
        %3237 = vmatmul.mubr.f32.gmra.mrb[0].mxu0 %v3170
        %v3238 = vpop.f32.mrb[0].mxu0
        %v3239 = vadd.f32 %v3167, %v3238
        %v3240 = vpop.f32.mrb[0].mxu0
        %3241 = vdwg.mxu0
        %v3242 = vmul.f32 %v3239, 0.5
        %v3243 = vmul.f32 %v3239, 0.044715
        %v3244 = vmul.f32 %v3243, %v3239
        %v3245 = vmul.f32 %v3244, %v3239
        %v3246 = vadd.f32 %v3239, %v3245
        %v3247 = vmul.f32 %v3246, 0.7978846
        %v3248 = vtanh.pop %v3247
        %v3249 = vadd.f32 %v3248, 1.0
        %v3250 = vmul.f32 %v3242, %v3249
        %v3251 = vld [vmem:[%s47] sm:$0xff]
        %v3252 = vld [vmem:[%s47 + $0x8] sm:$0xff]
        %v3253 = vld [vmem:[%s47 + $0x10] sm:$0xff]
        %v3254 = vld [vmem:[%s47 + $0x18] sm:$0xff]
        %v3255 = vld [vmem:[%s47 + $0x20] sm:$0xff]
        %v3256 = vld [vmem:[%s47 + $0x28] sm:$0xff]
        %v3257 = vld [vmem:[%s47 + $0x30] sm:$0xff]
        %v3258 = vld [vmem:[%s47 + $0x38] sm:$0xff]
        %v3259 = vld [vmem:[#allocation7] sm:$0x1]
        %v3261 = vlaneseq
        %v3262 = vshrl.u32 %v3261, 7
        %v3263 = vsub.s32 0, %v3262
        %v3264 = vrot.slane %v3259, %v3263
        %vm3266 = vcmask 523264
        %v3268 = vsel %vm3266, %v3250, 0
        %3270 = vmatprep.subr.mxu0 0.0
        %3271 = vmatpush1.msra.mxu0 %v3251
        %3272 = vmatprep.subr.mxu0 0.0
        %3273 = vmatpush1.msra.mxu0 %v3252
        %3274 = vmatprep.subr.mxu0 0.0
        %3275 = vmatpush1.msra.mxu0 %v3253
        %3276 = vmatprep.subr.mxu0 0.0
        %3277 = vmatpush1.msra.mxu0 %v3254
        %3278 = vmatprep.subr.mxu0 0.0
        %3279 = vmatpush1.msra.mxu0 %v3255
        %3280 = vmatprep.subr.mxu0 0.0
        %3281 = vmatpush1.msra.mxu0 %v3256
        %3282 = vmatprep.subr.mxu0 0.0
        %3283 = vmatpush1.msra.mxu0 %v3257
        %3284 = vmatprep.subr.mxu0 0.0
        %3285 = vmatpush1.msra.mxu0 %v3258
        %3286 = vmatprep.subr.mxu0 0.0
        %3287 = vmatpush1.msra.mxu0 0.0
        %3288 = vmatprep.subr.mxu0 0.0
        %3289 = vmatpush1.msra.mxu0 0.0
        %3290 = vmatprep.subr.mxu0 0.0
        %3291 = vmatpush1.msra.mxu0 0.0
        %3292 = vmatprep.subr.mxu0 0.0
        %3293 = vmatpush1.msra.mxu0 0.0
        %3294 = vmatprep.subr.mxu0 0.0
        %3295 = vmatpush1.msra.mxu0 0.0
        %3296 = vmatprep.subr.mxu0 0.0
        %3297 = vmatpush1.msra.mxu0 0.0
        %3298 = vmatprep.subr.mxu0 0.0
        %3299 = vmatpush1.msra.mxu0 0.0
        %3300 = vmatprep.subr.mxu0 0.0
        %3301 = vmatpush1.msra.mxu0 0.0
        %3302 = vmatprep.subr.mxu0 0.0
        %3303 = vmatpush1.msra.mxu0 0.0
        %3304 = vmatprep.subr.mxu0 0.0
        %3305 = vmatpush1.msra.mxu0 0.0
        %3306 = vmatprep.subr.mxu0 0.0
        %3307 = vmatpush1.msra.mxu0 0.0
        %3308 = vmatprep.subr.mxu0 0.0
        %3309 = vmatpush1.msra.mxu0 0.0
        %3310 = vmatprep.subr.mxu0 0.0
        %3311 = vmatpush1.msra.mxu0 0.0
        %3312 = vmatprep.subr.mxu0 0.0
        %3313 = vmatpush1.msra.mxu0 0.0
        %3314 = vmatprep.subr.mxu0 0.0
        %3315 = vmatpush1.msra.mxu0 0.0
        %3316 = vmatprep.subr.mxu0 0.0
        %3317 = vmatpush1.msra.mxu0 0.0
        %3318 = vmatprep.subr.mxu0 0.0
        %3319 = vmatpush1.msra.mxu0 0.0
        %3320 = vmatprep.subr.mxu0 0.0
        %3321 = vmatpush1.msra.mxu0 0.0
        %3322 = vmatprep.subr.mxu0 0.0
        %3323 = vmatpush1.msra.mxu0 0.0
        %3324 = vmatprep.subr.mxu0 0.0
        %3325 = vmatpush1.msra.mxu0 0.0
        %3326 = vmatprep.subr.mxu0 0.0
        %3327 = vmatpush1.msra.mxu0 0.0
        %3328 = vmatprep.subr.mxu0 0.0
        %3329 = vmatpush1.msra.mxu0 0.0
        %3330 = vmatprep.subr.mxu0 0.0
        %3331 = vmatpush1.msra.mxu0 0.0
        %3332 = vmatprep.subr.mxu0 0.0
        %3333 = vmatpush1.msra.mxu0 0.0
        %3334 = vmatprep.mubr.f32.mxu0 0.0
        %3335 = vmatmul.mubr.f32.gmra.mrb[0].mxu0 %v3268
        %v3336 = vpop.f32.mrb[0].mxu0
        %v3337 = vadd.f32 %v3264, %v3336
        %v3338 = vpop.f32.mrb[0].mxu0
        %3339 = vdwg.mxu0
        %v3340 = vadd.f32 %v3157, %v3337
        %v3341 = vld [vmem:[#allocation9] sm:$0x1]
        %v3342 = vld [vmem:[#allocation10] sm:$0x1]
        %v3343 = vsel %vm1278, %v3340, 0.0
        %3344 = vadd.xlane.f32.xlu0 %v3343
        %v3345 = vpop.xlane.xlu0 %3344
        %v3346 = vmul.f32 %v3345, %v2148
        %v3347 = vsub.f32 %v3340, %v3346
        %v3348 = vmul.f32 %v3347, %v3347
        %v3349 = vsel %vm1278, %v3348, 0.0
        %3350 = vadd.xlane.f32.xlu0 %v3349
        %v3351 = vpop.xlane.xlu0 %3350
        %v3352 = vmul.f32 %v3351, %v2148
        %v3353 = vadd.f32 %v3352, 1e-05
        %v3354 = vrsqrt.pop %v3353
        %v3355 = vmul.f32 %v3347, %v3354
        %v3357 = vlaneseq
        %v3358 = vshrl.u32 %v3357, 7
        %v3359 = vsub.s32 0, %v3358
        %v3360 = vrot.slane %v3341, %v3359
        %v3362 = vmul.f32 %v3355, %v3360
        %v3364 = vlaneseq
        %v3365 = vshrl.u32 %v3364, 7
        %v3366 = vsub.s32 0, %v3365
        %v3367 = vrot.slane %v3342, %v3366
        %v3369 = vadd.f32 %v3362, %v3367
        %v3370 = vld [vmem:[%s55] sm:$0x1]
        %v3371 = vld [vmem:[%s57] sm:$0x1]
        %v3372 = vsel %vm1278, %v3369, 0.0
        %3373 = vadd.xlane.f32.xlu0 %v3372
        %v3374 = vpop.xlane.xlu0 %3373
        %v3375 = vmul.f32 %v3374, %v2148
        %v3376 = vsub.f32 %v3369, %v3375
        %v3377 = vmul.f32 %v3376, %v3376
        %v3378 = vsel %vm1278, %v3377, 0.0
        %3379 = vadd.xlane.f32.xlu0 %v3378
        %v3380 = vpop.xlane.xlu0 %3379
        %v3381 = vmul.f32 %v3380, %v2148
        %v3382 = vadd.f32 %v3381, 1e-05
        %v3383 = vrsqrt.pop %v3382
        %v3384 = vmul.f32 %v3376, %v3383
        %v3386 = vlaneseq
        %v3387 = vshrl.u32 %v3386, 7
        %v3388 = vsub.s32 0, %v3387
        %v3389 = vrot.slane %v3370, %v3388
        %v3391 = vmul.f32 %v3384, %v3389
        %v3393 = vlaneseq
        %v3394 = vshrl.u32 %v3393, 7
        %v3395 = vsub.s32 0, %v3394
        %v3396 = vrot.slane %v3371, %v3395
        %v3398 = vadd.f32 %v3391, %v3396
        %3399 = vst.msk [vmem:[%s1029] sm:$0xff] %vm1278, %v3398
        %s3400 = sand.u32 %s727, 1
        %s3401 = scalar_lea.sflag [#allocation6], %s3400
        %s3402 = sand.u32 %s727, 1
        %s3403 = smul.addr %s3402, 8
        %s3404 = scalar_lea.vmem [#allocation12], %s3403
        %p3405 = scmp.lt.s32.totalorder %s83, 1
        %s3406 = scalar_select %p3405, %s83, 1
        %p3407 = scmp.lt.s32.totalorder %s84, 1
        %s3408 = scalar_select %p3407, %s84, 1
        %s3409 = smul.addr %s3406, 2
        %s3410 = sadd.s32 %s3408, %s3409
        %s3411 = smul.addr %s3410, 8
        %s3412 = scalar_lea.vmem %s61, %s3411
        // Predicated region
        $region157: #{transformer3d_forward.3} parent=135 // pred_check
          %p3413 = pneg %p737
        $region158: #{transformer3d_forward.3} parent=135 // pred_check_branch
          %3415 = sbr.rel (%p3413) target = $region160
        $region159: #{transformer3d_forward.3} parent=135 // pred_region
          %s3417 = ssub.s32 128, 128
          %3418 = vsyncadd %s3401, %s3417
          %s3419 = smul.addr %s83, 2
          %s3420 = sadd.s32 %s84, %s3419
          %s3421 = smul.addr %s3420, 128
          %s3422 = scalar_lea.hbm %s59, %s3421
          %s3424 = sshll.u32 %s3404, 4
          %s3425 = int_to_ptr.vmem [resolvable:$true] %s3424
          %3427 = dma.vmem_to_hbm [thread:$0]  %s3425, 128, %s3422, %s3401
        $region160: #{transformer3d_forward.3} parent=135 // pred_fallthru
          _
        // Predicated region
        $region161: #{transformer3d_forward.3} parent=135 // pred_check
          %p3428 = pneg %p765
        $region162: #{transformer3d_forward.3} parent=135 // pred_check_branch
          %3430 = sbr.rel (%p3428) target = $region164
        $region163: #{transformer3d_forward.3} parent=135 // pred_region
          _
        $region164: #{transformer3d_forward.3} parent=135 // pred_fallthru
          _
      $region136: #{transformer3d_forward.3} parent=5 // pred_fallthru
        _
      %p3431 = scmp.le.s32.totalorder 2, %s74
      // Predicated region
      $region165: #{transformer3d_forward.3} parent=5 // pred_check
        %p3432 = pneg %p3431
      $region166: #{transformer3d_forward.3} parent=5 // pred_check_branch
        %3434 = sbr.rel (%p3432) target = $region168
      $region167: #{transformer3d_forward.3} parent=5 // pred_region
        %s3435 = ssub.s32 %s74, 2
        // Predicated region
        $region169: #{transformer3d_forward.3} parent=167 // pred_check
          %p3436 = pneg %p743
        $region170: #{transformer3d_forward.3} parent=167 // pred_check_branch
          %3438 = sbr.rel (%p3436) target = $region172
        $region171: #{transformer3d_forward.3} parent=167 // pred_region
          %s3439 = sand.u32 %s728, 1
          %s3440 = scalar_lea.sflag [#allocation6], %s3439
          %s3441 = sand.u32 %s728, 1
          %s3442 = smul.addr %s3441, 8
          %s3443 = scalar_lea.vmem [#allocation12], %s3442
          %3444 = dma.done %s3440, 128
        $region172: #{transformer3d_forward.3} parent=167 // pred_fallthru
          _
        // Predicated region
        $region173: #{transformer3d_forward.3} parent=167 // pred_check
          %p3445 = pneg %p771
        $region174: #{transformer3d_forward.3} parent=167 // pred_check_branch
          %3447 = sbr.rel (%p3445) target = $region176
        $region175: #{transformer3d_forward.3} parent=167 // pred_region
          %p3448 = scmp.lt.s32.totalorder %s85, 1
          %s3449 = scalar_select %p3448, %s85, 1
          %p3450 = scmp.lt.s32.totalorder %s86, 1
          %s3451 = scalar_select %p3450, %s86, 1
          %s3452 = smul.addr %s3449, 2
          %s3453 = sadd.s32 %s3451, %s3452
          %s3454 = smul.addr %s3453, 8
          %s3455 = scalar_lea.vmem %s61, %s3454
        $region176: #{transformer3d_forward.3} parent=167 // pred_fallthru
          _
      $region168: #{transformer3d_forward.3} parent=5 // pred_fallthru
        _
    $region6: #{transformer3d_forward.3} parent=1 // loop_footer
      %s78 = sadd.s32 1, %s74
    $region7: #{transformer3d_forward.3} parent=1 // loop_footer_branch
      %73 = sbr.rel target = $region3
    $region8: #{transformer3d_forward.3} parent=1 // loop_exit
      _
    %3456 = vsyncpa [#allocation5], 1
    %s3457 = scalar_lea.sflag [#allocation5], 1
    %3458 = vsyncpa %s3457, 1
    %3459 = vsyncpa [#allocation8], 1
    %3460 = vsyncpa [#allocation11], 1
    %3461 = vsyncpa [#allocation6], 1
    %s3462 = scalar_lea.sflag [#allocation6], 1
    %3463 = vsyncpa %s3462, 1

</llo_original>
